<compile_context>
chip_gen: v7x
topology: tpu7x:2x2x1
jax: 0.10.0
libtpu: 0.0.40
codegen_flags: <defaults>
</compile_context>

<pallas_src>
import math

import jax
import jax.numpy as jnp
from jax import lax
from jax.experimental import pallas as pl
from jax.experimental.pallas import tpu as pltpu

# ----------------------------- model sizes (small) -----------------------------
IMG = 16                      # image H = W
PATCH = 4                     # 4x4 = 16 patches (+1 cls = 17 tokens)
IN_CH = 3
NPATCH = (IMG // PATCH) ** 2  # 16
S_ENC = NPATCH + 1            # 17 real encoder tokens
S_ENC_PAD = 32                # padded to a sublane/tile friendly row count
PATCH_DIM = IN_CH * PATCH * PATCH   # 48
D_ENC = 64                    # stand-in for ViT-Large 1024
ENC_HEADS = 4
ENC_DEPTH = 2
ENC_MLP = 4 * D_ENC
D_DEC = 32                    # stand-in for 768
DEC_HEADS = 4
DEC_DEPTH = 2
DEC_FFN = 2 * D_DEC
VOCAB = 64
VOCAB_PAD = 128               # lane-dense padded vocab for the output store
MAX_LEN = 8

NEG_INF = -1e30               # large finite mask value (NaN-safe, stays in f32)

# ----------------------------- in-kernel helpers (traced) ----------------------


def _layernorm(x, g, b, eps):
    xf = x.astype(jnp.float32)
    mu = jnp.mean(xf, axis=-1, keepdims=True)
    var = jnp.mean(jnp.square(xf - mu), axis=-1, keepdims=True)
    return (xf - mu) * lax.rsqrt(var + eps) * g + b


def _softmax_rows(s):
    m = jnp.max(s, axis=-1, keepdims=True)
    p = jnp.exp(s - m)
    denom = jnp.sum(p, axis=-1, keepdims=True)
    return p * pl.reciprocal(denom, approx=True)


def _attention(q, k, v, bias, num_heads, scale):
    """Per-batch multi-head attention.

    q: [Sq, D] f32, k/v: [Sk, D] f32 (heads concatenated along lanes),
    bias: [Sq, Sk] additive mask (0 = attend, NEG_INF = blocked).
    Returns the head-concatenated context [Sq, D] so the caller merges heads
    with a single Wo matmul.  Matmul operands cast to bf16, accumulation f32,
    softmax math f32.
    """
    d = q.shape[-1]
    dh = d // num_heads
    outs = []
    for h in range(num_heads):
        sl = slice(h * dh, (h + 1) * dh)
        s = lax.dot_general(q[:, sl].astype(jnp.bfloat16),
                            k[:, sl].astype(jnp.bfloat16),
                            (((1,), (1,)), ((), ())),
                            preferred_element_type=jnp.float32)
        p = _softmax_rows(s * scale + bias)
        outs.append(jnp.dot(p.astype(jnp.bfloat16), v[:, sl].astype(jnp.bfloat16),
                            preferred_element_type=jnp.float32))
    return jnp.concatenate(outs, axis=-1)


# ----------------------------- encoder kernel -----------------------------------
# grid = (B, ENC_DEPTH): batch "parallel", layer "arbitrary".
# Scratch x_ref holds the residual stream for the current batch element.


def _encoder_kernel(patches_ref, enc_add_ref, patch_w_ref,
                    ln1_g, ln1_b, wqkv, bqkv, wo, bo,
                    ln2_g, ln2_b, fc1_w, fc1_b, fc2_w, fc2_b,
                    norm_g, norm_b, head_w, head_b,
                    mem_ref, x_ref):
    l = pl.program_id(1)

    # key-padding mask: padded token rows (>= S_ENC) must never be attended to.
    col = lax.broadcasted_iota(jnp.int32, (S_ENC_PAD, S_ENC_PAD), 1)
    bias = jnp.where(col < S_ENC, 0.0, NEG_INF).astype(jnp.float32)

    @pl.when(l == 0)
    def _():
        # patch embedding + (cls token | patch bias) + positional embedding
        x_ref[...] = (jnp.dot(patches_ref[0], patch_w_ref[...],
                              preferred_element_type=jnp.float32)
                      + enc_add_ref[...])

    x = x_ref[...]
    scale = 1.0 / math.sqrt(D_ENC // ENC_HEADS)

    # --- self attention (pre-norm) ---
    h = _layernorm(x, ln1_g[0], ln1_b[0], 1e-6)
    qkv = jnp.dot(h.astype(jnp.bfloat16), wqkv[0],
                  preferred_element_type=jnp.float32) + bqkv[0]
    q, k, v = qkv[:, :D_ENC], qkv[:, D_ENC:2 * D_ENC], qkv[:, 2 * D_ENC:]
    o = _attention(q, k, v, bias, ENC_HEADS, scale)
    x = x + jnp.dot(o.astype(jnp.bfloat16), wo[0],
                    preferred_element_type=jnp.float32) + bo[0]

    # --- MLP ---
    h = _layernorm(x, ln2_g[0], ln2_b[0], 1e-6)
    h = jnp.dot(h.astype(jnp.bfloat16), fc1_w[0],
                preferred_element_type=jnp.float32) + fc1_b[0]
    # TODO(synk): timm ViT default is exact (erf) GELU; tanh approximation used here.
    h = jax.nn.gelu(h, approximate=True)
    x = x + jnp.dot(h.astype(jnp.bfloat16), fc2_w[0],
                    preferred_element_type=jnp.float32) + fc2_b[0]

    x_ref[...] = x

    @pl.when(l == ENC_DEPTH - 1)
    def _():
        y = _layernorm(x, norm_g[...], norm_b[...], 1e-6)
        mem_ref[0] = (jnp.dot(y.astype(jnp.bfloat16), head_w[...],
                              preferred_element_type=jnp.float32)
                      + head_b[...]).astype(mem_ref.dtype)


# ----------------------------- decoder kernel -----------------------------------
# grid = (B, DEC_DEPTH): batch "parallel", layer "arbitrary".


def _decoder_kernel(x0_ref, mem_ref,
                    ln1_g, ln1_b, sa_wqkv, sa_bqkv, sa_wo, sa_bo,
                    ln2_g, ln2_b, ca_wq, ca_bq, ca_wkv, ca_bkv, ca_wo, ca_bo,
                    ln3_g, ln3_b, fc1_w, fc1_b, fc2_w, fc2_b,
                    norm_g, norm_b, out_w, out_b,
                    logits_ref, x_ref):
    l = pl.program_id(1)
    T = x_ref.shape[0]

    @pl.when(l == 0)
    def _():
        x_ref[...] = x0_ref[0]

    x = x_ref[...]
    mem = mem_ref[0]
    scale = 1.0 / math.sqrt(D_DEC // DEC_HEADS)

    # causal mask for self-attention (built in-kernel, no O(B^2 S^2) bias input)
    row = lax.broadcasted_iota(jnp.int32, (T, T), 0)
    col = lax.broadcasted_iota(jnp.int32, (T, T), 1)
    causal_bias = jnp.where(col <= row, 0.0, NEG_INF).astype(jnp.float32)
    # cross-attention key-padding mask over padded encoder memory rows
    mcol = lax.broadcasted_iota(jnp.int32, (T, S_ENC_PAD), 1)
    cross_bias = jnp.where(mcol < S_ENC, 0.0, NEG_INF).astype(jnp.float32)

    # --- causal self attention ---
    h = _layernorm(x, ln1_g[0], ln1_b[0], 1e-5)
    qkv = jnp.dot(h.astype(jnp.bfloat16), sa_wqkv[0],
                  preferred_element_type=jnp.float32) + sa_bqkv[0]
    q, k, v = qkv[:, :D_DEC], qkv[:, D_DEC:2 * D_DEC], qkv[:, 2 * D_DEC:]
    o = _attention(q, k, v, causal_bias, DEC_HEADS, scale)
    x = x + jnp.dot(o.astype(jnp.bfloat16), sa_wo[0],
                    preferred_element_type=jnp.float32) + sa_bo[0]

    # --- cross attention over encoder memory ---
    h = _layernorm(x, ln2_g[0], ln2_b[0], 1e-5)
    q = jnp.dot(h.astype(jnp.bfloat16), ca_wq[0],
                preferred_element_type=jnp.float32) + ca_bq[0]
    kv = jnp.dot(mem.astype(jnp.bfloat16), ca_wkv[0],
                 preferred_element_type=jnp.float32) + ca_bkv[0]
    k, v = kv[:, :D_DEC], kv[:, D_DEC:]
    o = _attention(q, k, v, cross_bias, DEC_HEADS, scale)
    x = x + jnp.dot(o.astype(jnp.bfloat16), ca_wo[0],
                    preferred_element_type=jnp.float32) + ca_bo[0]

    # --- FFN (ReLU, nn default) ---
    h = _layernorm(x, ln3_g[0], ln3_b[0], 1e-5)
    h = jnp.dot(h.astype(jnp.bfloat16), fc1_w[0],
                preferred_element_type=jnp.float32) + fc1_b[0]
    h = jnp.maximum(h, 0.0)
    x = x + jnp.dot(h.astype(jnp.bfloat16), fc2_w[0],
                    preferred_element_type=jnp.float32) + fc2_b[0]

    x_ref[...] = x

    @pl.when(l == DEC_DEPTH - 1)
    def _():
        y = _layernorm(x, norm_g[...], norm_b[...], 1e-5)
        logits_ref[0] = (jnp.dot(y.astype(jnp.bfloat16), out_w[...],
                                 preferred_element_type=jnp.float32)
                         + out_b[...]).astype(logits_ref.dtype)


# ----------------------------- wrapper (plain JAX, tiny one-shot prep) ----------


def img_to_patches(img, patch):
    """NCHW -> [B, num_patches, C*ph*pw] (conv-weight flatten order C,ph,pw)."""
    B, C, H, W = img.shape
    x = img.reshape(B, C, H // patch, patch, W // patch, patch)
    x = x.transpose(0, 2, 4, 1, 3, 5)
    return x.reshape(B, (H // patch) * (W // patch), C * patch * patch)


def _stacked_spec(shape):
    """Per-layer stacked weight [L, ...]: block the leading dim by the layer axis."""
    nz = (0,) * (len(shape) - 1)
    return pl.BlockSpec((1,) + tuple(shape[1:]), lambda b, l, nz=nz: (l,) + nz)


def _shared_spec(shape):
    """Whole-array input, same block for every grid step."""
    nz = (0,) * len(shape)
    return pl.BlockSpec(tuple(shape), lambda b, l, nz=nz: nz)


def _batched_spec(shape):
    """Per-batch input [B, ...]: block the leading dim by the batch axis."""
    nz = (0,) * (len(shape) - 1)
    return pl.BlockSpec((1,) + tuple(shape[1:]), lambda b, l, nz=nz: (b,) + nz)


def transformer_forward(img, caption_encoded, params):
    B = img.shape[0]
    T = caption_encoded.shape[1]
    enc_p, dec_p = params["encoder"], params["decoder"]
    bf = jnp.bfloat16

    # ---- tiny wrapper-side layout prep (a few KB, once per call) ----
    patches = img_to_patches(img, PATCH)                                  # [B,16,48]
    patches_pad = jnp.zeros((B, S_ENC_PAD, PATCH_DIM), jnp.float32)
    patches_pad = patches_pad.at[:, 1:S_ENC, :].set(patches).astype(bf)   # cls/pad rows = 0

    # per-token additive term: pos-embed + (cls token at row 0, patch bias rows 1..16)
    add = jnp.zeros((S_ENC_PAD, D_ENC), jnp.float32)
    add = add.at[:S_ENC].set(
        enc_p["pos"] + jnp.concatenate(
            [enc_p["cls"],
             jnp.broadcast_to(enc_p["patch_b"], (NPATCH, D_ENC))], axis=0))

    # token embedding gather + positional embedding (no one-hot matmul in kernel)
    ids = caption_encoded.astype(jnp.int32)
    x0_dec = jnp.take(dec_p["tok_emb"], ids, axis=0) + dec_p["pos_emb"][:T][None]

    blk = enc_p["blocks"]
    lyr = dec_p["layers"]

    cparams = pltpu.CompilerParams(
        dimension_semantics=("parallel", "arbitrary"),
        vmem_limit_bytes=32 * 1024 * 1024)

    # ------------------------- encoder (ViT + Linear 1024->768 stand-in) --------
    enc_inputs = [
        patches_pad, add, enc_p["patch_w"].astype(bf),
        blk["ln1_g"], blk["ln1_b"],
        blk["wqkv"].astype(bf), blk["bqkv"],
        blk["wo"].astype(bf), blk["bo"],
        blk["ln2_g"], blk["ln2_b"],
        blk["fc1_w"].astype(bf), blk["fc1_b"],
        blk["fc2_w"].astype(bf), blk["fc2_b"],
        enc_p["norm_g"], enc_p["norm_b"],
        enc_p["head_w"].astype(bf), enc_p["head_b"],
    ]
    enc_specs = (
        [_batched_spec(enc_inputs[0].shape),
         _shared_spec(enc_inputs[1].shape),
         _shared_spec(enc_inputs[2].shape)]
        + [_stacked_spec(x.shape) for x in enc_inputs[3:15]]
        + [_shared_spec(x.shape) for x in enc_inputs[15:]]
    )
    mem = pl.pallas_call(
        _encoder_kernel,
        out_shape=jax.ShapeDtypeStruct((B, S_ENC_PAD, D_DEC), jnp.float32),
        grid=(B, ENC_DEPTH),
        in_specs=enc_specs,
        out_specs=pl.BlockSpec((1, S_ENC_PAD, D_DEC), lambda b, l: (b, 0, 0)),
        scratch_shapes=[pltpu.VMEM((S_ENC_PAD, D_ENC), jnp.float32)],
        compiler_params=cparams,
    )(*enc_inputs)

    # ------------------------- decoder -----------------------------------------
    out_w_pad = (jnp.zeros((D_DEC, VOCAB_PAD), jnp.float32)
                 .at[:, :VOCAB].set(dec_p["out_w"]).astype(bf))
    out_b_pad = (jnp.zeros((1, VOCAB_PAD), jnp.float32)
                 .at[:, :VOCAB].set(dec_p["out_b"]))

    dec_inputs = [
        x0_dec, mem,
        lyr["ln1_g"], lyr["ln1_b"],
        lyr["sa_wqkv"].astype(bf), lyr["sa_bqkv"],
        lyr["sa_wo"].astype(bf), lyr["sa_bo"],
        lyr["ln2_g"], lyr["ln2_b"],
        lyr["ca_wq"].astype(bf), lyr["ca_bq"],
        lyr["ca_wkv"].astype(bf), lyr["ca_bkv"],
        lyr["ca_wo"].astype(bf), lyr["ca_bo"],
        lyr["ln3_g"], lyr["ln3_b"],
        lyr["fc1_w"].astype(bf), lyr["fc1_b"],
        lyr["fc2_w"].astype(bf), lyr["fc2_b"],
        dec_p["norm_g"], dec_p["norm_b"],
        out_w_pad, out_b_pad,
    ]
    dec_specs = (
        [_batched_spec(dec_inputs[0].shape),
         _batched_spec(dec_inputs[1].shape)]
        + [_stacked_spec(x.shape) for x in dec_inputs[2:22]]
        + [_shared_spec(x.shape) for x in dec_inputs[22:]]
    )
    logits_pad = pl.pallas_call(
        _decoder_kernel,
        out_shape=jax.ShapeDtypeStruct((B, T, VOCAB_PAD), jnp.float32),
        grid=(B, DEC_DEPTH),
        in_specs=dec_specs,
        out_specs=pl.BlockSpec((1, T, VOCAB_PAD), lambda b, l: (b, 0, 0)),
        scratch_shapes=[pltpu.VMEM((T, D_DEC), jnp.float32)],
        compiler_params=cparams,
    )(*dec_inputs)

    return logits_pad[:, :, :VOCAB]


# ----------------------------- deterministic params -----------------------------


def make_params(key):
    keys = iter(jax.random.split(key, 128))

    def nrm(shape, scale=0.02):
        return (scale * jax.random.normal(next(keys), shape)).astype(jnp.float32)

    def zeros(shape):
        return jnp.zeros(shape, jnp.float32)

    def ones(shape):
        return jnp.ones(shape, jnp.float32)

    L = ENC_DEPTH
    enc_blocks = {
        "ln1_g": ones((L, 1, D_ENC)), "ln1_b": zeros((L, 1, D_ENC)),
        "wqkv": nrm((L, D_ENC, 3 * D_ENC)), "bqkv": zeros((L, 1, 3 * D_ENC)),
        "wo": nrm((L, D_ENC, D_ENC)), "bo": zeros((L, 1, D_ENC)),
        "ln2_g": ones((L, 1, D_ENC)), "ln2_b": zeros((L, 1, D_ENC)),
        "fc1_w": nrm((L, D_ENC, ENC_MLP)), "fc1_b": zeros((L, 1, ENC_MLP)),
        "fc2_w": nrm((L, ENC_MLP, D_ENC)), "fc2_b": zeros((L, 1, D_ENC)),
    }
    encoder = {
        "patch_w": nrm((PATCH_DIM, D_ENC)), "patch_b": zeros((1, D_ENC)),
        "cls": nrm((1, D_ENC)), "pos": nrm((S_ENC, D_ENC)),
        "blocks": enc_blocks,
        "norm_g": ones((1, D_ENC)), "norm_b": zeros((1, D_ENC)),
        "head_w": nrm((D_ENC, D_DEC)), "head_b": zeros((1, D_DEC)),
    }

    Ld = DEC_DEPTH
    dec_layers = {
        "ln1_g": ones((Ld, 1, D_DEC)), "ln1_b": zeros((Ld, 1, D_DEC)),
        "sa_wqkv": nrm((Ld, D_DEC, 3 * D_DEC)), "sa_bqkv": zeros((Ld, 1, 3 * D_DEC)),
        "sa_wo": nrm((Ld, D_DEC, D_DEC)), "sa_bo": zeros((Ld, 1, D_DEC)),
        "ln2_g": ones((Ld, 1, D_DEC)), "ln2_b": zeros((Ld, 1, D_DEC)),
        "ca_wq": nrm((Ld, D_DEC, D_DEC)), "ca_bq": zeros((Ld, 1, D_DEC)),
        "ca_wkv": nrm((Ld, D_DEC, 2 * D_DEC)), "ca_bkv": zeros((Ld, 1, 2 * D_DEC)),
        "ca_wo": nrm((Ld, D_DEC, D_DEC)), "ca_bo": zeros((Ld, 1, D_DEC)),
        "ln3_g": ones((Ld, 1, D_DEC)), "ln3_b": zeros((Ld, 1, D_DEC)),
        "fc1_w": nrm((Ld, D_DEC, DEC_FFN)), "fc1_b": zeros((Ld, 1, DEC_FFN)),
        "fc2_w": nrm((Ld, DEC_FFN, D_DEC)), "fc2_b": zeros((Ld, 1, D_DEC)),
    }
    decoder = {
        "tok_emb": nrm((VOCAB, D_DEC)),
        "pos_emb": nrm((MAX_LEN, D_DEC)),
        "layers": dec_layers,
        "norm_g": ones((1, D_DEC)), "norm_b": zeros((1, D_DEC)),
        "out_w": nrm((D_DEC, VOCAB)), "out_b": zeros((1, VOCAB)),
    }
    return {"encoder": encoder, "decoder": decoder}


# ----------------------------------- main ---------------------------------------

if __name__ == "__main__":
    key = jax.random.PRNGKey(0)
    k_params, k_img, k_cap = jax.random.split(key, 3)

    params = make_params(k_params)
    img = jax.random.normal(k_img, (2, IN_CH, IMG, IMG), jnp.float32)        # NCHW
    caption_encoded = jax.random.randint(k_cap, (2, MAX_LEN), 0, VOCAB, jnp.int32)

    fwd = jax.jit(transformer_forward)
    logits = fwd(img, caption_encoded, params)
    jax.block_until_ready(logits)

    assert logits.shape == (2, MAX_LEN, VOCAB), logits.shape
    assert bool(jnp.all(jnp.isfinite(logits)))
    print("KERNEL_OK")
</pallas_src>

<mosaic_0001>
module attributes {stable_mosaic.version = 11 : i64} {
  func.func @_encoder_kernel(%arg0: i32, %arg1: i32, %arg2: memref<1x32x48xbf16, #tpu.memory_space<vmem>>, %arg3: memref<32x64xf32, #tpu.memory_space<vmem>>, %arg4: memref<48x64xbf16, #tpu.memory_space<vmem>>, %arg5: memref<1x1x64xf32, #tpu.memory_space<vmem>>, %arg6: memref<1x1x64xf32, #tpu.memory_space<vmem>>, %arg7: memref<1x64x192xbf16, #tpu.memory_space<vmem>>, %arg8: memref<1x1x192xf32, #tpu.memory_space<vmem>>, %arg9: memref<1x64x64xbf16, #tpu.memory_space<vmem>>, %arg10: memref<1x1x64xf32, #tpu.memory_space<vmem>>, %arg11: memref<1x1x64xf32, #tpu.memory_space<vmem>>, %arg12: memref<1x1x64xf32, #tpu.memory_space<vmem>>, %arg13: memref<1x64x256xbf16, #tpu.memory_space<vmem>>, %arg14: memref<1x1x256xf32, #tpu.memory_space<vmem>>, %arg15: memref<1x256x64xbf16, #tpu.memory_space<vmem>>, %arg16: memref<1x1x64xf32, #tpu.memory_space<vmem>>, %arg17: memref<1x64xf32, #tpu.memory_space<vmem>>, %arg18: memref<1x64xf32, #tpu.memory_space<vmem>>, %arg19: memref<64x32xbf16, #tpu.memory_space<vmem>>, %arg20: memref<1x32xf32, #tpu.memory_space<vmem>>, %arg21: memref<1x32x32xf32, #tpu.memory_space<vmem>>, %arg22: memref<32x64xf32, #tpu.memory_space<vmem>>) attributes {dimension_semantics = [#tpu.dimension_semantics<parallel>, #tpu.dimension_semantics<arbitrary>], iteration_bounds = array<i64: 2, 2>, scalar_prefetch = 0 : i64, scratch_operands = 1 : i64, tpu.core_type = #tpu.core_type<tc>, window_params = [{transform_indices = @transform_0, window_bounds = array<i64: 1, 32, 48>}, {pipeline_mode = #tpu.pipeline_mode<synchronous>, transform_indices = @transform_1, window_bounds = array<i64: 32, 64>}, {pipeline_mode = #tpu.pipeline_mode<synchronous>, transform_indices = @transform_2, window_bounds = array<i64: 48, 64>}, {transform_indices = @transform_3, window_bounds = array<i64: 1, 1, 64>}, {transform_indices = @transform_4, window_bounds = array<i64: 1, 1, 64>}, {transform_indices = @transform_5, window_bounds = array<i64: 1, 64, 192>}, {transform_indices = @transform_6, window_bounds = array<i64: 1, 1, 192>}, {transform_indices = @transform_7, window_bounds = array<i64: 1, 64, 64>}, {transform_indices = @transform_8, window_bounds = array<i64: 1, 1, 64>}, {transform_indices = @transform_9, window_bounds = array<i64: 1, 1, 64>}, {transform_indices = @transform_10, window_bounds = array<i64: 1, 1, 64>}, {transform_indices = @transform_11, window_bounds = array<i64: 1, 64, 256>}, {transform_indices = @transform_12, window_bounds = array<i64: 1, 1, 256>}, {transform_indices = @transform_13, window_bounds = array<i64: 1, 256, 64>}, {transform_indices = @transform_14, window_bounds = array<i64: 1, 1, 64>}, {pipeline_mode = #tpu.pipeline_mode<synchronous>, transform_indices = @transform_15, window_bounds = array<i64: 1, 64>}, {pipeline_mode = #tpu.pipeline_mode<synchronous>, transform_indices = @transform_16, window_bounds = array<i64: 1, 64>}, {pipeline_mode = #tpu.pipeline_mode<synchronous>, transform_indices = @transform_17, window_bounds = array<i64: 64, 32>}, {pipeline_mode = #tpu.pipeline_mode<synchronous>, transform_indices = @transform_18, window_bounds = array<i64: 1, 32>}, {transform_indices = @transform_19, window_bounds = array<i64: 1, 32, 32>}]} {
    %0 = tpu.iota {dimensions = array<i32: 1>} : vector<32x32xi32>
    %c17_i32 = arith.constant 17 : i32
    %1 = vector.broadcast %c17_i32 : i32 to vector<32x32xi32>
    %2 = arith.cmpi slt, %0, %1 : vector<32x32xi32>
    %cst = arith.constant 0.000000e+00 : f32
    %cst_0 = arith.constant -1.000000e+30 : f32
    %3 = vector.broadcast %cst : f32 to vector<32x32xf32>
    %4 = vector.broadcast %cst_0 : f32 to vector<32x32xf32>
    %5 = arith.select %2, %3, %4 : vector<32x32xi1>, vector<32x32xf32>
    %c0_i32 = arith.constant 0 : i32
    %6 = arith.cmpi eq, %arg1, %c0_i32 : i32
    %7 = arith.extui %6 : i1 to i32
    %c0_i32_1 = arith.constant 0 : i32
    %8 = arith.cmpi ne, %7, %c0_i32_1 : i32
    scf.if %8 {
      %c0_80 = arith.constant 0 : index
      %c0_81 = arith.constant 0 : index
      %c0_82 = arith.constant 0 : index
      %205 = vector.load %arg2[%c0_80, %c0_81, %c0_82] : memref<1x32x48xbf16, #tpu.memory_space<vmem>>, vector<1x32x48xbf16>
      %206 = vector.shape_cast %205 : vector<1x32x48xbf16> to vector<32x48xbf16>
      %c0_83 = arith.constant 0 : index
      %c0_84 = arith.constant 0 : index
      %207 = vector.load %arg4[%c0_83, %c0_84] : memref<48x64xbf16, #tpu.memory_space<vmem>>, vector<48x64xbf16>
      %cst_85 = arith.constant dense<0.000000e+00> : vector<32x64xf32>
      %208 = tpu.matmul %206, %207, %cst_85 {dimension_numbers = #tpu.dot_dimension_numbers<[1], [0], [0], [1], [0, 0, 1, 1], [], []>} : vector<32x48xbf16>, vector<48x64xbf16>, vector<32x64xf32> -> vector<32x64xf32>
      %c0_86 = arith.constant 0 : index
      %c0_87 = arith.constant 0 : index
      %209 = vector.load %arg3[%c0_86, %c0_87] : memref<32x64xf32, #tpu.memory_space<vmem>>, vector<32x64xf32>
      %210 = arith.addf %208, %209 : vector<32x64xf32>
      %c0_88 = arith.constant 0 : index
      %c0_89 = arith.constant 0 : index
      %211 = vector.load %arg22[%c0_88, %c0_89] : memref<32x64xf32, #tpu.memory_space<vmem>>, vector<32x64xf32>
      tpu.vector_store %arg22[%c0_88, %c0_89], %210 {strides = array<i32>} : memref<32x64xf32, #tpu.memory_space<vmem>>, vector<32x64xf32>,
    } else {
    }
    %c0 = arith.constant 0 : index
    %c0_2 = arith.constant 0 : index
    %9 = vector.load %arg22[%c0, %c0_2] : memref<32x64xf32, #tpu.memory_space<vmem>>, vector<32x64xf32>
    %c0_3 = arith.constant 0 : index
    %c0_4 = arith.constant 0 : index
    %c0_5 = arith.constant 0 : index
    %10 = vector.load %arg5[%c0_3, %c0_4, %c0_5] : memref<1x1x64xf32, #tpu.memory_space<vmem>>, vector<1x1x64xf32>
    %11 = vector.shape_cast %10 : vector<1x1x64xf32> to vector<1x64xf32>
    %c0_6 = arith.constant 0 : index
    %c0_7 = arith.constant 0 : index
    %c0_8 = arith.constant 0 : index
    %12 = vector.load %arg6[%c0_6, %c0_7, %c0_8] : memref<1x1x64xf32, #tpu.memory_space<vmem>>, vector<1x1x64xf32>
    %13 = vector.shape_cast %12 : vector<1x1x64xf32> to vector<1x64xf32>
    %cst_9 = arith.constant dense<0.000000e+00> : vector<32xf32>
    %14 = vector.multi_reduction <add>, %9, %cst_9 [1] : vector<32x64xf32> to vector<32xf32>
    %15 = vector.shape_cast %14 : vector<32xf32> to vector<32x1xf32>
    %cst_10 = arith.constant 6.400000e+01 : f32
    %16 = vector.broadcast %cst_10 : f32 to vector<32x1xf32>
    %17 = arith.divf %15, %16 : vector<32x1xf32>
    %18 = vector.broadcast %17 : vector<32x1xf32> to vector<32x64xf32>
    %19 = arith.subf %9, %18 : vector<32x64xf32>
    %20 = arith.mulf %19, %19 : vector<32x64xf32>
    %cst_11 = arith.constant dense<0.000000e+00> : vector<32xf32>
    %21 = vector.multi_reduction <add>, %20, %cst_11 [1] : vector<32x64xf32> to vector<32xf32>
    %22 = vector.shape_cast %21 : vector<32xf32> to vector<32x1xf32>
    %cst_12 = arith.constant 6.400000e+01 : f32
    %23 = vector.broadcast %cst_12 : f32 to vector<32x1xf32>
    %24 = arith.divf %22, %23 : vector<32x1xf32>
    %25 = vector.broadcast %17 : vector<32x1xf32> to vector<32x64xf32>
    %26 = arith.subf %9, %25 : vector<32x64xf32>
    %cst_13 = arith.constant 9.99999997E-7 : f32
    %27 = vector.broadcast %cst_13 : f32 to vector<32x1xf32>
    %28 = arith.addf %24, %27 : vector<32x1xf32>
    %29 = math.rsqrt %28 : vector<32x1xf32>
    %30 = vector.broadcast %29 : vector<32x1xf32> to vector<32x64xf32>
    %31 = arith.mulf %26, %30 : vector<32x64xf32>
    %32 = vector.broadcast %11 : vector<1x64xf32> to vector<32x64xf32>
    %33 = arith.mulf %31, %32 : vector<32x64xf32>
    %34 = vector.broadcast %13 : vector<1x64xf32> to vector<32x64xf32>
    %35 = arith.addf %33, %34 : vector<32x64xf32>
    %36 = arith.truncf %35 : vector<32x64xf32> to vector<32x64xbf16>
    %c0_14 = arith.constant 0 : index
    %c0_15 = arith.constant 0 : index
    %c0_16 = arith.constant 0 : index
    %37 = vector.load %arg7[%c0_14, %c0_15, %c0_16] : memref<1x64x192xbf16, #tpu.memory_space<vmem>>, vector<1x64x192xbf16>
    %38 = vector.shape_cast %37 : vector<1x64x192xbf16> to vector<64x192xbf16>
    %cst_17 = arith.constant dense<0.000000e+00> : vector<32x192xf32>
    %39 = tpu.matmul %36, %38, %cst_17 {dimension_numbers = #tpu.dot_dimension_numbers<[1], [0], [0], [1], [0, 0, 1, 1], [], []>} : vector<32x64xbf16>, vector<64x192xbf16>, vector<32x192xf32> -> vector<32x192xf32>
    %c0_18 = arith.constant 0 : index
    %c0_19 = arith.constant 0 : index
    %c0_20 = arith.constant 0 : index
    %40 = vector.load %arg8[%c0_18, %c0_19, %c0_20] : memref<1x1x192xf32, #tpu.memory_space<vmem>>, vector<1x1x192xf32>
    %41 = vector.shape_cast %40 : vector<1x1x192xf32> to vector<1x192xf32>
    %42 = vector.broadcast %41 : vector<1x192xf32> to vector<32x192xf32>
    %43 = arith.addf %39, %42 : vector<32x192xf32>
    %44 = vector.extract_strided_slice %43 {offsets = [0, 0], sizes = [32, 64], strides = [1, 1]} : vector<32x192xf32> to vector<32x64xf32>
    %45 = vector.extract_strided_slice %43 {offsets = [0, 64], sizes = [32, 64], strides = [1, 1]} : vector<32x192xf32> to vector<32x64xf32>
    %46 = vector.extract_strided_slice %43 {offsets = [0, 128], sizes = [32, 64], strides = [1, 1]} : vector<32x192xf32> to vector<32x64xf32>
    %47 = vector.extract_strided_slice %44 {offsets = [0, 0], sizes = [32, 16], strides = [1, 1]} : vector<32x64xf32> to vector<32x16xf32>
    %48 = arith.truncf %47 : vector<32x16xf32> to vector<32x16xbf16>
    %49 = vector.extract_strided_slice %45 {offsets = [0, 0], sizes = [32, 16], strides = [1, 1]} : vector<32x64xf32> to vector<32x16xf32>
    %50 = arith.truncf %49 : vector<32x16xf32> to vector<32x16xbf16>
    %cst_21 = arith.constant dense<0.000000e+00> : vector<32x32xf32>
    %51 = tpu.matmul %48, %50, %cst_21 {dimension_numbers = #tpu.dot_dimension_numbers<[1], [1], [0], [0], [0, 0, 1, 0], [], []>} : vector<32x16xbf16>, vector<32x16xbf16>, vector<32x32xf32> -> vector<32x32xf32>
    %cst_22 = arith.constant 2.500000e-01 : f32
    %52 = vector.broadcast %cst_22 : f32 to vector<32x32xf32>
    %53 = arith.mulf %51, %52 : vector<32x32xf32>
    %54 = arith.addf %53, %5 : vector<32x32xf32>
    %cst_23 = arith.constant dense<0xFF800000> : vector<32xf32>
    %55 = vector.multi_reduction <maximumf>, %54, %cst_23 [1] : vector<32x32xf32> to vector<32xf32>
    %56 = vector.shape_cast %55 : vector<32xf32> to vector<32x1xf32>
    %57 = vector.broadcast %56 : vector<32x1xf32> to vector<32x32xf32>
    %58 = arith.subf %54, %57 : vector<32x32xf32>
    %59 = math.exp %58 : vector<32x32xf32>
    %cst_24 = arith.constant dense<0.000000e+00> : vector<32xf32>
    %60 = vector.multi_reduction <add>, %59, %cst_24 [1] : vector<32x32xf32> to vector<32xf32>
    %61 = vector.shape_cast %60 : vector<32xf32> to vector<32x1xf32>
    %62 = tpu.reciprocal %61 {approx = true} : vector<32x1xf32> -> vector<32x1xf32>
    %63 = vector.broadcast %62 : vector<32x1xf32> to vector<32x32xf32>
    %64 = arith.mulf %59, %63 : vector<32x32xf32>
    %65 = arith.truncf %64 : vector<32x32xf32> to vector<32x32xbf16>
    %66 = vector.extract_strided_slice %46 {offsets = [0, 0], sizes = [32, 16], strides = [1, 1]} : vector<32x64xf32> to vector<32x16xf32>
    %67 = arith.truncf %66 : vector<32x16xf32> to vector<32x16xbf16>
    %cst_25 = arith.constant dense<0.000000e+00> : vector<32x16xf32>
    %68 = tpu.matmul %65, %67, %cst_25 {dimension_numbers = #tpu.dot_dimension_numbers<[1], [0], [0], [1], [0, 0, 1, 1], [], []>} : vector<32x32xbf16>, vector<32x16xbf16>, vector<32x16xf32> -> vector<32x16xf32>
    %69 = vector.extract_strided_slice %44 {offsets = [0, 16], sizes = [32, 16], strides = [1, 1]} : vector<32x64xf32> to vector<32x16xf32>
    %70 = arith.truncf %69 : vector<32x16xf32> to vector<32x16xbf16>
    %71 = vector.extract_strided_slice %45 {offsets = [0, 16], sizes = [32, 16], strides = [1, 1]} : vector<32x64xf32> to vector<32x16xf32>
    %72 = arith.truncf %71 : vector<32x16xf32> to vector<32x16xbf16>
    %cst_26 = arith.constant dense<0.000000e+00> : vector<32x32xf32>
    %73 = tpu.matmul %70, %72, %cst_26 {dimension_numbers = #tpu.dot_dimension_numbers<[1], [1], [0], [0], [0, 0, 1, 0], [], []>} : vector<32x16xbf16>, vector<32x16xbf16>, vector<32x32xf32> -> vector<32x32xf32>
    %cst_27 = arith.constant 2.500000e-01 : f32
    %74 = vector.broadcast %cst_27 : f32 to vector<32x32xf32>
    %75 = arith.mulf %73, %74 : vector<32x32xf32>
    %76 = arith.addf %75, %5 : vector<32x32xf32>
    %cst_28 = arith.constant dense<0xFF800000> : vector<32xf32>
    %77 = vector.multi_reduction <maximumf>, %76, %cst_28 [1] : vector<32x32xf32> to vector<32xf32>
    %78 = vector.shape_cast %77 : vector<32xf32> to vector<32x1xf32>
    %79 = vector.broadcast %78 : vector<32x1xf32> to vector<32x32xf32>
    %80 = arith.subf %76, %79 : vector<32x32xf32>
    %81 = math.exp %80 : vector<32x32xf32>
    %cst_29 = arith.constant dense<0.000000e+00> : vector<32xf32>
    %82 = vector.multi_reduction <add>, %81, %cst_29 [1] : vector<32x32xf32> to vector<32xf32>
    %83 = vector.shape_cast %82 : vector<32xf32> to vector<32x1xf32>
    %84 = tpu.reciprocal %83 {approx = true} : vector<32x1xf32> -> vector<32x1xf32>
    %85 = vector.broadcast %84 : vector<32x1xf32> to vector<32x32xf32>
    %86 = arith.mulf %81, %85 : vector<32x32xf32>
    %87 = arith.truncf %86 : vector<32x32xf32> to vector<32x32xbf16>
    %88 = vector.extract_strided_slice %46 {offsets = [0, 16], sizes = [32, 16], strides = [1, 1]} : vector<32x64xf32> to vector<32x16xf32>
    %89 = arith.truncf %88 : vector<32x16xf32> to vector<32x16xbf16>
    %cst_30 = arith.constant dense<0.000000e+00> : vector<32x16xf32>
    %90 = tpu.matmul %87, %89, %cst_30 {dimension_numbers = #tpu.dot_dimension_numbers<[1], [0], [0], [1], [0, 0, 1, 1], [], []>} : vector<32x32xbf16>, vector<32x16xbf16>, vector<32x16xf32> -> vector<32x16xf32>
    %91 = vector.extract_strided_slice %44 {offsets = [0, 32], sizes = [32, 16], strides = [1, 1]} : vector<32x64xf32> to vector<32x16xf32>
    %92 = arith.truncf %91 : vector<32x16xf32> to vector<32x16xbf16>
    %93 = vector.extract_strided_slice %45 {offsets = [0, 32], sizes = [32, 16], strides = [1, 1]} : vector<32x64xf32> to vector<32x16xf32>
    %94 = arith.truncf %93 : vector<32x16xf32> to vector<32x16xbf16>
    %cst_31 = arith.constant dense<0.000000e+00> : vector<32x32xf32>
    %95 = tpu.matmul %92, %94, %cst_31 {dimension_numbers = #tpu.dot_dimension_numbers<[1], [1], [0], [0], [0, 0, 1, 0], [], []>} : vector<32x16xbf16>, vector<32x16xbf16>, vector<32x32xf32> -> vector<32x32xf32>
    %cst_32 = arith.constant 2.500000e-01 : f32
    %96 = vector.broadcast %cst_32 : f32 to vector<32x32xf32>
    %97 = arith.mulf %95, %96 : vector<32x32xf32>
    %98 = arith.addf %97, %5 : vector<32x32xf32>
    %cst_33 = arith.constant dense<0xFF800000> : vector<32xf32>
    %99 = vector.multi_reduction <maximumf>, %98, %cst_33 [1] : vector<32x32xf32> to vector<32xf32>
    %100 = vector.shape_cast %99 : vector<32xf32> to vector<32x1xf32>
    %101 = vector.broadcast %100 : vector<32x1xf32> to vector<32x32xf32>
    %102 = arith.subf %98, %101 : vector<32x32xf32>
    %103 = math.exp %102 : vector<32x32xf32>
    %cst_34 = arith.constant dense<0.000000e+00> : vector<32xf32>
    %104 = vector.multi_reduction <add>, %103, %cst_34 [1] : vector<32x32xf32> to vector<32xf32>
    %105 = vector.shape_cast %104 : vector<32xf32> to vector<32x1xf32>
    %106 = tpu.reciprocal %105 {approx = true} : vector<32x1xf32> -> vector<32x1xf32>
    %107 = vector.broadcast %106 : vector<32x1xf32> to vector<32x32xf32>
    %108 = arith.mulf %103, %107 : vector<32x32xf32>
    %109 = arith.truncf %108 : vector<32x32xf32> to vector<32x32xbf16>
    %110 = vector.extract_strided_slice %46 {offsets = [0, 32], sizes = [32, 16], strides = [1, 1]} : vector<32x64xf32> to vector<32x16xf32>
    %111 = arith.truncf %110 : vector<32x16xf32> to vector<32x16xbf16>
    %cst_35 = arith.constant dense<0.000000e+00> : vector<32x16xf32>
    %112 = tpu.matmul %109, %111, %cst_35 {dimension_numbers = #tpu.dot_dimension_numbers<[1], [0], [0], [1], [0, 0, 1, 1], [], []>} : vector<32x32xbf16>, vector<32x16xbf16>, vector<32x16xf32> -> vector<32x16xf32>
    %113 = vector.extract_strided_slice %44 {offsets = [0, 48], sizes = [32, 16], strides = [1, 1]} : vector<32x64xf32> to vector<32x16xf32>
    %114 = arith.truncf %113 : vector<32x16xf32> to vector<32x16xbf16>
    %115 = vector.extract_strided_slice %45 {offsets = [0, 48], sizes = [32, 16], strides = [1, 1]} : vector<32x64xf32> to vector<32x16xf32>
    %116 = arith.truncf %115 : vector<32x16xf32> to vector<32x16xbf16>
    %cst_36 = arith.constant dense<0.000000e+00> : vector<32x32xf32>
    %117 = tpu.matmul %114, %116, %cst_36 {dimension_numbers = #tpu.dot_dimension_numbers<[1], [1], [0], [0], [0, 0, 1, 0], [], []>} : vector<32x16xbf16>, vector<32x16xbf16>, vector<32x32xf32> -> vector<32x32xf32>
    %cst_37 = arith.constant 2.500000e-01 : f32
    %118 = vector.broadcast %cst_37 : f32 to vector<32x32xf32>
    %119 = arith.mulf %117, %118 : vector<32x32xf32>
    %120 = arith.addf %119, %5 : vector<32x32xf32>
    %cst_38 = arith.constant dense<0xFF800000> : vector<32xf32>
    %121 = vector.multi_reduction <maximumf>, %120, %cst_38 [1] : vector<32x32xf32> to vector<32xf32>
    %122 = vector.shape_cast %121 : vector<32xf32> to vector<32x1xf32>
    %123 = vector.broadcast %122 : vector<32x1xf32> to vector<32x32xf32>
    %124 = arith.subf %120, %123 : vector<32x32xf32>
    %125 = math.exp %124 : vector<32x32xf32>
    %cst_39 = arith.constant dense<0.000000e+00> : vector<32xf32>
    %126 = vector.multi_reduction <add>, %125, %cst_39 [1] : vector<32x32xf32> to vector<32xf32>
    %127 = vector.shape_cast %126 : vector<32xf32> to vector<32x1xf32>
    %128 = tpu.reciprocal %127 {approx = true} : vector<32x1xf32> -> vector<32x1xf32>
    %129 = vector.broadcast %128 : vector<32x1xf32> to vector<32x32xf32>
    %130 = arith.mulf %125, %129 : vector<32x32xf32>
    %131 = arith.truncf %130 : vector<32x32xf32> to vector<32x32xbf16>
    %132 = vector.extract_strided_slice %46 {offsets = [0, 48], sizes = [32, 16], strides = [1, 1]} : vector<32x64xf32> to vector<32x16xf32>
    %133 = arith.truncf %132 : vector<32x16xf32> to vector<32x16xbf16>
    %cst_40 = arith.constant dense<0.000000e+00> : vector<32x16xf32>
    %134 = tpu.matmul %131, %133, %cst_40 {dimension_numbers = #tpu.dot_dimension_numbers<[1], [0], [0], [1], [0, 0, 1, 1], [], []>} : vector<32x32xbf16>, vector<32x16xbf16>, vector<32x16xf32> -> vector<32x16xf32>
    %135 = tpu.concatenate %68, %90, %112, %134 in 1 : vector<32x16xf32>, vector<32x16xf32>, vector<32x16xf32>, vector<32x16xf32> -> vector<32x64xf32>
    %136 = arith.truncf %135 : vector<32x64xf32> to vector<32x64xbf16>
    %c0_41 = arith.constant 0 : index
    %c0_42 = arith.constant 0 : index
    %c0_43 = arith.constant 0 : index
    %137 = vector.load %arg9[%c0_41, %c0_42, %c0_43] : memref<1x64x64xbf16, #tpu.memory_space<vmem>>, vector<1x64x64xbf16>
    %138 = vector.shape_cast %137 : vector<1x64x64xbf16> to vector<64x64xbf16>
    %cst_44 = arith.constant dense<0.000000e+00> : vector<32x64xf32>
    %139 = tpu.matmul %136, %138, %cst_44 {dimension_numbers = #tpu.dot_dimension_numbers<[1], [0], [0], [1], [0, 0, 1, 1], [], []>} : vector<32x64xbf16>, vector<64x64xbf16>, vector<32x64xf32> -> vector<32x64xf32>
    %140 = arith.addf %9, %139 : vector<32x64xf32>
    %c0_45 = arith.constant 0 : index
    %c0_46 = arith.constant 0 : index
    %c0_47 = arith.constant 0 : index
    %141 = vector.load %arg10[%c0_45, %c0_46, %c0_47] : memref<1x1x64xf32, #tpu.memory_space<vmem>>, vector<1x1x64xf32>
    %142 = vector.shape_cast %141 : vector<1x1x64xf32> to vector<1x64xf32>
    %143 = vector.broadcast %142 : vector<1x64xf32> to vector<32x64xf32>
    %144 = arith.addf %140, %143 : vector<32x64xf32>
    %c0_48 = arith.constant 0 : index
    %c0_49 = arith.constant 0 : index
    %c0_50 = arith.constant 0 : index
    %145 = vector.load %arg11[%c0_48, %c0_49, %c0_50] : memref<1x1x64xf32, #tpu.memory_space<vmem>>, vector<1x1x64xf32>
    %146 = vector.shape_cast %145 : vector<1x1x64xf32> to vector<1x64xf32>
    %c0_51 = arith.constant 0 : index
    %c0_52 = arith.constant 0 : index
    %c0_53 = arith.constant 0 : index
    %147 = vector.load %arg12[%c0_51, %c0_52, %c0_53] : memref<1x1x64xf32, #tpu.memory_space<vmem>>, vector<1x1x64xf32>
    %148 = vector.shape_cast %147 : vector<1x1x64xf32> to vector<1x64xf32>
    %cst_54 = arith.constant dense<0.000000e+00> : vector<32xf32>
    %149 = vector.multi_reduction <add>, %144, %cst_54 [1] : vector<32x64xf32> to vector<32xf32>
    %150 = vector.shape_cast %149 : vector<32xf32> to vector<32x1xf32>
    %cst_55 = arith.constant 6.400000e+01 : f32
    %151 = vector.broadcast %cst_55 : f32 to vector<32x1xf32>
    %152 = arith.divf %150, %151 : vector<32x1xf32>
    %153 = vector.broadcast %152 : vector<32x1xf32> to vector<32x64xf32>
    %154 = arith.subf %144, %153 : vector<32x64xf32>
    %155 = arith.mulf %154, %154 : vector<32x64xf32>
    %cst_56 = arith.constant dense<0.000000e+00> : vector<32xf32>
    %156 = vector.multi_reduction <add>, %155, %cst_56 [1] : vector<32x64xf32> to vector<32xf32>
    %157 = vector.shape_cast %156 : vector<32xf32> to vector<32x1xf32>
    %cst_57 = arith.constant 6.400000e+01 : f32
    %158 = vector.broadcast %cst_57 : f32 to vector<32x1xf32>
    %159 = arith.divf %157, %158 : vector<32x1xf32>
    %160 = vector.broadcast %152 : vector<32x1xf32> to vector<32x64xf32>
    %161 = arith.subf %144, %160 : vector<32x64xf32>
    %cst_58 = arith.constant 9.99999997E-7 : f32
    %162 = vector.broadcast %cst_58 : f32 to vector<32x1xf32>
    %163 = arith.addf %159, %162 : vector<32x1xf32>
    %164 = math.rsqrt %163 : vector<32x1xf32>
    %165 = vector.broadcast %164 : vector<32x1xf32> to vector<32x64xf32>
    %166 = arith.mulf %161, %165 : vector<32x64xf32>
    %167 = vector.broadcast %146 : vector<1x64xf32> to vector<32x64xf32>
    %168 = arith.mulf %166, %167 : vector<32x64xf32>
    %169 = vector.broadcast %148 : vector<1x64xf32> to vector<32x64xf32>
    %170 = arith.addf %168, %169 : vector<32x64xf32>
    %171 = arith.truncf %170 : vector<32x64xf32> to vector<32x64xbf16>
    %c0_59 = arith.constant 0 : index
    %c0_60 = arith.constant 0 : index
    %c0_61 = arith.constant 0 : index
    %172 = vector.load %arg13[%c0_59, %c0_60, %c0_61] : memref<1x64x256xbf16, #tpu.memory_space<vmem>>, vector<1x64x256xbf16>
    %173 = vector.shape_cast %172 : vector<1x64x256xbf16> to vector<64x256xbf16>
    %cst_62 = arith.constant dense<0.000000e+00> : vector<32x256xf32>
    %174 = tpu.matmul %171, %173, %cst_62 {dimension_numbers = #tpu.dot_dimension_numbers<[1], [0], [0], [1], [0, 0, 1, 1], [], []>} : vector<32x64xbf16>, vector<64x256xbf16>, vector<32x256xf32> -> vector<32x256xf32>
    %c0_63 = arith.constant 0 : index
    %c0_64 = arith.constant 0 : index
    %c0_65 = arith.constant 0 : index
    %175 = vector.load %arg14[%c0_63, %c0_64, %c0_65] : memref<1x1x256xf32, #tpu.memory_space<vmem>>, vector<1x1x256xf32>
    %176 = vector.shape_cast %175 : vector<1x1x256xf32> to vector<1x256xf32>
    %177 = vector.broadcast %176 : vector<1x256xf32> to vector<32x256xf32>
    %178 = arith.addf %174, %177 : vector<32x256xf32>
    %179 = arith.mulf %178, %178 : vector<32x256xf32>
    %180 = arith.mulf %178, %179 : vector<32x256xf32>
    %cst_66 = arith.constant 4.471500e-02 : f32
    %181 = vector.broadcast %cst_66 : f32 to vector<32x256xf32>
    %182 = arith.mulf %181, %180 : vector<32x256xf32>
    %183 = arith.addf %178, %182 : vector<32x256xf32>
    %cst_67 = arith.constant 0.797884583 : f32
    %184 = vector.broadcast %cst_67 : f32 to vector<32x256xf32>
    %185 = arith.mulf %184, %183 : vector<32x256xf32>
    %186 = math.tanh %185 : vector<32x256xf32>
    %cst_68 = arith.constant 1.000000e+00 : f32
    %187 = vector.broadcast %cst_68 : f32 to vector<32x256xf32>
    %188 = arith.addf %187, %186 : vector<32x256xf32>
    %cst_69 = arith.constant 5.000000e-01 : f32
    %189 = vector.broadcast %cst_69 : f32 to vector<32x256xf32>
    %190 = arith.mulf %189, %188 : vector<32x256xf32>
    %191 = arith.mulf %178, %190 : vector<32x256xf32>
    %192 = arith.truncf %191 : vector<32x256xf32> to vector<32x256xbf16>
    %c0_70 = arith.constant 0 : index
    %c0_71 = arith.constant 0 : index
    %c0_72 = arith.constant 0 : index
    %193 = vector.load %arg15[%c0_70, %c0_71, %c0_72] : memref<1x256x64xbf16, #tpu.memory_space<vmem>>, vector<1x256x64xbf16>
    %194 = vector.shape_cast %193 : vector<1x256x64xbf16> to vector<256x64xbf16>
    %cst_73 = arith.constant dense<0.000000e+00> : vector<32x64xf32>
    %195 = tpu.matmul %192, %194, %cst_73 {dimension_numbers = #tpu.dot_dimension_numbers<[1], [0], [0], [1], [0, 0, 1, 1], [], []>} : vector<32x256xbf16>, vector<256x64xbf16>, vector<32x64xf32> -> vector<32x64xf32>
    %196 = arith.addf %144, %195 : vector<32x64xf32>
    %c0_74 = arith.constant 0 : index
    %c0_75 = arith.constant 0 : index
    %c0_76 = arith.constant 0 : index
    %197 = vector.load %arg16[%c0_74, %c0_75, %c0_76] : memref<1x1x64xf32, #tpu.memory_space<vmem>>, vector<1x1x64xf32>
    %198 = vector.shape_cast %197 : vector<1x1x64xf32> to vector<1x64xf32>
    %199 = vector.broadcast %198 : vector<1x64xf32> to vector<32x64xf32>
    %200 = arith.addf %196, %199 : vector<32x64xf32>
    %c0_77 = arith.constant 0 : index
    %c0_78 = arith.constant 0 : index
    %201 = vector.load %arg22[%c0_77, %c0_78] : memref<32x64xf32, #tpu.memory_space<vmem>>, vector<32x64xf32>
    tpu.vector_store %arg22[%c0_77, %c0_78], %200 {strides = array<i32>} : memref<32x64xf32, #tpu.memory_space<vmem>>, vector<32x64xf32>,
    %c1_i32 = arith.constant 1 : i32
    %202 = arith.cmpi eq, %arg1, %c1_i32 : i32
    %203 = arith.extui %202 : i1 to i32
    %c0_i32_79 = arith.constant 0 : i32
    %204 = arith.cmpi ne, %203, %c0_i32_79 : i32
    scf.if %204 {
      %c0_80 = arith.constant 0 : index
      %c0_81 = arith.constant 0 : index
      %205 = vector.load %arg17[%c0_80, %c0_81] : memref<1x64xf32, #tpu.memory_space<vmem>>, vector<1x64xf32>
      %c0_82 = arith.constant 0 : index
      %c0_83 = arith.constant 0 : index
      %206 = vector.load %arg18[%c0_82, %c0_83] : memref<1x64xf32, #tpu.memory_space<vmem>>, vector<1x64xf32>
      %cst_84 = arith.constant dense<0.000000e+00> : vector<32xf32>
      %207 = vector.multi_reduction <add>, %200, %cst_84 [1] : vector<32x64xf32> to vector<32xf32>
      %208 = vector.shape_cast %207 : vector<32xf32> to vector<32x1xf32>
      %cst_85 = arith.constant 6.400000e+01 : f32
      %209 = vector.broadcast %cst_85 : f32 to vector<32x1xf32>
      %210 = arith.divf %208, %209 : vector<32x1xf32>
      %211 = vector.broadcast %210 : vector<32x1xf32> to vector<32x64xf32>
      %212 = arith.subf %200, %211 : vector<32x64xf32>
      %213 = arith.mulf %212, %212 : vector<32x64xf32>
      %cst_86 = arith.constant dense<0.000000e+00> : vector<32xf32>
      %214 = vector.multi_reduction <add>, %213, %cst_86 [1] : vector<32x64xf32> to vector<32xf32>
      %215 = vector.shape_cast %214 : vector<32xf32> to vector<32x1xf32>
      %cst_87 = arith.constant 6.400000e+01 : f32
      %216 = vector.broadcast %cst_87 : f32 to vector<32x1xf32>
      %217 = arith.divf %215, %216 : vector<32x1xf32>
      %218 = vector.broadcast %210 : vector<32x1xf32> to vector<32x64xf32>
      %219 = arith.subf %200, %218 : vector<32x64xf32>
      %cst_88 = arith.constant 9.99999997E-7 : f32
      %220 = vector.broadcast %cst_88 : f32 to vector<32x1xf32>
      %221 = arith.addf %217, %220 : vector<32x1xf32>
      %222 = math.rsqrt %221 : vector<32x1xf32>
      %223 = vector.broadcast %222 : vector<32x1xf32> to vector<32x64xf32>
      %224 = arith.mulf %219, %223 : vector<32x64xf32>
      %225 = vector.broadcast %205 : vector<1x64xf32> to vector<32x64xf32>
      %226 = arith.mulf %224, %225 : vector<32x64xf32>
      %227 = vector.broadcast %206 : vector<1x64xf32> to vector<32x64xf32>
      %228 = arith.addf %226, %227 : vector<32x64xf32>
      %229 = arith.truncf %228 : vector<32x64xf32> to vector<32x64xbf16>
      %c0_89 = arith.constant 0 : index
      %c0_90 = arith.constant 0 : index
      %230 = vector.load %arg19[%c0_89, %c0_90] : memref<64x32xbf16, #tpu.memory_space<vmem>>, vector<64x32xbf16>
      %cst_91 = arith.constant dense<0.000000e+00> : vector<32x32xf32>
      %231 = tpu.matmul %229, %230, %cst_91 {dimension_numbers = #tpu.dot_dimension_numbers<[1], [0], [0], [1], [0, 0, 1, 1], [], []>} : vector<32x64xbf16>, vector<64x32xbf16>, vector<32x32xf32> -> vector<32x32xf32>
      %c0_92 = arith.constant 0 : index
      %c0_93 = arith.constant 0 : index
      %232 = vector.load %arg20[%c0_92, %c0_93] : memref<1x32xf32, #tpu.memory_space<vmem>>, vector<1x32xf32>
      %233 = vector.broadcast %232 : vector<1x32xf32> to vector<32x32xf32>
      %234 = arith.addf %231, %233 : vector<32x32xf32>
      %c0_94 = arith.constant 0 : index
      %c0_95 = arith.constant 0 : index
      %c0_96 = arith.constant 0 : index
      %235 = vector.load %arg21[%c0_94, %c0_95, %c0_96] : memref<1x32x32xf32, #tpu.memory_space<vmem>>, vector<1x32x32xf32>
      %236 = vector.shape_cast %235 : vector<1x32x32xf32> to vector<32x32xf32>
      %237 = vector.shape_cast %234 : vector<32x32xf32> to vector<1x32x32xf32>
      tpu.vector_store %arg21[%c0_94, %c0_95, %c0_96], %237 {strides = array<i32>} : memref<1x32x32xf32, #tpu.memory_space<vmem>>, vector<1x32x32xf32>,
    } else {
    }
    return
  }
  func.func @transform_0(%arg0: i32, %arg1: i32) -> (i32, i32, i32) {
    %c0_i32 = arith.constant 0 : i32
    %c0_i32_0 = arith.constant 0 : i32
    %c0_i32_1 = arith.constant 0 : i32
    return %arg0, %c0_i32, %c0_i32_0 : i32, i32, i32
  }
  func.func @transform_1(%arg0: i32, %arg1: i32) -> (i32, i32) {
    %c0_i32 = arith.constant 0 : i32
    %c0_i32_0 = arith.constant 0 : i32
    %c0_i32_1 = arith.constant 0 : i32
    return %c0_i32, %c0_i32_0 : i32, i32
  }
  func.func @transform_2(%arg0: i32, %arg1: i32) -> (i32, i32) {
    %c0_i32 = arith.constant 0 : i32
    %c0_i32_0 = arith.constant 0 : i32
    %c0_i32_1 = arith.constant 0 : i32
    return %c0_i32, %c0_i32_0 : i32, i32
  }
  func.func @transform_3(%arg0: i32, %arg1: i32) -> (i32, i32, i32) {
    %c0_i32 = arith.constant 0 : i32
    %c0_i32_0 = arith.constant 0 : i32
    %c0_i32_1 = arith.constant 0 : i32
    return %arg1, %c0_i32, %c0_i32_0 : i32, i32, i32
  }
  func.func @transform_4(%arg0: i32, %arg1: i32) -> (i32, i32, i32) {
    %c0_i32 = arith.constant 0 : i32
    %c0_i32_0 = arith.constant 0 : i32
    %c0_i32_1 = arith.constant 0 : i32
    return %arg1, %c0_i32, %c0_i32_0 : i32, i32, i32
  }
  func.func @transform_5(%arg0: i32, %arg1: i32) -> (i32, i32, i32) {
    %c0_i32 = arith.constant 0 : i32
    %c0_i32_0 = arith.constant 0 : i32
    %c0_i32_1 = arith.constant 0 : i32
    return %arg1, %c0_i32, %c0_i32_0 : i32, i32, i32
  }
  func.func @transform_6(%arg0: i32, %arg1: i32) -> (i32, i32, i32) {
    %c0_i32 = arith.constant 0 : i32
    %c0_i32_0 = arith.constant 0 : i32
    %c0_i32_1 = arith.constant 0 : i32
    return %arg1, %c0_i32, %c0_i32_0 : i32, i32, i32
  }
  func.func @transform_7(%arg0: i32, %arg1: i32) -> (i32, i32, i32) {
    %c0_i32 = arith.constant 0 : i32
    %c0_i32_0 = arith.constant 0 : i32
    %c0_i32_1 = arith.constant 0 : i32
    return %arg1, %c0_i32, %c0_i32_0 : i32, i32, i32
  }
  func.func @transform_8(%arg0: i32, %arg1: i32) -> (i32, i32, i32) {
    %c0_i32 = arith.constant 0 : i32
    %c0_i32_0 = arith.constant 0 : i32
    %c0_i32_1 = arith.constant 0 : i32
    return %arg1, %c0_i32, %c0_i32_0 : i32, i32, i32
  }
  func.func @transform_9(%arg0: i32, %arg1: i32) -> (i32, i32, i32) {
    %c0_i32 = arith.constant 0 : i32
    %c0_i32_0 = arith.constant 0 : i32
    %c0_i32_1 = arith.constant 0 : i32
    return %arg1, %c0_i32, %c0_i32_0 : i32, i32, i32
  }
  func.func @transform_10(%arg0: i32, %arg1: i32) -> (i32, i32, i32) {
    %c0_i32 = arith.constant 0 : i32
    %c0_i32_0 = arith.constant 0 : i32
    %c0_i32_1 = arith.constant 0 : i32
    return %arg1, %c0_i32, %c0_i32_0 : i32, i32, i32
  }
  func.func @transform_11(%arg0: i32, %arg1: i32) -> (i32, i32, i32) {
    %c0_i32 = arith.constant 0 : i32
    %c0_i32_0 = arith.constant 0 : i32
    %c0_i32_1 = arith.constant 0 : i32
    return %arg1, %c0_i32, %c0_i32_0 : i32, i32, i32
  }
  func.func @transform_12(%arg0: i32, %arg1: i32) -> (i32, i32, i32) {
    %c0_i32 = arith.constant 0 : i32
    %c0_i32_0 = arith.constant 0 : i32
    %c0_i32_1 = arith.constant 0 : i32
    return %arg1, %c0_i32, %c0_i32_0 : i32, i32, i32
  }
  func.func @transform_13(%arg0: i32, %arg1: i32) -> (i32, i32, i32) {
    %c0_i32 = arith.constant 0 : i32
    %c0_i32_0 = arith.constant 0 : i32
    %c0_i32_1 = arith.constant 0 : i32
    return %arg1, %c0_i32, %c0_i32_0 : i32, i32, i32
  }
  func.func @transform_14(%arg0: i32, %arg1: i32) -> (i32, i32, i32) {
    %c0_i32 = arith.constant 0 : i32
    %c0_i32_0 = arith.constant 0 : i32
    %c0_i32_1 = arith.constant 0 : i32
    return %arg1, %c0_i32, %c0_i32_0 : i32, i32, i32
  }
  func.func @transform_15(%arg0: i32, %arg1: i32) -> (i32, i32) {
    %c0_i32 = arith.constant 0 : i32
    %c0_i32_0 = arith.constant 0 : i32
    %c0_i32_1 = arith.constant 0 : i32
    return %c0_i32, %c0_i32_0 : i32, i32
  }
  func.func @transform_16(%arg0: i32, %arg1: i32) -> (i32, i32) {
    %c0_i32 = arith.constant 0 : i32
    %c0_i32_0 = arith.constant 0 : i32
    %c0_i32_1 = arith.constant 0 : i32
    return %c0_i32, %c0_i32_0 : i32, i32
  }
  func.func @transform_17(%arg0: i32, %arg1: i32) -> (i32, i32) {
    %c0_i32 = arith.constant 0 : i32
    %c0_i32_0 = arith.constant 0 : i32
    %c0_i32_1 = arith.constant 0 : i32
    return %c0_i32, %c0_i32_0 : i32, i32
  }
  func.func @transform_18(%arg0: i32, %arg1: i32) -> (i32, i32) {
    %c0_i32 = arith.constant 0 : i32
    %c0_i32_0 = arith.constant 0 : i32
    %c0_i32_1 = arith.constant 0 : i32
    return %c0_i32, %c0_i32_0 : i32, i32
  }
  func.func @transform_19(%arg0: i32, %arg1: i32) -> (i32, i32, i32) {
    %c0_i32 = arith.constant 0 : i32
    %c0_i32_0 = arith.constant 0 : i32
    %c0_i32_1 = arith.constant 0 : i32
    return %arg0, %c0_i32, %c0_i32_0 : i32, i32, i32
  }
}

module attributes {stable_mosaic.version = 11 : i64} {
  func.func @_decoder_kernel(%arg0: i32, %arg1: i32, %arg2: memref<1x8x32xf32, #tpu.memory_space<vmem>>, %arg3: memref<1x32x32xf32, #tpu.memory_space<vmem>>, %arg4: memref<1x1x32xf32, #tpu.memory_space<vmem>>, %arg5: memref<1x1x32xf32, #tpu.memory_space<vmem>>, %arg6: memref<1x32x96xbf16, #tpu.memory_space<vmem>>, %arg7: memref<1x1x96xf32, #tpu.memory_space<vmem>>, %arg8: memref<1x32x32xbf16, #tpu.memory_space<vmem>>, %arg9: memref<1x1x32xf32, #tpu.memory_space<vmem>>, %arg10: memref<1x1x32xf32, #tpu.memory_space<vmem>>, %arg11: memref<1x1x32xf32, #tpu.memory_space<vmem>>, %arg12: memref<1x32x32xbf16, #tpu.memory_space<vmem>>, %arg13: memref<1x1x32xf32, #tpu.memory_space<vmem>>, %arg14: memref<1x32x64xbf16, #tpu.memory_space<vmem>>, %arg15: memref<1x1x64xf32, #tpu.memory_space<vmem>>, %arg16: memref<1x32x32xbf16, #tpu.memory_space<vmem>>, %arg17: memref<1x1x32xf32, #tpu.memory_space<vmem>>, %arg18: memref<1x1x32xf32, #tpu.memory_space<vmem>>, %arg19: memref<1x1x32xf32, #tpu.memory_space<vmem>>, %arg20: memref<1x32x64xbf16, #tpu.memory_space<vmem>>, %arg21: memref<1x1x64xf32, #tpu.memory_space<vmem>>, %arg22: memref<1x64x32xbf16, #tpu.memory_space<vmem>>, %arg23: memref<1x1x32xf32, #tpu.memory_space<vmem>>, %arg24: memref<1x32xf32, #tpu.memory_space<vmem>>, %arg25: memref<1x32xf32, #tpu.memory_space<vmem>>, %arg26: memref<32x128xbf16, #tpu.memory_space<vmem>>, %arg27: memref<1x128xf32, #tpu.memory_space<vmem>>, %arg28: memref<1x8x128xf32, #tpu.memory_space<vmem>>, %arg29: memref<8x32xf32, #tpu.memory_space<vmem>>) attributes {dimension_semantics = [#tpu.dimension_semantics<parallel>, #tpu.dimension_semantics<arbitrary>], iteration_bounds = array<i64: 2, 2>, scalar_prefetch = 0 : i64, scratch_operands = 1 : i64, tpu.core_type = #tpu.core_type<tc>, window_params = [{transform_indices = @transform_0, window_bounds = array<i64: 1, 8, 32>}, {transform_indices = @transform_1, window_bounds = array<i64: 1, 32, 32>}, {transform_indices = @transform_2, window_bounds = array<i64: 1, 1, 32>}, {transform_indices = @transform_3, window_bounds = array<i64: 1, 1, 32>}, {transform_indices = @transform_4, window_bounds = array<i64: 1, 32, 96>}, {transform_indices = @transform_5, window_bounds = array<i64: 1, 1, 96>}, {transform_indices = @transform_6, window_bounds = array<i64: 1, 32, 32>}, {transform_indices = @transform_7, window_bounds = array<i64: 1, 1, 32>}, {transform_indices = @transform_8, window_bounds = array<i64: 1, 1, 32>}, {transform_indices = @transform_9, window_bounds = array<i64: 1, 1, 32>}, {transform_indices = @transform_10, window_bounds = array<i64: 1, 32, 32>}, {transform_indices = @transform_11, window_bounds = array<i64: 1, 1, 32>}, {transform_indices = @transform_12, window_bounds = array<i64: 1, 32, 64>}, {transform_indices = @transform_13, window_bounds = array<i64: 1, 1, 64>}, {transform_indices = @transform_14, window_bounds = array<i64: 1, 32, 32>}, {transform_indices = @transform_15, window_bounds = array<i64: 1, 1, 32>}, {transform_indices = @transform_16, window_bounds = array<i64: 1, 1, 32>}, {transform_indices = @transform_17, window_bounds = array<i64: 1, 1, 32>}, {transform_indices = @transform_18, window_bounds = array<i64: 1, 32, 64>}, {transform_indices = @transform_19, window_bounds = array<i64: 1, 1, 64>}, {transform_indices = @transform_20, window_bounds = array<i64: 1, 64, 32>}, {transform_indices = @transform_21, window_bounds = array<i64: 1, 1, 32>}, {pipeline_mode = #tpu.pipeline_mode<synchronous>, transform_indices = @transform_22, window_bounds = array<i64: 1, 32>}, {pipeline_mode = #tpu.pipeline_mode<synchronous>, transform_indices = @transform_23, window_bounds = array<i64: 1, 32>}, {pipeline_mode = #tpu.pipeline_mode<synchronous>, transform_indices = @transform_24, window_bounds = array<i64: 32, 128>}, {pipeline_mode = #tpu.pipeline_mode<synchronous>, transform_indices = @transform_25, window_bounds = array<i64: 1, 128>}, {transform_indices = @transform_26, window_bounds = array<i64: 1, 8, 128>}]} {
    %c0_i32 = arith.constant 0 : i32
    %0 = arith.cmpi eq, %arg1, %c0_i32 : i32
    %1 = arith.extui %0 : i1 to i32
    %c0_i32_0 = arith.constant 0 : i32
    %2 = arith.cmpi ne, %1, %c0_i32_0 : i32
    scf.if %2 {
      %c0_134 = arith.constant 0 : index
      %c0_135 = arith.constant 0 : index
      %c0_136 = arith.constant 0 : index
      %344 = vector.load %arg2[%c0_134, %c0_135, %c0_136] : memref<1x8x32xf32, #tpu.memory_space<vmem>>, vector<1x8x32xf32>
      %345 = vector.shape_cast %344 : vector<1x8x32xf32> to vector<8x32xf32>
      %c0_137 = arith.constant 0 : index
      %c0_138 = arith.constant 0 : index
      %346 = vector.load %arg29[%c0_137, %c0_138] : memref<8x32xf32, #tpu.memory_space<vmem>>, vector<8x32xf32>
      tpu.vector_store %arg29[%c0_137, %c0_138], %345 {strides = array<i32>} : memref<8x32xf32, #tpu.memory_space<vmem>>, vector<8x32xf32>,
    } else {
    }
    %c0 = arith.constant 0 : index
    %c0_1 = arith.constant 0 : index
    %3 = vector.load %arg29[%c0, %c0_1] : memref<8x32xf32, #tpu.memory_space<vmem>>, vector<8x32xf32>
    %c0_2 = arith.constant 0 : index
    %c0_3 = arith.constant 0 : index
    %c0_4 = arith.constant 0 : index
    %4 = vector.load %arg3[%c0_2, %c0_3, %c0_4] : memref<1x32x32xf32, #tpu.memory_space<vmem>>, vector<1x32x32xf32>
    %5 = vector.shape_cast %4 : vector<1x32x32xf32> to vector<32x32xf32>
    %6 = tpu.iota {dimensions = array<i32: 0>} : vector<8x8xi32>
    %7 = tpu.iota {dimensions = array<i32: 1>} : vector<8x8xi32>
    %8 = arith.cmpi sle, %7, %6 : vector<8x8xi32>
    %cst = arith.constant 0.000000e+00 : f32
    %cst_5 = arith.constant -1.000000e+30 : f32
    %9 = vector.broadcast %cst : f32 to vector<8x8xf32>
    %10 = vector.broadcast %cst_5 : f32 to vector<8x8xf32>
    %11 = arith.select %8, %9, %10 : vector<8x8xi1>, vector<8x8xf32>
    %12 = tpu.iota {dimensions = array<i32: 1>} : vector<8x32xi32>
    %c17_i32 = arith.constant 17 : i32
    %13 = vector.broadcast %c17_i32 : i32 to vector<8x32xi32>
    %14 = arith.cmpi slt, %12, %13 : vector<8x32xi32>
    %cst_6 = arith.constant 0.000000e+00 : f32
    %cst_7 = arith.constant -1.000000e+30 : f32
    %15 = vector.broadcast %cst_6 : f32 to vector<8x32xf32>
    %16 = vector.broadcast %cst_7 : f32 to vector<8x32xf32>
    %17 = arith.select %14, %15, %16 : vector<8x32xi1>, vector<8x32xf32>
    %c0_8 = arith.constant 0 : index
    %c0_9 = arith.constant 0 : index
    %c0_10 = arith.constant 0 : index
    %18 = vector.load %arg4[%c0_8, %c0_9, %c0_10] : memref<1x1x32xf32, #tpu.memory_space<vmem>>, vector<1x1x32xf32>
    %19 = vector.shape_cast %18 : vector<1x1x32xf32> to vector<1x32xf32>
    %c0_11 = arith.constant 0 : index
    %c0_12 = arith.constant 0 : index
    %c0_13 = arith.constant 0 : index
    %20 = vector.load %arg5[%c0_11, %c0_12, %c0_13] : memref<1x1x32xf32, #tpu.memory_space<vmem>>, vector<1x1x32xf32>
    %21 = vector.shape_cast %20 : vector<1x1x32xf32> to vector<1x32xf32>
    %cst_14 = arith.constant dense<0.000000e+00> : vector<8xf32>
    %22 = vector.multi_reduction <add>, %3, %cst_14 [1] : vector<8x32xf32> to vector<8xf32>
    %23 = vector.shape_cast %22 : vector<8xf32> to vector<8x1xf32>
    %cst_15 = arith.constant 3.200000e+01 : f32
    %24 = vector.broadcast %cst_15 : f32 to vector<8x1xf32>
    %25 = arith.divf %23, %24 : vector<8x1xf32>
    %26 = vector.broadcast %25 : vector<8x1xf32> to vector<8x32xf32>
    %27 = arith.subf %3, %26 : vector<8x32xf32>
    %28 = arith.mulf %27, %27 : vector<8x32xf32>
    %cst_16 = arith.constant dense<0.000000e+00> : vector<8xf32>
    %29 = vector.multi_reduction <add>, %28, %cst_16 [1] : vector<8x32xf32> to vector<8xf32>
    %30 = vector.shape_cast %29 : vector<8xf32> to vector<8x1xf32>
    %cst_17 = arith.constant 3.200000e+01 : f32
    %31 = vector.broadcast %cst_17 : f32 to vector<8x1xf32>
    %32 = arith.divf %30, %31 : vector<8x1xf32>
    %33 = vector.broadcast %25 : vector<8x1xf32> to vector<8x32xf32>
    %34 = arith.subf %3, %33 : vector<8x32xf32>
    %cst_18 = arith.constant 9.99999974E-6 : f32
    %35 = vector.broadcast %cst_18 : f32 to vector<8x1xf32>
    %36 = arith.addf %32, %35 : vector<8x1xf32>
    %37 = math.rsqrt %36 : vector<8x1xf32>
    %38 = vector.broadcast %37 : vector<8x1xf32> to vector<8x32xf32>
    %39 = arith.mulf %34, %38 : vector<8x32xf32>
    %40 = vector.broadcast %19 : vector<1x32xf32> to vector<8x32xf32>
    %41 = arith.mulf %39, %40 : vector<8x32xf32>
    %42 = vector.broadcast %21 : vector<1x32xf32> to vector<8x32xf32>
    %43 = arith.addf %41, %42 : vector<8x32xf32>
    %44 = arith.truncf %43 : vector<8x32xf32> to vector<8x32xbf16>
    %c0_19 = arith.constant 0 : index
    %c0_20 = arith.constant 0 : index
    %c0_21 = arith.constant 0 : index
    %45 = vector.load %arg6[%c0_19, %c0_20, %c0_21] : memref<1x32x96xbf16, #tpu.memory_space<vmem>>, vector<1x32x96xbf16>
    %46 = vector.shape_cast %45 : vector<1x32x96xbf16> to vector<32x96xbf16>
    %cst_22 = arith.constant dense<0.000000e+00> : vector<8x96xf32>
    %47 = tpu.matmul %44, %46, %cst_22 {dimension_numbers = #tpu.dot_dimension_numbers<[1], [0], [0], [1], [0, 0, 1, 1], [], []>} : vector<8x32xbf16>, vector<32x96xbf16>, vector<8x96xf32> -> vector<8x96xf32>
    %c0_23 = arith.constant 0 : index
    %c0_24 = arith.constant 0 : index
    %c0_25 = arith.constant 0 : index
    %48 = vector.load %arg7[%c0_23, %c0_24, %c0_25] : memref<1x1x96xf32, #tpu.memory_space<vmem>>, vector<1x1x96xf32>
    %49 = vector.shape_cast %48 : vector<1x1x96xf32> to vector<1x96xf32>
    %50 = vector.broadcast %49 : vector<1x96xf32> to vector<8x96xf32>
    %51 = arith.addf %47, %50 : vector<8x96xf32>
    %52 = vector.extract_strided_slice %51 {offsets = [0, 0], sizes = [8, 32], strides = [1, 1]} : vector<8x96xf32> to vector<8x32xf32>
    %53 = vector.extract_strided_slice %51 {offsets = [0, 32], sizes = [8, 32], strides = [1, 1]} : vector<8x96xf32> to vector<8x32xf32>
    %54 = vector.extract_strided_slice %51 {offsets = [0, 64], sizes = [8, 32], strides = [1, 1]} : vector<8x96xf32> to vector<8x32xf32>
    %55 = vector.extract_strided_slice %52 {offsets = [0, 0], sizes = [8, 8], strides = [1, 1]} : vector<8x32xf32> to vector<8x8xf32>
    %56 = arith.truncf %55 : vector<8x8xf32> to vector<8x8xbf16>
    %57 = vector.extract_strided_slice %53 {offsets = [0, 0], sizes = [8, 8], strides = [1, 1]} : vector<8x32xf32> to vector<8x8xf32>
    %58 = arith.truncf %57 : vector<8x8xf32> to vector<8x8xbf16>
    %cst_26 = arith.constant dense<0.000000e+00> : vector<8x8xf32>
    %59 = tpu.matmul %56, %58, %cst_26 {dimension_numbers = #tpu.dot_dimension_numbers<[1], [1], [0], [0], [0, 0, 1, 0], [], []>} : vector<8x8xbf16>, vector<8x8xbf16>, vector<8x8xf32> -> vector<8x8xf32>
    %cst_27 = arith.constant 0.353553385 : f32
    %60 = vector.broadcast %cst_27 : f32 to vector<8x8xf32>
    %61 = arith.mulf %59, %60 : vector<8x8xf32>
    %62 = arith.addf %61, %11 : vector<8x8xf32>
    %cst_28 = arith.constant dense<0xFF800000> : vector<8xf32>
    %63 = vector.multi_reduction <maximumf>, %62, %cst_28 [1] : vector<8x8xf32> to vector<8xf32>
    %64 = vector.shape_cast %63 : vector<8xf32> to vector<8x1xf32>
    %65 = vector.broadcast %64 : vector<8x1xf32> to vector<8x8xf32>
    %66 = arith.subf %62, %65 : vector<8x8xf32>
    %67 = math.exp %66 : vector<8x8xf32>
    %cst_29 = arith.constant dense<0.000000e+00> : vector<8xf32>
    %68 = vector.multi_reduction <add>, %67, %cst_29 [1] : vector<8x8xf32> to vector<8xf32>
    %69 = vector.shape_cast %68 : vector<8xf32> to vector<8x1xf32>
    %70 = tpu.reciprocal %69 {approx = true} : vector<8x1xf32> -> vector<8x1xf32>
    %71 = vector.broadcast %70 : vector<8x1xf32> to vector<8x8xf32>
    %72 = arith.mulf %67, %71 : vector<8x8xf32>
    %73 = arith.truncf %72 : vector<8x8xf32> to vector<8x8xbf16>
    %74 = vector.extract_strided_slice %54 {offsets = [0, 0], sizes = [8, 8], strides = [1, 1]} : vector<8x32xf32> to vector<8x8xf32>
    %75 = arith.truncf %74 : vector<8x8xf32> to vector<8x8xbf16>
    %cst_30 = arith.constant dense<0.000000e+00> : vector<8x8xf32>
    %76 = tpu.matmul %73, %75, %cst_30 {dimension_numbers = #tpu.dot_dimension_numbers<[1], [0], [0], [1], [0, 0, 1, 1], [], []>} : vector<8x8xbf16>, vector<8x8xbf16>, vector<8x8xf32> -> vector<8x8xf32>
    %77 = vector.extract_strided_slice %52 {offsets = [0, 8], sizes = [8, 8], strides = [1, 1]} : vector<8x32xf32> to vector<8x8xf32>
    %78 = arith.truncf %77 : vector<8x8xf32> to vector<8x8xbf16>
    %79 = vector.extract_strided_slice %53 {offsets = [0, 8], sizes = [8, 8], strides = [1, 1]} : vector<8x32xf32> to vector<8x8xf32>
    %80 = arith.truncf %79 : vector<8x8xf32> to vector<8x8xbf16>
    %cst_31 = arith.constant dense<0.000000e+00> : vector<8x8xf32>
    %81 = tpu.matmul %78, %80, %cst_31 {dimension_numbers = #tpu.dot_dimension_numbers<[1], [1], [0], [0], [0, 0, 1, 0], [], []>} : vector<8x8xbf16>, vector<8x8xbf16>, vector<8x8xf32> -> vector<8x8xf32>
    %cst_32 = arith.constant 0.353553385 : f32
    %82 = vector.broadcast %cst_32 : f32 to vector<8x8xf32>
    %83 = arith.mulf %81, %82 : vector<8x8xf32>
    %84 = arith.addf %83, %11 : vector<8x8xf32>
    %cst_33 = arith.constant dense<0xFF800000> : vector<8xf32>
    %85 = vector.multi_reduction <maximumf>, %84, %cst_33 [1] : vector<8x8xf32> to vector<8xf32>
    %86 = vector.shape_cast %85 : vector<8xf32> to vector<8x1xf32>
    %87 = vector.broadcast %86 : vector<8x1xf32> to vector<8x8xf32>
    %88 = arith.subf %84, %87 : vector<8x8xf32>
    %89 = math.exp %88 : vector<8x8xf32>
    %cst_34 = arith.constant dense<0.000000e+00> : vector<8xf32>
    %90 = vector.multi_reduction <add>, %89, %cst_34 [1] : vector<8x8xf32> to vector<8xf32>
    %91 = vector.shape_cast %90 : vector<8xf32> to vector<8x1xf32>
    %92 = tpu.reciprocal %91 {approx = true} : vector<8x1xf32> -> vector<8x1xf32>
    %93 = vector.broadcast %92 : vector<8x1xf32> to vector<8x8xf32>
    %94 = arith.mulf %89, %93 : vector<8x8xf32>
    %95 = arith.truncf %94 : vector<8x8xf32> to vector<8x8xbf16>
    %96 = vector.extract_strided_slice %54 {offsets = [0, 8], sizes = [8, 8], strides = [1, 1]} : vector<8x32xf32> to vector<8x8xf32>
    %97 = arith.truncf %96 : vector<8x8xf32> to vector<8x8xbf16>
    %cst_35 = arith.constant dense<0.000000e+00> : vector<8x8xf32>
    %98 = tpu.matmul %95, %97, %cst_35 {dimension_numbers = #tpu.dot_dimension_numbers<[1], [0], [0], [1], [0, 0, 1, 1], [], []>} : vector<8x8xbf16>, vector<8x8xbf16>, vector<8x8xf32> -> vector<8x8xf32>
    %99 = vector.extract_strided_slice %52 {offsets = [0, 16], sizes = [8, 8], strides = [1, 1]} : vector<8x32xf32> to vector<8x8xf32>
    %100 = arith.truncf %99 : vector<8x8xf32> to vector<8x8xbf16>
    %101 = vector.extract_strided_slice %53 {offsets = [0, 16], sizes = [8, 8], strides = [1, 1]} : vector<8x32xf32> to vector<8x8xf32>
    %102 = arith.truncf %101 : vector<8x8xf32> to vector<8x8xbf16>
    %cst_36 = arith.constant dense<0.000000e+00> : vector<8x8xf32>
    %103 = tpu.matmul %100, %102, %cst_36 {dimension_numbers = #tpu.dot_dimension_numbers<[1], [1], [0], [0], [0, 0, 1, 0], [], []>} : vector<8x8xbf16>, vector<8x8xbf16>, vector<8x8xf32> -> vector<8x8xf32>
    %cst_37 = arith.constant 0.353553385 : f32
    %104 = vector.broadcast %cst_37 : f32 to vector<8x8xf32>
    %105 = arith.mulf %103, %104 : vector<8x8xf32>
    %106 = arith.addf %105, %11 : vector<8x8xf32>
    %cst_38 = arith.constant dense<0xFF800000> : vector<8xf32>
    %107 = vector.multi_reduction <maximumf>, %106, %cst_38 [1] : vector<8x8xf32> to vector<8xf32>
    %108 = vector.shape_cast %107 : vector<8xf32> to vector<8x1xf32>
    %109 = vector.broadcast %108 : vector<8x1xf32> to vector<8x8xf32>
    %110 = arith.subf %106, %109 : vector<8x8xf32>
    %111 = math.exp %110 : vector<8x8xf32>
    %cst_39 = arith.constant dense<0.000000e+00> : vector<8xf32>
    %112 = vector.multi_reduction <add>, %111, %cst_39 [1] : vector<8x8xf32> to vector<8xf32>
    %113 = vector.shape_cast %112 : vector<8xf32> to vector<8x1xf32>
    %114 = tpu.reciprocal %113 {approx = true} : vector<8x1xf32> -> vector<8x1xf32>
    %115 = vector.broadcast %114 : vector<8x1xf32> to vector<8x8xf32>
    %116 = arith.mulf %111, %115 : vector<8x8xf32>
    %117 = arith.truncf %116 : vector<8x8xf32> to vector<8x8xbf16>
    %118 = vector.extract_strided_slice %54 {offsets = [0, 16], sizes = [8, 8], strides = [1, 1]} : vector<8x32xf32> to vector<8x8xf32>
    %119 = arith.truncf %118 : vector<8x8xf32> to vector<8x8xbf16>
    %cst_40 = arith.constant dense<0.000000e+00> : vector<8x8xf32>
    %120 = tpu.matmul %117, %119, %cst_40 {dimension_numbers = #tpu.dot_dimension_numbers<[1], [0], [0], [1], [0, 0, 1, 1], [], []>} : vector<8x8xbf16>, vector<8x8xbf16>, vector<8x8xf32> -> vector<8x8xf32>
    %121 = vector.extract_strided_slice %52 {offsets = [0, 24], sizes = [8, 8], strides = [1, 1]} : vector<8x32xf32> to vector<8x8xf32>
    %122 = arith.truncf %121 : vector<8x8xf32> to vector<8x8xbf16>
    %123 = vector.extract_strided_slice %53 {offsets = [0, 24], sizes = [8, 8], strides = [1, 1]} : vector<8x32xf32> to vector<8x8xf32>
    %124 = arith.truncf %123 : vector<8x8xf32> to vector<8x8xbf16>
    %cst_41 = arith.constant dense<0.000000e+00> : vector<8x8xf32>
    %125 = tpu.matmul %122, %124, %cst_41 {dimension_numbers = #tpu.dot_dimension_numbers<[1], [1], [0], [0], [0, 0, 1, 0], [], []>} : vector<8x8xbf16>, vector<8x8xbf16>, vector<8x8xf32> -> vector<8x8xf32>
    %cst_42 = arith.constant 0.353553385 : f32
    %126 = vector.broadcast %cst_42 : f32 to vector<8x8xf32>
    %127 = arith.mulf %125, %126 : vector<8x8xf32>
    %128 = arith.addf %127, %11 : vector<8x8xf32>
    %cst_43 = arith.constant dense<0xFF800000> : vector<8xf32>
    %129 = vector.multi_reduction <maximumf>, %128, %cst_43 [1] : vector<8x8xf32> to vector<8xf32>
    %130 = vector.shape_cast %129 : vector<8xf32> to vector<8x1xf32>
    %131 = vector.broadcast %130 : vector<8x1xf32> to vector<8x8xf32>
    %132 = arith.subf %128, %131 : vector<8x8xf32>
    %133 = math.exp %132 : vector<8x8xf32>
    %cst_44 = arith.constant dense<0.000000e+00> : vector<8xf32>
    %134 = vector.multi_reduction <add>, %133, %cst_44 [1] : vector<8x8xf32> to vector<8xf32>
    %135 = vector.shape_cast %134 : vector<8xf32> to vector<8x1xf32>
    %136 = tpu.reciprocal %135 {approx = true} : vector<8x1xf32> -> vector<8x1xf32>
    %137 = vector.broadcast %136 : vector<8x1xf32> to vector<8x8xf32>
    %138 = arith.mulf %133, %137 : vector<8x8xf32>
    %139 = arith.truncf %138 : vector<8x8xf32> to vector<8x8xbf16>
    %140 = vector.extract_strided_slice %54 {offsets = [0, 24], sizes = [8, 8], strides = [1, 1]} : vector<8x32xf32> to vector<8x8xf32>
    %141 = arith.truncf %140 : vector<8x8xf32> to vector<8x8xbf16>
    %cst_45 = arith.constant dense<0.000000e+00> : vector<8x8xf32>
    %142 = tpu.matmul %139, %141, %cst_45 {dimension_numbers = #tpu.dot_dimension_numbers<[1], [0], [0], [1], [0, 0, 1, 1], [], []>} : vector<8x8xbf16>, vector<8x8xbf16>, vector<8x8xf32> -> vector<8x8xf32>
    %143 = tpu.concatenate %76, %98, %120, %142 in 1 : vector<8x8xf32>, vector<8x8xf32>, vector<8x8xf32>, vector<8x8xf32> -> vector<8x32xf32>
    %144 = arith.truncf %143 : vector<8x32xf32> to vector<8x32xbf16>
    %c0_46 = arith.constant 0 : index
    %c0_47 = arith.constant 0 : index
    %c0_48 = arith.constant 0 : index
    %145 = vector.load %arg8[%c0_46, %c0_47, %c0_48] : memref<1x32x32xbf16, #tpu.memory_space<vmem>>, vector<1x32x32xbf16>
    %146 = vector.shape_cast %145 : vector<1x32x32xbf16> to vector<32x32xbf16>
    %cst_49 = arith.constant dense<0.000000e+00> : vector<8x32xf32>
    %147 = tpu.matmul %144, %146, %cst_49 {dimension_numbers = #tpu.dot_dimension_numbers<[1], [0], [0], [1], [0, 0, 1, 1], [], []>} : vector<8x32xbf16>, vector<32x32xbf16>, vector<8x32xf32> -> vector<8x32xf32>
    %148 = arith.addf %3, %147 : vector<8x32xf32>
    %c0_50 = arith.constant 0 : index
    %c0_51 = arith.constant 0 : index
    %c0_52 = arith.constant 0 : index
    %149 = vector.load %arg9[%c0_50, %c0_51, %c0_52] : memref<1x1x32xf32, #tpu.memory_space<vmem>>, vector<1x1x32xf32>
    %150 = vector.shape_cast %149 : vector<1x1x32xf32> to vector<1x32xf32>
    %151 = vector.broadcast %150 : vector<1x32xf32> to vector<8x32xf32>
    %152 = arith.addf %148, %151 : vector<8x32xf32>
    %c0_53 = arith.constant 0 : index
    %c0_54 = arith.constant 0 : index
    %c0_55 = arith.constant 0 : index
    %153 = vector.load %arg10[%c0_53, %c0_54, %c0_55] : memref<1x1x32xf32, #tpu.memory_space<vmem>>, vector<1x1x32xf32>
    %154 = vector.shape_cast %153 : vector<1x1x32xf32> to vector<1x32xf32>
    %c0_56 = arith.constant 0 : index
    %c0_57 = arith.constant 0 : index
    %c0_58 = arith.constant 0 : index
    %155 = vector.load %arg11[%c0_56, %c0_57, %c0_58] : memref<1x1x32xf32, #tpu.memory_space<vmem>>, vector<1x1x32xf32>
    %156 = vector.shape_cast %155 : vector<1x1x32xf32> to vector<1x32xf32>
    %cst_59 = arith.constant dense<0.000000e+00> : vector<8xf32>
    %157 = vector.multi_reduction <add>, %152, %cst_59 [1] : vector<8x32xf32> to vector<8xf32>
    %158 = vector.shape_cast %157 : vector<8xf32> to vector<8x1xf32>
    %cst_60 = arith.constant 3.200000e+01 : f32
    %159 = vector.broadcast %cst_60 : f32 to vector<8x1xf32>
    %160 = arith.divf %158, %159 : vector<8x1xf32>
    %161 = vector.broadcast %160 : vector<8x1xf32> to vector<8x32xf32>
    %162 = arith.subf %152, %161 : vector<8x32xf32>
    %163 = arith.mulf %162, %162 : vector<8x32xf32>
    %cst_61 = arith.constant dense<0.000000e+00> : vector<8xf32>
    %164 = vector.multi_reduction <add>, %163, %cst_61 [1] : vector<8x32xf32> to vector<8xf32>
    %165 = vector.shape_cast %164 : vector<8xf32> to vector<8x1xf32>
    %cst_62 = arith.constant 3.200000e+01 : f32
    %166 = vector.broadcast %cst_62 : f32 to vector<8x1xf32>
    %167 = arith.divf %165, %166 : vector<8x1xf32>
    %168 = vector.broadcast %160 : vector<8x1xf32> to vector<8x32xf32>
    %169 = arith.subf %152, %168 : vector<8x32xf32>
    %cst_63 = arith.constant 9.99999974E-6 : f32
    %170 = vector.broadcast %cst_63 : f32 to vector<8x1xf32>
    %171 = arith.addf %167, %170 : vector<8x1xf32>
    %172 = math.rsqrt %171 : vector<8x1xf32>
    %173 = vector.broadcast %172 : vector<8x1xf32> to vector<8x32xf32>
    %174 = arith.mulf %169, %173 : vector<8x32xf32>
    %175 = vector.broadcast %154 : vector<1x32xf32> to vector<8x32xf32>
    %176 = arith.mulf %174, %175 : vector<8x32xf32>
    %177 = vector.broadcast %156 : vector<1x32xf32> to vector<8x32xf32>
    %178 = arith.addf %176, %177 : vector<8x32xf32>
    %179 = arith.truncf %178 : vector<8x32xf32> to vector<8x32xbf16>
    %c0_64 = arith.constant 0 : index
    %c0_65 = arith.constant 0 : index
    %c0_66 = arith.constant 0 : index
    %180 = vector.load %arg12[%c0_64, %c0_65, %c0_66] : memref<1x32x32xbf16, #tpu.memory_space<vmem>>, vector<1x32x32xbf16>
    %181 = vector.shape_cast %180 : vector<1x32x32xbf16> to vector<32x32xbf16>
    %cst_67 = arith.constant dense<0.000000e+00> : vector<8x32xf32>
    %182 = tpu.matmul %179, %181, %cst_67 {dimension_numbers = #tpu.dot_dimension_numbers<[1], [0], [0], [1], [0, 0, 1, 1], [], []>} : vector<8x32xbf16>, vector<32x32xbf16>, vector<8x32xf32> -> vector<8x32xf32>
    %c0_68 = arith.constant 0 : index
    %c0_69 = arith.constant 0 : index
    %c0_70 = arith.constant 0 : index
    %183 = vector.load %arg13[%c0_68, %c0_69, %c0_70] : memref<1x1x32xf32, #tpu.memory_space<vmem>>, vector<1x1x32xf32>
    %184 = vector.shape_cast %183 : vector<1x1x32xf32> to vector<1x32xf32>
    %185 = vector.broadcast %184 : vector<1x32xf32> to vector<8x32xf32>
    %186 = arith.addf %182, %185 : vector<8x32xf32>
    %187 = arith.truncf %5 : vector<32x32xf32> to vector<32x32xbf16>
    %c0_71 = arith.constant 0 : index
    %c0_72 = arith.constant 0 : index
    %c0_73 = arith.constant 0 : index
    %188 = vector.load %arg14[%c0_71, %c0_72, %c0_73] : memref<1x32x64xbf16, #tpu.memory_space<vmem>>, vector<1x32x64xbf16>
    %189 = vector.shape_cast %188 : vector<1x32x64xbf16> to vector<32x64xbf16>
    %cst_74 = arith.constant dense<0.000000e+00> : vector<32x64xf32>
    %190 = tpu.matmul %187, %189, %cst_74 {dimension_numbers = #tpu.dot_dimension_numbers<[1], [0], [0], [1], [0, 0, 1, 1], [], []>} : vector<32x32xbf16>, vector<32x64xbf16>, vector<32x64xf32> -> vector<32x64xf32>
    %c0_75 = arith.constant 0 : index
    %c0_76 = arith.constant 0 : index
    %c0_77 = arith.constant 0 : index
    %191 = vector.load %arg15[%c0_75, %c0_76, %c0_77] : memref<1x1x64xf32, #tpu.memory_space<vmem>>, vector<1x1x64xf32>
    %192 = vector.shape_cast %191 : vector<1x1x64xf32> to vector<1x64xf32>
    %193 = vector.broadcast %192 : vector<1x64xf32> to vector<32x64xf32>
    %194 = arith.addf %190, %193 : vector<32x64xf32>
    %195 = vector.extract_strided_slice %194 {offsets = [0, 0], sizes = [32, 32], strides = [1, 1]} : vector<32x64xf32> to vector<32x32xf32>
    %196 = vector.extract_strided_slice %194 {offsets = [0, 32], sizes = [32, 32], strides = [1, 1]} : vector<32x64xf32> to vector<32x32xf32>
    %197 = vector.extract_strided_slice %186 {offsets = [0, 0], sizes = [8, 8], strides = [1, 1]} : vector<8x32xf32> to vector<8x8xf32>
    %198 = arith.truncf %197 : vector<8x8xf32> to vector<8x8xbf16>
    %199 = vector.extract_strided_slice %195 {offsets = [0, 0], sizes = [32, 8], strides = [1, 1]} : vector<32x32xf32> to vector<32x8xf32>
    %200 = arith.truncf %199 : vector<32x8xf32> to vector<32x8xbf16>
    %cst_78 = arith.constant dense<0.000000e+00> : vector<8x32xf32>
    %201 = tpu.matmul %198, %200, %cst_78 {dimension_numbers = #tpu.dot_dimension_numbers<[1], [1], [0], [0], [0, 0, 1, 0], [], []>} : vector<8x8xbf16>, vector<32x8xbf16>, vector<8x32xf32> -> vector<8x32xf32>
    %cst_79 = arith.constant 0.353553385 : f32
    %202 = vector.broadcast %cst_79 : f32 to vector<8x32xf32>
    %203 = arith.mulf %201, %202 : vector<8x32xf32>
    %204 = arith.addf %203, %17 : vector<8x32xf32>
    %cst_80 = arith.constant dense<0xFF800000> : vector<8xf32>
    %205 = vector.multi_reduction <maximumf>, %204, %cst_80 [1] : vector<8x32xf32> to vector<8xf32>
    %206 = vector.shape_cast %205 : vector<8xf32> to vector<8x1xf32>
    %207 = vector.broadcast %206 : vector<8x1xf32> to vector<8x32xf32>
    %208 = arith.subf %204, %207 : vector<8x32xf32>
    %209 = math.exp %208 : vector<8x32xf32>
    %cst_81 = arith.constant dense<0.000000e+00> : vector<8xf32>
    %210 = vector.multi_reduction <add>, %209, %cst_81 [1] : vector<8x32xf32> to vector<8xf32>
    %211 = vector.shape_cast %210 : vector<8xf32> to vector<8x1xf32>
    %212 = tpu.reciprocal %211 {approx = true} : vector<8x1xf32> -> vector<8x1xf32>
    %213 = vector.broadcast %212 : vector<8x1xf32> to vector<8x32xf32>
    %214 = arith.mulf %209, %213 : vector<8x32xf32>
    %215 = arith.truncf %214 : vector<8x32xf32> to vector<8x32xbf16>
    %216 = vector.extract_strided_slice %196 {offsets = [0, 0], sizes = [32, 8], strides = [1, 1]} : vector<32x32xf32> to vector<32x8xf32>
    %217 = arith.truncf %216 : vector<32x8xf32> to vector<32x8xbf16>
    %cst_82 = arith.constant dense<0.000000e+00> : vector<8x8xf32>
    %218 = tpu.matmul %215, %217, %cst_82 {dimension_numbers = #tpu.dot_dimension_numbers<[1], [0], [0], [1], [0, 0, 1, 1], [], []>} : vector<8x32xbf16>, vector<32x8xbf16>, vector<8x8xf32> -> vector<8x8xf32>
    %219 = vector.extract_strided_slice %186 {offsets = [0, 8], sizes = [8, 8], strides = [1, 1]} : vector<8x32xf32> to vector<8x8xf32>
    %220 = arith.truncf %219 : vector<8x8xf32> to vector<8x8xbf16>
    %221 = vector.extract_strided_slice %195 {offsets = [0, 8], sizes = [32, 8], strides = [1, 1]} : vector<32x32xf32> to vector<32x8xf32>
    %222 = arith.truncf %221 : vector<32x8xf32> to vector<32x8xbf16>
    %cst_83 = arith.constant dense<0.000000e+00> : vector<8x32xf32>
    %223 = tpu.matmul %220, %222, %cst_83 {dimension_numbers = #tpu.dot_dimension_numbers<[1], [1], [0], [0], [0, 0, 1, 0], [], []>} : vector<8x8xbf16>, vector<32x8xbf16>, vector<8x32xf32> -> vector<8x32xf32>
    %cst_84 = arith.constant 0.353553385 : f32
    %224 = vector.broadcast %cst_84 : f32 to vector<8x32xf32>
    %225 = arith.mulf %223, %224 : vector<8x32xf32>
    %226 = arith.addf %225, %17 : vector<8x32xf32>
    %cst_85 = arith.constant dense<0xFF800000> : vector<8xf32>
    %227 = vector.multi_reduction <maximumf>, %226, %cst_85 [1] : vector<8x32xf32> to vector<8xf32>
    %228 = vector.shape_cast %227 : vector<8xf32> to vector<8x1xf32>
    %229 = vector.broadcast %228 : vector<8x1xf32> to vector<8x32xf32>
    %230 = arith.subf %226, %229 : vector<8x32xf32>
    %231 = math.exp %230 : vector<8x32xf32>
    %cst_86 = arith.constant dense<0.000000e+00> : vector<8xf32>
    %232 = vector.multi_reduction <add>, %231, %cst_86 [1] : vector<8x32xf32> to vector<8xf32>
    %233 = vector.shape_cast %232 : vector<8xf32> to vector<8x1xf32>
    %234 = tpu.reciprocal %233 {approx = true} : vector<8x1xf32> -> vector<8x1xf32>
    %235 = vector.broadcast %234 : vector<8x1xf32> to vector<8x32xf32>
    %236 = arith.mulf %231, %235 : vector<8x32xf32>
    %237 = arith.truncf %236 : vector<8x32xf32> to vector<8x32xbf16>
    %238 = vector.extract_strided_slice %196 {offsets = [0, 8], sizes = [32, 8], strides = [1, 1]} : vector<32x32xf32> to vector<32x8xf32>
    %239 = arith.truncf %238 : vector<32x8xf32> to vector<32x8xbf16>
    %cst_87 = arith.constant dense<0.000000e+00> : vector<8x8xf32>
    %240 = tpu.matmul %237, %239, %cst_87 {dimension_numbers = #tpu.dot_dimension_numbers<[1], [0], [0], [1], [0, 0, 1, 1], [], []>} : vector<8x32xbf16>, vector<32x8xbf16>, vector<8x8xf32> -> vector<8x8xf32>
    %241 = vector.extract_strided_slice %186 {offsets = [0, 16], sizes = [8, 8], strides = [1, 1]} : vector<8x32xf32> to vector<8x8xf32>
    %242 = arith.truncf %241 : vector<8x8xf32> to vector<8x8xbf16>
    %243 = vector.extract_strided_slice %195 {offsets = [0, 16], sizes = [32, 8], strides = [1, 1]} : vector<32x32xf32> to vector<32x8xf32>
    %244 = arith.truncf %243 : vector<32x8xf32> to vector<32x8xbf16>
    %cst_88 = arith.constant dense<0.000000e+00> : vector<8x32xf32>
    %245 = tpu.matmul %242, %244, %cst_88 {dimension_numbers = #tpu.dot_dimension_numbers<[1], [1], [0], [0], [0, 0, 1, 0], [], []>} : vector<8x8xbf16>, vector<32x8xbf16>, vector<8x32xf32> -> vector<8x32xf32>
    %cst_89 = arith.constant 0.353553385 : f32
    %246 = vector.broadcast %cst_89 : f32 to vector<8x32xf32>
    %247 = arith.mulf %245, %246 : vector<8x32xf32>
    %248 = arith.addf %247, %17 : vector<8x32xf32>
    %cst_90 = arith.constant dense<0xFF800000> : vector<8xf32>
    %249 = vector.multi_reduction <maximumf>, %248, %cst_90 [1] : vector<8x32xf32> to vector<8xf32>
    %250 = vector.shape_cast %249 : vector<8xf32> to vector<8x1xf32>
    %251 = vector.broadcast %250 : vector<8x1xf32> to vector<8x32xf32>
    %252 = arith.subf %248, %251 : vector<8x32xf32>
    %253 = math.exp %252 : vector<8x32xf32>
    %cst_91 = arith.constant dense<0.000000e+00> : vector<8xf32>
    %254 = vector.multi_reduction <add>, %253, %cst_91 [1] : vector<8x32xf32> to vector<8xf32>
    %255 = vector.shape_cast %254 : vector<8xf32> to vector<8x1xf32>
    %256 = tpu.reciprocal %255 {approx = true} : vector<8x1xf32> -> vector<8x1xf32>
    %257 = vector.broadcast %256 : vector<8x1xf32> to vector<8x32xf32>
    %258 = arith.mulf %253, %257 : vector<8x32xf32>
    %259 = arith.truncf %258 : vector<8x32xf32> to vector<8x32xbf16>
    %260 = vector.extract_strided_slice %196 {offsets = [0, 16], sizes = [32, 8], strides = [1, 1]} : vector<32x32xf32> to vector<32x8xf32>
    %261 = arith.truncf %260 : vector<32x8xf32> to vector<32x8xbf16>
    %cst_92 = arith.constant dense<0.000000e+00> : vector<8x8xf32>
    %262 = tpu.matmul %259, %261, %cst_92 {dimension_numbers = #tpu.dot_dimension_numbers<[1], [0], [0], [1], [0, 0, 1, 1], [], []>} : vector<8x32xbf16>, vector<32x8xbf16>, vector<8x8xf32> -> vector<8x8xf32>
    %263 = vector.extract_strided_slice %186 {offsets = [0, 24], sizes = [8, 8], strides = [1, 1]} : vector<8x32xf32> to vector<8x8xf32>
    %264 = arith.truncf %263 : vector<8x8xf32> to vector<8x8xbf16>
    %265 = vector.extract_strided_slice %195 {offsets = [0, 24], sizes = [32, 8], strides = [1, 1]} : vector<32x32xf32> to vector<32x8xf32>
    %266 = arith.truncf %265 : vector<32x8xf32> to vector<32x8xbf16>
    %cst_93 = arith.constant dense<0.000000e+00> : vector<8x32xf32>
    %267 = tpu.matmul %264, %266, %cst_93 {dimension_numbers = #tpu.dot_dimension_numbers<[1], [1], [0], [0], [0, 0, 1, 0], [], []>} : vector<8x8xbf16>, vector<32x8xbf16>, vector<8x32xf32> -> vector<8x32xf32>
    %cst_94 = arith.constant 0.353553385 : f32
    %268 = vector.broadcast %cst_94 : f32 to vector<8x32xf32>
    %269 = arith.mulf %267, %268 : vector<8x32xf32>
    %270 = arith.addf %269, %17 : vector<8x32xf32>
    %cst_95 = arith.constant dense<0xFF800000> : vector<8xf32>
    %271 = vector.multi_reduction <maximumf>, %270, %cst_95 [1] : vector<8x32xf32> to vector<8xf32>
    %272 = vector.shape_cast %271 : vector<8xf32> to vector<8x1xf32>
    %273 = vector.broadcast %272 : vector<8x1xf32> to vector<8x32xf32>
    %274 = arith.subf %270, %273 : vector<8x32xf32>
    %275 = math.exp %274 : vector<8x32xf32>
    %cst_96 = arith.constant dense<0.000000e+00> : vector<8xf32>
    %276 = vector.multi_reduction <add>, %275, %cst_96 [1] : vector<8x32xf32> to vector<8xf32>
    %277 = vector.shape_cast %276 : vector<8xf32> to vector<8x1xf32>
    %278 = tpu.reciprocal %277 {approx = true} : vector<8x1xf32> -> vector<8x1xf32>
    %279 = vector.broadcast %278 : vector<8x1xf32> to vector<8x32xf32>
    %280 = arith.mulf %275, %279 : vector<8x32xf32>
    %281 = arith.truncf %280 : vector<8x32xf32> to vector<8x32xbf16>
    %282 = vector.extract_strided_slice %196 {offsets = [0, 24], sizes = [32, 8], strides = [1, 1]} : vector<32x32xf32> to vector<32x8xf32>
    %283 = arith.truncf %282 : vector<32x8xf32> to vector<32x8xbf16>
    %cst_97 = arith.constant dense<0.000000e+00> : vector<8x8xf32>
    %284 = tpu.matmul %281, %283, %cst_97 {dimension_numbers = #tpu.dot_dimension_numbers<[1], [0], [0], [1], [0, 0, 1, 1], [], []>} : vector<8x32xbf16>, vector<32x8xbf16>, vector<8x8xf32> -> vector<8x8xf32>
    %285 = tpu.concatenate %218, %240, %262, %284 in 1 : vector<8x8xf32>, vector<8x8xf32>, vector<8x8xf32>, vector<8x8xf32> -> vector<8x32xf32>
    %286 = arith.truncf %285 : vector<8x32xf32> to vector<8x32xbf16>
    %c0_98 = arith.constant 0 : index
    %c0_99 = arith.constant 0 : index
    %c0_100 = arith.constant 0 : index
    %287 = vector.load %arg16[%c0_98, %c0_99, %c0_100] : memref<1x32x32xbf16, #tpu.memory_space<vmem>>, vector<1x32x32xbf16>
    %288 = vector.shape_cast %287 : vector<1x32x32xbf16> to vector<32x32xbf16>
    %cst_101 = arith.constant dense<0.000000e+00> : vector<8x32xf32>
    %289 = tpu.matmul %286, %288, %cst_101 {dimension_numbers = #tpu.dot_dimension_numbers<[1], [0], [0], [1], [0, 0, 1, 1], [], []>} : vector<8x32xbf16>, vector<32x32xbf16>, vector<8x32xf32> -> vector<8x32xf32>
    %290 = arith.addf %152, %289 : vector<8x32xf32>
    %c0_102 = arith.constant 0 : index
    %c0_103 = arith.constant 0 : index
    %c0_104 = arith.constant 0 : index
    %291 = vector.load %arg17[%c0_102, %c0_103, %c0_104] : memref<1x1x32xf32, #tpu.memory_space<vmem>>, vector<1x1x32xf32>
    %292 = vector.shape_cast %291 : vector<1x1x32xf32> to vector<1x32xf32>
    %293 = vector.broadcast %292 : vector<1x32xf32> to vector<8x32xf32>
    %294 = arith.addf %290, %293 : vector<8x32xf32>
    %c0_105 = arith.constant 0 : index
    %c0_106 = arith.constant 0 : index
    %c0_107 = arith.constant 0 : index
    %295 = vector.load %arg18[%c0_105, %c0_106, %c0_107] : memref<1x1x32xf32, #tpu.memory_space<vmem>>, vector<1x1x32xf32>
    %296 = vector.shape_cast %295 : vector<1x1x32xf32> to vector<1x32xf32>
    %c0_108 = arith.constant 0 : index
    %c0_109 = arith.constant 0 : index
    %c0_110 = arith.constant 0 : index
    %297 = vector.load %arg19[%c0_108, %c0_109, %c0_110] : memref<1x1x32xf32, #tpu.memory_space<vmem>>, vector<1x1x32xf32>
    %298 = vector.shape_cast %297 : vector<1x1x32xf32> to vector<1x32xf32>
    %cst_111 = arith.constant dense<0.000000e+00> : vector<8xf32>
    %299 = vector.multi_reduction <add>, %294, %cst_111 [1] : vector<8x32xf32> to vector<8xf32>
    %300 = vector.shape_cast %299 : vector<8xf32> to vector<8x1xf32>
    %cst_112 = arith.constant 3.200000e+01 : f32
    %301 = vector.broadcast %cst_112 : f32 to vector<8x1xf32>
    %302 = arith.divf %300, %301 : vector<8x1xf32>
    %303 = vector.broadcast %302 : vector<8x1xf32> to vector<8x32xf32>
    %304 = arith.subf %294, %303 : vector<8x32xf32>
    %305 = arith.mulf %304, %304 : vector<8x32xf32>
    %cst_113 = arith.constant dense<0.000000e+00> : vector<8xf32>
    %306 = vector.multi_reduction <add>, %305, %cst_113 [1] : vector<8x32xf32> to vector<8xf32>
    %307 = vector.shape_cast %306 : vector<8xf32> to vector<8x1xf32>
    %cst_114 = arith.constant 3.200000e+01 : f32
    %308 = vector.broadcast %cst_114 : f32 to vector<8x1xf32>
    %309 = arith.divf %307, %308 : vector<8x1xf32>
    %310 = vector.broadcast %302 : vector<8x1xf32> to vector<8x32xf32>
    %311 = arith.subf %294, %310 : vector<8x32xf32>
    %cst_115 = arith.constant 9.99999974E-6 : f32
    %312 = vector.broadcast %cst_115 : f32 to vector<8x1xf32>
    %313 = arith.addf %309, %312 : vector<8x1xf32>
    %314 = math.rsqrt %313 : vector<8x1xf32>
    %315 = vector.broadcast %314 : vector<8x1xf32> to vector<8x32xf32>
    %316 = arith.mulf %311, %315 : vector<8x32xf32>
    %317 = vector.broadcast %296 : vector<1x32xf32> to vector<8x32xf32>
    %318 = arith.mulf %316, %317 : vector<8x32xf32>
    %319 = vector.broadcast %298 : vector<1x32xf32> to vector<8x32xf32>
    %320 = arith.addf %318, %319 : vector<8x32xf32>
    %321 = arith.truncf %320 : vector<8x32xf32> to vector<8x32xbf16>
    %c0_116 = arith.constant 0 : index
    %c0_117 = arith.constant 0 : index
    %c0_118 = arith.constant 0 : index
    %322 = vector.load %arg20[%c0_116, %c0_117, %c0_118] : memref<1x32x64xbf16, #tpu.memory_space<vmem>>, vector<1x32x64xbf16>
    %323 = vector.shape_cast %322 : vector<1x32x64xbf16> to vector<32x64xbf16>
    %cst_119 = arith.constant dense<0.000000e+00> : vector<8x64xf32>
    %324 = tpu.matmul %321, %323, %cst_119 {dimension_numbers = #tpu.dot_dimension_numbers<[1], [0], [0], [1], [0, 0, 1, 1], [], []>} : vector<8x32xbf16>, vector<32x64xbf16>, vector<8x64xf32> -> vector<8x64xf32>
    %c0_120 = arith.constant 0 : index
    %c0_121 = arith.constant 0 : index
    %c0_122 = arith.constant 0 : index
    %325 = vector.load %arg21[%c0_120, %c0_121, %c0_122] : memref<1x1x64xf32, #tpu.memory_space<vmem>>, vector<1x1x64xf32>
    %326 = vector.shape_cast %325 : vector<1x1x64xf32> to vector<1x64xf32>
    %327 = vector.broadcast %326 : vector<1x64xf32> to vector<8x64xf32>
    %328 = arith.addf %324, %327 : vector<8x64xf32>
    %cst_123 = arith.constant 0.000000e+00 : f32
    %329 = vector.broadcast %cst_123 : f32 to vector<8x64xf32>
    %330 = arith.maximumf %328, %329 : vector<8x64xf32>
    %331 = arith.truncf %330 : vector<8x64xf32> to vector<8x64xbf16>
    %c0_124 = arith.constant 0 : index
    %c0_125 = arith.constant 0 : index
    %c0_126 = arith.constant 0 : index
    %332 = vector.load %arg22[%c0_124, %c0_125, %c0_126] : memref<1x64x32xbf16, #tpu.memory_space<vmem>>, vector<1x64x32xbf16>
    %333 = vector.shape_cast %332 : vector<1x64x32xbf16> to vector<64x32xbf16>
    %cst_127 = arith.constant dense<0.000000e+00> : vector<8x32xf32>
    %334 = tpu.matmul %331, %333, %cst_127 {dimension_numbers = #tpu.dot_dimension_numbers<[1], [0], [0], [1], [0, 0, 1, 1], [], []>} : vector<8x64xbf16>, vector<64x32xbf16>, vector<8x32xf32> -> vector<8x32xf32>
    %335 = arith.addf %294, %334 : vector<8x32xf32>
    %c0_128 = arith.constant 0 : index
    %c0_129 = arith.constant 0 : index
    %c0_130 = arith.constant 0 : index
    %336 = vector.load %arg23[%c0_128, %c0_129, %c0_130] : memref<1x1x32xf32, #tpu.memory_space<vmem>>, vector<1x1x32xf32>
    %337 = vector.shape_cast %336 : vector<1x1x32xf32> to vector<1x32xf32>
    %338 = vector.broadcast %337 : vector<1x32xf32> to vector<8x32xf32>
    %339 = arith.addf %335, %338 : vector<8x32xf32>
    %c0_131 = arith.constant 0 : index
    %c0_132 = arith.constant 0 : index
    %340 = vector.load %arg29[%c0_131, %c0_132] : memref<8x32xf32, #tpu.memory_space<vmem>>, vector<8x32xf32>
    tpu.vector_store %arg29[%c0_131, %c0_132], %339 {strides = array<i32>} : memref<8x32xf32, #tpu.memory_space<vmem>>, vector<8x32xf32>,
    %c1_i32 = arith.constant 1 : i32
    %341 = arith.cmpi eq, %arg1, %c1_i32 : i32
    %342 = arith.extui %341 : i1 to i32
    %c0_i32_133 = arith.constant 0 : i32
    %343 = arith.cmpi ne, %342, %c0_i32_133 : i32
    scf.if %343 {
      %c0_134 = arith.constant 0 : index
      %c0_135 = arith.constant 0 : index
      %344 = vector.load %arg24[%c0_134, %c0_135] : memref<1x32xf32, #tpu.memory_space<vmem>>, vector<1x32xf32>
      %c0_136 = arith.constant 0 : index
      %c0_137 = arith.constant 0 : index
      %345 = vector.load %arg25[%c0_136, %c0_137] : memref<1x32xf32, #tpu.memory_space<vmem>>, vector<1x32xf32>
      %cst_138 = arith.constant dense<0.000000e+00> : vector<8xf32>
      %346 = vector.multi_reduction <add>, %339, %cst_138 [1] : vector<8x32xf32> to vector<8xf32>
      %347 = vector.shape_cast %346 : vector<8xf32> to vector<8x1xf32>
      %cst_139 = arith.constant 3.200000e+01 : f32
      %348 = vector.broadcast %cst_139 : f32 to vector<8x1xf32>
      %349 = arith.divf %347, %348 : vector<8x1xf32>
      %350 = vector.broadcast %349 : vector<8x1xf32> to vector<8x32xf32>
      %351 = arith.subf %339, %350 : vector<8x32xf32>
      %352 = arith.mulf %351, %351 : vector<8x32xf32>
      %cst_140 = arith.constant dense<0.000000e+00> : vector<8xf32>
      %353 = vector.multi_reduction <add>, %352, %cst_140 [1] : vector<8x32xf32> to vector<8xf32>
      %354 = vector.shape_cast %353 : vector<8xf32> to vector<8x1xf32>
      %cst_141 = arith.constant 3.200000e+01 : f32
      %355 = vector.broadcast %cst_141 : f32 to vector<8x1xf32>
      %356 = arith.divf %354, %355 : vector<8x1xf32>
      %357 = vector.broadcast %349 : vector<8x1xf32> to vector<8x32xf32>
      %358 = arith.subf %339, %357 : vector<8x32xf32>
      %cst_142 = arith.constant 9.99999974E-6 : f32
      %359 = vector.broadcast %cst_142 : f32 to vector<8x1xf32>
      %360 = arith.addf %356, %359 : vector<8x1xf32>
      %361 = math.rsqrt %360 : vector<8x1xf32>
      %362 = vector.broadcast %361 : vector<8x1xf32> to vector<8x32xf32>
      %363 = arith.mulf %358, %362 : vector<8x32xf32>
      %364 = vector.broadcast %344 : vector<1x32xf32> to vector<8x32xf32>
      %365 = arith.mulf %363, %364 : vector<8x32xf32>
      %366 = vector.broadcast %345 : vector<1x32xf32> to vector<8x32xf32>
      %367 = arith.addf %365, %366 : vector<8x32xf32>
      %368 = arith.truncf %367 : vector<8x32xf32> to vector<8x32xbf16>
      %c0_143 = arith.constant 0 : index
      %c0_144 = arith.constant 0 : index
      %369 = vector.load %arg26[%c0_143, %c0_144] : memref<32x128xbf16, #tpu.memory_space<vmem>>, vector<32x128xbf16>
      %cst_145 = arith.constant dense<0.000000e+00> : vector<8x128xf32>
      %370 = tpu.matmul %368, %369, %cst_145 {dimension_numbers = #tpu.dot_dimension_numbers<[1], [0], [0], [1], [0, 0, 1, 1], [], []>} : vector<8x32xbf16>, vector<32x128xbf16>, vector<8x128xf32> -> vector<8x128xf32>
      %c0_146 = arith.constant 0 : index
      %c0_147 = arith.constant 0 : index
      %371 = vector.load %arg27[%c0_146, %c0_147] : memref<1x128xf32, #tpu.memory_space<vmem>>, vector<1x128xf32>
      %372 = vector.broadcast %371 : vector<1x128xf32> to vector<8x128xf32>
      %373 = arith.addf %370, %372 : vector<8x128xf32>
      %c0_148 = arith.constant 0 : index
      %c0_149 = arith.constant 0 : index
      %c0_150 = arith.constant 0 : index
      %374 = vector.load %arg28[%c0_148, %c0_149, %c0_150] : memref<1x8x128xf32, #tpu.memory_space<vmem>>, vector<1x8x128xf32>
      %375 = vector.shape_cast %374 : vector<1x8x128xf32> to vector<8x128xf32>
      %376 = vector.shape_cast %373 : vector<8x128xf32> to vector<1x8x128xf32>
      tpu.vector_store %arg28[%c0_148, %c0_149, %c0_150], %376 {strides = array<i32>} : memref<1x8x128xf32, #tpu.memory_space<vmem>>, vector<1x8x128xf32>,
    } else {
    }
    return
  }
  func.func @transform_0(%arg0: i32, %arg1: i32) -> (i32, i32, i32) {
    %c0_i32 = arith.constant 0 : i32
    %c0_i32_0 = arith.constant 0 : i32
    %c0_i32_1 = arith.constant 0 : i32
    return %arg0, %c0_i32, %c0_i32_0 : i32, i32, i32
  }
  func.func @transform_1(%arg0: i32, %arg1: i32) -> (i32, i32, i32) {
    %c0_i32 = arith.constant 0 : i32
    %c0_i32_0 = arith.constant 0 : i32
    %c0_i32_1 = arith.constant 0 : i32
    return %arg0, %c0_i32, %c0_i32_0 : i32, i32, i32
  }
  func.func @transform_2(%arg0: i32, %arg1: i32) -> (i32, i32, i32) {
    %c0_i32 = arith.constant 0 : i32
    %c0_i32_0 = arith.constant 0 : i32
    %c0_i32_1 = arith.constant 0 : i32
    return %arg1, %c0_i32, %c0_i32_0 : i32, i32, i32
  }
  func.func @transform_3(%arg0: i32, %arg1: i32) -> (i32, i32, i32) {
    %c0_i32 = arith.constant 0 : i32
    %c0_i32_0 = arith.constant 0 : i32
    %c0_i32_1 = arith.constant 0 : i32
    return %arg1, %c0_i32, %c0_i32_0 : i32, i32, i32
  }
  func.func @transform_4(%arg0: i32, %arg1: i32) -> (i32, i32, i32) {
    %c0_i32 = arith.constant 0 : i32
    %c0_i32_0 = arith.constant 0 : i32
    %c0_i32_1 = arith.constant 0 : i32
    return %arg1, %c0_i32, %c0_i32_0 : i32, i32, i32
  }
  func.func @transform_5(%arg0: i32, %arg1: i32) -> (i32, i32, i32) {
    %c0_i32 = arith.constant 0 : i32
    %c0_i32_0 = arith.constant 0 : i32
    %c0_i32_1 = arith.constant 0 : i32
    return %arg1, %c0_i32, %c0_i32_0 : i32, i32, i32
  }
  func.func @transform_6(%arg0: i32, %arg1: i32) -> (i32, i32, i32) {
    %c0_i32 = arith.constant 0 : i32
    %c0_i32_0 = arith.constant 0 : i32
    %c0_i32_1 = arith.constant 0 : i32
    return %arg1, %c0_i32, %c0_i32_0 : i32, i32, i32
  }
  func.func @transform_7(%arg0: i32, %arg1: i32) -> (i32, i32, i32) {
    %c0_i32 = arith.constant 0 : i32
    %c0_i32_0 = arith.constant 0 : i32
    %c0_i32_1 = arith.constant 0 : i32
    return %arg1, %c0_i32, %c0_i32_0 : i32, i32, i32
  }
  func.func @transform_8(%arg0: i32, %arg1: i32) -> (i32, i32, i32) {
    %c0_i32 = arith.constant 0 : i32
    %c0_i32_0 = arith.constant 0 : i32
    %c0_i32_1 = arith.constant 0 : i32
    return %arg1, %c0_i32, %c0_i32_0 : i32, i32, i32
  }
  func.func @transform_9(%arg0: i32, %arg1: i32) -> (i32, i32, i32) {
    %c0_i32 = arith.constant 0 : i32
    %c0_i32_0 = arith.constant 0 : i32
    %c0_i32_1 = arith.constant 0 : i32
    return %arg1, %c0_i32, %c0_i32_0 : i32, i32, i32
  }
  func.func @transform_10(%arg0: i32, %arg1: i32) -> (i32, i32, i32) {
    %c0_i32 = arith.constant 0 : i32
    %c0_i32_0 = arith.constant 0 : i32
    %c0_i32_1 = arith.constant 0 : i32
    return %arg1, %c0_i32, %c0_i32_0 : i32, i32, i32
  }
  func.func @transform_11(%arg0: i32, %arg1: i32) -> (i32, i32, i32) {
    %c0_i32 = arith.constant 0 : i32
    %c0_i32_0 = arith.constant 0 : i32
    %c0_i32_1 = arith.constant 0 : i32
    return %arg1, %c0_i32, %c0_i32_0 : i32, i32, i32
  }
  func.func @transform_12(%arg0: i32, %arg1: i32) -> (i32, i32, i32) {
    %c0_i32 = arith.constant 0 : i32
    %c0_i32_0 = arith.constant 0 : i32
    %c0_i32_1 = arith.constant 0 : i32
    return %arg1, %c0_i32, %c0_i32_0 : i32, i32, i32
  }
  func.func @transform_13(%arg0: i32, %arg1: i32) -> (i32, i32, i32) {
    %c0_i32 = arith.constant 0 : i32
    %c0_i32_0 = arith.constant 0 : i32
    %c0_i32_1 = arith.constant 0 : i32
    return %arg1, %c0_i32, %c0_i32_0 : i32, i32, i32
  }
  func.func @transform_14(%arg0: i32, %arg1: i32) -> (i32, i32, i32) {
    %c0_i32 = arith.constant 0 : i32
    %c0_i32_0 = arith.constant 0 : i32
    %c0_i32_1 = arith.constant 0 : i32
    return %arg1, %c0_i32, %c0_i32_0 : i32, i32, i32
  }
  func.func @transform_15(%arg0: i32, %arg1: i32) -> (i32, i32, i32) {
    %c0_i32 = arith.constant 0 : i32
    %c0_i32_0 = arith.constant 0 : i32
    %c0_i32_1 = arith.constant 0 : i32
    return %arg1, %c0_i32, %c0_i32_0 : i32, i32, i32
  }
  func.func @transform_16(%arg0: i32, %arg1: i32) -> (i32, i32, i32) {
    %c0_i32 = arith.constant 0 : i32
    %c0_i32_0 = arith.constant 0 : i32
    %c0_i32_1 = arith.constant 0 : i32
    return %arg1, %c0_i32, %c0_i32_0 : i32, i32, i32
  }
  func.func @transform_17(%arg0: i32, %arg1: i32) -> (i32, i32, i32) {
    %c0_i32 = arith.constant 0 : i32
    %c0_i32_0 = arith.constant 0 : i32
    %c0_i32_1 = arith.constant 0 : i32
    return %arg1, %c0_i32, %c0_i32_0 : i32, i32, i32
  }
  func.func @transform_18(%arg0: i32, %arg1: i32) -> (i32, i32, i32) {
    %c0_i32 = arith.constant 0 : i32
    %c0_i32_0 = arith.constant 0 : i32
    %c0_i32_1 = arith.constant 0 : i32
    return %arg1, %c0_i32, %c0_i32_0 : i32, i32, i32
  }
  func.func @transform_19(%arg0: i32, %arg1: i32) -> (i32, i32, i32) {
    %c0_i32 = arith.constant 0 : i32
    %c0_i32_0 = arith.constant 0 : i32
    %c0_i32_1 = arith.constant 0 : i32
    return %arg1, %c0_i32, %c0_i32_0 : i32, i32, i32
  }
  func.func @transform_20(%arg0: i32, %arg1: i32) -> (i32, i32, i32) {
    %c0_i32 = arith.constant 0 : i32
    %c0_i32_0 = arith.constant 0 : i32
    %c0_i32_1 = arith.constant 0 : i32
    return %arg1, %c0_i32, %c0_i32_0 : i32, i32, i32
  }
  func.func @transform_21(%arg0: i32, %arg1: i32) -> (i32, i32, i32) {
    %c0_i32 = arith.constant 0 : i32
    %c0_i32_0 = arith.constant 0 : i32
    %c0_i32_1 = arith.constant 0 : i32
    return %arg1, %c0_i32, %c0_i32_0 : i32, i32, i32
  }
  func.func @transform_22(%arg0: i32, %arg1: i32) -> (i32, i32) {
    %c0_i32 = arith.constant 0 : i32
    %c0_i32_0 = arith.constant 0 : i32
    %c0_i32_1 = arith.constant 0 : i32
    return %c0_i32, %c0_i32_0 : i32, i32
  }
  func.func @transform_23(%arg0: i32, %arg1: i32) -> (i32, i32) {
    %c0_i32 = arith.constant 0 : i32
    %c0_i32_0 = arith.constant 0 : i32
    %c0_i32_1 = arith.constant 0 : i32
    return %c0_i32, %c0_i32_0 : i32, i32
  }
  func.func @transform_24(%arg0: i32, %arg1: i32) -> (i32, i32) {
    %c0_i32 = arith.constant 0 : i32
    %c0_i32_0 = arith.constant 0 : i32
    %c0_i32_1 = arith.constant 0 : i32
    return %c0_i32, %c0_i32_0 : i32, i32
  }
  func.func @transform_25(%arg0: i32, %arg1: i32) -> (i32, i32) {
    %c0_i32 = arith.constant 0 : i32
    %c0_i32_0 = arith.constant 0 : i32
    %c0_i32_1 = arith.constant 0 : i32
    return %c0_i32, %c0_i32_0 : i32, i32
  }
  func.func @transform_26(%arg0: i32, %arg1: i32) -> (i32, i32, i32) {
    %c0_i32 = arith.constant 0 : i32
    %c0_i32_0 = arith.constant 0 : i32
    %c0_i32_1 = arith.constant 0 : i32
    return %arg0, %c0_i32, %c0_i32_0 : i32, i32, i32
  }
}

</mosaic_0001>

<llo_original>
// kernel: transformer_forward.2
$region0: #{transformer_forward.2}
  #allocation0 [shape = 'u32[]', space=smem, size = 0x4, offset = 0x4, fixed_abs, tag = 'smem constant byte address 0x4 - core index']
  #allocation1 [shape = 'u32[144,128]{1,0:T(1,128)}', space=vmem, size = 0x12000, scoped, tag = 'internal scratch']
  #allocation2 [shape = 'f32[32,64]{1,0:T(8,128)}', space=vmem, size = 0x4000, scoped, tag = 'scratch operand']
  %s0 = inlined_call_operand.vmem [shape: bf16[2,32,48], index: 0, kind: input, shape index: {}]
  %s1 = inlined_call_operand.vmem [shape: f32[32,64], index: 1, kind: input, shape index: {}]
  %s2 = inlined_call_operand.vmem [shape: bf16[48,64], index: 2, kind: input, shape index: {}]
  %s3 = inlined_call_operand.vmem [shape: f32[2,1,64], index: 3, kind: input, shape index: {}]
  %s4 = inlined_call_operand.vmem [shape: f32[2,1,64], index: 4, kind: input, shape index: {}]
  %s5 = inlined_call_operand.vmem [shape: bf16[2,64,192], index: 5, kind: input, shape index: {}]
  %s6 = inlined_call_operand.vmem [shape: f32[2,1,192], index: 6, kind: input, shape index: {}]
  %s7 = inlined_call_operand.vmem [shape: bf16[2,64,64], index: 7, kind: input, shape index: {}]
  %s8 = inlined_call_operand.vmem [shape: f32[2,1,64], index: 8, kind: input, shape index: {}]
  %s9 = inlined_call_operand.vmem [shape: f32[2,1,64], index: 9, kind: input, shape index: {}]
  %s10 = inlined_call_operand.vmem [shape: f32[2,1,64], index: 10, kind: input, shape index: {}]
  %s11 = inlined_call_operand.vmem [shape: bf16[2,64,256], index: 11, kind: input, shape index: {}]
  %s12 = inlined_call_operand.vmem [shape: f32[2,1,256], index: 12, kind: input, shape index: {}]
  %s13 = inlined_call_operand.vmem [shape: bf16[2,256,64], index: 13, kind: input, shape index: {}]
  %s14 = inlined_call_operand.vmem [shape: f32[2,1,64], index: 14, kind: input, shape index: {}]
  %s15 = inlined_call_operand.vmem [shape: f32[1,64], index: 15, kind: input, shape index: {}]
  %s16 = inlined_call_operand.vmem [shape: f32[1,64], index: 16, kind: input, shape index: {}]
  %s17 = inlined_call_operand.vmem [shape: bf16[64,32], index: 17, kind: input, shape index: {}]
  %s18 = inlined_call_operand.vmem [shape: f32[1,32], index: 18, kind: input, shape index: {}]
  %s19 = inlined_call_operand.vmem [shape: f32[2,32,32], index: 19, kind: output, shape index: {}]
  %s20 = sld [smem:[#allocation0]]
  $region117: #{transformer_forward.2} parent=0
    _
  %s22 = ssub.s32 1, %s20
  %s23 = scalar_select 0, %s22, %s20
  loop: start=0, step=1, limit=6
  $region2: #{transformer_forward.2} parent=0 // loop_pre_header
    _
  $region3: #{transformer_forward.2} parent=0 // loop_header
    %s25 = sphi 0, %s29
    %p26 = scmp.ge.s32.totalorder %s25, 6
    %s32 = sphi 0, %s44
    %s33 = sphi 0, %s40
    %s34 = sphi 0, %s32
    %s35 = sphi 0, %s33
    %s36 = sphi 0, %s34
    %s37 = sphi 0, %s35
    %s47 = sphi 0, %s49
    %s50 = sphi 0, %s47
    %s51 = sphi 0, %s50
    %s67 = sphi 0, %s51
    %s71 = sphi 0, %s71
    %s73 = sphi 0, %s71
    %s74 = sphi 0, %s73
    %s88 = sphi 0, %s74
    %s92 = sphi 0, %s92
    %s94 = sphi 0, %s92
    %s95 = sphi 0, %s94
    %s109 = sphi 0, %s95
    %s115 = sphi 0, %s117
    %s118 = sphi 0, %s115
    %s119 = sphi 0, %s118
    %s135 = sphi 0, %s119
    %s141 = sphi 0, %s143
    %s144 = sphi 0, %s141
    %s145 = sphi 0, %s144
    %s161 = sphi 0, %s145
    %s167 = sphi 0, %s169
    %s170 = sphi 0, %s167
    %s171 = sphi 0, %s170
    %s187 = sphi 0, %s171
    %s193 = sphi 0, %s195
    %s196 = sphi 0, %s193
    %s197 = sphi 0, %s196
    %s213 = sphi 0, %s197
    %s219 = sphi 0, %s221
    %s222 = sphi 0, %s219
    %s223 = sphi 0, %s222
    %s239 = sphi 0, %s223
    %s245 = sphi 0, %s247
    %s248 = sphi 0, %s245
    %s249 = sphi 0, %s248
    %s265 = sphi 0, %s249
    %s271 = sphi 0, %s273
    %s274 = sphi 0, %s271
    %s275 = sphi 0, %s274
    %s291 = sphi 0, %s275
    %s297 = sphi 0, %s299
    %s300 = sphi 0, %s297
    %s301 = sphi 0, %s300
    %s317 = sphi 0, %s301
    %s323 = sphi 0, %s325
    %s326 = sphi 0, %s323
    %s327 = sphi 0, %s326
    %s343 = sphi 0, %s327
    %s349 = sphi 0, %s351
    %s352 = sphi 0, %s349
    %s353 = sphi 0, %s352
    %s369 = sphi 0, %s353
    %s375 = sphi 0, %s377
    %s378 = sphi 0, %s375
    %s379 = sphi 0, %s378
    %s395 = sphi 0, %s379
    %s401 = sphi 0, %s403
    %s404 = sphi 0, %s401
    %s405 = sphi 0, %s404
    %s421 = sphi 0, %s405
    %s425 = sphi 0, %s425
    %s427 = sphi 0, %s425
    %s428 = sphi 0, %s427
    %s442 = sphi 0, %s428
    %s446 = sphi 0, %s446
    %s448 = sphi 0, %s446
    %s449 = sphi 0, %s448
    %s463 = sphi 0, %s449
    %s467 = sphi 0, %s467
    %s469 = sphi 0, %s467
    %s470 = sphi 0, %s469
    %s484 = sphi 0, %s470
    %s488 = sphi 0, %s488
    %s490 = sphi 0, %s488
    %s491 = sphi 0, %s490
    %s505 = sphi 0, %s491
    %s511 = sphi 0, %s513
    %s514 = sphi 0, %s511
    %s515 = sphi 0, %s514
    %s531 = sphi 0, %s515
  $region4: #{transformer_forward.2} parent=0 // loop_header_branch
    %28 = sbr.rel (%p26) target = $region8
  $region5: #{transformer_forward.2} parent=0 // loop_body
    %s30 = ssub.s32 %s25, 1
    %s31 = ssub.s32 %s25, 2
    %s38 = sadd.s32 1, %s33
    %p39 = scmp.ge.s32.totalorder %s38, 2
    %s40 = scalar_select %p39, 0, %s38
    %s41 = sadd.s32 1, %s32
    %s42 = scalar_select %p39, %s41, %s32
    %p43 = scmp.ge.s32.totalorder %s42, 2
    %s44 = scalar_select %p43, 0, %s42
    %s45 = ssub.s32 %s32, %s44
    %p46 = scmp.eq.s32.totalorder %s45, 0
    %s48 = sadd.s32 %s47, 1
    %s49 = scalar_select %p46, %s47, %s48
    %p52 = pneg %p46
    %p53 = scmp.eq.s32.totalorder %s25, 3
    %p54 = por %p52, %p53
    %p55 = scmp.ne.s32.totalorder %s47, %s50
    %p56 = scmp.eq.s32.totalorder %s25, 0
    %p57 = por %p55, %p56
    %p58 = scmp.ne.s32.totalorder %s47, %s50
    %p59 = scmp.eq.s32.totalorder %s30, 3
    %p60 = por %p58, %p59
    %p61 = scmp.ne.s32.totalorder %s50, %s51
    %p62 = scmp.eq.s32.totalorder %s30, 0
    %p63 = por %p61, %p62
    %p64 = scmp.ne.s32.totalorder %s50, %s51
    %p65 = scmp.eq.s32.totalorder %s31, 3
    %p66 = por %p64, %p65
    %p68 = scmp.ne.s32.totalorder %s51, %s67
    %p69 = scmp.eq.s32.totalorder %s31, 0
    %p70 = por %p68, %p69
    %s72 = sadd.s32 %s71, 1
    %p75 = scmp.eq.s32.totalorder %s25, 3
    %p76 = scmp.ne.s32.totalorder %s71, %s73
    %p77 = scmp.eq.s32.totalorder %s25, 0
    %p78 = por %p76, %p77
    %p79 = scmp.ne.s32.totalorder %s71, %s73
    %p80 = scmp.eq.s32.totalorder %s30, 3
    %p81 = por %p79, %p80
    %p82 = scmp.ne.s32.totalorder %s73, %s74
    %p83 = scmp.eq.s32.totalorder %s30, 0
    %p84 = por %p82, %p83
    %p85 = scmp.ne.s32.totalorder %s73, %s74
    %p86 = scmp.eq.s32.totalorder %s31, 3
    %p87 = por %p85, %p86
    %p89 = scmp.ne.s32.totalorder %s74, %s88
    %p90 = scmp.eq.s32.totalorder %s31, 0
    %p91 = por %p89, %p90
    %s93 = sadd.s32 %s92, 1
    %p96 = scmp.eq.s32.totalorder %s25, 3
    %p97 = scmp.ne.s32.totalorder %s92, %s94
    %p98 = scmp.eq.s32.totalorder %s25, 0
    %p99 = por %p97, %p98
    %p100 = scmp.ne.s32.totalorder %s92, %s94
    %p101 = scmp.eq.s32.totalorder %s30, 3
    %p102 = por %p100, %p101
    %p103 = scmp.ne.s32.totalorder %s94, %s95
    %p104 = scmp.eq.s32.totalorder %s30, 0
    %p105 = por %p103, %p104
    %p106 = scmp.ne.s32.totalorder %s94, %s95
    %p107 = scmp.eq.s32.totalorder %s31, 3
    %p108 = por %p106, %p107
    %p110 = scmp.ne.s32.totalorder %s95, %s109
    %p111 = scmp.eq.s32.totalorder %s31, 0
    %p112 = por %p110, %p111
    %s113 = ssub.s32 %s33, %s40
    %p114 = scmp.eq.s32.totalorder %s113, 0
    %s116 = sadd.s32 %s115, 1
    %s117 = scalar_select %p114, %s115, %s116
    %p120 = pneg %p114
    %p121 = scmp.eq.s32.totalorder %s25, 3
    %p122 = por %p120, %p121
    %p123 = scmp.ne.s32.totalorder %s115, %s118
    %p124 = scmp.eq.s32.totalorder %s25, 0
    %p125 = por %p123, %p124
    %p126 = scmp.ne.s32.totalorder %s115, %s118
    %p127 = scmp.eq.s32.totalorder %s30, 3
    %p128 = por %p126, %p127
    %p129 = scmp.ne.s32.totalorder %s118, %s119
    %p130 = scmp.eq.s32.totalorder %s30, 0
    %p131 = por %p129, %p130
    %p132 = scmp.ne.s32.totalorder %s118, %s119
    %p133 = scmp.eq.s32.totalorder %s31, 3
    %p134 = por %p132, %p133
    %p136 = scmp.ne.s32.totalorder %s119, %s135
    %p137 = scmp.eq.s32.totalorder %s31, 0
    %p138 = por %p136, %p137
    %s139 = ssub.s32 %s33, %s40
    %p140 = scmp.eq.s32.totalorder %s139, 0
    %s142 = sadd.s32 %s141, 1
    %s143 = scalar_select %p140, %s141, %s142
    %p146 = pneg %p140
    %p147 = scmp.eq.s32.totalorder %s25, 3
    %p148 = por %p146, %p147
    %p149 = scmp.ne.s32.totalorder %s141, %s144
    %p150 = scmp.eq.s32.totalorder %s25, 0
    %p151 = por %p149, %p150
    %p152 = scmp.ne.s32.totalorder %s141, %s144
    %p153 = scmp.eq.s32.totalorder %s30, 3
    %p154 = por %p152, %p153
    %p155 = scmp.ne.s32.totalorder %s144, %s145
    %p156 = scmp.eq.s32.totalorder %s30, 0
    %p157 = por %p155, %p156
    %p158 = scmp.ne.s32.totalorder %s144, %s145
    %p159 = scmp.eq.s32.totalorder %s31, 3
    %p160 = por %p158, %p159
    %p162 = scmp.ne.s32.totalorder %s145, %s161
    %p163 = scmp.eq.s32.totalorder %s31, 0
    %p164 = por %p162, %p163
    %s165 = ssub.s32 %s33, %s40
    %p166 = scmp.eq.s32.totalorder %s165, 0
    %s168 = sadd.s32 %s167, 1
    %s169 = scalar_select %p166, %s167, %s168
    %p172 = pneg %p166
    %p173 = scmp.eq.s32.totalorder %s25, 3
    %p174 = por %p172, %p173
    %p175 = scmp.ne.s32.totalorder %s167, %s170
    %p176 = scmp.eq.s32.totalorder %s25, 0
    %p177 = por %p175, %p176
    %p178 = scmp.ne.s32.totalorder %s167, %s170
    %p179 = scmp.eq.s32.totalorder %s30, 3
    %p180 = por %p178, %p179
    %p181 = scmp.ne.s32.totalorder %s170, %s171
    %p182 = scmp.eq.s32.totalorder %s30, 0
    %p183 = por %p181, %p182
    %p184 = scmp.ne.s32.totalorder %s170, %s171
    %p185 = scmp.eq.s32.totalorder %s31, 3
    %p186 = por %p184, %p185
    %p188 = scmp.ne.s32.totalorder %s171, %s187
    %p189 = scmp.eq.s32.totalorder %s31, 0
    %p190 = por %p188, %p189
    %s191 = ssub.s32 %s33, %s40
    %p192 = scmp.eq.s32.totalorder %s191, 0
    %s194 = sadd.s32 %s193, 1
    %s195 = scalar_select %p192, %s193, %s194
    %p198 = pneg %p192
    %p199 = scmp.eq.s32.totalorder %s25, 3
    %p200 = por %p198, %p199
    %p201 = scmp.ne.s32.totalorder %s193, %s196
    %p202 = scmp.eq.s32.totalorder %s25, 0
    %p203 = por %p201, %p202
    %p204 = scmp.ne.s32.totalorder %s193, %s196
    %p205 = scmp.eq.s32.totalorder %s30, 3
    %p206 = por %p204, %p205
    %p207 = scmp.ne.s32.totalorder %s196, %s197
    %p208 = scmp.eq.s32.totalorder %s30, 0
    %p209 = por %p207, %p208
    %p210 = scmp.ne.s32.totalorder %s196, %s197
    %p211 = scmp.eq.s32.totalorder %s31, 3
    %p212 = por %p210, %p211
    %p214 = scmp.ne.s32.totalorder %s197, %s213
    %p215 = scmp.eq.s32.totalorder %s31, 0
    %p216 = por %p214, %p215
    %s217 = ssub.s32 %s33, %s40
    %p218 = scmp.eq.s32.totalorder %s217, 0
    %s220 = sadd.s32 %s219, 1
    %s221 = scalar_select %p218, %s219, %s220
    %p224 = pneg %p218
    %p225 = scmp.eq.s32.totalorder %s25, 3
    %p226 = por %p224, %p225
    %p227 = scmp.ne.s32.totalorder %s219, %s222
    %p228 = scmp.eq.s32.totalorder %s25, 0
    %p229 = por %p227, %p228
    %p230 = scmp.ne.s32.totalorder %s219, %s222
    %p231 = scmp.eq.s32.totalorder %s30, 3
    %p232 = por %p230, %p231
    %p233 = scmp.ne.s32.totalorder %s222, %s223
    %p234 = scmp.eq.s32.totalorder %s30, 0
    %p235 = por %p233, %p234
    %p236 = scmp.ne.s32.totalorder %s222, %s223
    %p237 = scmp.eq.s32.totalorder %s31, 3
    %p238 = por %p236, %p237
    %p240 = scmp.ne.s32.totalorder %s223, %s239
    %p241 = scmp.eq.s32.totalorder %s31, 0
    %p242 = por %p240, %p241
    %s243 = ssub.s32 %s33, %s40
    %p244 = scmp.eq.s32.totalorder %s243, 0
    %s246 = sadd.s32 %s245, 1
    %s247 = scalar_select %p244, %s245, %s246
    %p250 = pneg %p244
    %p251 = scmp.eq.s32.totalorder %s25, 3
    %p252 = por %p250, %p251
    %p253 = scmp.ne.s32.totalorder %s245, %s248
    %p254 = scmp.eq.s32.totalorder %s25, 0
    %p255 = por %p253, %p254
    %p256 = scmp.ne.s32.totalorder %s245, %s248
    %p257 = scmp.eq.s32.totalorder %s30, 3
    %p258 = por %p256, %p257
    %p259 = scmp.ne.s32.totalorder %s248, %s249
    %p260 = scmp.eq.s32.totalorder %s30, 0
    %p261 = por %p259, %p260
    %p262 = scmp.ne.s32.totalorder %s248, %s249
    %p263 = scmp.eq.s32.totalorder %s31, 3
    %p264 = por %p262, %p263
    %p266 = scmp.ne.s32.totalorder %s249, %s265
    %p267 = scmp.eq.s32.totalorder %s31, 0
    %p268 = por %p266, %p267
    %s269 = ssub.s32 %s33, %s40
    %p270 = scmp.eq.s32.totalorder %s269, 0
    %s272 = sadd.s32 %s271, 1
    %s273 = scalar_select %p270, %s271, %s272
    %p276 = pneg %p270
    %p277 = scmp.eq.s32.totalorder %s25, 3
    %p278 = por %p276, %p277
    %p279 = scmp.ne.s32.totalorder %s271, %s274
    %p280 = scmp.eq.s32.totalorder %s25, 0
    %p281 = por %p279, %p280
    %p282 = scmp.ne.s32.totalorder %s271, %s274
    %p283 = scmp.eq.s32.totalorder %s30, 3
    %p284 = por %p282, %p283
    %p285 = scmp.ne.s32.totalorder %s274, %s275
    %p286 = scmp.eq.s32.totalorder %s30, 0
    %p287 = por %p285, %p286
    %p288 = scmp.ne.s32.totalorder %s274, %s275
    %p289 = scmp.eq.s32.totalorder %s31, 3
    %p290 = por %p288, %p289
    %p292 = scmp.ne.s32.totalorder %s275, %s291
    %p293 = scmp.eq.s32.totalorder %s31, 0
    %p294 = por %p292, %p293
    %s295 = ssub.s32 %s33, %s40
    %p296 = scmp.eq.s32.totalorder %s295, 0
    %s298 = sadd.s32 %s297, 1
    %s299 = scalar_select %p296, %s297, %s298
    %p302 = pneg %p296
    %p303 = scmp.eq.s32.totalorder %s25, 3
    %p304 = por %p302, %p303
    %p305 = scmp.ne.s32.totalorder %s297, %s300
    %p306 = scmp.eq.s32.totalorder %s25, 0
    %p307 = por %p305, %p306
    %p308 = scmp.ne.s32.totalorder %s297, %s300
    %p309 = scmp.eq.s32.totalorder %s30, 3
    %p310 = por %p308, %p309
    %p311 = scmp.ne.s32.totalorder %s300, %s301
    %p312 = scmp.eq.s32.totalorder %s30, 0
    %p313 = por %p311, %p312
    %p314 = scmp.ne.s32.totalorder %s300, %s301
    %p315 = scmp.eq.s32.totalorder %s31, 3
    %p316 = por %p314, %p315
    %p318 = scmp.ne.s32.totalorder %s301, %s317
    %p319 = scmp.eq.s32.totalorder %s31, 0
    %p320 = por %p318, %p319
    %s321 = ssub.s32 %s33, %s40
    %p322 = scmp.eq.s32.totalorder %s321, 0
    %s324 = sadd.s32 %s323, 1
    %s325 = scalar_select %p322, %s323, %s324
    %p328 = pneg %p322
    %p329 = scmp.eq.s32.totalorder %s25, 3
    %p330 = por %p328, %p329
    %p331 = scmp.ne.s32.totalorder %s323, %s326
    %p332 = scmp.eq.s32.totalorder %s25, 0
    %p333 = por %p331, %p332
    %p334 = scmp.ne.s32.totalorder %s323, %s326
    %p335 = scmp.eq.s32.totalorder %s30, 3
    %p336 = por %p334, %p335
    %p337 = scmp.ne.s32.totalorder %s326, %s327
    %p338 = scmp.eq.s32.totalorder %s30, 0
    %p339 = por %p337, %p338
    %p340 = scmp.ne.s32.totalorder %s326, %s327
    %p341 = scmp.eq.s32.totalorder %s31, 3
    %p342 = por %p340, %p341
    %p344 = scmp.ne.s32.totalorder %s327, %s343
    %p345 = scmp.eq.s32.totalorder %s31, 0
    %p346 = por %p344, %p345
    %s347 = ssub.s32 %s33, %s40
    %p348 = scmp.eq.s32.totalorder %s347, 0
    %s350 = sadd.s32 %s349, 1
    %s351 = scalar_select %p348, %s349, %s350
    %p354 = pneg %p348
    %p355 = scmp.eq.s32.totalorder %s25, 3
    %p356 = por %p354, %p355
    %p357 = scmp.ne.s32.totalorder %s349, %s352
    %p358 = scmp.eq.s32.totalorder %s25, 0
    %p359 = por %p357, %p358
    %p360 = scmp.ne.s32.totalorder %s349, %s352
    %p361 = scmp.eq.s32.totalorder %s30, 3
    %p362 = por %p360, %p361
    %p363 = scmp.ne.s32.totalorder %s352, %s353
    %p364 = scmp.eq.s32.totalorder %s30, 0
    %p365 = por %p363, %p364
    %p366 = scmp.ne.s32.totalorder %s352, %s353
    %p367 = scmp.eq.s32.totalorder %s31, 3
    %p368 = por %p366, %p367
    %p370 = scmp.ne.s32.totalorder %s353, %s369
    %p371 = scmp.eq.s32.totalorder %s31, 0
    %p372 = por %p370, %p371
    %s373 = ssub.s32 %s33, %s40
    %p374 = scmp.eq.s32.totalorder %s373, 0
    %s376 = sadd.s32 %s375, 1
    %s377 = scalar_select %p374, %s375, %s376
    %p380 = pneg %p374
    %p381 = scmp.eq.s32.totalorder %s25, 3
    %p382 = por %p380, %p381
    %p383 = scmp.ne.s32.totalorder %s375, %s378
    %p384 = scmp.eq.s32.totalorder %s25, 0
    %p385 = por %p383, %p384
    %p386 = scmp.ne.s32.totalorder %s375, %s378
    %p387 = scmp.eq.s32.totalorder %s30, 3
    %p388 = por %p386, %p387
    %p389 = scmp.ne.s32.totalorder %s378, %s379
    %p390 = scmp.eq.s32.totalorder %s30, 0
    %p391 = por %p389, %p390
    %p392 = scmp.ne.s32.totalorder %s378, %s379
    %p393 = scmp.eq.s32.totalorder %s31, 3
    %p394 = por %p392, %p393
    %p396 = scmp.ne.s32.totalorder %s379, %s395
    %p397 = scmp.eq.s32.totalorder %s31, 0
    %p398 = por %p396, %p397
    %s399 = ssub.s32 %s33, %s40
    %p400 = scmp.eq.s32.totalorder %s399, 0
    %s402 = sadd.s32 %s401, 1
    %s403 = scalar_select %p400, %s401, %s402
    %p406 = pneg %p400
    %p407 = scmp.eq.s32.totalorder %s25, 3
    %p408 = por %p406, %p407
    %p409 = scmp.ne.s32.totalorder %s401, %s404
    %p410 = scmp.eq.s32.totalorder %s25, 0
    %p411 = por %p409, %p410
    %p412 = scmp.ne.s32.totalorder %s401, %s404
    %p413 = scmp.eq.s32.totalorder %s30, 3
    %p414 = por %p412, %p413
    %p415 = scmp.ne.s32.totalorder %s404, %s405
    %p416 = scmp.eq.s32.totalorder %s30, 0
    %p417 = por %p415, %p416
    %p418 = scmp.ne.s32.totalorder %s404, %s405
    %p419 = scmp.eq.s32.totalorder %s31, 3
    %p420 = por %p418, %p419
    %p422 = scmp.ne.s32.totalorder %s405, %s421
    %p423 = scmp.eq.s32.totalorder %s31, 0
    %p424 = por %p422, %p423
    %s426 = sadd.s32 %s425, 1
    %p429 = scmp.eq.s32.totalorder %s25, 3
    %p430 = scmp.ne.s32.totalorder %s425, %s427
    %p431 = scmp.eq.s32.totalorder %s25, 0
    %p432 = por %p430, %p431
    %p433 = scmp.ne.s32.totalorder %s425, %s427
    %p434 = scmp.eq.s32.totalorder %s30, 3
    %p435 = por %p433, %p434
    %p436 = scmp.ne.s32.totalorder %s427, %s428
    %p437 = scmp.eq.s32.totalorder %s30, 0
    %p438 = por %p436, %p437
    %p439 = scmp.ne.s32.totalorder %s427, %s428
    %p440 = scmp.eq.s32.totalorder %s31, 3
    %p441 = por %p439, %p440
    %p443 = scmp.ne.s32.totalorder %s428, %s442
    %p444 = scmp.eq.s32.totalorder %s31, 0
    %p445 = por %p443, %p444
    %s447 = sadd.s32 %s446, 1
    %p450 = scmp.eq.s32.totalorder %s25, 3
    %p451 = scmp.ne.s32.totalorder %s446, %s448
    %p452 = scmp.eq.s32.totalorder %s25, 0
    %p453 = por %p451, %p452
    %p454 = scmp.ne.s32.totalorder %s446, %s448
    %p455 = scmp.eq.s32.totalorder %s30, 3
    %p456 = por %p454, %p455
    %p457 = scmp.ne.s32.totalorder %s448, %s449
    %p458 = scmp.eq.s32.totalorder %s30, 0
    %p459 = por %p457, %p458
    %p460 = scmp.ne.s32.totalorder %s448, %s449
    %p461 = scmp.eq.s32.totalorder %s31, 3
    %p462 = por %p460, %p461
    %p464 = scmp.ne.s32.totalorder %s449, %s463
    %p465 = scmp.eq.s32.totalorder %s31, 0
    %p466 = por %p464, %p465
    %s468 = sadd.s32 %s467, 1
    %p471 = scmp.eq.s32.totalorder %s25, 3
    %p472 = scmp.ne.s32.totalorder %s467, %s469
    %p473 = scmp.eq.s32.totalorder %s25, 0
    %p474 = por %p472, %p473
    %p475 = scmp.ne.s32.totalorder %s467, %s469
    %p476 = scmp.eq.s32.totalorder %s30, 3
    %p477 = por %p475, %p476
    %p478 = scmp.ne.s32.totalorder %s469, %s470
    %p479 = scmp.eq.s32.totalorder %s30, 0
    %p480 = por %p478, %p479
    %p481 = scmp.ne.s32.totalorder %s469, %s470
    %p482 = scmp.eq.s32.totalorder %s31, 3
    %p483 = por %p481, %p482
    %p485 = scmp.ne.s32.totalorder %s470, %s484
    %p486 = scmp.eq.s32.totalorder %s31, 0
    %p487 = por %p485, %p486
    %s489 = sadd.s32 %s488, 1
    %p492 = scmp.eq.s32.totalorder %s25, 3
    %p493 = scmp.ne.s32.totalorder %s488, %s490
    %p494 = scmp.eq.s32.totalorder %s25, 0
    %p495 = por %p493, %p494
    %p496 = scmp.ne.s32.totalorder %s488, %s490
    %p497 = scmp.eq.s32.totalorder %s30, 3
    %p498 = por %p496, %p497
    %p499 = scmp.ne.s32.totalorder %s490, %s491
    %p500 = scmp.eq.s32.totalorder %s30, 0
    %p501 = por %p499, %p500
    %p502 = scmp.ne.s32.totalorder %s490, %s491
    %p503 = scmp.eq.s32.totalorder %s31, 3
    %p504 = por %p502, %p503
    %p506 = scmp.ne.s32.totalorder %s491, %s505
    %p507 = scmp.eq.s32.totalorder %s31, 0
    %p508 = por %p506, %p507
    %s509 = ssub.s32 %s32, %s44
    %p510 = scmp.eq.s32.totalorder %s509, 0
    %s512 = sadd.s32 %s511, 1
    %s513 = scalar_select %p510, %s511, %s512
    %p516 = pneg %p510
    %p517 = scmp.eq.s32.totalorder %s25, 3
    %p518 = por %p516, %p517
    %p519 = scmp.ne.s32.totalorder %s511, %s514
    %p520 = scmp.eq.s32.totalorder %s25, 0
    %p521 = por %p519, %p520
    %p522 = scmp.ne.s32.totalorder %s511, %s514
    %p523 = scmp.eq.s32.totalorder %s30, 3
    %p524 = por %p522, %p523
    %p525 = scmp.ne.s32.totalorder %s514, %s515
    %p526 = scmp.eq.s32.totalorder %s30, 0
    %p527 = por %p525, %p526
    %p528 = scmp.ne.s32.totalorder %s514, %s515
    %p529 = scmp.eq.s32.totalorder %s31, 3
    %p530 = por %p528, %p529
    %p532 = scmp.ne.s32.totalorder %s515, %s531
    %p533 = scmp.eq.s32.totalorder %s31, 0
    %p534 = por %p532, %p533
    %p535 = scmp.le.s32.totalorder 1, %s25
    %p536 = scmp.lt.s32.totalorder %s25, 5
    %p537 = pnand %p535, %p536
    %p538 = pneg %p537
    // Predicated region
    $region9: #{transformer_forward.2} parent=5 // pred_check
      _
    $region10: #{transformer_forward.2} parent=5 // pred_check_branch
      %540 = sbr.rel (%p537) target = $region12
    $region11: #{transformer_forward.2} parent=5 // pred_region
      %s541 = ssub.s32 %s25, 1
      // Predicated region
      $region13: #{transformer_forward.2} parent=11 // pred_check
        %p542 = pneg %p84
      $region14: #{transformer_forward.2} parent=11 // pred_check_branch
        %544 = sbr.rel (%p542) target = $region16
      $region15: #{transformer_forward.2} parent=11 // pred_region
        _
      $region16: #{transformer_forward.2} parent=11 // pred_fallthru
        _
      // Predicated region
      $region17: #{transformer_forward.2} parent=11 // pred_check
        %p545 = pneg %p105
      $region18: #{transformer_forward.2} parent=11 // pred_check_branch
        %547 = sbr.rel (%p545) target = $region20
      $region19: #{transformer_forward.2} parent=11 // pred_region
        _
      $region20: #{transformer_forward.2} parent=11 // pred_fallthru
        _
      // Predicated region
      $region21: #{transformer_forward.2} parent=11 // pred_check
        %p548 = pneg %p438
      $region22: #{transformer_forward.2} parent=11 // pred_check_branch
        %550 = sbr.rel (%p548) target = $region24
      $region23: #{transformer_forward.2} parent=11 // pred_region
        _
      $region24: #{transformer_forward.2} parent=11 // pred_fallthru
        _
      // Predicated region
      $region25: #{transformer_forward.2} parent=11 // pred_check
        %p551 = pneg %p459
      $region26: #{transformer_forward.2} parent=11 // pred_check_branch
        %553 = sbr.rel (%p551) target = $region28
      $region27: #{transformer_forward.2} parent=11 // pred_region
        _
      $region28: #{transformer_forward.2} parent=11 // pred_fallthru
        _
      // Predicated region
      $region29: #{transformer_forward.2} parent=11 // pred_check
        %p554 = pneg %p480
      $region30: #{transformer_forward.2} parent=11 // pred_check_branch
        %556 = sbr.rel (%p554) target = $region32
      $region31: #{transformer_forward.2} parent=11 // pred_region
        _
      $region32: #{transformer_forward.2} parent=11 // pred_fallthru
        _
      // Predicated region
      $region33: #{transformer_forward.2} parent=11 // pred_check
        %p557 = pneg %p501
      $region34: #{transformer_forward.2} parent=11 // pred_check_branch
        %559 = sbr.rel (%p557) target = $region36
      $region35: #{transformer_forward.2} parent=11 // pred_region
        _
      $region36: #{transformer_forward.2} parent=11 // pred_fallthru
        _
    $region12: #{transformer_forward.2} parent=5 // pred_fallthru
      _
    %p560 = scmp.lt.s32.totalorder %s25, 4
    // Predicated region
    $region37: #{transformer_forward.2} parent=5 // pred_check
      %p561 = pneg %p560
    $region38: #{transformer_forward.2} parent=5 // pred_check_branch
      %563 = sbr.rel (%p561) target = $region40
    $region39: #{transformer_forward.2} parent=5 // pred_region
      // Predicated region
      $region41: #{transformer_forward.2} parent=39 // pred_check
        %p564 = pneg %p57
      $region42: #{transformer_forward.2} parent=39 // pred_check_branch
        %566 = sbr.rel (%p564) target = $region44
      $region43: #{transformer_forward.2} parent=39 // pred_region
        %p567 = scmp.lt.s32.totalorder %s32, 1
        %s568 = scalar_select %p567, %s32, 1
        %s569 = smul.addr %s568, 4
        %s570 = smul.addr %s569, 4
        %s571 = scalar_lea.vmem %s0, %s570
      $region44: #{transformer_forward.2} parent=39 // pred_fallthru
        _
      // Predicated region
      $region45: #{transformer_forward.2} parent=39 // pred_check
        %p572 = pneg %p125
      $region46: #{transformer_forward.2} parent=39 // pred_check_branch
        %574 = sbr.rel (%p572) target = $region48
      $region47: #{transformer_forward.2} parent=39 // pred_region
        %p575 = scmp.lt.s32.totalorder %s33, 1
        %s576 = scalar_select %p575, %s33, 1
        %s577 = scalar_lea.vmem %s3, %s576
      $region48: #{transformer_forward.2} parent=39 // pred_fallthru
        _
      // Predicated region
      $region49: #{transformer_forward.2} parent=39 // pred_check
        %p578 = pneg %p151
      $region50: #{transformer_forward.2} parent=39 // pred_check_branch
        %580 = sbr.rel (%p578) target = $region52
      $region51: #{transformer_forward.2} parent=39 // pred_region
        %p581 = scmp.lt.s32.totalorder %s33, 1
        %s582 = scalar_select %p581, %s33, 1
        %s583 = scalar_lea.vmem %s4, %s582
      $region52: #{transformer_forward.2} parent=39 // pred_fallthru
        _
      // Predicated region
      $region53: #{transformer_forward.2} parent=39 // pred_check
        %p584 = pneg %p177
      $region54: #{transformer_forward.2} parent=39 // pred_check_branch
        %586 = sbr.rel (%p584) target = $region56
      $region55: #{transformer_forward.2} parent=39 // pred_region
        %p587 = scmp.lt.s32.totalorder %s33, 1
        %s588 = scalar_select %p587, %s33, 1
        %s589 = smul.addr %s588, 16
        %s590 = smul.addr %s589, 4
        %s591 = scalar_lea.vmem %s5, %s590
      $region56: #{transformer_forward.2} parent=39 // pred_fallthru
        _
      // Predicated region
      $region57: #{transformer_forward.2} parent=39 // pred_check
        %p592 = pneg %p203
      $region58: #{transformer_forward.2} parent=39 // pred_check_branch
        %594 = sbr.rel (%p592) target = $region60
      $region59: #{transformer_forward.2} parent=39 // pred_region
        %p595 = scmp.lt.s32.totalorder %s33, 1
        %s596 = scalar_select %p595, %s33, 1
        %s597 = smul.addr %s596, 2
        %s598 = scalar_lea.vmem %s6, %s597
      $region60: #{transformer_forward.2} parent=39 // pred_fallthru
        _
      // Predicated region
      $region61: #{transformer_forward.2} parent=39 // pred_check
        %p599 = pneg %p229
      $region62: #{transformer_forward.2} parent=39 // pred_check_branch
        %601 = sbr.rel (%p599) target = $region64
      $region63: #{transformer_forward.2} parent=39 // pred_region
        %p602 = scmp.lt.s32.totalorder %s33, 1
        %s603 = scalar_select %p602, %s33, 1
        %s604 = smul.addr %s603, 8
        %s605 = smul.addr %s604, 4
        %s606 = scalar_lea.vmem %s7, %s605
      $region64: #{transformer_forward.2} parent=39 // pred_fallthru
        _
      // Predicated region
      $region65: #{transformer_forward.2} parent=39 // pred_check
        %p607 = pneg %p255
      $region66: #{transformer_forward.2} parent=39 // pred_check_branch
        %609 = sbr.rel (%p607) target = $region68
      $region67: #{transformer_forward.2} parent=39 // pred_region
        %p610 = scmp.lt.s32.totalorder %s33, 1
        %s611 = scalar_select %p610, %s33, 1
        %s612 = scalar_lea.vmem %s8, %s611
      $region68: #{transformer_forward.2} parent=39 // pred_fallthru
        _
      // Predicated region
      $region69: #{transformer_forward.2} parent=39 // pred_check
        %p613 = pneg %p281
      $region70: #{transformer_forward.2} parent=39 // pred_check_branch
        %615 = sbr.rel (%p613) target = $region72
      $region71: #{transformer_forward.2} parent=39 // pred_region
        %p616 = scmp.lt.s32.totalorder %s33, 1
        %s617 = scalar_select %p616, %s33, 1
        %s618 = scalar_lea.vmem %s9, %s617
      $region72: #{transformer_forward.2} parent=39 // pred_fallthru
        _
      // Predicated region
      $region73: #{transformer_forward.2} parent=39 // pred_check
        %p619 = pneg %p307
      $region74: #{transformer_forward.2} parent=39 // pred_check_branch
        %621 = sbr.rel (%p619) target = $region76
      $region75: #{transformer_forward.2} parent=39 // pred_region
        %p622 = scmp.lt.s32.totalorder %s33, 1
        %s623 = scalar_select %p622, %s33, 1
        %s624 = scalar_lea.vmem %s10, %s623
      $region76: #{transformer_forward.2} parent=39 // pred_fallthru
        _
      // Predicated region
      $region77: #{transformer_forward.2} parent=39 // pred_check
        %p625 = pneg %p333
      $region78: #{transformer_forward.2} parent=39 // pred_check_branch
        %627 = sbr.rel (%p625) target = $region80
      $region79: #{transformer_forward.2} parent=39 // pred_region
        %p628 = scmp.lt.s32.totalorder %s33, 1
        %s629 = scalar_select %p628, %s33, 1
        %s630 = smul.addr %s629, 16
        %s631 = smul.addr %s630, 4
        %s632 = scalar_lea.vmem %s11, %s631
      $region80: #{transformer_forward.2} parent=39 // pred_fallthru
        _
      // Predicated region
      $region81: #{transformer_forward.2} parent=39 // pred_check
        %p633 = pneg %p359
      $region82: #{transformer_forward.2} parent=39 // pred_check_branch
        %635 = sbr.rel (%p633) target = $region84
      $region83: #{transformer_forward.2} parent=39 // pred_region
        %p636 = scmp.lt.s32.totalorder %s33, 1
        %s637 = scalar_select %p636, %s33, 1
        %s638 = smul.addr %s637, 2
        %s639 = scalar_lea.vmem %s12, %s638
      $region84: #{transformer_forward.2} parent=39 // pred_fallthru
        _
      // Predicated region
      $region85: #{transformer_forward.2} parent=39 // pred_check
        %p640 = pneg %p385
      $region86: #{transformer_forward.2} parent=39 // pred_check_branch
        %642 = sbr.rel (%p640) target = $region88
      $region87: #{transformer_forward.2} parent=39 // pred_region
        %p643 = scmp.lt.s32.totalorder %s33, 1
        %s644 = scalar_select %p643, %s33, 1
        %s645 = smul.addr %s644, 32
        %s646 = smul.addr %s645, 4
        %s647 = scalar_lea.vmem %s13, %s646
      $region88: #{transformer_forward.2} parent=39 // pred_fallthru
        _
      // Predicated region
      $region89: #{transformer_forward.2} parent=39 // pred_check
        %p648 = pneg %p411
      $region90: #{transformer_forward.2} parent=39 // pred_check_branch
        %650 = sbr.rel (%p648) target = $region92
      $region91: #{transformer_forward.2} parent=39 // pred_region
        %p651 = scmp.lt.s32.totalorder %s33, 1
        %s652 = scalar_select %p651, %s33, 1
        %s653 = scalar_lea.vmem %s14, %s652
      $region92: #{transformer_forward.2} parent=39 // pred_fallthru
        _
    $region40: #{transformer_forward.2} parent=5 // pred_fallthru
      _
    %p654 = scmp.le.s32.totalorder 1, %s25
    %p655 = scmp.lt.s32.totalorder %s25, 5
    %p656 = pnand %p654, %p655
    %p657 = pneg %p656
    // Predicated region
    $region93: #{transformer_forward.2} parent=5 // pred_check
      _
    $region94: #{transformer_forward.2} parent=5 // pred_check_branch
      %659 = sbr.rel (%p656) target = $region96
    $region95: #{transformer_forward.2} parent=5 // pred_region
      %s660 = ssub.s32 %s25, 1
      %p661 = scmp.lt.s32.totalorder %s34, 1
      %s662 = scalar_select %p661, %s34, 1
      %s663 = smul.addr %s662, 4
      %s664 = smul.addr %s663, 4
      %s665 = scalar_lea.vmem %s0, %s664
      %p666 = pneg %p63
      %p667 = pneg %p60
      %p668 = pneg %p84
      %p669 = pneg %p81
      %p670 = pneg %p105
      %p671 = pneg %p102
      %p672 = scmp.lt.s32.totalorder %s35, 1
      %s673 = scalar_select %p672, %s35, 1
      %s674 = scalar_lea.vmem %s3, %s673
      %p675 = pneg %p131
      %p676 = pneg %p128
      %p677 = scmp.lt.s32.totalorder %s35, 1
      %s678 = scalar_select %p677, %s35, 1
      %s679 = scalar_lea.vmem %s4, %s678
      %p680 = pneg %p157
      %p681 = pneg %p154
      %p682 = scmp.lt.s32.totalorder %s35, 1
      %s683 = scalar_select %p682, %s35, 1
      %s684 = smul.addr %s683, 16
      %s685 = smul.addr %s684, 4
      %s686 = scalar_lea.vmem %s5, %s685
      %p687 = pneg %p183
      %p688 = pneg %p180
      %p689 = scmp.lt.s32.totalorder %s35, 1
      %s690 = scalar_select %p689, %s35, 1
      %s691 = smul.addr %s690, 2
      %s692 = scalar_lea.vmem %s6, %s691
      %p693 = pneg %p209
      %p694 = pneg %p206
      %p695 = scmp.lt.s32.totalorder %s35, 1
      %s696 = scalar_select %p695, %s35, 1
      %s697 = smul.addr %s696, 8
      %s698 = smul.addr %s697, 4
      %s699 = scalar_lea.vmem %s7, %s698
      %p700 = pneg %p235
      %p701 = pneg %p232
      %p702 = scmp.lt.s32.totalorder %s35, 1
      %s703 = scalar_select %p702, %s35, 1
      %s704 = scalar_lea.vmem %s8, %s703
      %p705 = pneg %p261
      %p706 = pneg %p258
      %p707 = scmp.lt.s32.totalorder %s35, 1
      %s708 = scalar_select %p707, %s35, 1
      %s709 = scalar_lea.vmem %s9, %s708
      %p710 = pneg %p287
      %p711 = pneg %p284
      %p712 = scmp.lt.s32.totalorder %s35, 1
      %s713 = scalar_select %p712, %s35, 1
      %s714 = scalar_lea.vmem %s10, %s713
      %p715 = pneg %p313
      %p716 = pneg %p310
      %p717 = scmp.lt.s32.totalorder %s35, 1
      %s718 = scalar_select %p717, %s35, 1
      %s719 = smul.addr %s718, 16
      %s720 = smul.addr %s719, 4
      %s721 = scalar_lea.vmem %s11, %s720
      %p722 = pneg %p339
      %p723 = pneg %p336
      %p724 = scmp.lt.s32.totalorder %s35, 1
      %s725 = scalar_select %p724, %s35, 1
      %s726 = smul.addr %s725, 2
      %s727 = scalar_lea.vmem %s12, %s726
      %p728 = pneg %p365
      %p729 = pneg %p362
      %p730 = scmp.lt.s32.totalorder %s35, 1
      %s731 = scalar_select %p730, %s35, 1
      %s732 = smul.addr %s731, 32
      %s733 = smul.addr %s732, 4
      %s734 = scalar_lea.vmem %s13, %s733
      %p735 = pneg %p391
      %p736 = pneg %p388
      %p737 = scmp.lt.s32.totalorder %s35, 1
      %s738 = scalar_select %p737, %s35, 1
      %s739 = scalar_lea.vmem %s14, %s738
      %p740 = pneg %p417
      %p741 = pneg %p414
      %p742 = pneg %p438
      %p743 = pneg %p435
      %p744 = pneg %p459
      %p745 = pneg %p456
      %p746 = pneg %p480
      %p747 = pneg %p477
      %p748 = pneg %p501
      %p749 = pneg %p498
      %p750 = pneg %p527
      %p751 = pneg %p524
      %p752 = scmp.lt.s32.totalorder %s34, 1
      %s753 = scalar_select %p752, %s34, 1
      %s754 = smul.addr %s753, 4
      %s755 = smul.addr %s754, 8
      %s756 = scalar_lea.vmem %s19, %s755
      %p757 = scmp.lt.s32.totalorder %s34, 1
      %s758 = scalar_select %p757, %s34, 1
      %s759 = smul.addr %s758, 4
      %s760 = smul.addr %s759, 4
      %s761 = scalar_lea.vmem %s0, %s760
      %p762 = scmp.lt.s32.totalorder %s35, 1
      %s763 = scalar_select %p762, %s35, 1
      %s764 = scalar_lea.vmem %s3, %s763
      %p765 = scmp.lt.s32.totalorder %s35, 1
      %s766 = scalar_select %p765, %s35, 1
      %s767 = scalar_lea.vmem %s4, %s766
      %p768 = scmp.lt.s32.totalorder %s35, 1
      %s769 = scalar_select %p768, %s35, 1
      %s770 = smul.addr %s769, 16
      %s771 = smul.addr %s770, 4
      %s772 = scalar_lea.vmem %s5, %s771
      %p773 = scmp.lt.s32.totalorder %s35, 1
      %s774 = scalar_select %p773, %s35, 1
      %s775 = smul.addr %s774, 2
      %s776 = scalar_lea.vmem %s6, %s775
      %p777 = scmp.lt.s32.totalorder %s35, 1
      %s778 = scalar_select %p777, %s35, 1
      %s779 = smul.addr %s778, 8
      %s780 = smul.addr %s779, 4
      %s781 = scalar_lea.vmem %s7, %s780
      %p782 = scmp.lt.s32.totalorder %s35, 1
      %s783 = scalar_select %p782, %s35, 1
      %s784 = scalar_lea.vmem %s8, %s783
      %p785 = scmp.lt.s32.totalorder %s35, 1
      %s786 = scalar_select %p785, %s35, 1
      %s787 = scalar_lea.vmem %s9, %s786
      %p788 = scmp.lt.s32.totalorder %s35, 1
      %s789 = scalar_select %p788, %s35, 1
      %s790 = scalar_lea.vmem %s10, %s789
      %p791 = scmp.lt.s32.totalorder %s35, 1
      %s792 = scalar_select %p791, %s35, 1
      %s793 = smul.addr %s792, 16
      %s794 = smul.addr %s793, 4
      %s795 = scalar_lea.vmem %s11, %s794
      %p796 = scmp.lt.s32.totalorder %s35, 1
      %s797 = scalar_select %p796, %s35, 1
      %s798 = smul.addr %s797, 2
      %s799 = scalar_lea.vmem %s12, %s798
      %p800 = scmp.lt.s32.totalorder %s35, 1
      %s801 = scalar_select %p800, %s35, 1
      %s802 = smul.addr %s801, 32
      %s803 = smul.addr %s802, 4
      %s804 = scalar_lea.vmem %s13, %s803
      %p805 = scmp.lt.s32.totalorder %s35, 1
      %s806 = scalar_select %p805, %s35, 1
      %s807 = scalar_lea.vmem %s14, %s806
      %p808 = scmp.lt.s32.totalorder %s34, 1
      %s809 = scalar_select %p808, %s34, 1
      %s810 = smul.addr %s809, 4
      %s811 = smul.addr %s810, 8
      %s812 = scalar_lea.vmem %s19, %s811
      %v814 = vlaneseq
      %v815 = vand.u32 %v814, 127
      %vm816 = vcmp.lt.s32.totalorder %v815, 17
      %v817 = vsel %vm816, 0.0, -1e+30
      %p818 = scmp.eq.s32.totalorder %s35, 0
      // Predicated region
      $region97: #{transformer_forward.2} parent=95 // pred_check
        %p819 = pneg %p818
      $region98: #{transformer_forward.2} parent=95 // pred_check_branch
        %821 = sbr.rel (%p819) target = $region100
      $region99: #{transformer_forward.2} parent=95 // pred_region
        %v822 = vld [vmem:[%s761] sm:$0xf]
        %v823 = vld [vmem:[%s761 + $0x4] sm:$0xf]
        %v824 = vld [vmem:[%s761 + $0x8] sm:$0xf]
        %v825 = vld [vmem:[%s761 + $0xc] sm:$0xf]
        %v826 = vld [vmem:[%s2] sm:$0xf]
        %v827 = vld [vmem:[%s2 + $0x4] sm:$0xf]
        %v828 = vld [vmem:[%s2 + $0x8] sm:$0xf]
        %v829 = vld [vmem:[%s2 + $0xc] sm:$0xf]
        %v830 = vld [vmem:[%s2 + $0x10] sm:$0xf]
        %v831 = vld [vmem:[%s2 + $0x14] sm:$0xf]
        %v832 = vld [vmem:[%s1] sm:$0xff]
        %v833 = vld [vmem:[%s1 + $0x8] sm:$0xff]
        %v834 = vld [vmem:[%s1 + $0x10] sm:$0xff]
        %v835 = vld [vmem:[%s1 + $0x18] sm:$0xff]
        %v840 = vunpack.c.l.b16 %v822
        %v841 = vunpack.c.l.b16 %v823
        %v842 = vunpack.c.l.b16 %v824
        %v843 = vunpack.c.l.b16 %v825
        %v844 = vpack.c.b16 %v841, %v840
        %v845 = vpack.c.b16 %v843, %v842
        %v852 = vunpack.c.l.b16 %v826
        %v853 = vunpack.c.l.b16 %v827
        %v854 = vunpack.c.l.b16 %v828
        %v855 = vunpack.c.l.b16 %v829
        %v856 = vunpack.c.l.b16 %v830
        %v857 = vunpack.c.l.b16 %v831
        %v858 = vpack.c.b16 %v853, %v852
        %v859 = vpack.c.b16 %v855, %v854
        %v860 = vpack.c.b16 %v857, %v856
        %vm864 = vcmask 392192
        %v866 = vsel %vm864, %v844, 0
        %v869 = vsel %vm864, %v845, 0
        %871 = vmatprep.subr.bf16.mxu0 0
        %872 = vmatpush1.bf16.msra.mxu0 %v858
        %873 = vmatprep.subr.bf16.mxu0 0
        %874 = vmatpush1.bf16.msra.mxu0 %v859
        %875 = vmatprep.subr.bf16.mxu0 0
        %876 = vmatpush1.bf16.msra.mxu0 %v860
        %877 = vmatprep.subr.bf16.mxu0 0
        %878 = vmatpush1.bf16.msra.mxu0 0
        %879 = vmatprep.subr.bf16.mxu0 0
        %880 = vmatpush1.bf16.msra.mxu0 0
        %881 = vmatprep.subr.bf16.mxu0 0
        %882 = vmatpush1.bf16.msra.mxu0 0
        %883 = vmatprep.subr.bf16.mxu0 0
        %884 = vmatpush1.bf16.msra.mxu0 0
        %885 = vmatprep.subr.bf16.mxu0 0
        %886 = vmatpush1.bf16.msra.mxu0 0
        %887 = vmatprep.subr.bf16.mxu0 0
        %888 = vmatpush1.bf16.msra.mxu0 0
        %889 = vmatprep.subr.bf16.mxu0 0
        %890 = vmatpush1.bf16.msra.mxu0 0
        %891 = vmatprep.subr.bf16.mxu0 0
        %892 = vmatpush1.bf16.msra.mxu0 0
        %893 = vmatprep.subr.bf16.mxu0 0
        %894 = vmatpush1.bf16.msra.mxu0 0
        %895 = vmatprep.subr.bf16.mxu0 0
        %896 = vmatpush1.bf16.msra.mxu0 0
        %897 = vmatprep.subr.bf16.mxu0 0
        %898 = vmatpush1.bf16.msra.mxu0 0
        %899 = vmatprep.subr.bf16.mxu0 0
        %900 = vmatpush1.bf16.msra.mxu0 0
        %901 = vmatprep.subr.bf16.mxu0 0
        %902 = vmatpush1.bf16.msra.mxu0 0
        %903 = vmatprep.mubr.bf16.mxu0 0
        %904 = vmatmul.mubr.bf16.gmra.mrb[0].mxu0 %v866
        %v905 = vpop.f32.mrb[0].mxu0
        %v906 = vadd.f32 %v832, %v905
        %v907 = vpop.f32.mrb[0].mxu0
        %v908 = vpop.f32.mrb[0].mxu0
        %v909 = vadd.f32 %v833, %v908
        %v910 = vpop.f32.mrb[0].mxu0
        %911 = vmatprep.mubr.bf16.mxu0 0
        %912 = vmatmul.mubr.bf16.gmra.mrb[0].mxu0 %v869
        %v913 = vpop.f32.mrb[0].mxu0
        %v914 = vadd.f32 %v834, %v913
        %v915 = vpop.f32.mrb[0].mxu0
        %v916 = vpop.f32.mrb[0].mxu0
        %v917 = vadd.f32 %v835, %v916
        %v918 = vpop.f32.mrb[0].mxu0
        %919 = vdwg.mxu0
        %vm920 = vcmask 523264
        %921 = vst.msk [vmem:[#allocation2] sm:$0xff] %vm920, %v906
        %922 = vst.msk [vmem:[#allocation2 + $0x8] sm:$0xff] %vm920, %v909
        %923 = vst.msk [vmem:[#allocation2 + $0x10] sm:$0xff] %vm920, %v914
        %924 = vst.msk [vmem:[#allocation2 + $0x18] sm:$0xff] %vm920, %v917
      $region100: #{transformer_forward.2} parent=95 // pred_fallthru
        _
      %v925 = vld [vmem:[#allocation2] sm:$0xff]
      %v926 = vld [vmem:[#allocation2 + $0x8] sm:$0xff]
      %v927 = vld [vmem:[#allocation2 + $0x10] sm:$0xff]
      %v928 = vld [vmem:[#allocation2 + $0x18] sm:$0xff]
      %v929 = vld [vmem:[%s764] sm:$0x1]
      %v930 = vld [vmem:[%s767] sm:$0x1]
      %vm931 = vcmask 523264
      %v932 = vsel %vm931, %v925, 0.0
      %933 = vadd.xlane.f32.xlu0 %v932
      %v934 = vpop.xlane.xlu0 %933
      %v935 = vsel %vm931, %v926, 0.0
      %936 = vadd.xlane.f32.xlu0 %v935
      %v937 = vpop.xlane.xlu0 %936
      %v938 = vsel %vm931, %v927, 0.0
      %939 = vadd.xlane.f32.xlu0 %v938
      %v940 = vpop.xlane.xlu0 %939
      %v941 = vsel %vm931, %v928, 0.0
      %942 = vadd.xlane.f32.xlu0 %v941
      %v943 = vpop.xlane.xlu0 %942
      %v944 = vrcp.pop 64.0
      %v945 = vmul.f32 %v934, %v944
      %v946 = vmul.f32 %v937, %v944
      %v947 = vmul.f32 %v940, %v944
      %v948 = vmul.f32 %v943, %v944
      %v949 = vsub.f32 %v925, %v945
      %v950 = vsub.f32 %v926, %v946
      %v951 = vsub.f32 %v927, %v947
      %v952 = vsub.f32 %v928, %v948
      %v953 = vmul.f32 %v949, %v949
      %v954 = vmul.f32 %v950, %v950
      %v955 = vmul.f32 %v951, %v951
      %v956 = vmul.f32 %v952, %v952
      %v957 = vsel %vm931, %v953, 0.0
      %958 = vadd.xlane.f32.xlu0 %v957
      %v959 = vpop.xlane.xlu0 %958
      %v960 = vsel %vm931, %v954, 0.0
      %961 = vadd.xlane.f32.xlu0 %v960
      %v962 = vpop.xlane.xlu0 %961
      %v963 = vsel %vm931, %v955, 0.0
      %964 = vadd.xlane.f32.xlu0 %v963
      %v965 = vpop.xlane.xlu0 %964
      %v966 = vsel %vm931, %v956, 0.0
      %967 = vadd.xlane.f32.xlu0 %v966
      %v968 = vpop.xlane.xlu0 %967
      %v969 = vmul.f32 %v959, %v944
      %v970 = vmul.f32 %v962, %v944
      %v971 = vmul.f32 %v965, %v944
      %v972 = vmul.f32 %v968, %v944
      %v973 = vadd.f32 %v969, 1e-06
      %v974 = vadd.f32 %v970, 1e-06
      %v975 = vadd.f32 %v971, 1e-06
      %v976 = vadd.f32 %v972, 1e-06
      %v977 = vrsqrt.pop %v973
      %v978 = vrsqrt.pop %v974
      %v979 = vrsqrt.pop %v975
      %v980 = vrsqrt.pop %v976
      %v981 = vmul.f32 %v949, %v977
      %v982 = vmul.f32 %v950, %v978
      %v983 = vmul.f32 %v951, %v979
      %v984 = vmul.f32 %v952, %v980
      %v986 = vlaneseq
      %v987 = vshrl.u32 %v986, 7
      %v988 = vsub.s32 0, %v987
      %v989 = vrot.slane %v929, %v988
      %v991 = vmul.f32 %v981, %v989
      %v992 = vmul.f32 %v982, %v989
      %v993 = vmul.f32 %v983, %v989
      %v994 = vmul.f32 %v984, %v989
      %v996 = vlaneseq
      %v997 = vshrl.u32 %v996, 7
      %v998 = vsub.s32 0, %v997
      %v999 = vrot.slane %v930, %v998
      %v1001 = vadd.f32 %v991, %v999
      %v1002 = vadd.f32 %v992, %v999
      %v1003 = vadd.f32 %v993, %v999
      %v1004 = vadd.f32 %v994, %v999
      %v1005 = vpack.c.bf16 %v1002, %v1001
      %v1006 = vpack.c.bf16 %v1004, %v1003
      %v1007 = vld [vmem:[%s772] sm:$0xff]
      %v1008 = vld [vmem:[%s772 + $0x8] sm:$0xff]
      %v1009 = vld [vmem:[%s772 + $0x10] sm:$0xff]
      %v1010 = vld [vmem:[%s772 + $0x18] sm:$0xff]
      %v1011 = vld [vmem:[%s772 + $0x20] sm:$0xff]
      %v1012 = vld [vmem:[%s772 + $0x28] sm:$0xff]
      %v1013 = vld [vmem:[%s772 + $0x30] sm:$0xff]
      %v1014 = vld [vmem:[%s772 + $0x38] sm:$0xff]
      %v1015 = vld [vmem:[%s776] sm:$0x3]
      %v1017 = vlaneseq
      %v1018 = vshrl.u32 %v1017, 7
      %v1019 = vsub.s32 0, %v1018
      %v1020 = vrot.slane %v1015, %v1019
      %v1021 = vlaneseq
      %v1022 = vshrl.u32 %v1021, 7
      %v1023 = vsub.s32 1, %v1022
      %v1024 = vrot.slane %v1015, %v1023
      %v1035 = vunpack.c.l.b16 %v1007
      %v1036 = vunpack.c.h.b16 %v1007
      %v1037 = vunpack.c.l.b16 %v1008
      %v1038 = vunpack.c.h.b16 %v1008
      %v1039 = vunpack.c.l.b16 %v1009
      %v1040 = vunpack.c.h.b16 %v1009
      %v1041 = vunpack.c.l.b16 %v1010
      %v1042 = vunpack.c.h.b16 %v1010
      %v1043 = vunpack.c.l.b16 %v1011
      %v1044 = vunpack.c.h.b16 %v1011
      %v1045 = vunpack.c.l.b16 %v1012
      %v1046 = vunpack.c.h.b16 %v1012
      %v1047 = vunpack.c.l.b16 %v1013
      %v1048 = vunpack.c.h.b16 %v1013
      %v1049 = vunpack.c.l.b16 %v1014
      %v1050 = vunpack.c.h.b16 %v1014
      %v1051 = vpack.c.b16 %v1037, %v1035
      %v1052 = vpack.c.b16 %v1038, %v1036
      %v1053 = vpack.c.b16 %v1041, %v1039
      %v1054 = vpack.c.b16 %v1042, %v1040
      %v1055 = vpack.c.b16 %v1045, %v1043
      %v1056 = vpack.c.b16 %v1046, %v1044
      %v1057 = vpack.c.b16 %v1049, %v1047
      %v1058 = vpack.c.b16 %v1050, %v1048
      %v1068 = vsel %vm931, %v1005, 0
      %v1071 = vsel %vm931, %v1006, 0
      %1073 = vmatprep.subr.bf16.mxu0 %v1052
      %1074 = vmatpush1.bf16.msra.mxu0 %v1051
      %1075 = vmatprep.subr.bf16.mxu0 %v1054
      %1076 = vmatpush1.bf16.msra.mxu0 %v1053
      %1077 = vmatprep.subr.bf16.mxu0 %v1056
      %1078 = vmatpush1.bf16.msra.mxu0 %v1055
      %1079 = vmatprep.subr.bf16.mxu0 %v1058
      %1080 = vmatpush1.bf16.msra.mxu0 %v1057
      %1081 = vmatprep.subr.bf16.mxu0 0
      %1082 = vmatpush1.bf16.msra.mxu0 0
      %1083 = vmatprep.subr.bf16.mxu0 0
      %1084 = vmatpush1.bf16.msra.mxu0 0
      %1085 = vmatprep.subr.bf16.mxu0 0
      %1086 = vmatpush1.bf16.msra.mxu0 0
      %1087 = vmatprep.subr.bf16.mxu0 0
      %1088 = vmatpush1.bf16.msra.mxu0 0
      %1089 = vmatprep.subr.bf16.mxu0 0
      %1090 = vmatpush1.bf16.msra.mxu0 0
      %1091 = vmatprep.subr.bf16.mxu0 0
      %1092 = vmatpush1.bf16.msra.mxu0 0
      %1093 = vmatprep.subr.bf16.mxu0 0
      %1094 = vmatpush1.bf16.msra.mxu0 0
      %1095 = vmatprep.subr.bf16.mxu0 0
      %1096 = vmatpush1.bf16.msra.mxu0 0
      %1097 = vmatprep.subr.bf16.mxu0 0
      %1098 = vmatpush1.bf16.msra.mxu0 0
      %1099 = vmatprep.subr.bf16.mxu0 0
      %1100 = vmatpush1.bf16.msra.mxu0 0
      %1101 = vmatprep.subr.bf16.mxu0 0
      %1102 = vmatpush1.bf16.msra.mxu0 0
      %1103 = vmatprep.subr.bf16.mxu0 0
      %1104 = vmatpush1.bf16.msra.mxu0 0
      %1105 = vmatprep.mubr.bf16.mxu0 0
      %1106 = vmatmul.mubr.bf16.gmra.mrb[0].mxu0 %v1068
      %v1107 = vpop.f32.mrb[0].mxu0
      %v1108 = vadd.f32 %v1020, %v1107
      %v1109 = vpop.f32.mrb[0].mxu0
      %v1110 = vadd.f32 %v1024, %v1109
      %v1111 = vpop.f32.mrb[0].mxu0
      %v1112 = vadd.f32 %v1020, %v1111
      %v1113 = vpop.f32.mrb[0].mxu0
      %v1114 = vadd.f32 %v1024, %v1113
      %1115 = vmatprep.mubr.bf16.mxu0 0
      %1116 = vmatmul.mubr.bf16.gmra.mrb[0].mxu0 %v1071
      %v1117 = vpop.f32.mrb[0].mxu0
      %v1118 = vadd.f32 %v1020, %v1117
      %v1119 = vpop.f32.mrb[0].mxu0
      %v1120 = vadd.f32 %v1024, %v1119
      %v1121 = vpop.f32.mrb[0].mxu0
      %v1122 = vadd.f32 %v1020, %v1121
      %v1123 = vpop.f32.mrb[0].mxu0
      %v1124 = vadd.f32 %v1024, %v1123
      %1125 = vdwg.mxu0
      %v1126 = vpack.c.bf16 %v1112, %v1108
      %v1127 = vpack.c.bf16 %v1122, %v1118
      %1130 = vrot.lane.b32.xlu0 %v1126, 64
      %v1131 = vpop.permute.xlu0 %1130
      %1132 = vrot.lane.b32.xlu0 %v1127, 64
      %v1133 = vpop.permute.xlu0 %1132
      %vm1134 = vcmask 130048
      %v1136 = vsel %vm1134, %v1126, 0
      %v1139 = vsel %vm1134, %v1127, 0
      %v1142 = vsel %vm1134, %v1131, 0
      %v1145 = vsel %vm1134, %v1133, 0
      %1147 = vmatprep.subr.bf16.mxu0 0
      %1148 = vmatpush1.bf16.xpose.msra.mxu0 %v1142
      %1149 = vmatprep.subr.bf16.mxu0 0
      %1150 = vmatpush1.bf16.xpose.msra.mxu0 %v1145
      %1151 = vmatprep.subr.bf16.mxu0 0
      %1152 = vmatpush1.bf16.xpose.msra.mxu0 0
      %1153 = vmatprep.subr.bf16.mxu0 0
      %1154 = vmatpush1.bf16.xpose.msra.mxu0 0
      %1155 = vmatprep.subr.bf16.mxu0 0
      %1156 = vmatpush1.bf16.xpose.msra.mxu0 0
      %1157 = vmatprep.subr.bf16.mxu0 0
      %1158 = vmatpush1.bf16.xpose.msra.mxu0 0
      %1159 = vmatprep.subr.bf16.mxu0 0
      %1160 = vmatpush1.bf16.xpose.msra.mxu0 0
      %1161 = vmatprep.subr.bf16.mxu0 0
      %1162 = vmatpush1.bf16.xpose.msra.mxu0 0
      %1163 = vmatprep.subr.bf16.mxu0 0
      %1164 = vmatpush1.bf16.xpose.msra.mxu0 0
      %1165 = vmatprep.subr.bf16.mxu0 0
      %1166 = vmatpush1.bf16.xpose.msra.mxu0 0
      %1167 = vmatprep.subr.bf16.mxu0 0
      %1168 = vmatpush1.bf16.xpose.msra.mxu0 0
      %1169 = vmatprep.subr.bf16.mxu0 0
      %1170 = vmatpush1.bf16.xpose.msra.mxu0 0
      %1171 = vmatprep.subr.bf16.mxu0 0
      %1172 = vmatpush1.bf16.xpose.msra.mxu0 0
      %1173 = vmatprep.subr.bf16.mxu0 0
      %1174 = vmatpush1.bf16.xpose.msra.mxu0 0
      %1175 = vmatprep.subr.bf16.mxu0 0
      %1176 = vmatpush1.bf16.xpose.msra.mxu0 0
      %1177 = vmatprep.subr.bf16.mxu0 0
      %1178 = vmatpush1.bf16.xpose.msra.mxu0 0
      %1179 = vmatprep.mubr.bf16.mxu0 0
      %1180 = vmatmul.mubr.bf16.gmra.mrb[0].mxu0 %v1136
      %v1181 = vpop.f32.mrb[0].mxu0
      %v1182 = vadd.f32 0.0, %v1181
      %v1183 = vpop.f32.mrb[0].mxu0
      %v1184 = vpop.f32.mrb[0].mxu0
      %v1185 = vadd.f32 0.0, %v1184
      %v1186 = vpop.f32.mrb[0].mxu0
      %1187 = vmatprep.mubr.bf16.mxu0 0
      %1188 = vmatmul.mubr.bf16.gmra.mrb[0].mxu0 %v1139
      %v1189 = vpop.f32.mrb[0].mxu0
      %v1190 = vadd.f32 0.0, %v1189
      %v1191 = vpop.f32.mrb[0].mxu0
      %v1192 = vpop.f32.mrb[0].mxu0
      %v1193 = vadd.f32 0.0, %v1192
      %v1194 = vpop.f32.mrb[0].mxu0
      %1195 = vdwg.mxu0
      %v1196 = vmul.f32 %v1182, 0.25
      %v1197 = vmul.f32 %v1185, 0.25
      %v1198 = vmul.f32 %v1190, 0.25
      %v1199 = vmul.f32 %v1193, 0.25
      %v1200 = vadd.f32 %v1196, %v817
      %v1201 = vadd.f32 %v1197, %v817
      %v1202 = vadd.f32 %v1198, %v817
      %v1203 = vadd.f32 %v1199, %v817
      %vm1204 = vcmask 261120
      %v1205 = vsel %vm1204, %v1200, -inf
      %1206 = vmax.xlane.f32.xlu0 %v1205
      %v1207 = vpop.xlane.xlu0 %1206
      %v1208 = vsel %vm1204, %v1201, -inf
      %1209 = vmax.xlane.f32.xlu0 %v1208
      %v1210 = vpop.xlane.xlu0 %1209
      %v1211 = vsel %vm1204, %v1202, -inf
      %1212 = vmax.xlane.f32.xlu0 %v1211
      %v1213 = vpop.xlane.xlu0 %1212
      %v1214 = vsel %vm1204, %v1203, -inf
      %1215 = vmax.xlane.f32.xlu0 %v1214
      %v1216 = vpop.xlane.xlu0 %1215
      %v1217 = vsub.f32 %v1200, %v1207
      %v1218 = vsub.f32 %v1201, %v1210
      %v1219 = vsub.f32 %v1202, %v1213
      %v1220 = vsub.f32 %v1203, %v1216
      %v1221 = vmul.f32 %v1217, 1.442695
      %v1222 = vpow.pop %v1221
      %v1223 = vmul.f32 %v1218, 1.442695
      %v1224 = vpow.pop %v1223
      %v1225 = vmul.f32 %v1219, 1.442695
      %v1226 = vpow.pop %v1225
      %v1227 = vmul.f32 %v1220, 1.442695
      %v1228 = vpow.pop %v1227
      %v1229 = vsel %vm1204, %v1222, 0.0
      %1230 = vadd.xlane.f32.xlu0 %v1229
      %v1231 = vpop.xlane.xlu0 %1230
      %v1232 = vsel %vm1204, %v1224, 0.0
      %1233 = vadd.xlane.f32.xlu0 %v1232
      %v1234 = vpop.xlane.xlu0 %1233
      %v1235 = vsel %vm1204, %v1226, 0.0
      %1236 = vadd.xlane.f32.xlu0 %v1235
      %v1237 = vpop.xlane.xlu0 %1236
      %v1238 = vsel %vm1204, %v1228, 0.0
      %1239 = vadd.xlane.f32.xlu0 %v1238
      %v1240 = vpop.xlane.xlu0 %1239
      %v1241 = vrcp.pop %v1231
      %v1242 = vrcp.pop %v1234
      %v1243 = vrcp.pop %v1237
      %v1244 = vrcp.pop %v1240
      %v1245 = vmul.f32 %v1222, %v1241
      %v1246 = vmul.f32 %v1224, %v1242
      %v1247 = vmul.f32 %v1226, %v1243
      %v1248 = vmul.f32 %v1228, %v1244
      %v1249 = vpack.c.bf16 %v1246, %v1245
      %v1250 = vpack.c.bf16 %v1248, %v1247
      %v1251 = vpack.c.bf16 %v1114, %v1110
      %v1252 = vpack.c.bf16 %v1124, %v1120
      %v1254 = vsel %vm1204, %v1249, 0
      %v1257 = vsel %vm1204, %v1250, 0
      %1259 = vmatprep.subr.bf16.mxu0 0
      %1260 = vmatpush1.bf16.msra.mxu0 %v1251
      %1261 = vmatprep.subr.bf16.mxu0 0
      %1262 = vmatpush1.bf16.msra.mxu0 %v1252
      %1263 = vmatprep.subr.bf16.mxu0 0
      %1264 = vmatpush1.bf16.msra.mxu0 0
      %1265 = vmatprep.subr.bf16.mxu0 0
      %1266 = vmatpush1.bf16.msra.mxu0 0
      %1267 = vmatprep.subr.bf16.mxu0 0
      %1268 = vmatpush1.bf16.msra.mxu0 0
      %1269 = vmatprep.subr.bf16.mxu0 0
      %1270 = vmatpush1.bf16.msra.mxu0 0
      %1271 = vmatprep.subr.bf16.mxu0 0
      %1272 = vmatpush1.bf16.msra.mxu0 0
      %1273 = vmatprep.subr.bf16.mxu0 0
      %1274 = vmatpush1.bf16.msra.mxu0 0
      %1275 = vmatprep.subr.bf16.mxu0 0
      %1276 = vmatpush1.bf16.msra.mxu0 0
      %1277 = vmatprep.subr.bf16.mxu0 0
      %1278 = vmatpush1.bf16.msra.mxu0 0
      %1279 = vmatprep.subr.bf16.mxu0 0
      %1280 = vmatpush1.bf16.msra.mxu0 0
      %1281 = vmatprep.subr.bf16.mxu0 0
      %1282 = vmatpush1.bf16.msra.mxu0 0
      %1283 = vmatprep.subr.bf16.mxu0 0
      %1284 = vmatpush1.bf16.msra.mxu0 0
      %1285 = vmatprep.subr.bf16.mxu0 0
      %1286 = vmatpush1.bf16.msra.mxu0 0
      %1287 = vmatprep.subr.bf16.mxu0 0
      %1288 = vmatpush1.bf16.msra.mxu0 0
      %1289 = vmatprep.subr.bf16.mxu0 0
      %1290 = vmatpush1.bf16.msra.mxu0 0
      %1291 = vmatprep.mubr.bf16.mxu0 0
      %1292 = vmatmul.mubr.bf16.gmra.mrb[0].mxu0 %v1254
      %v1293 = vpop.f32.mrb[0].mxu0
      %v1294 = vadd.f32 0.0, %v1293
      %v1295 = vpop.f32.mrb[0].mxu0
      %v1296 = vpop.f32.mrb[0].mxu0
      %v1297 = vadd.f32 0.0, %v1296
      %v1298 = vpop.f32.mrb[0].mxu0
      %1299 = vmatprep.mubr.bf16.mxu0 0
      %1300 = vmatmul.mubr.bf16.gmra.mrb[0].mxu0 %v1257
      %v1301 = vpop.f32.mrb[0].mxu0
      %v1302 = vadd.f32 0.0, %v1301
      %v1303 = vpop.f32.mrb[0].mxu0
      %v1304 = vpop.f32.mrb[0].mxu0
      %v1305 = vadd.f32 0.0, %v1304
      %v1306 = vpop.f32.mrb[0].mxu0
      %1307 = vdwg.mxu0
      %1308 = vrot.lane.b32.xlu0 %v1126, 112
      %v1309 = vpop.permute.xlu0 %1308
      %1310 = vrot.lane.b32.xlu0 %v1127, 112
      %v1311 = vpop.permute.xlu0 %1310
      %1312 = vrot.lane.b32.xlu0 %v1126, 48
      %v1313 = vpop.permute.xlu0 %1312
      %1314 = vrot.lane.b32.xlu0 %v1127, 48
      %v1315 = vpop.permute.xlu0 %1314
      %v1317 = vsel %vm1134, %v1309, 0
      %v1320 = vsel %vm1134, %v1311, 0
      %v1323 = vsel %vm1134, %v1313, 0
      %v1326 = vsel %vm1134, %v1315, 0
      %1328 = vmatprep.subr.bf16.mxu0 0
      %1329 = vmatpush1.bf16.xpose.msra.mxu0 %v1323
      %1330 = vmatprep.subr.bf16.mxu0 0
      %1331 = vmatpush1.bf16.xpose.msra.mxu0 %v1326
      %1332 = vmatprep.subr.bf16.mxu0 0
      %1333 = vmatpush1.bf16.xpose.msra.mxu0 0
      %1334 = vmatprep.subr.bf16.mxu0 0
      %1335 = vmatpush1.bf16.xpose.msra.mxu0 0
      %1336 = vmatprep.subr.bf16.mxu0 0
      %1337 = vmatpush1.bf16.xpose.msra.mxu0 0
      %1338 = vmatprep.subr.bf16.mxu0 0
      %1339 = vmatpush1.bf16.xpose.msra.mxu0 0
      %1340 = vmatprep.subr.bf16.mxu0 0
      %1341 = vmatpush1.bf16.xpose.msra.mxu0 0
      %1342 = vmatprep.subr.bf16.mxu0 0
      %1343 = vmatpush1.bf16.xpose.msra.mxu0 0
      %1344 = vmatprep.subr.bf16.mxu0 0
      %1345 = vmatpush1.bf16.xpose.msra.mxu0 0
      %1346 = vmatprep.subr.bf16.mxu0 0
      %1347 = vmatpush1.bf16.xpose.msra.mxu0 0
      %1348 = vmatprep.subr.bf16.mxu0 0
      %1349 = vmatpush1.bf16.xpose.msra.mxu0 0
      %1350 = vmatprep.subr.bf16.mxu0 0
      %1351 = vmatpush1.bf16.xpose.msra.mxu0 0
      %1352 = vmatprep.subr.bf16.mxu0 0
      %1353 = vmatpush1.bf16.xpose.msra.mxu0 0
      %1354 = vmatprep.subr.bf16.mxu0 0
      %1355 = vmatpush1.bf16.xpose.msra.mxu0 0
      %1356 = vmatprep.subr.bf16.mxu0 0
      %1357 = vmatpush1.bf16.xpose.msra.mxu0 0
      %1358 = vmatprep.subr.bf16.mxu0 0
      %1359 = vmatpush1.bf16.xpose.msra.mxu0 0
      %1360 = vmatprep.mubr.bf16.mxu0 0
      %1361 = vmatmul.mubr.bf16.gmra.mrb[0].mxu0 %v1317
      %v1362 = vpop.f32.mrb[0].mxu0
      %v1363 = vadd.f32 0.0, %v1362
      %v1364 = vpop.f32.mrb[0].mxu0
      %v1365 = vpop.f32.mrb[0].mxu0
      %v1366 = vadd.f32 0.0, %v1365
      %v1367 = vpop.f32.mrb[0].mxu0
      %1368 = vmatprep.mubr.bf16.mxu0 0
      %1369 = vmatmul.mubr.bf16.gmra.mrb[0].mxu0 %v1320
      %v1370 = vpop.f32.mrb[0].mxu0
      %v1371 = vadd.f32 0.0, %v1370
      %v1372 = vpop.f32.mrb[0].mxu0
      %v1373 = vpop.f32.mrb[0].mxu0
      %v1374 = vadd.f32 0.0, %v1373
      %v1375 = vpop.f32.mrb[0].mxu0
      %1376 = vdwg.mxu0
      %v1377 = vmul.f32 %v1363, 0.25
      %v1378 = vmul.f32 %v1366, 0.25
      %v1379 = vmul.f32 %v1371, 0.25
      %v1380 = vmul.f32 %v1374, 0.25
      %v1381 = vadd.f32 %v1377, %v817
      %v1382 = vadd.f32 %v1378, %v817
      %v1383 = vadd.f32 %v1379, %v817
      %v1384 = vadd.f32 %v1380, %v817
      %v1385 = vsel %vm1204, %v1381, -inf
      %1386 = vmax.xlane.f32.xlu0 %v1385
      %v1387 = vpop.xlane.xlu0 %1386
      %v1388 = vsel %vm1204, %v1382, -inf
      %1389 = vmax.xlane.f32.xlu0 %v1388
      %v1390 = vpop.xlane.xlu0 %1389
      %v1391 = vsel %vm1204, %v1383, -inf
      %1392 = vmax.xlane.f32.xlu0 %v1391
      %v1393 = vpop.xlane.xlu0 %1392
      %v1394 = vsel %vm1204, %v1384, -inf
      %1395 = vmax.xlane.f32.xlu0 %v1394
      %v1396 = vpop.xlane.xlu0 %1395
      %v1397 = vsub.f32 %v1381, %v1387
      %v1398 = vsub.f32 %v1382, %v1390
      %v1399 = vsub.f32 %v1383, %v1393
      %v1400 = vsub.f32 %v1384, %v1396
      %v1401 = vmul.f32 %v1397, 1.442695
      %v1402 = vpow.pop %v1401
      %v1403 = vmul.f32 %v1398, 1.442695
      %v1404 = vpow.pop %v1403
      %v1405 = vmul.f32 %v1399, 1.442695
      %v1406 = vpow.pop %v1405
      %v1407 = vmul.f32 %v1400, 1.442695
      %v1408 = vpow.pop %v1407
      %v1409 = vsel %vm1204, %v1402, 0.0
      %1410 = vadd.xlane.f32.xlu0 %v1409
      %v1411 = vpop.xlane.xlu0 %1410
      %v1412 = vsel %vm1204, %v1404, 0.0
      %1413 = vadd.xlane.f32.xlu0 %v1412
      %v1414 = vpop.xlane.xlu0 %1413
      %v1415 = vsel %vm1204, %v1406, 0.0
      %1416 = vadd.xlane.f32.xlu0 %v1415
      %v1417 = vpop.xlane.xlu0 %1416
      %v1418 = vsel %vm1204, %v1408, 0.0
      %1419 = vadd.xlane.f32.xlu0 %v1418
      %v1420 = vpop.xlane.xlu0 %1419
      %v1421 = vrcp.pop %v1411
      %v1422 = vrcp.pop %v1414
      %v1423 = vrcp.pop %v1417
      %v1424 = vrcp.pop %v1420
      %v1425 = vmul.f32 %v1402, %v1421
      %v1426 = vmul.f32 %v1404, %v1422
      %v1427 = vmul.f32 %v1406, %v1423
      %v1428 = vmul.f32 %v1408, %v1424
      %v1429 = vpack.c.bf16 %v1426, %v1425
      %v1430 = vpack.c.bf16 %v1428, %v1427
      %1433 = vrot.lane.b32.xlu0 %v1251, 112
      %v1434 = vpop.permute.xlu0 %1433
      %1435 = vrot.lane.b32.xlu0 %v1252, 112
      %v1436 = vpop.permute.xlu0 %1435
      %v1440 = vsel %vm1204, %v1429, 0
      %v1443 = vsel %vm1204, %v1430, 0
      %1445 = vmatprep.subr.bf16.mxu0 0
      %1446 = vmatpush1.bf16.msra.mxu0 %v1434
      %1447 = vmatprep.subr.bf16.mxu0 0
      %1448 = vmatpush1.bf16.msra.mxu0 %v1436
      %1449 = vmatprep.subr.bf16.mxu0 0
      %1450 = vmatpush1.bf16.msra.mxu0 0
      %1451 = vmatprep.subr.bf16.mxu0 0
      %1452 = vmatpush1.bf16.msra.mxu0 0
      %1453 = vmatprep.subr.bf16.mxu0 0
      %1454 = vmatpush1.bf16.msra.mxu0 0
      %1455 = vmatprep.subr.bf16.mxu0 0
      %1456 = vmatpush1.bf16.msra.mxu0 0
      %1457 = vmatprep.subr.bf16.mxu0 0
      %1458 = vmatpush1.bf16.msra.mxu0 0
      %1459 = vmatprep.subr.bf16.mxu0 0
      %1460 = vmatpush1.bf16.msra.mxu0 0
      %1461 = vmatprep.subr.bf16.mxu0 0
      %1462 = vmatpush1.bf16.msra.mxu0 0
      %1463 = vmatprep.subr.bf16.mxu0 0
      %1464 = vmatpush1.bf16.msra.mxu0 0
      %1465 = vmatprep.subr.bf16.mxu0 0
      %1466 = vmatpush1.bf16.msra.mxu0 0
      %1467 = vmatprep.subr.bf16.mxu0 0
      %1468 = vmatpush1.bf16.msra.mxu0 0
      %1469 = vmatprep.subr.bf16.mxu0 0
      %1470 = vmatpush1.bf16.msra.mxu0 0
      %1471 = vmatprep.subr.bf16.mxu0 0
      %1472 = vmatpush1.bf16.msra.mxu0 0
      %1473 = vmatprep.subr.bf16.mxu0 0
      %1474 = vmatpush1.bf16.msra.mxu0 0
      %1475 = vmatprep.subr.bf16.mxu0 0
      %1476 = vmatpush1.bf16.msra.mxu0 0
      %1477 = vmatprep.mubr.bf16.mxu0 0
      %1478 = vmatmul.mubr.bf16.gmra.mrb[0].mxu0 %v1440
      %v1479 = vpop.f32.mrb[0].mxu0
      %v1480 = vadd.f32 0.0, %v1479
      %v1481 = vpop.f32.mrb[0].mxu0
      %v1482 = vpop.f32.mrb[0].mxu0
      %v1483 = vadd.f32 0.0, %v1482
      %v1484 = vpop.f32.mrb[0].mxu0
      %1485 = vmatprep.mubr.bf16.mxu0 0
      %1486 = vmatmul.mubr.bf16.gmra.mrb[0].mxu0 %v1443
      %v1487 = vpop.f32.mrb[0].mxu0
      %v1488 = vadd.f32 0.0, %v1487
      %v1489 = vpop.f32.mrb[0].mxu0
      %v1490 = vpop.f32.mrb[0].mxu0
      %v1491 = vadd.f32 0.0, %v1490
      %v1492 = vpop.f32.mrb[0].mxu0
      %1493 = vdwg.mxu0
      %1494 = vrot.lane.b32.xlu0 %v1126, 96
      %v1495 = vpop.permute.xlu0 %1494
      %1496 = vrot.lane.b32.xlu0 %v1127, 96
      %v1497 = vpop.permute.xlu0 %1496
      %1498 = vrot.lane.b32.xlu0 %v1126, 32
      %v1499 = vpop.permute.xlu0 %1498
      %1500 = vrot.lane.b32.xlu0 %v1127, 32
      %v1501 = vpop.permute.xlu0 %1500
      %v1503 = vsel %vm1134, %v1495, 0
      %v1506 = vsel %vm1134, %v1497, 0
      %v1509 = vsel %vm1134, %v1499, 0
      %v1512 = vsel %vm1134, %v1501, 0
      %1514 = vmatprep.subr.bf16.mxu0 0
      %1515 = vmatpush1.bf16.xpose.msra.mxu0 %v1509
      %1516 = vmatprep.subr.bf16.mxu0 0
      %1517 = vmatpush1.bf16.xpose.msra.mxu0 %v1512
      %1518 = vmatprep.subr.bf16.mxu0 0
      %1519 = vmatpush1.bf16.xpose.msra.mxu0 0
      %1520 = vmatprep.subr.bf16.mxu0 0
      %1521 = vmatpush1.bf16.xpose.msra.mxu0 0
      %1522 = vmatprep.subr.bf16.mxu0 0
      %1523 = vmatpush1.bf16.xpose.msra.mxu0 0
      %1524 = vmatprep.subr.bf16.mxu0 0
      %1525 = vmatpush1.bf16.xpose.msra.mxu0 0
      %1526 = vmatprep.subr.bf16.mxu0 0
      %1527 = vmatpush1.bf16.xpose.msra.mxu0 0
      %1528 = vmatprep.subr.bf16.mxu0 0
      %1529 = vmatpush1.bf16.xpose.msra.mxu0 0
      %1530 = vmatprep.subr.bf16.mxu0 0
      %1531 = vmatpush1.bf16.xpose.msra.mxu0 0
      %1532 = vmatprep.subr.bf16.mxu0 0
      %1533 = vmatpush1.bf16.xpose.msra.mxu0 0
      %1534 = vmatprep.subr.bf16.mxu0 0
      %1535 = vmatpush1.bf16.xpose.msra.mxu0 0
      %1536 = vmatprep.subr.bf16.mxu0 0
      %1537 = vmatpush1.bf16.xpose.msra.mxu0 0
      %1538 = vmatprep.subr.bf16.mxu0 0
      %1539 = vmatpush1.bf16.xpose.msra.mxu0 0
      %1540 = vmatprep.subr.bf16.mxu0 0
      %1541 = vmatpush1.bf16.xpose.msra.mxu0 0
      %1542 = vmatprep.subr.bf16.mxu0 0
      %1543 = vmatpush1.bf16.xpose.msra.mxu0 0
      %1544 = vmatprep.subr.bf16.mxu0 0
      %1545 = vmatpush1.bf16.xpose.msra.mxu0 0
      %1546 = vmatprep.mubr.bf16.mxu0 0
      %1547 = vmatmul.mubr.bf16.gmra.mrb[0].mxu0 %v1503
      %v1548 = vpop.f32.mrb[0].mxu0
      %v1549 = vadd.f32 0.0, %v1548
      %v1550 = vpop.f32.mrb[0].mxu0
      %v1551 = vpop.f32.mrb[0].mxu0
      %v1552 = vadd.f32 0.0, %v1551
      %v1553 = vpop.f32.mrb[0].mxu0
      %1554 = vmatprep.mubr.bf16.mxu0 0
      %1555 = vmatmul.mubr.bf16.gmra.mrb[0].mxu0 %v1506
      %v1556 = vpop.f32.mrb[0].mxu0
      %v1557 = vadd.f32 0.0, %v1556
      %v1558 = vpop.f32.mrb[0].mxu0
      %v1559 = vpop.f32.mrb[0].mxu0
      %v1560 = vadd.f32 0.0, %v1559
      %v1561 = vpop.f32.mrb[0].mxu0
      %1562 = vdwg.mxu0
      %v1563 = vmul.f32 %v1549, 0.25
      %v1564 = vmul.f32 %v1552, 0.25
      %v1565 = vmul.f32 %v1557, 0.25
      %v1566 = vmul.f32 %v1560, 0.25
      %v1567 = vadd.f32 %v1563, %v817
      %v1568 = vadd.f32 %v1564, %v817
      %v1569 = vadd.f32 %v1565, %v817
      %v1570 = vadd.f32 %v1566, %v817
      %v1571 = vsel %vm1204, %v1567, -inf
      %1572 = vmax.xlane.f32.xlu0 %v1571
      %v1573 = vpop.xlane.xlu0 %1572
      %v1574 = vsel %vm1204, %v1568, -inf
      %1575 = vmax.xlane.f32.xlu0 %v1574
      %v1576 = vpop.xlane.xlu0 %1575
      %v1577 = vsel %vm1204, %v1569, -inf
      %1578 = vmax.xlane.f32.xlu0 %v1577
      %v1579 = vpop.xlane.xlu0 %1578
      %v1580 = vsel %vm1204, %v1570, -inf
      %1581 = vmax.xlane.f32.xlu0 %v1580
      %v1582 = vpop.xlane.xlu0 %1581
      %v1583 = vsub.f32 %v1567, %v1573
      %v1584 = vsub.f32 %v1568, %v1576
      %v1585 = vsub.f32 %v1569, %v1579
      %v1586 = vsub.f32 %v1570, %v1582
      %v1587 = vmul.f32 %v1583, 1.442695
      %v1588 = vpow.pop %v1587
      %v1589 = vmul.f32 %v1584, 1.442695
      %v1590 = vpow.pop %v1589
      %v1591 = vmul.f32 %v1585, 1.442695
      %v1592 = vpow.pop %v1591
      %v1593 = vmul.f32 %v1586, 1.442695
      %v1594 = vpow.pop %v1593
      %v1595 = vsel %vm1204, %v1588, 0.0
      %1596 = vadd.xlane.f32.xlu0 %v1595
      %v1597 = vpop.xlane.xlu0 %1596
      %v1598 = vsel %vm1204, %v1590, 0.0
      %1599 = vadd.xlane.f32.xlu0 %v1598
      %v1600 = vpop.xlane.xlu0 %1599
      %v1601 = vsel %vm1204, %v1592, 0.0
      %1602 = vadd.xlane.f32.xlu0 %v1601
      %v1603 = vpop.xlane.xlu0 %1602
      %v1604 = vsel %vm1204, %v1594, 0.0
      %1605 = vadd.xlane.f32.xlu0 %v1604
      %v1606 = vpop.xlane.xlu0 %1605
      %v1607 = vrcp.pop %v1597
      %v1608 = vrcp.pop %v1600
      %v1609 = vrcp.pop %v1603
      %v1610 = vrcp.pop %v1606
      %v1611 = vmul.f32 %v1588, %v1607
      %v1612 = vmul.f32 %v1590, %v1608
      %v1613 = vmul.f32 %v1592, %v1609
      %v1614 = vmul.f32 %v1594, %v1610
      %v1615 = vpack.c.bf16 %v1612, %v1611
      %v1616 = vpack.c.bf16 %v1614, %v1613
      %1617 = vrot.lane.b32.xlu0 %v1251, 96
      %v1618 = vpop.permute.xlu0 %1617
      %1619 = vrot.lane.b32.xlu0 %v1252, 96
      %v1620 = vpop.permute.xlu0 %1619
      %v1624 = vsel %vm1204, %v1615, 0
      %v1627 = vsel %vm1204, %v1616, 0
      %1629 = vmatprep.subr.bf16.mxu0 0
      %1630 = vmatpush1.bf16.msra.mxu0 %v1618
      %1631 = vmatprep.subr.bf16.mxu0 0
      %1632 = vmatpush1.bf16.msra.mxu0 %v1620
      %1633 = vmatprep.subr.bf16.mxu0 0
      %1634 = vmatpush1.bf16.msra.mxu0 0
      %1635 = vmatprep.subr.bf16.mxu0 0
      %1636 = vmatpush1.bf16.msra.mxu0 0
      %1637 = vmatprep.subr.bf16.mxu0 0
      %1638 = vmatpush1.bf16.msra.mxu0 0
      %1639 = vmatprep.subr.bf16.mxu0 0
      %1640 = vmatpush1.bf16.msra.mxu0 0
      %1641 = vmatprep.subr.bf16.mxu0 0
      %1642 = vmatpush1.bf16.msra.mxu0 0
      %1643 = vmatprep.subr.bf16.mxu0 0
      %1644 = vmatpush1.bf16.msra.mxu0 0
      %1645 = vmatprep.subr.bf16.mxu0 0
      %1646 = vmatpush1.bf16.msra.mxu0 0
      %1647 = vmatprep.subr.bf16.mxu0 0
      %1648 = vmatpush1.bf16.msra.mxu0 0
      %1649 = vmatprep.subr.bf16.mxu0 0
      %1650 = vmatpush1.bf16.msra.mxu0 0
      %1651 = vmatprep.subr.bf16.mxu0 0
      %1652 = vmatpush1.bf16.msra.mxu0 0
      %1653 = vmatprep.subr.bf16.mxu0 0
      %1654 = vmatpush1.bf16.msra.mxu0 0
      %1655 = vmatprep.subr.bf16.mxu0 0
      %1656 = vmatpush1.bf16.msra.mxu0 0
      %1657 = vmatprep.subr.bf16.mxu0 0
      %1658 = vmatpush1.bf16.msra.mxu0 0
      %1659 = vmatprep.subr.bf16.mxu0 0
      %1660 = vmatpush1.bf16.msra.mxu0 0
      %1661 = vmatprep.mubr.bf16.mxu0 0
      %1662 = vmatmul.mubr.bf16.gmra.mrb[0].mxu0 %v1624
      %v1663 = vpop.f32.mrb[0].mxu0
      %v1664 = vadd.f32 0.0, %v1663
      %v1665 = vpop.f32.mrb[0].mxu0
      %v1666 = vpop.f32.mrb[0].mxu0
      %v1667 = vadd.f32 0.0, %v1666
      %v1668 = vpop.f32.mrb[0].mxu0
      %1669 = vmatprep.mubr.bf16.mxu0 0
      %1670 = vmatmul.mubr.bf16.gmra.mrb[0].mxu0 %v1627
      %v1671 = vpop.f32.mrb[0].mxu0
      %v1672 = vadd.f32 0.0, %v1671
      %v1673 = vpop.f32.mrb[0].mxu0
      %v1674 = vpop.f32.mrb[0].mxu0
      %v1675 = vadd.f32 0.0, %v1674
      %v1676 = vpop.f32.mrb[0].mxu0
      %1677 = vdwg.mxu0
      %1678 = vrot.lane.b32.xlu0 %v1126, 80
      %v1679 = vpop.permute.xlu0 %1678
      %1680 = vrot.lane.b32.xlu0 %v1127, 80
      %v1681 = vpop.permute.xlu0 %1680
      %1682 = vrot.lane.b32.xlu0 %v1126, 16
      %v1683 = vpop.permute.xlu0 %1682
      %1684 = vrot.lane.b32.xlu0 %v1127, 16
      %v1685 = vpop.permute.xlu0 %1684
      %v1687 = vsel %vm1134, %v1679, 0
      %v1690 = vsel %vm1134, %v1681, 0
      %v1693 = vsel %vm1134, %v1683, 0
      %v1696 = vsel %vm1134, %v1685, 0
      %1698 = vmatprep.subr.bf16.mxu0 0
      %1699 = vmatpush1.bf16.xpose.msra.mxu0 %v1693
      %1700 = vmatprep.subr.bf16.mxu0 0
      %1701 = vmatpush1.bf16.xpose.msra.mxu0 %v1696
      %1702 = vmatprep.subr.bf16.mxu0 0
      %1703 = vmatpush1.bf16.xpose.msra.mxu0 0
      %1704 = vmatprep.subr.bf16.mxu0 0
      %1705 = vmatpush1.bf16.xpose.msra.mxu0 0
      %1706 = vmatprep.subr.bf16.mxu0 0
      %1707 = vmatpush1.bf16.xpose.msra.mxu0 0
      %1708 = vmatprep.subr.bf16.mxu0 0
      %1709 = vmatpush1.bf16.xpose.msra.mxu0 0
      %1710 = vmatprep.subr.bf16.mxu0 0
      %1711 = vmatpush1.bf16.xpose.msra.mxu0 0
      %1712 = vmatprep.subr.bf16.mxu0 0
      %1713 = vmatpush1.bf16.xpose.msra.mxu0 0
      %1714 = vmatprep.subr.bf16.mxu0 0
      %1715 = vmatpush1.bf16.xpose.msra.mxu0 0
      %1716 = vmatprep.subr.bf16.mxu0 0
      %1717 = vmatpush1.bf16.xpose.msra.mxu0 0
      %1718 = vmatprep.subr.bf16.mxu0 0
      %1719 = vmatpush1.bf16.xpose.msra.mxu0 0
      %1720 = vmatprep.subr.bf16.mxu0 0
      %1721 = vmatpush1.bf16.xpose.msra.mxu0 0
      %1722 = vmatprep.subr.bf16.mxu0 0
      %1723 = vmatpush1.bf16.xpose.msra.mxu0 0
      %1724 = vmatprep.subr.bf16.mxu0 0
      %1725 = vmatpush1.bf16.xpose.msra.mxu0 0
      %1726 = vmatprep.subr.bf16.mxu0 0
      %1727 = vmatpush1.bf16.xpose.msra.mxu0 0
      %1728 = vmatprep.subr.bf16.mxu0 0
      %1729 = vmatpush1.bf16.xpose.msra.mxu0 0
      %1730 = vmatprep.mubr.bf16.mxu0 0
      %1731 = vmatmul.mubr.bf16.gmra.mrb[0].mxu0 %v1687
      %v1732 = vpop.f32.mrb[0].mxu0
      %v1733 = vadd.f32 0.0, %v1732
      %v1734 = vpop.f32.mrb[0].mxu0
      %v1735 = vpop.f32.mrb[0].mxu0
      %v1736 = vadd.f32 0.0, %v1735
      %v1737 = vpop.f32.mrb[0].mxu0
      %1738 = vmatprep.mubr.bf16.mxu0 0
      %1739 = vmatmul.mubr.bf16.gmra.mrb[0].mxu0 %v1690
      %v1740 = vpop.f32.mrb[0].mxu0
      %v1741 = vadd.f32 0.0, %v1740
      %v1742 = vpop.f32.mrb[0].mxu0
      %v1743 = vpop.f32.mrb[0].mxu0
      %v1744 = vadd.f32 0.0, %v1743
      %v1745 = vpop.f32.mrb[0].mxu0
      %1746 = vdwg.mxu0
      %v1747 = vmul.f32 %v1733, 0.25
      %v1748 = vmul.f32 %v1736, 0.25
      %v1749 = vmul.f32 %v1741, 0.25
      %v1750 = vmul.f32 %v1744, 0.25
      %v1751 = vadd.f32 %v1747, %v817
      %v1752 = vadd.f32 %v1748, %v817
      %v1753 = vadd.f32 %v1749, %v817
      %v1754 = vadd.f32 %v1750, %v817
      %v1755 = vsel %vm1204, %v1751, -inf
      %1756 = vmax.xlane.f32.xlu0 %v1755
      %v1757 = vpop.xlane.xlu0 %1756
      %v1758 = vsel %vm1204, %v1752, -inf
      %1759 = vmax.xlane.f32.xlu0 %v1758
      %v1760 = vpop.xlane.xlu0 %1759
      %v1761 = vsel %vm1204, %v1753, -inf
      %1762 = vmax.xlane.f32.xlu0 %v1761
      %v1763 = vpop.xlane.xlu0 %1762
      %v1764 = vsel %vm1204, %v1754, -inf
      %1765 = vmax.xlane.f32.xlu0 %v1764
      %v1766 = vpop.xlane.xlu0 %1765
      %v1767 = vsub.f32 %v1751, %v1757
      %v1768 = vsub.f32 %v1752, %v1760
      %v1769 = vsub.f32 %v1753, %v1763
      %v1770 = vsub.f32 %v1754, %v1766
      %v1771 = vmul.f32 %v1767, 1.442695
      %v1772 = vpow.pop %v1771
      %v1773 = vmul.f32 %v1768, 1.442695
      %v1774 = vpow.pop %v1773
      %v1775 = vmul.f32 %v1769, 1.442695
      %v1776 = vpow.pop %v1775
      %v1777 = vmul.f32 %v1770, 1.442695
      %v1778 = vpow.pop %v1777
      %v1779 = vsel %vm1204, %v1772, 0.0
      %1780 = vadd.xlane.f32.xlu0 %v1779
      %v1781 = vpop.xlane.xlu0 %1780
      %v1782 = vsel %vm1204, %v1774, 0.0
      %1783 = vadd.xlane.f32.xlu0 %v1782
      %v1784 = vpop.xlane.xlu0 %1783
      %v1785 = vsel %vm1204, %v1776, 0.0
      %1786 = vadd.xlane.f32.xlu0 %v1785
      %v1787 = vpop.xlane.xlu0 %1786
      %v1788 = vsel %vm1204, %v1778, 0.0
      %1789 = vadd.xlane.f32.xlu0 %v1788
      %v1790 = vpop.xlane.xlu0 %1789
      %v1791 = vrcp.pop %v1781
      %v1792 = vrcp.pop %v1784
      %v1793 = vrcp.pop %v1787
      %v1794 = vrcp.pop %v1790
      %v1795 = vmul.f32 %v1772, %v1791
      %v1796 = vmul.f32 %v1774, %v1792
      %v1797 = vmul.f32 %v1776, %v1793
      %v1798 = vmul.f32 %v1778, %v1794
      %v1799 = vpack.c.bf16 %v1796, %v1795
      %v1800 = vpack.c.bf16 %v1798, %v1797
      %1801 = vrot.lane.b32.xlu0 %v1251, 80
      %v1802 = vpop.permute.xlu0 %1801
      %1803 = vrot.lane.b32.xlu0 %v1252, 80
      %v1804 = vpop.permute.xlu0 %1803
      %v1808 = vsel %vm1204, %v1799, 0
      %v1811 = vsel %vm1204, %v1800, 0
      %1813 = vmatprep.subr.bf16.mxu0 0
      %1814 = vmatpush1.bf16.msra.mxu0 %v1802
      %1815 = vmatprep.subr.bf16.mxu0 0
      %1816 = vmatpush1.bf16.msra.mxu0 %v1804
      %1817 = vmatprep.subr.bf16.mxu0 0
      %1818 = vmatpush1.bf16.msra.mxu0 0
      %1819 = vmatprep.subr.bf16.mxu0 0
      %1820 = vmatpush1.bf16.msra.mxu0 0
      %1821 = vmatprep.subr.bf16.mxu0 0
      %1822 = vmatpush1.bf16.msra.mxu0 0
      %1823 = vmatprep.subr.bf16.mxu0 0
      %1824 = vmatpush1.bf16.msra.mxu0 0
      %1825 = vmatprep.subr.bf16.mxu0 0
      %1826 = vmatpush1.bf16.msra.mxu0 0
      %1827 = vmatprep.subr.bf16.mxu0 0
      %1828 = vmatpush1.bf16.msra.mxu0 0
      %1829 = vmatprep.subr.bf16.mxu0 0
      %1830 = vmatpush1.bf16.msra.mxu0 0
      %1831 = vmatprep.subr.bf16.mxu0 0
      %1832 = vmatpush1.bf16.msra.mxu0 0
      %1833 = vmatprep.subr.bf16.mxu0 0
      %1834 = vmatpush1.bf16.msra.mxu0 0
      %1835 = vmatprep.subr.bf16.mxu0 0
      %1836 = vmatpush1.bf16.msra.mxu0 0
      %1837 = vmatprep.subr.bf16.mxu0 0
      %1838 = vmatpush1.bf16.msra.mxu0 0
      %1839 = vmatprep.subr.bf16.mxu0 0
      %1840 = vmatpush1.bf16.msra.mxu0 0
      %1841 = vmatprep.subr.bf16.mxu0 0
      %1842 = vmatpush1.bf16.msra.mxu0 0
      %1843 = vmatprep.subr.bf16.mxu0 0
      %1844 = vmatpush1.bf16.msra.mxu0 0
      %1845 = vmatprep.mubr.bf16.mxu0 0
      %1846 = vmatmul.mubr.bf16.gmra.mrb[0].mxu0 %v1808
      %v1847 = vpop.f32.mrb[0].mxu0
      %v1848 = vadd.f32 0.0, %v1847
      %v1849 = vpop.f32.mrb[0].mxu0
      %v1850 = vpop.f32.mrb[0].mxu0
      %v1851 = vadd.f32 0.0, %v1850
      %v1852 = vpop.f32.mrb[0].mxu0
      %1853 = vmatprep.mubr.bf16.mxu0 0
      %1854 = vmatmul.mubr.bf16.gmra.mrb[0].mxu0 %v1811
      %v1855 = vpop.f32.mrb[0].mxu0
      %v1856 = vadd.f32 0.0, %v1855
      %v1857 = vpop.f32.mrb[0].mxu0
      %v1858 = vpop.f32.mrb[0].mxu0
      %v1859 = vadd.f32 0.0, %v1858
      %v1860 = vpop.f32.mrb[0].mxu0
      %1861 = vdwg.mxu0
      %1866 = vrot.lane.b32.xlu0 %v1480, 16
      %v1867 = vpop.permute.xlu0 %1866
      %1868 = vrot.lane.b32.xlu0 %v1483, 16
      %v1869 = vpop.permute.xlu0 %1868
      %1870 = vrot.lane.b32.xlu0 %v1488, 16
      %v1871 = vpop.permute.xlu0 %1870
      %1872 = vrot.lane.b32.xlu0 %v1491, 16
      %v1873 = vpop.permute.xlu0 %1872
      %1882 = vrot.lane.b32.xlu0 %v1664, 32
      %v1883 = vpop.permute.xlu0 %1882
      %1884 = vrot.lane.b32.xlu0 %v1667, 32
      %v1885 = vpop.permute.xlu0 %1884
      %1886 = vrot.lane.b32.xlu0 %v1672, 32
      %v1887 = vpop.permute.xlu0 %1886
      %1888 = vrot.lane.b32.xlu0 %v1675, 32
      %v1889 = vpop.permute.xlu0 %1888
      %1898 = vrot.lane.b32.xlu0 %v1848, 48
      %v1899 = vpop.permute.xlu0 %1898
      %1900 = vrot.lane.b32.xlu0 %v1851, 48
      %v1901 = vpop.permute.xlu0 %1900
      %1902 = vrot.lane.b32.xlu0 %v1856, 48
      %v1903 = vpop.permute.xlu0 %1902
      %1904 = vrot.lane.b32.xlu0 %v1859, 48
      %v1905 = vpop.permute.xlu0 %1904
      %v1910 = vsel %vm1134, %v1294, %v1867
      %v1911 = vsel %vm1134, %v1297, %v1869
      %v1912 = vsel %vm1134, %v1302, %v1871
      %v1913 = vsel %vm1134, %v1305, %v1873
      %v1914 = vsel %vm1204, %v1910, %v1883
      %v1915 = vsel %vm1204, %v1911, %v1885
      %v1916 = vsel %vm1204, %v1912, %v1887
      %v1917 = vsel %vm1204, %v1913, %v1889
      %vm1918 = vcmask 392192
      %v1919 = vsel %vm1918, %v1914, %v1899
      %v1920 = vsel %vm1918, %v1915, %v1901
      %v1921 = vsel %vm1918, %v1916, %v1903
      %v1922 = vsel %vm1918, %v1917, %v1905
      %v1923 = vpack.c.bf16 %v1920, %v1919
      %v1924 = vpack.c.bf16 %v1922, %v1921
      %v1925 = vld [vmem:[%s781] sm:$0xf]
      %v1926 = vld [vmem:[%s781 + $0x4] sm:$0xf]
      %v1927 = vld [vmem:[%s781 + $0x8] sm:$0xf]
      %v1928 = vld [vmem:[%s781 + $0xc] sm:$0xf]
      %v1929 = vld [vmem:[%s781 + $0x10] sm:$0xf]
      %v1930 = vld [vmem:[%s781 + $0x14] sm:$0xf]
      %v1931 = vld [vmem:[%s781 + $0x18] sm:$0xf]
      %v1932 = vld [vmem:[%s781 + $0x1c] sm:$0xf]
      %v1941 = vunpack.c.l.b16 %v1925
      %v1942 = vunpack.c.l.b16 %v1926
      %v1943 = vunpack.c.l.b16 %v1927
      %v1944 = vunpack.c.l.b16 %v1928
      %v1945 = vunpack.c.l.b16 %v1929
      %v1946 = vunpack.c.l.b16 %v1930
      %v1947 = vunpack.c.l.b16 %v1931
      %v1948 = vunpack.c.l.b16 %v1932
      %v1949 = vpack.c.b16 %v1942, %v1941
      %v1950 = vpack.c.b16 %v1944, %v1943
      %v1951 = vpack.c.b16 %v1946, %v1945
      %v1952 = vpack.c.b16 %v1948, %v1947
      %v1958 = vsel %vm931, %v1923, 0
      %v1961 = vsel %vm931, %v1924, 0
      %1963 = vmatprep.subr.bf16.mxu0 0
      %1964 = vmatpush1.bf16.msra.mxu0 %v1949
      %1965 = vmatprep.subr.bf16.mxu0 0
      %1966 = vmatpush1.bf16.msra.mxu0 %v1950
      %1967 = vmatprep.subr.bf16.mxu0 0
      %1968 = vmatpush1.bf16.msra.mxu0 %v1951
      %1969 = vmatprep.subr.bf16.mxu0 0
      %1970 = vmatpush1.bf16.msra.mxu0 %v1952
      %1971 = vmatprep.subr.bf16.mxu0 0
      %1972 = vmatpush1.bf16.msra.mxu0 0
      %1973 = vmatprep.subr.bf16.mxu0 0
      %1974 = vmatpush1.bf16.msra.mxu0 0
      %1975 = vmatprep.subr.bf16.mxu0 0
      %1976 = vmatpush1.bf16.msra.mxu0 0
      %1977 = vmatprep.subr.bf16.mxu0 0
      %1978 = vmatpush1.bf16.msra.mxu0 0
      %1979 = vmatprep.subr.bf16.mxu0 0
      %1980 = vmatpush1.bf16.msra.mxu0 0
      %1981 = vmatprep.subr.bf16.mxu0 0
      %1982 = vmatpush1.bf16.msra.mxu0 0
      %1983 = vmatprep.subr.bf16.mxu0 0
      %1984 = vmatpush1.bf16.msra.mxu0 0
      %1985 = vmatprep.subr.bf16.mxu0 0
      %1986 = vmatpush1.bf16.msra.mxu0 0
      %1987 = vmatprep.subr.bf16.mxu0 0
      %1988 = vmatpush1.bf16.msra.mxu0 0
      %1989 = vmatprep.subr.bf16.mxu0 0
      %1990 = vmatpush1.bf16.msra.mxu0 0
      %1991 = vmatprep.subr.bf16.mxu0 0
      %1992 = vmatpush1.bf16.msra.mxu0 0
      %1993 = vmatprep.subr.bf16.mxu0 0
      %1994 = vmatpush1.bf16.msra.mxu0 0
      %1995 = vmatprep.mubr.bf16.mxu0 0
      %1996 = vmatmul.mubr.bf16.gmra.mrb[0].mxu0 %v1958
      %v1997 = vpop.f32.mrb[0].mxu0
      %v1998 = vadd.f32 0.0, %v1997
      %v1999 = vpop.f32.mrb[0].mxu0
      %v2000 = vpop.f32.mrb[0].mxu0
      %v2001 = vadd.f32 0.0, %v2000
      %v2002 = vpop.f32.mrb[0].mxu0
      %2003 = vmatprep.mubr.bf16.mxu0 0
      %2004 = vmatmul.mubr.bf16.gmra.mrb[0].mxu0 %v1961
      %v2005 = vpop.f32.mrb[0].mxu0
      %v2006 = vadd.f32 0.0, %v2005
      %v2007 = vpop.f32.mrb[0].mxu0
      %v2008 = vpop.f32.mrb[0].mxu0
      %v2009 = vadd.f32 0.0, %v2008
      %v2010 = vpop.f32.mrb[0].mxu0
      %2011 = vdwg.mxu0
      %v2012 = vadd.f32 %v925, %v1998
      %v2013 = vadd.f32 %v926, %v2001
      %v2014 = vadd.f32 %v927, %v2006
      %v2015 = vadd.f32 %v928, %v2009
      %v2016 = vld [vmem:[%s784] sm:$0x1]
      %v2018 = vlaneseq
      %v2019 = vshrl.u32 %v2018, 7
      %v2020 = vsub.s32 0, %v2019
      %v2021 = vrot.slane %v2016, %v2020
      %v2023 = vadd.f32 %v2012, %v2021
      %v2024 = vadd.f32 %v2013, %v2021
      %v2025 = vadd.f32 %v2014, %v2021
      %v2026 = vadd.f32 %v2015, %v2021
      %v2027 = vld [vmem:[%s787] sm:$0x1]
      %v2028 = vld [vmem:[%s790] sm:$0x1]
      %v2029 = vsel %vm931, %v2023, 0.0
      %2030 = vadd.xlane.f32.xlu0 %v2029
      %v2031 = vpop.xlane.xlu0 %2030
      %v2032 = vsel %vm931, %v2024, 0.0
      %2033 = vadd.xlane.f32.xlu0 %v2032
      %v2034 = vpop.xlane.xlu0 %2033
      %v2035 = vsel %vm931, %v2025, 0.0
      %2036 = vadd.xlane.f32.xlu0 %v2035
      %v2037 = vpop.xlane.xlu0 %2036
      %v2038 = vsel %vm931, %v2026, 0.0
      %2039 = vadd.xlane.f32.xlu0 %v2038
      %v2040 = vpop.xlane.xlu0 %2039
      %v2041 = vmul.f32 %v2031, %v944
      %v2042 = vmul.f32 %v2034, %v944
      %v2043 = vmul.f32 %v2037, %v944
      %v2044 = vmul.f32 %v2040, %v944
      %v2045 = vsub.f32 %v2023, %v2041
      %v2046 = vsub.f32 %v2024, %v2042
      %v2047 = vsub.f32 %v2025, %v2043
      %v2048 = vsub.f32 %v2026, %v2044
      %v2049 = vmul.f32 %v2045, %v2045
      %v2050 = vmul.f32 %v2046, %v2046
      %v2051 = vmul.f32 %v2047, %v2047
      %v2052 = vmul.f32 %v2048, %v2048
      %v2053 = vsel %vm931, %v2049, 0.0
      %2054 = vadd.xlane.f32.xlu0 %v2053
      %v2055 = vpop.xlane.xlu0 %2054
      %v2056 = vsel %vm931, %v2050, 0.0
      %2057 = vadd.xlane.f32.xlu0 %v2056
      %v2058 = vpop.xlane.xlu0 %2057
      %v2059 = vsel %vm931, %v2051, 0.0
      %2060 = vadd.xlane.f32.xlu0 %v2059
      %v2061 = vpop.xlane.xlu0 %2060
      %v2062 = vsel %vm931, %v2052, 0.0
      %2063 = vadd.xlane.f32.xlu0 %v2062
      %v2064 = vpop.xlane.xlu0 %2063
      %v2065 = vmul.f32 %v2055, %v944
      %v2066 = vmul.f32 %v2058, %v944
      %v2067 = vmul.f32 %v2061, %v944
      %v2068 = vmul.f32 %v2064, %v944
      %v2069 = vadd.f32 %v2065, 1e-06
      %v2070 = vadd.f32 %v2066, 1e-06
      %v2071 = vadd.f32 %v2067, 1e-06
      %v2072 = vadd.f32 %v2068, 1e-06
      %v2073 = vrsqrt.pop %v2069
      %v2074 = vrsqrt.pop %v2070
      %v2075 = vrsqrt.pop %v2071
      %v2076 = vrsqrt.pop %v2072
      %v2077 = vmul.f32 %v2045, %v2073
      %v2078 = vmul.f32 %v2046, %v2074
      %v2079 = vmul.f32 %v2047, %v2075
      %v2080 = vmul.f32 %v2048, %v2076
      %v2082 = vlaneseq
      %v2083 = vshrl.u32 %v2082, 7
      %v2084 = vsub.s32 0, %v2083
      %v2085 = vrot.slane %v2027, %v2084
      %v2087 = vmul.f32 %v2077, %v2085
      %v2088 = vmul.f32 %v2078, %v2085
      %v2089 = vmul.f32 %v2079, %v2085
      %v2090 = vmul.f32 %v2080, %v2085
      %v2092 = vlaneseq
      %v2093 = vshrl.u32 %v2092, 7
      %v2094 = vsub.s32 0, %v2093
      %v2095 = vrot.slane %v2028, %v2094
      %v2097 = vadd.f32 %v2087, %v2095
      %v2098 = vadd.f32 %v2088, %v2095
      %v2099 = vadd.f32 %v2089, %v2095
      %v2100 = vadd.f32 %v2090, %v2095
      %v2101 = vpack.c.bf16 %v2098, %v2097
      %v2102 = vpack.c.bf16 %v2100, %v2099
      %v2103 = vld [vmem:[%s795] sm:$0xff]
      %v2104 = vld [vmem:[%s795 + $0x8] sm:$0xff]
      %v2105 = vld [vmem:[%s795 + $0x10] sm:$0xff]
      %v2106 = vld [vmem:[%s795 + $0x18] sm:$0xff]
      %v2107 = vld [vmem:[%s795 + $0x20] sm:$0xff]
      %v2108 = vld [vmem:[%s795 + $0x28] sm:$0xff]
      %v2109 = vld [vmem:[%s795 + $0x30] sm:$0xff]
      %v2110 = vld [vmem:[%s795 + $0x38] sm:$0xff]
      %v2111 = vld [vmem:[%s799] sm:$0x3]
      %v2113 = vlaneseq
      %v2114 = vshrl.u32 %v2113, 7
      %v2115 = vsub.s32 0, %v2114
      %v2116 = vrot.slane %v2111, %v2115
      %v2117 = vlaneseq
      %v2118 = vshrl.u32 %v2117, 7
      %v2119 = vsub.s32 1, %v2118
      %v2120 = vrot.slane %v2111, %v2119
      %v2131 = vunpack.c.l.b16 %v2103
      %v2132 = vunpack.c.h.b16 %v2103
      %v2133 = vunpack.c.l.b16 %v2104
      %v2134 = vunpack.c.h.b16 %v2104
      %v2135 = vunpack.c.l.b16 %v2105
      %v2136 = vunpack.c.h.b16 %v2105
      %v2137 = vunpack.c.l.b16 %v2106
      %v2138 = vunpack.c.h.b16 %v2106
      %v2139 = vunpack.c.l.b16 %v2107
      %v2140 = vunpack.c.h.b16 %v2107
      %v2141 = vunpack.c.l.b16 %v2108
      %v2142 = vunpack.c.h.b16 %v2108
      %v2143 = vunpack.c.l.b16 %v2109
      %v2144 = vunpack.c.h.b16 %v2109
      %v2145 = vunpack.c.l.b16 %v2110
      %v2146 = vunpack.c.h.b16 %v2110
      %v2147 = vpack.c.b16 %v2133, %v2131
      %v2148 = vpack.c.b16 %v2134, %v2132
      %v2149 = vpack.c.b16 %v2137, %v2135
      %v2150 = vpack.c.b16 %v2138, %v2136
      %v2151 = vpack.c.b16 %v2141, %v2139
      %v2152 = vpack.c.b16 %v2142, %v2140
      %v2153 = vpack.c.b16 %v2145, %v2143
      %v2154 = vpack.c.b16 %v2146, %v2144
      %v2164 = vsel %vm931, %v2101, 0
      %v2167 = vsel %vm931, %v2102, 0
      %2169 = vmatprep.subr.bf16.mxu0 %v2148
      %2170 = vmatpush1.bf16.msra.mxu0 %v2147
      %2171 = vmatprep.subr.bf16.mxu0 %v2150
      %2172 = vmatpush1.bf16.msra.mxu0 %v2149
      %2173 = vmatprep.subr.bf16.mxu0 %v2152
      %2174 = vmatpush1.bf16.msra.mxu0 %v2151
      %2175 = vmatprep.subr.bf16.mxu0 %v2154
      %2176 = vmatpush1.bf16.msra.mxu0 %v2153
      %2177 = vmatprep.subr.bf16.mxu0 0
      %2178 = vmatpush1.bf16.msra.mxu0 0
      %2179 = vmatprep.subr.bf16.mxu0 0
      %2180 = vmatpush1.bf16.msra.mxu0 0
      %2181 = vmatprep.subr.bf16.mxu0 0
      %2182 = vmatpush1.bf16.msra.mxu0 0
      %2183 = vmatprep.subr.bf16.mxu0 0
      %2184 = vmatpush1.bf16.msra.mxu0 0
      %2185 = vmatprep.subr.bf16.mxu0 0
      %2186 = vmatpush1.bf16.msra.mxu0 0
      %2187 = vmatprep.subr.bf16.mxu0 0
      %2188 = vmatpush1.bf16.msra.mxu0 0
      %2189 = vmatprep.subr.bf16.mxu0 0
      %2190 = vmatpush1.bf16.msra.mxu0 0
      %2191 = vmatprep.subr.bf16.mxu0 0
      %2192 = vmatpush1.bf16.msra.mxu0 0
      %2193 = vmatprep.subr.bf16.mxu0 0
      %2194 = vmatpush1.bf16.msra.mxu0 0
      %2195 = vmatprep.subr.bf16.mxu0 0
      %2196 = vmatpush1.bf16.msra.mxu0 0
      %2197 = vmatprep.subr.bf16.mxu0 0
      %2198 = vmatpush1.bf16.msra.mxu0 0
      %2199 = vmatprep.subr.bf16.mxu0 0
      %2200 = vmatpush1.bf16.msra.mxu0 0
      %2201 = vmatprep.mubr.bf16.mxu0 0
      %2202 = vmatmul.mubr.bf16.gmra.mrb[0].mxu0 %v2164
      %v2203 = vpop.f32.mrb[0].mxu0
      %v2204 = vadd.f32 %v2116, %v2203
      %v2205 = vpop.f32.mrb[0].mxu0
      %v2206 = vadd.f32 %v2120, %v2205
      %v2207 = vpop.f32.mrb[0].mxu0
      %v2208 = vadd.f32 %v2116, %v2207
      %v2209 = vpop.f32.mrb[0].mxu0
      %v2210 = vadd.f32 %v2120, %v2209
      %2211 = vmatprep.mubr.bf16.mxu0 0
      %2212 = vmatmul.mubr.bf16.gmra.mrb[0].mxu0 %v2167
      %v2213 = vpop.f32.mrb[0].mxu0
      %v2214 = vadd.f32 %v2116, %v2213
      %v2215 = vpop.f32.mrb[0].mxu0
      %v2216 = vadd.f32 %v2120, %v2215
      %v2217 = vpop.f32.mrb[0].mxu0
      %v2218 = vadd.f32 %v2116, %v2217
      %v2219 = vpop.f32.mrb[0].mxu0
      %v2220 = vadd.f32 %v2120, %v2219
      %2221 = vdwg.mxu0
      %v2222 = vmul.f32 %v2204, %v2204
      %v2223 = vmul.f32 %v2206, %v2206
      %v2224 = vmul.f32 %v2208, %v2208
      %v2225 = vmul.f32 %v2210, %v2210
      %v2226 = vmul.f32 %v2214, %v2214
      %v2227 = vmul.f32 %v2216, %v2216
      %v2228 = vmul.f32 %v2218, %v2218
      %v2229 = vmul.f32 %v2220, %v2220
      %v2230 = vmul.f32 %v2204, %v2222
      %v2231 = vmul.f32 %v2206, %v2223
      %v2232 = vmul.f32 %v2208, %v2224
      %v2233 = vmul.f32 %v2210, %v2225
      %v2234 = vmul.f32 %v2214, %v2226
      %v2235 = vmul.f32 %v2216, %v2227
      %v2236 = vmul.f32 %v2218, %v2228
      %v2237 = vmul.f32 %v2220, %v2229
      %v2238 = vmul.f32 %v2230, 0.044715
      %v2239 = vmul.f32 %v2231, 0.044715
      %v2240 = vmul.f32 %v2232, 0.044715
      %v2241 = vmul.f32 %v2233, 0.044715
      %v2242 = vmul.f32 %v2234, 0.044715
      %v2243 = vmul.f32 %v2235, 0.044715
      %v2244 = vmul.f32 %v2236, 0.044715
      %v2245 = vmul.f32 %v2237, 0.044715
      %v2246 = vadd.f32 %v2204, %v2238
      %v2247 = vadd.f32 %v2206, %v2239
      %v2248 = vadd.f32 %v2208, %v2240
      %v2249 = vadd.f32 %v2210, %v2241
      %v2250 = vadd.f32 %v2214, %v2242
      %v2251 = vadd.f32 %v2216, %v2243
      %v2252 = vadd.f32 %v2218, %v2244
      %v2253 = vadd.f32 %v2220, %v2245
      %v2254 = vmul.f32 %v2246, 0.7978846
      %v2255 = vmul.f32 %v2247, 0.7978846
      %v2256 = vmul.f32 %v2248, 0.7978846
      %v2257 = vmul.f32 %v2249, 0.7978846
      %v2258 = vmul.f32 %v2250, 0.7978846
      %v2259 = vmul.f32 %v2251, 0.7978846
      %v2260 = vmul.f32 %v2252, 0.7978846
      %v2261 = vmul.f32 %v2253, 0.7978846
      %v2262 = vtanh.pop %v2254
      %v2263 = vtanh.pop %v2255
      %v2264 = vtanh.pop %v2256
      %v2265 = vtanh.pop %v2257
      %v2266 = vtanh.pop %v2258
      %v2267 = vtanh.pop %v2259
      %v2268 = vtanh.pop %v2260
      %v2269 = vtanh.pop %v2261
      %v2270 = vadd.f32 %v2262, 1.0
      %v2271 = vadd.f32 %v2263, 1.0
      %v2272 = vadd.f32 %v2264, 1.0
      %v2273 = vadd.f32 %v2265, 1.0
      %v2274 = vadd.f32 %v2266, 1.0
      %v2275 = vadd.f32 %v2267, 1.0
      %v2276 = vadd.f32 %v2268, 1.0
      %v2277 = vadd.f32 %v2269, 1.0
      %v2278 = vmul.f32 %v2270, 0.5
      %v2279 = vmul.f32 %v2271, 0.5
      %v2280 = vmul.f32 %v2272, 0.5
      %v2281 = vmul.f32 %v2273, 0.5
      %v2282 = vmul.f32 %v2274, 0.5
      %v2283 = vmul.f32 %v2275, 0.5
      %v2284 = vmul.f32 %v2276, 0.5
      %v2285 = vmul.f32 %v2277, 0.5
      %v2286 = vmul.f32 %v2204, %v2278
      %v2287 = vmul.f32 %v2206, %v2279
      %v2288 = vmul.f32 %v2208, %v2280
      %v2289 = vmul.f32 %v2210, %v2281
      %v2290 = vmul.f32 %v2214, %v2282
      %v2291 = vmul.f32 %v2216, %v2283
      %v2292 = vmul.f32 %v2218, %v2284
      %v2293 = vmul.f32 %v2220, %v2285
      %v2294 = vpack.c.bf16 %v2288, %v2286
      %v2295 = vpack.c.bf16 %v2289, %v2287
      %v2296 = vpack.c.bf16 %v2292, %v2290
      %v2297 = vpack.c.bf16 %v2293, %v2291
      %v2298 = vld [vmem:[%s804] sm:$0xf]
      %v2299 = vld [vmem:[%s804 + $0x4] sm:$0xf]
      %v2300 = vld [vmem:[%s804 + $0x8] sm:$0xf]
      %v2301 = vld [vmem:[%s804 + $0xc] sm:$0xf]
      %v2302 = vld [vmem:[%s804 + $0x10] sm:$0xf]
      %v2303 = vld [vmem:[%s804 + $0x14] sm:$0xf]
      %v2304 = vld [vmem:[%s804 + $0x18] sm:$0xf]
      %v2305 = vld [vmem:[%s804 + $0x1c] sm:$0xf]
      %v2306 = vld [vmem:[%s804 + $0x20] sm:$0xf]
      %v2307 = vld [vmem:[%s804 + $0x24] sm:$0xf]
      %v2308 = vld [vmem:[%s804 + $0x28] sm:$0xf]
      %v2309 = vld [vmem:[%s804 + $0x2c] sm:$0xf]
      %v2310 = vld [vmem:[%s804 + $0x30] sm:$0xf]
      %v2311 = vld [vmem:[%s804 + $0x34] sm:$0xf]
      %v2312 = vld [vmem:[%s804 + $0x38] sm:$0xf]
      %v2313 = vld [vmem:[%s804 + $0x3c] sm:$0xf]
      %v2314 = vld [vmem:[%s804 + $0x40] sm:$0xf]
      %v2315 = vld [vmem:[%s804 + $0x44] sm:$0xf]
      %v2316 = vld [vmem:[%s804 + $0x48] sm:$0xf]
      %v2317 = vld [vmem:[%s804 + $0x4c] sm:$0xf]
      %v2318 = vld [vmem:[%s804 + $0x50] sm:$0xf]
      %v2319 = vld [vmem:[%s804 + $0x54] sm:$0xf]
      %v2320 = vld [vmem:[%s804 + $0x58] sm:$0xf]
      %v2321 = vld [vmem:[%s804 + $0x5c] sm:$0xf]
      %v2322 = vld [vmem:[%s804 + $0x60] sm:$0xf]
      %v2323 = vld [vmem:[%s804 + $0x64] sm:$0xf]
      %v2324 = vld [vmem:[%s804 + $0x68] sm:$0xf]
      %v2325 = vld [vmem:[%s804 + $0x6c] sm:$0xf]
      %v2326 = vld [vmem:[%s804 + $0x70] sm:$0xf]
      %v2327 = vld [vmem:[%s804 + $0x74] sm:$0xf]
      %v2328 = vld [vmem:[%s804 + $0x78] sm:$0xf]
      %v2329 = vld [vmem:[%s804 + $0x7c] sm:$0xf]
      %v2362 = vunpack.c.l.b16 %v2298
      %v2363 = vunpack.c.l.b16 %v2299
      %v2364 = vunpack.c.l.b16 %v2300
      %v2365 = vunpack.c.l.b16 %v2301
      %v2366 = vunpack.c.l.b16 %v2302
      %v2367 = vunpack.c.l.b16 %v2303
      %v2368 = vunpack.c.l.b16 %v2304
      %v2369 = vunpack.c.l.b16 %v2305
      %v2370 = vunpack.c.l.b16 %v2306
      %v2371 = vunpack.c.l.b16 %v2307
      %v2372 = vunpack.c.l.b16 %v2308
      %v2373 = vunpack.c.l.b16 %v2309
      %v2374 = vunpack.c.l.b16 %v2310
      %v2375 = vunpack.c.l.b16 %v2311
      %v2376 = vunpack.c.l.b16 %v2312
      %v2377 = vunpack.c.l.b16 %v2313
      %v2378 = vunpack.c.l.b16 %v2314
      %v2379 = vunpack.c.l.b16 %v2315
      %v2380 = vunpack.c.l.b16 %v2316
      %v2381 = vunpack.c.l.b16 %v2317
      %v2382 = vunpack.c.l.b16 %v2318
      %v2383 = vunpack.c.l.b16 %v2319
      %v2384 = vunpack.c.l.b16 %v2320
      %v2385 = vunpack.c.l.b16 %v2321
      %v2386 = vunpack.c.l.b16 %v2322
      %v2387 = vunpack.c.l.b16 %v2323
      %v2388 = vunpack.c.l.b16 %v2324
      %v2389 = vunpack.c.l.b16 %v2325
      %v2390 = vunpack.c.l.b16 %v2326
      %v2391 = vunpack.c.l.b16 %v2327
      %v2392 = vunpack.c.l.b16 %v2328
      %v2393 = vunpack.c.l.b16 %v2329
      %v2394 = vpack.c.b16 %v2363, %v2362
      %v2395 = vpack.c.b16 %v2365, %v2364
      %v2396 = vpack.c.b16 %v2367, %v2366
      %v2397 = vpack.c.b16 %v2369, %v2368
      %v2398 = vpack.c.b16 %v2371, %v2370
      %v2399 = vpack.c.b16 %v2373, %v2372
      %v2400 = vpack.c.b16 %v2375, %v2374
      %v2401 = vpack.c.b16 %v2377, %v2376
      %v2402 = vpack.c.b16 %v2379, %v2378
      %v2403 = vpack.c.b16 %v2381, %v2380
      %v2404 = vpack.c.b16 %v2383, %v2382
      %v2405 = vpack.c.b16 %v2385, %v2384
      %v2406 = vpack.c.b16 %v2387, %v2386
      %v2407 = vpack.c.b16 %v2389, %v2388
      %v2408 = vpack.c.b16 %v2391, %v2390
      %v2409 = vpack.c.b16 %v2393, %v2392
      %2426 = vmatprep.subr.bf16.mxu0 0
      %2427 = vmatpush1.bf16.msra.mxu0 %v2394
      %2428 = vmatprep.subr.bf16.mxu0 0
      %2429 = vmatpush1.bf16.msra.mxu0 %v2395
      %2430 = vmatprep.subr.bf16.mxu0 0
      %2431 = vmatpush1.bf16.msra.mxu0 %v2396
      %2432 = vmatprep.subr.bf16.mxu0 0
      %2433 = vmatpush1.bf16.msra.mxu0 %v2397
      %2434 = vmatprep.subr.bf16.mxu0 0
      %2435 = vmatpush1.bf16.msra.mxu0 %v2398
      %2436 = vmatprep.subr.bf16.mxu0 0
      %2437 = vmatpush1.bf16.msra.mxu0 %v2399
      %2438 = vmatprep.subr.bf16.mxu0 0
      %2439 = vmatpush1.bf16.msra.mxu0 %v2400
      %2440 = vmatprep.subr.bf16.mxu0 0
      %2441 = vmatpush1.bf16.msra.mxu0 %v2401
      %2442 = vmatprep.subr.bf16.mxu0 0
      %2443 = vmatpush1.bf16.msra.mxu0 %v2402
      %2444 = vmatprep.subr.bf16.mxu0 0
      %2445 = vmatpush1.bf16.msra.mxu0 %v2403
      %2446 = vmatprep.subr.bf16.mxu0 0
      %2447 = vmatpush1.bf16.msra.mxu0 %v2404
      %2448 = vmatprep.subr.bf16.mxu0 0
      %2449 = vmatpush1.bf16.msra.mxu0 %v2405
      %2450 = vmatprep.subr.bf16.mxu0 0
      %2451 = vmatpush1.bf16.msra.mxu0 %v2406
      %2452 = vmatprep.subr.bf16.mxu0 0
      %2453 = vmatpush1.bf16.msra.mxu0 %v2407
      %2454 = vmatprep.subr.bf16.mxu0 0
      %2455 = vmatpush1.bf16.msra.mxu0 %v2408
      %2456 = vmatprep.subr.bf16.mxu0 0
      %2457 = vmatpush1.bf16.msra.mxu0 %v2409
      %2458 = vmatprep.mubr.bf16.mxu0 %v2295
      %2459 = vmatmul.mubr.bf16.gmra.mrb[0].mxu0 %v2294
      %v2460 = vpop.f32.mrb[0].mxu0
      %v2461 = vadd.f32 0.0, %v2460
      %v2462 = vpop.f32.mrb[0].mxu0
      %v2463 = vpop.f32.mrb[0].mxu0
      %v2464 = vadd.f32 0.0, %v2463
      %v2465 = vpop.f32.mrb[0].mxu0
      %2466 = vmatprep.mubr.bf16.mxu0 %v2297
      %2467 = vmatmul.mubr.bf16.gmra.mrb[0].mxu0 %v2296
      %v2468 = vpop.f32.mrb[0].mxu0
      %v2469 = vadd.f32 0.0, %v2468
      %v2470 = vpop.f32.mrb[0].mxu0
      %v2471 = vpop.f32.mrb[0].mxu0
      %v2472 = vadd.f32 0.0, %v2471
      %v2473 = vpop.f32.mrb[0].mxu0
      %2474 = vdwg.mxu0
      %v2475 = vadd.f32 %v2023, %v2461
      %v2476 = vadd.f32 %v2024, %v2464
      %v2477 = vadd.f32 %v2025, %v2469
      %v2478 = vadd.f32 %v2026, %v2472
      %v2479 = vld [vmem:[%s807] sm:$0x1]
      %v2481 = vlaneseq
      %v2482 = vshrl.u32 %v2481, 7
      %v2483 = vsub.s32 0, %v2482
      %v2484 = vrot.slane %v2479, %v2483
      %v2486 = vadd.f32 %v2475, %v2484
      %v2487 = vadd.f32 %v2476, %v2484
      %v2488 = vadd.f32 %v2477, %v2484
      %v2489 = vadd.f32 %v2478, %v2484
      %2490 = vst.msk [vmem:[#allocation2] sm:$0xff] %vm931, %v2486
      %2491 = vst.msk [vmem:[#allocation2 + $0x8] sm:$0xff] %vm931, %v2487
      %2492 = vst.msk [vmem:[#allocation2 + $0x10] sm:$0xff] %vm931, %v2488
      %2493 = vst.msk [vmem:[#allocation2 + $0x18] sm:$0xff] %vm931, %v2489
      %p2494 = scmp.eq.s32.totalorder %s35, 1
      // Predicated region
      $region101: #{transformer_forward.2} parent=95 // pred_check
        %p2495 = pneg %p2494
      $region102: #{transformer_forward.2} parent=95 // pred_check_branch
        %2497 = sbr.rel (%p2495) target = $region104
      $region103: #{transformer_forward.2} parent=95 // pred_region
        %v2498 = vld [vmem:[%s15] sm:$0x1]
        %v2499 = vld [vmem:[%s16] sm:$0x1]
        %v2500 = vsel %vm931, %v2486, 0.0
        %2501 = vadd.xlane.f32.xlu0 %v2500
        %v2502 = vpop.xlane.xlu0 %2501
        %v2503 = vsel %vm931, %v2487, 0.0
        %2504 = vadd.xlane.f32.xlu0 %v2503
        %v2505 = vpop.xlane.xlu0 %2504
        %v2506 = vsel %vm931, %v2488, 0.0
        %2507 = vadd.xlane.f32.xlu0 %v2506
        %v2508 = vpop.xlane.xlu0 %2507
        %v2509 = vsel %vm931, %v2489, 0.0
        %2510 = vadd.xlane.f32.xlu0 %v2509
        %v2511 = vpop.xlane.xlu0 %2510
        %v2512 = vmul.f32 %v2502, %v944
        %v2513 = vmul.f32 %v2505, %v944
        %v2514 = vmul.f32 %v2508, %v944
        %v2515 = vmul.f32 %v2511, %v944
        %v2516 = vsub.f32 %v2486, %v2512
        %v2517 = vsub.f32 %v2487, %v2513
        %v2518 = vsub.f32 %v2488, %v2514
        %v2519 = vsub.f32 %v2489, %v2515
        %v2520 = vmul.f32 %v2516, %v2516
        %v2521 = vmul.f32 %v2517, %v2517
        %v2522 = vmul.f32 %v2518, %v2518
        %v2523 = vmul.f32 %v2519, %v2519
        %v2524 = vsel %vm931, %v2520, 0.0
        %2525 = vadd.xlane.f32.xlu0 %v2524
        %v2526 = vpop.xlane.xlu0 %2525
        %v2527 = vsel %vm931, %v2521, 0.0
        %2528 = vadd.xlane.f32.xlu0 %v2527
        %v2529 = vpop.xlane.xlu0 %2528
        %v2530 = vsel %vm931, %v2522, 0.0
        %2531 = vadd.xlane.f32.xlu0 %v2530
        %v2532 = vpop.xlane.xlu0 %2531
        %v2533 = vsel %vm931, %v2523, 0.0
        %2534 = vadd.xlane.f32.xlu0 %v2533
        %v2535 = vpop.xlane.xlu0 %2534
        %v2536 = vmul.f32 %v2526, %v944
        %v2537 = vmul.f32 %v2529, %v944
        %v2538 = vmul.f32 %v2532, %v944
        %v2539 = vmul.f32 %v2535, %v944
        %v2540 = vadd.f32 %v2536, 1e-06
        %v2541 = vadd.f32 %v2537, 1e-06
        %v2542 = vadd.f32 %v2538, 1e-06
        %v2543 = vadd.f32 %v2539, 1e-06
        %v2544 = vrsqrt.pop %v2540
        %v2545 = vrsqrt.pop %v2541
        %v2546 = vrsqrt.pop %v2542
        %v2547 = vrsqrt.pop %v2543
        %v2548 = vmul.f32 %v2516, %v2544
        %v2549 = vmul.f32 %v2517, %v2545
        %v2550 = vmul.f32 %v2518, %v2546
        %v2551 = vmul.f32 %v2519, %v2547
        %v2553 = vlaneseq
        %v2554 = vshrl.u32 %v2553, 7
        %v2555 = vsub.s32 0, %v2554
        %v2556 = vrot.slane %v2498, %v2555
        %v2558 = vmul.f32 %v2548, %v2556
        %v2559 = vmul.f32 %v2549, %v2556
        %v2560 = vmul.f32 %v2550, %v2556
        %v2561 = vmul.f32 %v2551, %v2556
        %v2563 = vlaneseq
        %v2564 = vshrl.u32 %v2563, 7
        %v2565 = vsub.s32 0, %v2564
        %v2566 = vrot.slane %v2499, %v2565
        %v2568 = vadd.f32 %v2558, %v2566
        %v2569 = vadd.f32 %v2559, %v2566
        %v2570 = vadd.f32 %v2560, %v2566
        %v2571 = vadd.f32 %v2561, %v2566
        %v2572 = vpack.c.bf16 %v2569, %v2568
        %v2573 = vpack.c.bf16 %v2571, %v2570
        %v2574 = vld [vmem:[%s17] sm:$0xf]
        %v2575 = vld [vmem:[%s17 + $0x4] sm:$0xf]
        %v2576 = vld [vmem:[%s17 + $0x8] sm:$0xf]
        %v2577 = vld [vmem:[%s17 + $0xc] sm:$0xf]
        %v2578 = vld [vmem:[%s17 + $0x10] sm:$0xf]
        %v2579 = vld [vmem:[%s17 + $0x14] sm:$0xf]
        %v2580 = vld [vmem:[%s17 + $0x18] sm:$0xf]
        %v2581 = vld [vmem:[%s17 + $0x1c] sm:$0xf]
        %v2582 = vld [vmem:[%s18] sm:$0x1]
        %v2584 = vlaneseq
        %v2585 = vshrl.u32 %v2584, 7
        %v2586 = vsub.s32 0, %v2585
        %v2587 = vrot.slane %v2582, %v2586
        %v2597 = vunpack.c.l.b16 %v2574
        %v2598 = vunpack.c.l.b16 %v2575
        %v2599 = vunpack.c.l.b16 %v2576
        %v2600 = vunpack.c.l.b16 %v2577
        %v2601 = vunpack.c.l.b16 %v2578
        %v2602 = vunpack.c.l.b16 %v2579
        %v2603 = vunpack.c.l.b16 %v2580
        %v2604 = vunpack.c.l.b16 %v2581
        %v2605 = vpack.c.b16 %v2598, %v2597
        %v2606 = vpack.c.b16 %v2600, %v2599
        %v2607 = vpack.c.b16 %v2602, %v2601
        %v2608 = vpack.c.b16 %v2604, %v2603
        %v2614 = vsel %vm931, %v2572, 0
        %v2617 = vsel %vm931, %v2573, 0
        %2619 = vmatprep.subr.bf16.mxu0 0
        %2620 = vmatpush1.bf16.msra.mxu0 %v2605
        %2621 = vmatprep.subr.bf16.mxu0 0
        %2622 = vmatpush1.bf16.msra.mxu0 %v2606
        %2623 = vmatprep.subr.bf16.mxu0 0
        %2624 = vmatpush1.bf16.msra.mxu0 %v2607
        %2625 = vmatprep.subr.bf16.mxu0 0
        %2626 = vmatpush1.bf16.msra.mxu0 %v2608
        %2627 = vmatprep.subr.bf16.mxu0 0
        %2628 = vmatpush1.bf16.msra.mxu0 0
        %2629 = vmatprep.subr.bf16.mxu0 0
        %2630 = vmatpush1.bf16.msra.mxu0 0
        %2631 = vmatprep.subr.bf16.mxu0 0
        %2632 = vmatpush1.bf16.msra.mxu0 0
        %2633 = vmatprep.subr.bf16.mxu0 0
        %2634 = vmatpush1.bf16.msra.mxu0 0
        %2635 = vmatprep.subr.bf16.mxu0 0
        %2636 = vmatpush1.bf16.msra.mxu0 0
        %2637 = vmatprep.subr.bf16.mxu0 0
        %2638 = vmatpush1.bf16.msra.mxu0 0
        %2639 = vmatprep.subr.bf16.mxu0 0
        %2640 = vmatpush1.bf16.msra.mxu0 0
        %2641 = vmatprep.subr.bf16.mxu0 0
        %2642 = vmatpush1.bf16.msra.mxu0 0
        %2643 = vmatprep.subr.bf16.mxu0 0
        %2644 = vmatpush1.bf16.msra.mxu0 0
        %2645 = vmatprep.subr.bf16.mxu0 0
        %2646 = vmatpush1.bf16.msra.mxu0 0
        %2647 = vmatprep.subr.bf16.mxu0 0
        %2648 = vmatpush1.bf16.msra.mxu0 0
        %2649 = vmatprep.subr.bf16.mxu0 0
        %2650 = vmatpush1.bf16.msra.mxu0 0
        %2651 = vmatprep.mubr.bf16.mxu0 0
        %2652 = vmatmul.mubr.bf16.gmra.mrb[0].mxu0 %v2614
        %v2653 = vpop.f32.mrb[0].mxu0
        %v2654 = vadd.f32 %v2587, %v2653
        %v2655 = vpop.f32.mrb[0].mxu0
        %v2656 = vpop.f32.mrb[0].mxu0
        %v2657 = vadd.f32 %v2587, %v2656
        %v2658 = vpop.f32.mrb[0].mxu0
        %2659 = vmatprep.mubr.bf16.mxu0 0
        %2660 = vmatmul.mubr.bf16.gmra.mrb[0].mxu0 %v2617
        %v2661 = vpop.f32.mrb[0].mxu0
        %v2662 = vadd.f32 %v2587, %v2661
        %v2663 = vpop.f32.mrb[0].mxu0
        %v2664 = vpop.f32.mrb[0].mxu0
        %v2665 = vadd.f32 %v2587, %v2664
        %v2666 = vpop.f32.mrb[0].mxu0
        %2667 = vdwg.mxu0
        %2668 = vst.msk [vmem:[%s812] sm:$0xff] %vm1204, %v2654
        %2669 = vst.msk [vmem:[%s812 + $0x8] sm:$0xff] %vm1204, %v2657
        %2670 = vst.msk [vmem:[%s812 + $0x10] sm:$0xff] %vm1204, %v2662
        %2671 = vst.msk [vmem:[%s812 + $0x18] sm:$0xff] %vm1204, %v2665
      $region104: #{transformer_forward.2} parent=95 // pred_fallthru
        _
      %p2672 = scmp.lt.s32.totalorder %s34, 1
      %s2673 = scalar_select %p2672, %s34, 1
      %s2674 = smul.addr %s2673, 4
      %s2675 = smul.addr %s2674, 8
      %s2676 = scalar_lea.vmem %s19, %s2675
      // Predicated region
      $region105: #{transformer_forward.2} parent=95 // pred_check
        %p2677 = pneg %p524
      $region106: #{transformer_forward.2} parent=95 // pred_check_branch
        %2679 = sbr.rel (%p2677) target = $region108
      $region107: #{transformer_forward.2} parent=95 // pred_region
        _
      $region108: #{transformer_forward.2} parent=95 // pred_fallthru
        _
    $region96: #{transformer_forward.2} parent=5 // pred_fallthru
      _
    %p2680 = scmp.le.s32.totalorder 2, %s25
    // Predicated region
    $region109: #{transformer_forward.2} parent=5 // pred_check
      %p2681 = pneg %p2680
    $region110: #{transformer_forward.2} parent=5 // pred_check_branch
      %2683 = sbr.rel (%p2681) target = $region112
    $region111: #{transformer_forward.2} parent=5 // pred_region
      %s2684 = ssub.s32 %s25, 2
      // Predicated region
      $region113: #{transformer_forward.2} parent=111 // pred_check
        %p2685 = pneg %p530
      $region114: #{transformer_forward.2} parent=111 // pred_check_branch
        %2687 = sbr.rel (%p2685) target = $region116
      $region115: #{transformer_forward.2} parent=111 // pred_region
        %p2688 = scmp.lt.s32.totalorder %s36, 1
        %s2689 = scalar_select %p2688, %s36, 1
        %s2690 = smul.addr %s2689, 4
        %s2691 = smul.addr %s2690, 8
        %s2692 = scalar_lea.vmem %s19, %s2691
      $region116: #{transformer_forward.2} parent=111 // pred_fallthru
        _
    $region112: #{transformer_forward.2} parent=5 // pred_fallthru
      _
  $region6: #{transformer_forward.2} parent=0 // loop_footer
    %s29 = sadd.s32 1, %s25
  $region7: #{transformer_forward.2} parent=0 // loop_footer_branch
    %24 = sbr.rel target = $region3
  $region8: #{transformer_forward.2} parent=0 // loop_exit
    _

// kernel: transformer_forward.3
$region0: #{transformer_forward.3}
  #allocation0 [shape = 'u32[]', space=smem, size = 0x4, offset = 0x4, fixed_abs, tag = 'smem constant byte address 0x4 - core index']
  #allocation1 [shape = 'u32[144,128]{1,0:T(1,128)}', space=vmem, size = 0x12000, scoped, tag = 'internal scratch']
  #allocation2 [shape = 'f32[8,32]{1,0:T(8,128)}', space=vmem, size = 0x1000, scoped, tag = 'scratch operand']
  %s0 = inlined_call_operand.vmem [shape: f32[2,8,32], index: 0, kind: input, shape index: {}]
  %s1 = inlined_call_operand.vmem [shape: f32[2,32,32], index: 1, kind: input, shape index: {}]
  %s2 = inlined_call_operand.vmem [shape: f32[2,1,32], index: 2, kind: input, shape index: {}]
  %s3 = inlined_call_operand.vmem [shape: f32[2,1,32], index: 3, kind: input, shape index: {}]
  %s4 = inlined_call_operand.vmem [shape: bf16[2,32,96], index: 4, kind: input, shape index: {}]
  %s5 = inlined_call_operand.vmem [shape: f32[2,1,96], index: 5, kind: input, shape index: {}]
  %s6 = inlined_call_operand.vmem [shape: bf16[2,32,32], index: 6, kind: input, shape index: {}]
  %s7 = inlined_call_operand.vmem [shape: f32[2,1,32], index: 7, kind: input, shape index: {}]
  %s8 = inlined_call_operand.vmem [shape: f32[2,1,32], index: 8, kind: input, shape index: {}]
  %s9 = inlined_call_operand.vmem [shape: f32[2,1,32], index: 9, kind: input, shape index: {}]
  %s10 = inlined_call_operand.vmem [shape: bf16[2,32,32], index: 10, kind: input, shape index: {}]
  %s11 = inlined_call_operand.vmem [shape: f32[2,1,32], index: 11, kind: input, shape index: {}]
  %s12 = inlined_call_operand.vmem [shape: bf16[2,32,64], index: 12, kind: input, shape index: {}]
  %s13 = inlined_call_operand.vmem [shape: f32[2,1,64], index: 13, kind: input, shape index: {}]
  %s14 = inlined_call_operand.vmem [shape: bf16[2,32,32], index: 14, kind: input, shape index: {}]
  %s15 = inlined_call_operand.vmem [shape: f32[2,1,32], index: 15, kind: input, shape index: {}]
  %s16 = inlined_call_operand.vmem [shape: f32[2,1,32], index: 16, kind: input, shape index: {}]
  %s17 = inlined_call_operand.vmem [shape: f32[2,1,32], index: 17, kind: input, shape index: {}]
  %s18 = inlined_call_operand.vmem [shape: bf16[2,32,64], index: 18, kind: input, shape index: {}]
  %s19 = inlined_call_operand.vmem [shape: f32[2,1,64], index: 19, kind: input, shape index: {}]
  %s20 = inlined_call_operand.vmem [shape: bf16[2,64,32], index: 20, kind: input, shape index: {}]
  %s21 = inlined_call_operand.vmem [shape: f32[2,1,32], index: 21, kind: input, shape index: {}]
  %s22 = inlined_call_operand.vmem [shape: f32[1,32], index: 22, kind: input, shape index: {}]
  %s23 = inlined_call_operand.vmem [shape: f32[1,32], index: 23, kind: input, shape index: {}]
  %s24 = inlined_call_operand.vmem [shape: bf16[32,128], index: 24, kind: input, shape index: {}]
  %s25 = inlined_call_operand.vmem [shape: f32[1,128], index: 25, kind: input, shape index: {}]
  %s26 = inlined_call_operand.hbm [shape: f32[2,8,128], index: 26, kind: output, shape index: {}]
  %s27 = sld [smem:[#allocation0]]
  $region145: #{transformer_forward.3} parent=0
    _
  %s29 = ssub.s32 1, %s27
  %s30 = scalar_select 0, %s29, %s27
  $region1: #{transformer_forward.3} parent=0
    #allocation3 [shape = 'u8[8192]{0}', space=vmem, size = 0x2000, scoped, tag = 'output window, operand 0']
    #allocation4 [shape = 's32[2]{0}', space=sflag, size = 0x8, scoped, tag = 'scoped memory for transformer_forward.3']
    %31 = vsyncpa [#allocation4], 0
    %s32 = scalar_lea.sflag [#allocation4], 1
    %33 = vsyncpa %s32, 0
    loop: start=0, step=1, limit=6
    $region2: #{transformer_forward.3} parent=1 // loop_pre_header
      _
    $region3: #{transformer_forward.3} parent=1 // loop_header
      %s35 = sphi 0, %s39
      %p36 = scmp.ge.s32.totalorder %s35, 6
      %s42 = sphi 0, %s54
      %s43 = sphi 0, %s50
      %s44 = sphi 0, %s42
      %s45 = sphi 0, %s43
      %s46 = sphi 0, %s44
      %s47 = sphi 0, %s45
      %s57 = sphi 0, %s59
      %s60 = sphi 0, %s57
      %s61 = sphi 0, %s60
      %s77 = sphi 0, %s61
      %s83 = sphi 0, %s85
      %s86 = sphi 0, %s83
      %s87 = sphi 0, %s86
      %s103 = sphi 0, %s87
      %s109 = sphi 0, %s111
      %s112 = sphi 0, %s109
      %s113 = sphi 0, %s112
      %s129 = sphi 0, %s113
      %s135 = sphi 0, %s137
      %s138 = sphi 0, %s135
      %s139 = sphi 0, %s138
      %s155 = sphi 0, %s139
      %s161 = sphi 0, %s163
      %s164 = sphi 0, %s161
      %s165 = sphi 0, %s164
      %s181 = sphi 0, %s165
      %s187 = sphi 0, %s189
      %s190 = sphi 0, %s187
      %s191 = sphi 0, %s190
      %s207 = sphi 0, %s191
      %s213 = sphi 0, %s215
      %s216 = sphi 0, %s213
      %s217 = sphi 0, %s216
      %s233 = sphi 0, %s217
      %s239 = sphi 0, %s241
      %s242 = sphi 0, %s239
      %s243 = sphi 0, %s242
      %s259 = sphi 0, %s243
      %s265 = sphi 0, %s267
      %s268 = sphi 0, %s265
      %s269 = sphi 0, %s268
      %s285 = sphi 0, %s269
      %s291 = sphi 0, %s293
      %s294 = sphi 0, %s291
      %s295 = sphi 0, %s294
      %s311 = sphi 0, %s295
      %s317 = sphi 0, %s319
      %s320 = sphi 0, %s317
      %s321 = sphi 0, %s320
      %s337 = sphi 0, %s321
      %s343 = sphi 0, %s345
      %s346 = sphi 0, %s343
      %s347 = sphi 0, %s346
      %s363 = sphi 0, %s347
      %s369 = sphi 0, %s371
      %s372 = sphi 0, %s369
      %s373 = sphi 0, %s372
      %s389 = sphi 0, %s373
      %s395 = sphi 0, %s397
      %s398 = sphi 0, %s395
      %s399 = sphi 0, %s398
      %s415 = sphi 0, %s399
      %s421 = sphi 0, %s423
      %s424 = sphi 0, %s421
      %s425 = sphi 0, %s424
      %s441 = sphi 0, %s425
      %s447 = sphi 0, %s449
      %s450 = sphi 0, %s447
      %s451 = sphi 0, %s450
      %s467 = sphi 0, %s451
      %s473 = sphi 0, %s475
      %s476 = sphi 0, %s473
      %s477 = sphi 0, %s476
      %s493 = sphi 0, %s477
      %s499 = sphi 0, %s501
      %s502 = sphi 0, %s499
      %s503 = sphi 0, %s502
      %s519 = sphi 0, %s503
      %s525 = sphi 0, %s527
      %s528 = sphi 0, %s525
      %s529 = sphi 0, %s528
      %s545 = sphi 0, %s529
      %s551 = sphi 0, %s553
      %s554 = sphi 0, %s551
      %s555 = sphi 0, %s554
      %s571 = sphi 0, %s555
      %s577 = sphi 0, %s579
      %s580 = sphi 0, %s577
      %s581 = sphi 0, %s580
      %s597 = sphi 0, %s581
      %s603 = sphi 0, %s605
      %s606 = sphi 0, %s603
      %s607 = sphi 0, %s606
      %s623 = sphi 0, %s607
      %s627 = sphi 0, %s627
      %s629 = sphi 0, %s627
      %s630 = sphi 0, %s629
      %s644 = sphi 0, %s630
      %s648 = sphi 0, %s648
      %s650 = sphi 0, %s648
      %s651 = sphi 0, %s650
      %s665 = sphi 0, %s651
      %s669 = sphi 0, %s669
      %s671 = sphi 0, %s669
      %s672 = sphi 0, %s671
      %s686 = sphi 0, %s672
      %s690 = sphi 0, %s690
      %s692 = sphi 0, %s690
      %s693 = sphi 0, %s692
      %s707 = sphi 0, %s693
      %s713 = sphi 0, %s715
      %s716 = sphi 0, %s713
      %s717 = sphi 0, %s716
      %s733 = sphi 0, %s717
    $region4: #{transformer_forward.3} parent=1 // loop_header_branch
      %38 = sbr.rel (%p36) target = $region8
    $region5: #{transformer_forward.3} parent=1 // loop_body
      %s40 = ssub.s32 %s35, 1
      %s41 = ssub.s32 %s35, 2
      %s48 = sadd.s32 1, %s43
      %p49 = scmp.ge.s32.totalorder %s48, 2
      %s50 = scalar_select %p49, 0, %s48
      %s51 = sadd.s32 1, %s42
      %s52 = scalar_select %p49, %s51, %s42
      %p53 = scmp.ge.s32.totalorder %s52, 2
      %s54 = scalar_select %p53, 0, %s52
      %s55 = ssub.s32 %s42, %s54
      %p56 = scmp.eq.s32.totalorder %s55, 0
      %s58 = sadd.s32 %s57, 1
      %s59 = scalar_select %p56, %s57, %s58
      %p62 = pneg %p56
      %p63 = scmp.eq.s32.totalorder %s35, 3
      %p64 = por %p62, %p63
      %p65 = scmp.ne.s32.totalorder %s57, %s60
      %p66 = scmp.eq.s32.totalorder %s35, 0
      %p67 = por %p65, %p66
      %p68 = scmp.ne.s32.totalorder %s57, %s60
      %p69 = scmp.eq.s32.totalorder %s40, 3
      %p70 = por %p68, %p69
      %p71 = scmp.ne.s32.totalorder %s60, %s61
      %p72 = scmp.eq.s32.totalorder %s40, 0
      %p73 = por %p71, %p72
      %p74 = scmp.ne.s32.totalorder %s60, %s61
      %p75 = scmp.eq.s32.totalorder %s41, 3
      %p76 = por %p74, %p75
      %p78 = scmp.ne.s32.totalorder %s61, %s77
      %p79 = scmp.eq.s32.totalorder %s41, 0
      %p80 = por %p78, %p79
      %s81 = ssub.s32 %s42, %s54
      %p82 = scmp.eq.s32.totalorder %s81, 0
      %s84 = sadd.s32 %s83, 1
      %s85 = scalar_select %p82, %s83, %s84
      %p88 = pneg %p82
      %p89 = scmp.eq.s32.totalorder %s35, 3
      %p90 = por %p88, %p89
      %p91 = scmp.ne.s32.totalorder %s83, %s86
      %p92 = scmp.eq.s32.totalorder %s35, 0
      %p93 = por %p91, %p92
      %p94 = scmp.ne.s32.totalorder %s83, %s86
      %p95 = scmp.eq.s32.totalorder %s40, 3
      %p96 = por %p94, %p95
      %p97 = scmp.ne.s32.totalorder %s86, %s87
      %p98 = scmp.eq.s32.totalorder %s40, 0
      %p99 = por %p97, %p98
      %p100 = scmp.ne.s32.totalorder %s86, %s87
      %p101 = scmp.eq.s32.totalorder %s41, 3
      %p102 = por %p100, %p101
      %p104 = scmp.ne.s32.totalorder %s87, %s103
      %p105 = scmp.eq.s32.totalorder %s41, 0
      %p106 = por %p104, %p105
      %s107 = ssub.s32 %s43, %s50
      %p108 = scmp.eq.s32.totalorder %s107, 0
      %s110 = sadd.s32 %s109, 1
      %s111 = scalar_select %p108, %s109, %s110
      %p114 = pneg %p108
      %p115 = scmp.eq.s32.totalorder %s35, 3
      %p116 = por %p114, %p115
      %p117 = scmp.ne.s32.totalorder %s109, %s112
      %p118 = scmp.eq.s32.totalorder %s35, 0
      %p119 = por %p117, %p118
      %p120 = scmp.ne.s32.totalorder %s109, %s112
      %p121 = scmp.eq.s32.totalorder %s40, 3
      %p122 = por %p120, %p121
      %p123 = scmp.ne.s32.totalorder %s112, %s113
      %p124 = scmp.eq.s32.totalorder %s40, 0
      %p125 = por %p123, %p124
      %p126 = scmp.ne.s32.totalorder %s112, %s113
      %p127 = scmp.eq.s32.totalorder %s41, 3
      %p128 = por %p126, %p127
      %p130 = scmp.ne.s32.totalorder %s113, %s129
      %p131 = scmp.eq.s32.totalorder %s41, 0
      %p132 = por %p130, %p131
      %s133 = ssub.s32 %s43, %s50
      %p134 = scmp.eq.s32.totalorder %s133, 0
      %s136 = sadd.s32 %s135, 1
      %s137 = scalar_select %p134, %s135, %s136
      %p140 = pneg %p134
      %p141 = scmp.eq.s32.totalorder %s35, 3
      %p142 = por %p140, %p141
      %p143 = scmp.ne.s32.totalorder %s135, %s138
      %p144 = scmp.eq.s32.totalorder %s35, 0
      %p145 = por %p143, %p144
      %p146 = scmp.ne.s32.totalorder %s135, %s138
      %p147 = scmp.eq.s32.totalorder %s40, 3
      %p148 = por %p146, %p147
      %p149 = scmp.ne.s32.totalorder %s138, %s139
      %p150 = scmp.eq.s32.totalorder %s40, 0
      %p151 = por %p149, %p150
      %p152 = scmp.ne.s32.totalorder %s138, %s139
      %p153 = scmp.eq.s32.totalorder %s41, 3
      %p154 = por %p152, %p153
      %p156 = scmp.ne.s32.totalorder %s139, %s155
      %p157 = scmp.eq.s32.totalorder %s41, 0
      %p158 = por %p156, %p157
      %s159 = ssub.s32 %s43, %s50
      %p160 = scmp.eq.s32.totalorder %s159, 0
      %s162 = sadd.s32 %s161, 1
      %s163 = scalar_select %p160, %s161, %s162
      %p166 = pneg %p160
      %p167 = scmp.eq.s32.totalorder %s35, 3
      %p168 = por %p166, %p167
      %p169 = scmp.ne.s32.totalorder %s161, %s164
      %p170 = scmp.eq.s32.totalorder %s35, 0
      %p171 = por %p169, %p170
      %p172 = scmp.ne.s32.totalorder %s161, %s164
      %p173 = scmp.eq.s32.totalorder %s40, 3
      %p174 = por %p172, %p173
      %p175 = scmp.ne.s32.totalorder %s164, %s165
      %p176 = scmp.eq.s32.totalorder %s40, 0
      %p177 = por %p175, %p176
      %p178 = scmp.ne.s32.totalorder %s164, %s165
      %p179 = scmp.eq.s32.totalorder %s41, 3
      %p180 = por %p178, %p179
      %p182 = scmp.ne.s32.totalorder %s165, %s181
      %p183 = scmp.eq.s32.totalorder %s41, 0
      %p184 = por %p182, %p183
      %s185 = ssub.s32 %s43, %s50
      %p186 = scmp.eq.s32.totalorder %s185, 0
      %s188 = sadd.s32 %s187, 1
      %s189 = scalar_select %p186, %s187, %s188
      %p192 = pneg %p186
      %p193 = scmp.eq.s32.totalorder %s35, 3
      %p194 = por %p192, %p193
      %p195 = scmp.ne.s32.totalorder %s187, %s190
      %p196 = scmp.eq.s32.totalorder %s35, 0
      %p197 = por %p195, %p196
      %p198 = scmp.ne.s32.totalorder %s187, %s190
      %p199 = scmp.eq.s32.totalorder %s40, 3
      %p200 = por %p198, %p199
      %p201 = scmp.ne.s32.totalorder %s190, %s191
      %p202 = scmp.eq.s32.totalorder %s40, 0
      %p203 = por %p201, %p202
      %p204 = scmp.ne.s32.totalorder %s190, %s191
      %p205 = scmp.eq.s32.totalorder %s41, 3
      %p206 = por %p204, %p205
      %p208 = scmp.ne.s32.totalorder %s191, %s207
      %p209 = scmp.eq.s32.totalorder %s41, 0
      %p210 = por %p208, %p209
      %s211 = ssub.s32 %s43, %s50
      %p212 = scmp.eq.s32.totalorder %s211, 0
      %s214 = sadd.s32 %s213, 1
      %s215 = scalar_select %p212, %s213, %s214
      %p218 = pneg %p212
      %p219 = scmp.eq.s32.totalorder %s35, 3
      %p220 = por %p218, %p219
      %p221 = scmp.ne.s32.totalorder %s213, %s216
      %p222 = scmp.eq.s32.totalorder %s35, 0
      %p223 = por %p221, %p222
      %p224 = scmp.ne.s32.totalorder %s213, %s216
      %p225 = scmp.eq.s32.totalorder %s40, 3
      %p226 = por %p224, %p225
      %p227 = scmp.ne.s32.totalorder %s216, %s217
      %p228 = scmp.eq.s32.totalorder %s40, 0
      %p229 = por %p227, %p228
      %p230 = scmp.ne.s32.totalorder %s216, %s217
      %p231 = scmp.eq.s32.totalorder %s41, 3
      %p232 = por %p230, %p231
      %p234 = scmp.ne.s32.totalorder %s217, %s233
      %p235 = scmp.eq.s32.totalorder %s41, 0
      %p236 = por %p234, %p235
      %s237 = ssub.s32 %s43, %s50
      %p238 = scmp.eq.s32.totalorder %s237, 0
      %s240 = sadd.s32 %s239, 1
      %s241 = scalar_select %p238, %s239, %s240
      %p244 = pneg %p238
      %p245 = scmp.eq.s32.totalorder %s35, 3
      %p246 = por %p244, %p245
      %p247 = scmp.ne.s32.totalorder %s239, %s242
      %p248 = scmp.eq.s32.totalorder %s35, 0
      %p249 = por %p247, %p248
      %p250 = scmp.ne.s32.totalorder %s239, %s242
      %p251 = scmp.eq.s32.totalorder %s40, 3
      %p252 = por %p250, %p251
      %p253 = scmp.ne.s32.totalorder %s242, %s243
      %p254 = scmp.eq.s32.totalorder %s40, 0
      %p255 = por %p253, %p254
      %p256 = scmp.ne.s32.totalorder %s242, %s243
      %p257 = scmp.eq.s32.totalorder %s41, 3
      %p258 = por %p256, %p257
      %p260 = scmp.ne.s32.totalorder %s243, %s259
      %p261 = scmp.eq.s32.totalorder %s41, 0
      %p262 = por %p260, %p261
      %s263 = ssub.s32 %s43, %s50
      %p264 = scmp.eq.s32.totalorder %s263, 0
      %s266 = sadd.s32 %s265, 1
      %s267 = scalar_select %p264, %s265, %s266
      %p270 = pneg %p264
      %p271 = scmp.eq.s32.totalorder %s35, 3
      %p272 = por %p270, %p271
      %p273 = scmp.ne.s32.totalorder %s265, %s268
      %p274 = scmp.eq.s32.totalorder %s35, 0
      %p275 = por %p273, %p274
      %p276 = scmp.ne.s32.totalorder %s265, %s268
      %p277 = scmp.eq.s32.totalorder %s40, 3
      %p278 = por %p276, %p277
      %p279 = scmp.ne.s32.totalorder %s268, %s269
      %p280 = scmp.eq.s32.totalorder %s40, 0
      %p281 = por %p279, %p280
      %p282 = scmp.ne.s32.totalorder %s268, %s269
      %p283 = scmp.eq.s32.totalorder %s41, 3
      %p284 = por %p282, %p283
      %p286 = scmp.ne.s32.totalorder %s269, %s285
      %p287 = scmp.eq.s32.totalorder %s41, 0
      %p288 = por %p286, %p287
      %s289 = ssub.s32 %s43, %s50
      %p290 = scmp.eq.s32.totalorder %s289, 0
      %s292 = sadd.s32 %s291, 1
      %s293 = scalar_select %p290, %s291, %s292
      %p296 = pneg %p290
      %p297 = scmp.eq.s32.totalorder %s35, 3
      %p298 = por %p296, %p297
      %p299 = scmp.ne.s32.totalorder %s291, %s294
      %p300 = scmp.eq.s32.totalorder %s35, 0
      %p301 = por %p299, %p300
      %p302 = scmp.ne.s32.totalorder %s291, %s294
      %p303 = scmp.eq.s32.totalorder %s40, 3
      %p304 = por %p302, %p303
      %p305 = scmp.ne.s32.totalorder %s294, %s295
      %p306 = scmp.eq.s32.totalorder %s40, 0
      %p307 = por %p305, %p306
      %p308 = scmp.ne.s32.totalorder %s294, %s295
      %p309 = scmp.eq.s32.totalorder %s41, 3
      %p310 = por %p308, %p309
      %p312 = scmp.ne.s32.totalorder %s295, %s311
      %p313 = scmp.eq.s32.totalorder %s41, 0
      %p314 = por %p312, %p313
      %s315 = ssub.s32 %s43, %s50
      %p316 = scmp.eq.s32.totalorder %s315, 0
      %s318 = sadd.s32 %s317, 1
      %s319 = scalar_select %p316, %s317, %s318
      %p322 = pneg %p316
      %p323 = scmp.eq.s32.totalorder %s35, 3
      %p324 = por %p322, %p323
      %p325 = scmp.ne.s32.totalorder %s317, %s320
      %p326 = scmp.eq.s32.totalorder %s35, 0
      %p327 = por %p325, %p326
      %p328 = scmp.ne.s32.totalorder %s317, %s320
      %p329 = scmp.eq.s32.totalorder %s40, 3
      %p330 = por %p328, %p329
      %p331 = scmp.ne.s32.totalorder %s320, %s321
      %p332 = scmp.eq.s32.totalorder %s40, 0
      %p333 = por %p331, %p332
      %p334 = scmp.ne.s32.totalorder %s320, %s321
      %p335 = scmp.eq.s32.totalorder %s41, 3
      %p336 = por %p334, %p335
      %p338 = scmp.ne.s32.totalorder %s321, %s337
      %p339 = scmp.eq.s32.totalorder %s41, 0
      %p340 = por %p338, %p339
      %s341 = ssub.s32 %s43, %s50
      %p342 = scmp.eq.s32.totalorder %s341, 0
      %s344 = sadd.s32 %s343, 1
      %s345 = scalar_select %p342, %s343, %s344
      %p348 = pneg %p342
      %p349 = scmp.eq.s32.totalorder %s35, 3
      %p350 = por %p348, %p349
      %p351 = scmp.ne.s32.totalorder %s343, %s346
      %p352 = scmp.eq.s32.totalorder %s35, 0
      %p353 = por %p351, %p352
      %p354 = scmp.ne.s32.totalorder %s343, %s346
      %p355 = scmp.eq.s32.totalorder %s40, 3
      %p356 = por %p354, %p355
      %p357 = scmp.ne.s32.totalorder %s346, %s347
      %p358 = scmp.eq.s32.totalorder %s40, 0
      %p359 = por %p357, %p358
      %p360 = scmp.ne.s32.totalorder %s346, %s347
      %p361 = scmp.eq.s32.totalorder %s41, 3
      %p362 = por %p360, %p361
      %p364 = scmp.ne.s32.totalorder %s347, %s363
      %p365 = scmp.eq.s32.totalorder %s41, 0
      %p366 = por %p364, %p365
      %s367 = ssub.s32 %s43, %s50
      %p368 = scmp.eq.s32.totalorder %s367, 0
      %s370 = sadd.s32 %s369, 1
      %s371 = scalar_select %p368, %s369, %s370
      %p374 = pneg %p368
      %p375 = scmp.eq.s32.totalorder %s35, 3
      %p376 = por %p374, %p375
      %p377 = scmp.ne.s32.totalorder %s369, %s372
      %p378 = scmp.eq.s32.totalorder %s35, 0
      %p379 = por %p377, %p378
      %p380 = scmp.ne.s32.totalorder %s369, %s372
      %p381 = scmp.eq.s32.totalorder %s40, 3
      %p382 = por %p380, %p381
      %p383 = scmp.ne.s32.totalorder %s372, %s373
      %p384 = scmp.eq.s32.totalorder %s40, 0
      %p385 = por %p383, %p384
      %p386 = scmp.ne.s32.totalorder %s372, %s373
      %p387 = scmp.eq.s32.totalorder %s41, 3
      %p388 = por %p386, %p387
      %p390 = scmp.ne.s32.totalorder %s373, %s389
      %p391 = scmp.eq.s32.totalorder %s41, 0
      %p392 = por %p390, %p391
      %s393 = ssub.s32 %s43, %s50
      %p394 = scmp.eq.s32.totalorder %s393, 0
      %s396 = sadd.s32 %s395, 1
      %s397 = scalar_select %p394, %s395, %s396
      %p400 = pneg %p394
      %p401 = scmp.eq.s32.totalorder %s35, 3
      %p402 = por %p400, %p401
      %p403 = scmp.ne.s32.totalorder %s395, %s398
      %p404 = scmp.eq.s32.totalorder %s35, 0
      %p405 = por %p403, %p404
      %p406 = scmp.ne.s32.totalorder %s395, %s398
      %p407 = scmp.eq.s32.totalorder %s40, 3
      %p408 = por %p406, %p407
      %p409 = scmp.ne.s32.totalorder %s398, %s399
      %p410 = scmp.eq.s32.totalorder %s40, 0
      %p411 = por %p409, %p410
      %p412 = scmp.ne.s32.totalorder %s398, %s399
      %p413 = scmp.eq.s32.totalorder %s41, 3
      %p414 = por %p412, %p413
      %p416 = scmp.ne.s32.totalorder %s399, %s415
      %p417 = scmp.eq.s32.totalorder %s41, 0
      %p418 = por %p416, %p417
      %s419 = ssub.s32 %s43, %s50
      %p420 = scmp.eq.s32.totalorder %s419, 0
      %s422 = sadd.s32 %s421, 1
      %s423 = scalar_select %p420, %s421, %s422
      %p426 = pneg %p420
      %p427 = scmp.eq.s32.totalorder %s35, 3
      %p428 = por %p426, %p427
      %p429 = scmp.ne.s32.totalorder %s421, %s424
      %p430 = scmp.eq.s32.totalorder %s35, 0
      %p431 = por %p429, %p430
      %p432 = scmp.ne.s32.totalorder %s421, %s424
      %p433 = scmp.eq.s32.totalorder %s40, 3
      %p434 = por %p432, %p433
      %p435 = scmp.ne.s32.totalorder %s424, %s425
      %p436 = scmp.eq.s32.totalorder %s40, 0
      %p437 = por %p435, %p436
      %p438 = scmp.ne.s32.totalorder %s424, %s425
      %p439 = scmp.eq.s32.totalorder %s41, 3
      %p440 = por %p438, %p439
      %p442 = scmp.ne.s32.totalorder %s425, %s441
      %p443 = scmp.eq.s32.totalorder %s41, 0
      %p444 = por %p442, %p443
      %s445 = ssub.s32 %s43, %s50
      %p446 = scmp.eq.s32.totalorder %s445, 0
      %s448 = sadd.s32 %s447, 1
      %s449 = scalar_select %p446, %s447, %s448
      %p452 = pneg %p446
      %p453 = scmp.eq.s32.totalorder %s35, 3
      %p454 = por %p452, %p453
      %p455 = scmp.ne.s32.totalorder %s447, %s450
      %p456 = scmp.eq.s32.totalorder %s35, 0
      %p457 = por %p455, %p456
      %p458 = scmp.ne.s32.totalorder %s447, %s450
      %p459 = scmp.eq.s32.totalorder %s40, 3
      %p460 = por %p458, %p459
      %p461 = scmp.ne.s32.totalorder %s450, %s451
      %p462 = scmp.eq.s32.totalorder %s40, 0
      %p463 = por %p461, %p462
      %p464 = scmp.ne.s32.totalorder %s450, %s451
      %p465 = scmp.eq.s32.totalorder %s41, 3
      %p466 = por %p464, %p465
      %p468 = scmp.ne.s32.totalorder %s451, %s467
      %p469 = scmp.eq.s32.totalorder %s41, 0
      %p470 = por %p468, %p469
      %s471 = ssub.s32 %s43, %s50
      %p472 = scmp.eq.s32.totalorder %s471, 0
      %s474 = sadd.s32 %s473, 1
      %s475 = scalar_select %p472, %s473, %s474
      %p478 = pneg %p472
      %p479 = scmp.eq.s32.totalorder %s35, 3
      %p480 = por %p478, %p479
      %p481 = scmp.ne.s32.totalorder %s473, %s476
      %p482 = scmp.eq.s32.totalorder %s35, 0
      %p483 = por %p481, %p482
      %p484 = scmp.ne.s32.totalorder %s473, %s476
      %p485 = scmp.eq.s32.totalorder %s40, 3
      %p486 = por %p484, %p485
      %p487 = scmp.ne.s32.totalorder %s476, %s477
      %p488 = scmp.eq.s32.totalorder %s40, 0
      %p489 = por %p487, %p488
      %p490 = scmp.ne.s32.totalorder %s476, %s477
      %p491 = scmp.eq.s32.totalorder %s41, 3
      %p492 = por %p490, %p491
      %p494 = scmp.ne.s32.totalorder %s477, %s493
      %p495 = scmp.eq.s32.totalorder %s41, 0
      %p496 = por %p494, %p495
      %s497 = ssub.s32 %s43, %s50
      %p498 = scmp.eq.s32.totalorder %s497, 0
      %s500 = sadd.s32 %s499, 1
      %s501 = scalar_select %p498, %s499, %s500
      %p504 = pneg %p498
      %p505 = scmp.eq.s32.totalorder %s35, 3
      %p506 = por %p504, %p505
      %p507 = scmp.ne.s32.totalorder %s499, %s502
      %p508 = scmp.eq.s32.totalorder %s35, 0
      %p509 = por %p507, %p508
      %p510 = scmp.ne.s32.totalorder %s499, %s502
      %p511 = scmp.eq.s32.totalorder %s40, 3
      %p512 = por %p510, %p511
      %p513 = scmp.ne.s32.totalorder %s502, %s503
      %p514 = scmp.eq.s32.totalorder %s40, 0
      %p515 = por %p513, %p514
      %p516 = scmp.ne.s32.totalorder %s502, %s503
      %p517 = scmp.eq.s32.totalorder %s41, 3
      %p518 = por %p516, %p517
      %p520 = scmp.ne.s32.totalorder %s503, %s519
      %p521 = scmp.eq.s32.totalorder %s41, 0
      %p522 = por %p520, %p521
      %s523 = ssub.s32 %s43, %s50
      %p524 = scmp.eq.s32.totalorder %s523, 0
      %s526 = sadd.s32 %s525, 1
      %s527 = scalar_select %p524, %s525, %s526
      %p530 = pneg %p524
      %p531 = scmp.eq.s32.totalorder %s35, 3
      %p532 = por %p530, %p531
      %p533 = scmp.ne.s32.totalorder %s525, %s528
      %p534 = scmp.eq.s32.totalorder %s35, 0
      %p535 = por %p533, %p534
      %p536 = scmp.ne.s32.totalorder %s525, %s528
      %p537 = scmp.eq.s32.totalorder %s40, 3
      %p538 = por %p536, %p537
      %p539 = scmp.ne.s32.totalorder %s528, %s529
      %p540 = scmp.eq.s32.totalorder %s40, 0
      %p541 = por %p539, %p540
      %p542 = scmp.ne.s32.totalorder %s528, %s529
      %p543 = scmp.eq.s32.totalorder %s41, 3
      %p544 = por %p542, %p543
      %p546 = scmp.ne.s32.totalorder %s529, %s545
      %p547 = scmp.eq.s32.totalorder %s41, 0
      %p548 = por %p546, %p547
      %s549 = ssub.s32 %s43, %s50
      %p550 = scmp.eq.s32.totalorder %s549, 0
      %s552 = sadd.s32 %s551, 1
      %s553 = scalar_select %p550, %s551, %s552
      %p556 = pneg %p550
      %p557 = scmp.eq.s32.totalorder %s35, 3
      %p558 = por %p556, %p557
      %p559 = scmp.ne.s32.totalorder %s551, %s554
      %p560 = scmp.eq.s32.totalorder %s35, 0
      %p561 = por %p559, %p560
      %p562 = scmp.ne.s32.totalorder %s551, %s554
      %p563 = scmp.eq.s32.totalorder %s40, 3
      %p564 = por %p562, %p563
      %p565 = scmp.ne.s32.totalorder %s554, %s555
      %p566 = scmp.eq.s32.totalorder %s40, 0
      %p567 = por %p565, %p566
      %p568 = scmp.ne.s32.totalorder %s554, %s555
      %p569 = scmp.eq.s32.totalorder %s41, 3
      %p570 = por %p568, %p569
      %p572 = scmp.ne.s32.totalorder %s555, %s571
      %p573 = scmp.eq.s32.totalorder %s41, 0
      %p574 = por %p572, %p573
      %s575 = ssub.s32 %s43, %s50
      %p576 = scmp.eq.s32.totalorder %s575, 0
      %s578 = sadd.s32 %s577, 1
      %s579 = scalar_select %p576, %s577, %s578
      %p582 = pneg %p576
      %p583 = scmp.eq.s32.totalorder %s35, 3
      %p584 = por %p582, %p583
      %p585 = scmp.ne.s32.totalorder %s577, %s580
      %p586 = scmp.eq.s32.totalorder %s35, 0
      %p587 = por %p585, %p586
      %p588 = scmp.ne.s32.totalorder %s577, %s580
      %p589 = scmp.eq.s32.totalorder %s40, 3
      %p590 = por %p588, %p589
      %p591 = scmp.ne.s32.totalorder %s580, %s581
      %p592 = scmp.eq.s32.totalorder %s40, 0
      %p593 = por %p591, %p592
      %p594 = scmp.ne.s32.totalorder %s580, %s581
      %p595 = scmp.eq.s32.totalorder %s41, 3
      %p596 = por %p594, %p595
      %p598 = scmp.ne.s32.totalorder %s581, %s597
      %p599 = scmp.eq.s32.totalorder %s41, 0
      %p600 = por %p598, %p599
      %s601 = ssub.s32 %s43, %s50
      %p602 = scmp.eq.s32.totalorder %s601, 0
      %s604 = sadd.s32 %s603, 1
      %s605 = scalar_select %p602, %s603, %s604
      %p608 = pneg %p602
      %p609 = scmp.eq.s32.totalorder %s35, 3
      %p610 = por %p608, %p609
      %p611 = scmp.ne.s32.totalorder %s603, %s606
      %p612 = scmp.eq.s32.totalorder %s35, 0
      %p613 = por %p611, %p612
      %p614 = scmp.ne.s32.totalorder %s603, %s606
      %p615 = scmp.eq.s32.totalorder %s40, 3
      %p616 = por %p614, %p615
      %p617 = scmp.ne.s32.totalorder %s606, %s607
      %p618 = scmp.eq.s32.totalorder %s40, 0
      %p619 = por %p617, %p618
      %p620 = scmp.ne.s32.totalorder %s606, %s607
      %p621 = scmp.eq.s32.totalorder %s41, 3
      %p622 = por %p620, %p621
      %p624 = scmp.ne.s32.totalorder %s607, %s623
      %p625 = scmp.eq.s32.totalorder %s41, 0
      %p626 = por %p624, %p625
      %s628 = sadd.s32 %s627, 1
      %p631 = scmp.eq.s32.totalorder %s35, 3
      %p632 = scmp.ne.s32.totalorder %s627, %s629
      %p633 = scmp.eq.s32.totalorder %s35, 0
      %p634 = por %p632, %p633
      %p635 = scmp.ne.s32.totalorder %s627, %s629
      %p636 = scmp.eq.s32.totalorder %s40, 3
      %p637 = por %p635, %p636
      %p638 = scmp.ne.s32.totalorder %s629, %s630
      %p639 = scmp.eq.s32.totalorder %s40, 0
      %p640 = por %p638, %p639
      %p641 = scmp.ne.s32.totalorder %s629, %s630
      %p642 = scmp.eq.s32.totalorder %s41, 3
      %p643 = por %p641, %p642
      %p645 = scmp.ne.s32.totalorder %s630, %s644
      %p646 = scmp.eq.s32.totalorder %s41, 0
      %p647 = por %p645, %p646
      %s649 = sadd.s32 %s648, 1
      %p652 = scmp.eq.s32.totalorder %s35, 3
      %p653 = scmp.ne.s32.totalorder %s648, %s650
      %p654 = scmp.eq.s32.totalorder %s35, 0
      %p655 = por %p653, %p654
      %p656 = scmp.ne.s32.totalorder %s648, %s650
      %p657 = scmp.eq.s32.totalorder %s40, 3
      %p658 = por %p656, %p657
      %p659 = scmp.ne.s32.totalorder %s650, %s651
      %p660 = scmp.eq.s32.totalorder %s40, 0
      %p661 = por %p659, %p660
      %p662 = scmp.ne.s32.totalorder %s650, %s651
      %p663 = scmp.eq.s32.totalorder %s41, 3
      %p664 = por %p662, %p663
      %p666 = scmp.ne.s32.totalorder %s651, %s665
      %p667 = scmp.eq.s32.totalorder %s41, 0
      %p668 = por %p666, %p667
      %s670 = sadd.s32 %s669, 1
      %p673 = scmp.eq.s32.totalorder %s35, 3
      %p674 = scmp.ne.s32.totalorder %s669, %s671
      %p675 = scmp.eq.s32.totalorder %s35, 0
      %p676 = por %p674, %p675
      %p677 = scmp.ne.s32.totalorder %s669, %s671
      %p678 = scmp.eq.s32.totalorder %s40, 3
      %p679 = por %p677, %p678
      %p680 = scmp.ne.s32.totalorder %s671, %s672
      %p681 = scmp.eq.s32.totalorder %s40, 0
      %p682 = por %p680, %p681
      %p683 = scmp.ne.s32.totalorder %s671, %s672
      %p684 = scmp.eq.s32.totalorder %s41, 3
      %p685 = por %p683, %p684
      %p687 = scmp.ne.s32.totalorder %s672, %s686
      %p688 = scmp.eq.s32.totalorder %s41, 0
      %p689 = por %p687, %p688
      %s691 = sadd.s32 %s690, 1
      %p694 = scmp.eq.s32.totalorder %s35, 3
      %p695 = scmp.ne.s32.totalorder %s690, %s692
      %p696 = scmp.eq.s32.totalorder %s35, 0
      %p697 = por %p695, %p696
      %p698 = scmp.ne.s32.totalorder %s690, %s692
      %p699 = scmp.eq.s32.totalorder %s40, 3
      %p700 = por %p698, %p699
      %p701 = scmp.ne.s32.totalorder %s692, %s693
      %p702 = scmp.eq.s32.totalorder %s40, 0
      %p703 = por %p701, %p702
      %p704 = scmp.ne.s32.totalorder %s692, %s693
      %p705 = scmp.eq.s32.totalorder %s41, 3
      %p706 = por %p704, %p705
      %p708 = scmp.ne.s32.totalorder %s693, %s707
      %p709 = scmp.eq.s32.totalorder %s41, 0
      %p710 = por %p708, %p709
      %s711 = ssub.s32 %s42, %s54
      %p712 = scmp.eq.s32.totalorder %s711, 0
      %s714 = sadd.s32 %s713, 1
      %s715 = scalar_select %p712, %s713, %s714
      %p718 = pneg %p712
      %p719 = scmp.eq.s32.totalorder %s35, 3
      %p720 = por %p718, %p719
      %p721 = scmp.ne.s32.totalorder %s713, %s716
      %p722 = scmp.eq.s32.totalorder %s35, 0
      %p723 = por %p721, %p722
      %p724 = scmp.ne.s32.totalorder %s713, %s716
      %p725 = scmp.eq.s32.totalorder %s40, 3
      %p726 = por %p724, %p725
      %p727 = scmp.ne.s32.totalorder %s716, %s717
      %p728 = scmp.eq.s32.totalorder %s40, 0
      %p729 = por %p727, %p728
      %p730 = scmp.ne.s32.totalorder %s716, %s717
      %p731 = scmp.eq.s32.totalorder %s41, 3
      %p732 = por %p730, %p731
      %p734 = scmp.ne.s32.totalorder %s717, %s733
      %p735 = scmp.eq.s32.totalorder %s41, 0
      %p736 = por %p734, %p735
      %p737 = scmp.le.s32.totalorder 1, %s35
      %p738 = scmp.lt.s32.totalorder %s35, 5
      %p739 = pnand %p737, %p738
      %p740 = pneg %p739
      // Predicated region
      $region9: #{transformer_forward.3} parent=5 // pred_check
        _
      $region10: #{transformer_forward.3} parent=5 // pred_check_branch
        %742 = sbr.rel (%p739) target = $region12
      $region11: #{transformer_forward.3} parent=5 // pred_region
        %s743 = ssub.s32 %s35, 1
        // Predicated region
        $region13: #{transformer_forward.3} parent=11 // pred_check
          %p744 = pneg %p640
        $region14: #{transformer_forward.3} parent=11 // pred_check_branch
          %746 = sbr.rel (%p744) target = $region16
        $region15: #{transformer_forward.3} parent=11 // pred_region
          _
        $region16: #{transformer_forward.3} parent=11 // pred_fallthru
          _
        // Predicated region
        $region17: #{transformer_forward.3} parent=11 // pred_check
          %p747 = pneg %p661
        $region18: #{transformer_forward.3} parent=11 // pred_check_branch
          %749 = sbr.rel (%p747) target = $region20
        $region19: #{transformer_forward.3} parent=11 // pred_region
          _
        $region20: #{transformer_forward.3} parent=11 // pred_fallthru
          _
        // Predicated region
        $region21: #{transformer_forward.3} parent=11 // pred_check
          %p750 = pneg %p682
        $region22: #{transformer_forward.3} parent=11 // pred_check_branch
          %752 = sbr.rel (%p750) target = $region24
        $region23: #{transformer_forward.3} parent=11 // pred_region
          _
        $region24: #{transformer_forward.3} parent=11 // pred_fallthru
          _
        // Predicated region
        $region25: #{transformer_forward.3} parent=11 // pred_check
          %p753 = pneg %p703
        $region26: #{transformer_forward.3} parent=11 // pred_check_branch
          %755 = sbr.rel (%p753) target = $region28
        $region27: #{transformer_forward.3} parent=11 // pred_region
          _
        $region28: #{transformer_forward.3} parent=11 // pred_fallthru
          _
      $region12: #{transformer_forward.3} parent=5 // pred_fallthru
        _
      %p756 = scmp.lt.s32.totalorder %s35, 4
      // Predicated region
      $region29: #{transformer_forward.3} parent=5 // pred_check
        %p757 = pneg %p756
      $region30: #{transformer_forward.3} parent=5 // pred_check_branch
        %759 = sbr.rel (%p757) target = $region32
      $region31: #{transformer_forward.3} parent=5 // pred_region
        // Predicated region
        $region33: #{transformer_forward.3} parent=31 // pred_check
          %p760 = pneg %p67
        $region34: #{transformer_forward.3} parent=31 // pred_check_branch
          %762 = sbr.rel (%p760) target = $region36
        $region35: #{transformer_forward.3} parent=31 // pred_region
          %p763 = scmp.lt.s32.totalorder %s42, 1
          %s764 = scalar_select %p763, %s42, 1
          %s765 = smul.addr %s764, 8
          %s766 = scalar_lea.vmem %s0, %s765
        $region36: #{transformer_forward.3} parent=31 // pred_fallthru
          _
        // Predicated region
        $region37: #{transformer_forward.3} parent=31 // pred_check
          %p767 = pneg %p93
        $region38: #{transformer_forward.3} parent=31 // pred_check_branch
          %769 = sbr.rel (%p767) target = $region40
        $region39: #{transformer_forward.3} parent=31 // pred_region
          %p770 = scmp.lt.s32.totalorder %s42, 1
          %s771 = scalar_select %p770, %s42, 1
          %s772 = smul.addr %s771, 4
          %s773 = smul.addr %s772, 8
          %s774 = scalar_lea.vmem %s1, %s773
        $region40: #{transformer_forward.3} parent=31 // pred_fallthru
          _
        // Predicated region
        $region41: #{transformer_forward.3} parent=31 // pred_check
          %p775 = pneg %p119
        $region42: #{transformer_forward.3} parent=31 // pred_check_branch
          %777 = sbr.rel (%p775) target = $region44
        $region43: #{transformer_forward.3} parent=31 // pred_region
          %p778 = scmp.lt.s32.totalorder %s43, 1
          %s779 = scalar_select %p778, %s43, 1
          %s780 = scalar_lea.vmem %s2, %s779
        $region44: #{transformer_forward.3} parent=31 // pred_fallthru
          _
        // Predicated region
        $region45: #{transformer_forward.3} parent=31 // pred_check
          %p781 = pneg %p145
        $region46: #{transformer_forward.3} parent=31 // pred_check_branch
          %783 = sbr.rel (%p781) target = $region48
        $region47: #{transformer_forward.3} parent=31 // pred_region
          %p784 = scmp.lt.s32.totalorder %s43, 1
          %s785 = scalar_select %p784, %s43, 1
          %s786 = scalar_lea.vmem %s3, %s785
        $region48: #{transformer_forward.3} parent=31 // pred_fallthru
          _
        // Predicated region
        $region49: #{transformer_forward.3} parent=31 // pred_check
          %p787 = pneg %p171
        $region50: #{transformer_forward.3} parent=31 // pred_check_branch
          %789 = sbr.rel (%p787) target = $region52
        $region51: #{transformer_forward.3} parent=31 // pred_region
          %p790 = scmp.lt.s32.totalorder %s43, 1
          %s791 = scalar_select %p790, %s43, 1
          %s792 = smul.addr %s791, 4
          %s793 = smul.addr %s792, 4
          %s794 = scalar_lea.vmem %s4, %s793
        $region52: #{transformer_forward.3} parent=31 // pred_fallthru
          _
        // Predicated region
        $region53: #{transformer_forward.3} parent=31 // pred_check
          %p795 = pneg %p197
        $region54: #{transformer_forward.3} parent=31 // pred_check_branch
          %797 = sbr.rel (%p795) target = $region56
        $region55: #{transformer_forward.3} parent=31 // pred_region
          %p798 = scmp.lt.s32.totalorder %s43, 1
          %s799 = scalar_select %p798, %s43, 1
          %s800 = scalar_lea.vmem %s5, %s799
        $region56: #{transformer_forward.3} parent=31 // pred_fallthru
          _
        // Predicated region
        $region57: #{transformer_forward.3} parent=31 // pred_check
          %p801 = pneg %p223
        $region58: #{transformer_forward.3} parent=31 // pred_check_branch
          %803 = sbr.rel (%p801) target = $region60
        $region59: #{transformer_forward.3} parent=31 // pred_region
          %p804 = scmp.lt.s32.totalorder %s43, 1
          %s805 = scalar_select %p804, %s43, 1
          %s806 = smul.addr %s805, 4
          %s807 = smul.addr %s806, 4
          %s808 = scalar_lea.vmem %s6, %s807
        $region60: #{transformer_forward.3} parent=31 // pred_fallthru
          _
        // Predicated region
        $region61: #{transformer_forward.3} parent=31 // pred_check
          %p809 = pneg %p249
        $region62: #{transformer_forward.3} parent=31 // pred_check_branch
          %811 = sbr.rel (%p809) target = $region64
        $region63: #{transformer_forward.3} parent=31 // pred_region
          %p812 = scmp.lt.s32.totalorder %s43, 1
          %s813 = scalar_select %p812, %s43, 1
          %s814 = scalar_lea.vmem %s7, %s813
        $region64: #{transformer_forward.3} parent=31 // pred_fallthru
          _
        // Predicated region
        $region65: #{transformer_forward.3} parent=31 // pred_check
          %p815 = pneg %p275
        $region66: #{transformer_forward.3} parent=31 // pred_check_branch
          %817 = sbr.rel (%p815) target = $region68
        $region67: #{transformer_forward.3} parent=31 // pred_region
          %p818 = scmp.lt.s32.totalorder %s43, 1
          %s819 = scalar_select %p818, %s43, 1
          %s820 = scalar_lea.vmem %s8, %s819
        $region68: #{transformer_forward.3} parent=31 // pred_fallthru
          _
        // Predicated region
        $region69: #{transformer_forward.3} parent=31 // pred_check
          %p821 = pneg %p301
        $region70: #{transformer_forward.3} parent=31 // pred_check_branch
          %823 = sbr.rel (%p821) target = $region72
        $region71: #{transformer_forward.3} parent=31 // pred_region
          %p824 = scmp.lt.s32.totalorder %s43, 1
          %s825 = scalar_select %p824, %s43, 1
          %s826 = scalar_lea.vmem %s9, %s825
        $region72: #{transformer_forward.3} parent=31 // pred_fallthru
          _
        // Predicated region
        $region73: #{transformer_forward.3} parent=31 // pred_check
          %p827 = pneg %p327
        $region74: #{transformer_forward.3} parent=31 // pred_check_branch
          %829 = sbr.rel (%p827) target = $region76
        $region75: #{transformer_forward.3} parent=31 // pred_region
          %p830 = scmp.lt.s32.totalorder %s43, 1
          %s831 = scalar_select %p830, %s43, 1
          %s832 = smul.addr %s831, 4
          %s833 = smul.addr %s832, 4
          %s834 = scalar_lea.vmem %s10, %s833
        $region76: #{transformer_forward.3} parent=31 // pred_fallthru
          _
        // Predicated region
        $region77: #{transformer_forward.3} parent=31 // pred_check
          %p835 = pneg %p353
        $region78: #{transformer_forward.3} parent=31 // pred_check_branch
          %837 = sbr.rel (%p835) target = $region80
        $region79: #{transformer_forward.3} parent=31 // pred_region
          %p838 = scmp.lt.s32.totalorder %s43, 1
          %s839 = scalar_select %p838, %s43, 1
          %s840 = scalar_lea.vmem %s11, %s839
        $region80: #{transformer_forward.3} parent=31 // pred_fallthru
          _
        // Predicated region
        $region81: #{transformer_forward.3} parent=31 // pred_check
          %p841 = pneg %p379
        $region82: #{transformer_forward.3} parent=31 // pred_check_branch
          %843 = sbr.rel (%p841) target = $region84
        $region83: #{transformer_forward.3} parent=31 // pred_region
          %p844 = scmp.lt.s32.totalorder %s43, 1
          %s845 = scalar_select %p844, %s43, 1
          %s846 = smul.addr %s845, 4
          %s847 = smul.addr %s846, 4
          %s848 = scalar_lea.vmem %s12, %s847
        $region84: #{transformer_forward.3} parent=31 // pred_fallthru
          _
        // Predicated region
        $region85: #{transformer_forward.3} parent=31 // pred_check
          %p849 = pneg %p405
        $region86: #{transformer_forward.3} parent=31 // pred_check_branch
          %851 = sbr.rel (%p849) target = $region88
        $region87: #{transformer_forward.3} parent=31 // pred_region
          %p852 = scmp.lt.s32.totalorder %s43, 1
          %s853 = scalar_select %p852, %s43, 1
          %s854 = scalar_lea.vmem %s13, %s853
        $region88: #{transformer_forward.3} parent=31 // pred_fallthru
          _
        // Predicated region
        $region89: #{transformer_forward.3} parent=31 // pred_check
          %p855 = pneg %p431
        $region90: #{transformer_forward.3} parent=31 // pred_check_branch
          %857 = sbr.rel (%p855) target = $region92
        $region91: #{transformer_forward.3} parent=31 // pred_region
          %p858 = scmp.lt.s32.totalorder %s43, 1
          %s859 = scalar_select %p858, %s43, 1
          %s860 = smul.addr %s859, 4
          %s861 = smul.addr %s860, 4
          %s862 = scalar_lea.vmem %s14, %s861
        $region92: #{transformer_forward.3} parent=31 // pred_fallthru
          _
        // Predicated region
        $region93: #{transformer_forward.3} parent=31 // pred_check
          %p863 = pneg %p457
        $region94: #{transformer_forward.3} parent=31 // pred_check_branch
          %865 = sbr.rel (%p863) target = $region96
        $region95: #{transformer_forward.3} parent=31 // pred_region
          %p866 = scmp.lt.s32.totalorder %s43, 1
          %s867 = scalar_select %p866, %s43, 1
          %s868 = scalar_lea.vmem %s15, %s867
        $region96: #{transformer_forward.3} parent=31 // pred_fallthru
          _
        // Predicated region
        $region97: #{transformer_forward.3} parent=31 // pred_check
          %p869 = pneg %p483
        $region98: #{transformer_forward.3} parent=31 // pred_check_branch
          %871 = sbr.rel (%p869) target = $region100
        $region99: #{transformer_forward.3} parent=31 // pred_region
          %p872 = scmp.lt.s32.totalorder %s43, 1
          %s873 = scalar_select %p872, %s43, 1
          %s874 = scalar_lea.vmem %s16, %s873
        $region100: #{transformer_forward.3} parent=31 // pred_fallthru
          _
        // Predicated region
        $region101: #{transformer_forward.3} parent=31 // pred_check
          %p875 = pneg %p509
        $region102: #{transformer_forward.3} parent=31 // pred_check_branch
          %877 = sbr.rel (%p875) target = $region104
        $region103: #{transformer_forward.3} parent=31 // pred_region
          %p878 = scmp.lt.s32.totalorder %s43, 1
          %s879 = scalar_select %p878, %s43, 1
          %s880 = scalar_lea.vmem %s17, %s879
        $region104: #{transformer_forward.3} parent=31 // pred_fallthru
          _
        // Predicated region
        $region105: #{transformer_forward.3} parent=31 // pred_check
          %p881 = pneg %p535
        $region106: #{transformer_forward.3} parent=31 // pred_check_branch
          %883 = sbr.rel (%p881) target = $region108
        $region107: #{transformer_forward.3} parent=31 // pred_region
          %p884 = scmp.lt.s32.totalorder %s43, 1
          %s885 = scalar_select %p884, %s43, 1
          %s886 = smul.addr %s885, 4
          %s887 = smul.addr %s886, 4
          %s888 = scalar_lea.vmem %s18, %s887
        $region108: #{transformer_forward.3} parent=31 // pred_fallthru
          _
        // Predicated region
        $region109: #{transformer_forward.3} parent=31 // pred_check
          %p889 = pneg %p561
        $region110: #{transformer_forward.3} parent=31 // pred_check_branch
          %891 = sbr.rel (%p889) target = $region112
        $region111: #{transformer_forward.3} parent=31 // pred_region
          %p892 = scmp.lt.s32.totalorder %s43, 1
          %s893 = scalar_select %p892, %s43, 1
          %s894 = scalar_lea.vmem %s19, %s893
        $region112: #{transformer_forward.3} parent=31 // pred_fallthru
          _
        // Predicated region
        $region113: #{transformer_forward.3} parent=31 // pred_check
          %p895 = pneg %p587
        $region114: #{transformer_forward.3} parent=31 // pred_check_branch
          %897 = sbr.rel (%p895) target = $region116
        $region115: #{transformer_forward.3} parent=31 // pred_region
          %p898 = scmp.lt.s32.totalorder %s43, 1
          %s899 = scalar_select %p898, %s43, 1
          %s900 = smul.addr %s899, 8
          %s901 = smul.addr %s900, 4
          %s902 = scalar_lea.vmem %s20, %s901
        $region116: #{transformer_forward.3} parent=31 // pred_fallthru
          _
        // Predicated region
        $region117: #{transformer_forward.3} parent=31 // pred_check
          %p903 = pneg %p613
        $region118: #{transformer_forward.3} parent=31 // pred_check_branch
          %905 = sbr.rel (%p903) target = $region120
        $region119: #{transformer_forward.3} parent=31 // pred_region
          %p906 = scmp.lt.s32.totalorder %s43, 1
          %s907 = scalar_select %p906, %s43, 1
          %s908 = scalar_lea.vmem %s21, %s907
        $region120: #{transformer_forward.3} parent=31 // pred_fallthru
          _
      $region32: #{transformer_forward.3} parent=5 // pred_fallthru
        _
      %p909 = scmp.le.s32.totalorder 1, %s35
      %p910 = scmp.lt.s32.totalorder %s35, 5
      %p911 = pnand %p909, %p910
      %p912 = pneg %p911
      // Predicated region
      $region121: #{transformer_forward.3} parent=5 // pred_check
        _
      $region122: #{transformer_forward.3} parent=5 // pred_check_branch
        %914 = sbr.rel (%p911) target = $region124
      $region123: #{transformer_forward.3} parent=5 // pred_region
        %s915 = ssub.s32 %s35, 1
        %p916 = scmp.lt.s32.totalorder %s44, 1
        %s917 = scalar_select %p916, %s44, 1
        %s918 = smul.addr %s917, 8
        %s919 = scalar_lea.vmem %s0, %s918
        %p920 = pneg %p73
        %p921 = pneg %p70
        %p922 = scmp.lt.s32.totalorder %s44, 1
        %s923 = scalar_select %p922, %s44, 1
        %s924 = smul.addr %s923, 4
        %s925 = smul.addr %s924, 8
        %s926 = scalar_lea.vmem %s1, %s925
        %p927 = pneg %p99
        %p928 = pneg %p96
        %p929 = scmp.lt.s32.totalorder %s45, 1
        %s930 = scalar_select %p929, %s45, 1
        %s931 = scalar_lea.vmem %s2, %s930
        %p932 = pneg %p125
        %p933 = pneg %p122
        %p934 = scmp.lt.s32.totalorder %s45, 1
        %s935 = scalar_select %p934, %s45, 1
        %s936 = scalar_lea.vmem %s3, %s935
        %p937 = pneg %p151
        %p938 = pneg %p148
        %p939 = scmp.lt.s32.totalorder %s45, 1
        %s940 = scalar_select %p939, %s45, 1
        %s941 = smul.addr %s940, 4
        %s942 = smul.addr %s941, 4
        %s943 = scalar_lea.vmem %s4, %s942
        %p944 = pneg %p177
        %p945 = pneg %p174
        %p946 = scmp.lt.s32.totalorder %s45, 1
        %s947 = scalar_select %p946, %s45, 1
        %s948 = scalar_lea.vmem %s5, %s947
        %p949 = pneg %p203
        %p950 = pneg %p200
        %p951 = scmp.lt.s32.totalorder %s45, 1
        %s952 = scalar_select %p951, %s45, 1
        %s953 = smul.addr %s952, 4
        %s954 = smul.addr %s953, 4
        %s955 = scalar_lea.vmem %s6, %s954
        %p956 = pneg %p229
        %p957 = pneg %p226
        %p958 = scmp.lt.s32.totalorder %s45, 1
        %s959 = scalar_select %p958, %s45, 1
        %s960 = scalar_lea.vmem %s7, %s959
        %p961 = pneg %p255
        %p962 = pneg %p252
        %p963 = scmp.lt.s32.totalorder %s45, 1
        %s964 = scalar_select %p963, %s45, 1
        %s965 = scalar_lea.vmem %s8, %s964
        %p966 = pneg %p281
        %p967 = pneg %p278
        %p968 = scmp.lt.s32.totalorder %s45, 1
        %s969 = scalar_select %p968, %s45, 1
        %s970 = scalar_lea.vmem %s9, %s969
        %p971 = pneg %p307
        %p972 = pneg %p304
        %p973 = scmp.lt.s32.totalorder %s45, 1
        %s974 = scalar_select %p973, %s45, 1
        %s975 = smul.addr %s974, 4
        %s976 = smul.addr %s975, 4
        %s977 = scalar_lea.vmem %s10, %s976
        %p978 = pneg %p333
        %p979 = pneg %p330
        %p980 = scmp.lt.s32.totalorder %s45, 1
        %s981 = scalar_select %p980, %s45, 1
        %s982 = scalar_lea.vmem %s11, %s981
        %p983 = pneg %p359
        %p984 = pneg %p356
        %p985 = scmp.lt.s32.totalorder %s45, 1
        %s986 = scalar_select %p985, %s45, 1
        %s987 = smul.addr %s986, 4
        %s988 = smul.addr %s987, 4
        %s989 = scalar_lea.vmem %s12, %s988
        %p990 = pneg %p385
        %p991 = pneg %p382
        %p992 = scmp.lt.s32.totalorder %s45, 1
        %s993 = scalar_select %p992, %s45, 1
        %s994 = scalar_lea.vmem %s13, %s993
        %p995 = pneg %p411
        %p996 = pneg %p408
        %p997 = scmp.lt.s32.totalorder %s45, 1
        %s998 = scalar_select %p997, %s45, 1
        %s999 = smul.addr %s998, 4
        %s1000 = smul.addr %s999, 4
        %s1001 = scalar_lea.vmem %s14, %s1000
        %p1002 = pneg %p437
        %p1003 = pneg %p434
        %p1004 = scmp.lt.s32.totalorder %s45, 1
        %s1005 = scalar_select %p1004, %s45, 1
        %s1006 = scalar_lea.vmem %s15, %s1005
        %p1007 = pneg %p463
        %p1008 = pneg %p460
        %p1009 = scmp.lt.s32.totalorder %s45, 1
        %s1010 = scalar_select %p1009, %s45, 1
        %s1011 = scalar_lea.vmem %s16, %s1010
        %p1012 = pneg %p489
        %p1013 = pneg %p486
        %p1014 = scmp.lt.s32.totalorder %s45, 1
        %s1015 = scalar_select %p1014, %s45, 1
        %s1016 = scalar_lea.vmem %s17, %s1015
        %p1017 = pneg %p515
        %p1018 = pneg %p512
        %p1019 = scmp.lt.s32.totalorder %s45, 1
        %s1020 = scalar_select %p1019, %s45, 1
        %s1021 = smul.addr %s1020, 4
        %s1022 = smul.addr %s1021, 4
        %s1023 = scalar_lea.vmem %s18, %s1022
        %p1024 = pneg %p541
        %p1025 = pneg %p538
        %p1026 = scmp.lt.s32.totalorder %s45, 1
        %s1027 = scalar_select %p1026, %s45, 1
        %s1028 = scalar_lea.vmem %s19, %s1027
        %p1029 = pneg %p567
        %p1030 = pneg %p564
        %p1031 = scmp.lt.s32.totalorder %s45, 1
        %s1032 = scalar_select %p1031, %s45, 1
        %s1033 = smul.addr %s1032, 8
        %s1034 = smul.addr %s1033, 4
        %s1035 = scalar_lea.vmem %s20, %s1034
        %p1036 = pneg %p593
        %p1037 = pneg %p590
        %p1038 = scmp.lt.s32.totalorder %s45, 1
        %s1039 = scalar_select %p1038, %s45, 1
        %s1040 = scalar_lea.vmem %s21, %s1039
        %p1041 = pneg %p619
        %p1042 = pneg %p616
        %p1043 = pneg %p640
        %p1044 = pneg %p637
        %p1045 = pneg %p661
        %p1046 = pneg %p658
        %p1047 = pneg %p682
        %p1048 = pneg %p679
        %p1049 = pneg %p703
        %p1050 = pneg %p700
        %p1051 = pneg %p729
        %p1052 = pneg %p726
        %s1053 = sand.u32 %s716, 1
        %s1054 = scalar_lea.sflag [#allocation4], %s1053
        %s1055 = sand.u32 %s716, 1
        %s1056 = smul.addr %s1055, 8
        %s1057 = scalar_lea.vmem [#allocation3], %s1056
        %p1058 = scmp.lt.s32.totalorder %s44, 1
        %s1059 = scalar_select %p1058, %s44, 1
        %s1060 = smul.addr %s1059, 8
        %s1061 = scalar_lea.vmem %s0, %s1060
        %p1062 = scmp.lt.s32.totalorder %s44, 1
        %s1063 = scalar_select %p1062, %s44, 1
        %s1064 = smul.addr %s1063, 4
        %s1065 = smul.addr %s1064, 8
        %s1066 = scalar_lea.vmem %s1, %s1065
        %p1067 = scmp.lt.s32.totalorder %s45, 1
        %s1068 = scalar_select %p1067, %s45, 1
        %s1069 = scalar_lea.vmem %s2, %s1068
        %p1070 = scmp.lt.s32.totalorder %s45, 1
        %s1071 = scalar_select %p1070, %s45, 1
        %s1072 = scalar_lea.vmem %s3, %s1071
        %p1073 = scmp.lt.s32.totalorder %s45, 1
        %s1074 = scalar_select %p1073, %s45, 1
        %s1075 = smul.addr %s1074, 4
        %s1076 = smul.addr %s1075, 4
        %s1077 = scalar_lea.vmem %s4, %s1076
        %p1078 = scmp.lt.s32.totalorder %s45, 1
        %s1079 = scalar_select %p1078, %s45, 1
        %s1080 = scalar_lea.vmem %s5, %s1079
        %p1081 = scmp.lt.s32.totalorder %s45, 1
        %s1082 = scalar_select %p1081, %s45, 1
        %s1083 = smul.addr %s1082, 4
        %s1084 = smul.addr %s1083, 4
        %s1085 = scalar_lea.vmem %s6, %s1084
        %p1086 = scmp.lt.s32.totalorder %s45, 1
        %s1087 = scalar_select %p1086, %s45, 1
        %s1088 = scalar_lea.vmem %s7, %s1087
        %p1089 = scmp.lt.s32.totalorder %s45, 1
        %s1090 = scalar_select %p1089, %s45, 1
        %s1091 = scalar_lea.vmem %s8, %s1090
        %p1092 = scmp.lt.s32.totalorder %s45, 1
        %s1093 = scalar_select %p1092, %s45, 1
        %s1094 = scalar_lea.vmem %s9, %s1093
        %p1095 = scmp.lt.s32.totalorder %s45, 1
        %s1096 = scalar_select %p1095, %s45, 1
        %s1097 = smul.addr %s1096, 4
        %s1098 = smul.addr %s1097, 4
        %s1099 = scalar_lea.vmem %s10, %s1098
        %p1100 = scmp.lt.s32.totalorder %s45, 1
        %s1101 = scalar_select %p1100, %s45, 1
        %s1102 = scalar_lea.vmem %s11, %s1101
        %p1103 = scmp.lt.s32.totalorder %s45, 1
        %s1104 = scalar_select %p1103, %s45, 1
        %s1105 = smul.addr %s1104, 4
        %s1106 = smul.addr %s1105, 4
        %s1107 = scalar_lea.vmem %s12, %s1106
        %p1108 = scmp.lt.s32.totalorder %s45, 1
        %s1109 = scalar_select %p1108, %s45, 1
        %s1110 = scalar_lea.vmem %s13, %s1109
        %p1111 = scmp.lt.s32.totalorder %s45, 1
        %s1112 = scalar_select %p1111, %s45, 1
        %s1113 = smul.addr %s1112, 4
        %s1114 = smul.addr %s1113, 4
        %s1115 = scalar_lea.vmem %s14, %s1114
        %p1116 = scmp.lt.s32.totalorder %s45, 1
        %s1117 = scalar_select %p1116, %s45, 1
        %s1118 = scalar_lea.vmem %s15, %s1117
        %p1119 = scmp.lt.s32.totalorder %s45, 1
        %s1120 = scalar_select %p1119, %s45, 1
        %s1121 = scalar_lea.vmem %s16, %s1120
        %p1122 = scmp.lt.s32.totalorder %s45, 1
        %s1123 = scalar_select %p1122, %s45, 1
        %s1124 = scalar_lea.vmem %s17, %s1123
        %p1125 = scmp.lt.s32.totalorder %s45, 1
        %s1126 = scalar_select %p1125, %s45, 1
        %s1127 = smul.addr %s1126, 4
        %s1128 = smul.addr %s1127, 4
        %s1129 = scalar_lea.vmem %s18, %s1128
        %p1130 = scmp.lt.s32.totalorder %s45, 1
        %s1131 = scalar_select %p1130, %s45, 1
        %s1132 = scalar_lea.vmem %s19, %s1131
        %p1133 = scmp.lt.s32.totalorder %s45, 1
        %s1134 = scalar_select %p1133, %s45, 1
        %s1135 = smul.addr %s1134, 8
        %s1136 = smul.addr %s1135, 4
        %s1137 = scalar_lea.vmem %s20, %s1136
        %p1138 = scmp.lt.s32.totalorder %s45, 1
        %s1139 = scalar_select %p1138, %s45, 1
        %s1140 = scalar_lea.vmem %s21, %s1139
        %p1142 = scmp.eq.s32.totalorder %s45, 0
        // Predicated region
        $region125: #{transformer_forward.3} parent=123 // pred_check
          %p1143 = pneg %p1142
        $region126: #{transformer_forward.3} parent=123 // pred_check_branch
          %1145 = sbr.rel (%p1143) target = $region128
        $region127: #{transformer_forward.3} parent=123 // pred_region
          %v1146 = vld [vmem:[%s1061] sm:$0xff]
          %vm1147 = vcmask 261120
          %1148 = vst.msk [vmem:[#allocation2] sm:$0xff] %vm1147, %v1146
        $region128: #{transformer_forward.3} parent=123 // pred_fallthru
          _
        %v1149 = vld [vmem:[#allocation2] sm:$0xff]
        %v1150 = vld [vmem:[%s1066] sm:$0xff]
        %v1151 = vld [vmem:[%s1066 + $0x8] sm:$0xff]
        %v1152 = vld [vmem:[%s1066 + $0x10] sm:$0xff]
        %v1153 = vld [vmem:[%s1066 + $0x18] sm:$0xff]
        %v1154 = vlaneseq
        %v1155 = vshrl.u32 %v1154, 7
        %v1156 = vlaneseq
        %v1157 = vand.u32 %v1156, 127
        %vm1158 = vcmp.le.s32.totalorder %v1157, %v1155
        %v1159 = vsel %vm1158, 0.0, -1e+30
        %vm1160 = vcmp.lt.s32.totalorder %v1157, 17
        %v1161 = vsel %vm1160, 0.0, -1e+30
        %v1162 = vld [vmem:[%s1069] sm:$0x1]
        %v1163 = vld [vmem:[%s1072] sm:$0x1]
        %vm1164 = vcmask 261120
        %v1165 = vsel %vm1164, %v1149, 0.0
        %1166 = vadd.xlane.f32.xlu0 %v1165
        %v1167 = vpop.xlane.xlu0 %1166
        %v1168 = vrcp.pop 32.0
        %v1169 = vmul.f32 %v1167, %v1168
        %v1170 = vsub.f32 %v1149, %v1169
        %v1171 = vmul.f32 %v1170, %v1170
        %v1172 = vsel %vm1164, %v1171, 0.0
        %1173 = vadd.xlane.f32.xlu0 %v1172
        %v1174 = vpop.xlane.xlu0 %1173
        %v1175 = vmul.f32 %v1174, %v1168
        %v1176 = vadd.f32 %v1175, 1e-05
        %v1177 = vrsqrt.pop %v1176
        %v1178 = vmul.f32 %v1170, %v1177
        %v1180 = vlaneseq
        %v1181 = vshrl.u32 %v1180, 7
        %v1182 = vsub.s32 0, %v1181
        %v1183 = vrot.slane %v1162, %v1182
        %v1185 = vmul.f32 %v1178, %v1183
        %v1187 = vlaneseq
        %v1188 = vshrl.u32 %v1187, 7
        %v1189 = vsub.s32 0, %v1188
        %v1190 = vrot.slane %v1163, %v1189
        %v1192 = vadd.f32 %v1185, %v1190
        %v1193 = vpack.c.bf16 %v1192, %v1192
        %v1194 = vld [vmem:[%s1077] sm:$0xf]
        %v1195 = vld [vmem:[%s1077 + $0x4] sm:$0xf]
        %v1196 = vld [vmem:[%s1077 + $0x8] sm:$0xf]
        %v1197 = vld [vmem:[%s1077 + $0xc] sm:$0xf]
        %v1198 = vld [vmem:[%s1080] sm:$0x1]
        %v1200 = vlaneseq
        %v1201 = vshrl.u32 %v1200, 7
        %v1202 = vsub.s32 0, %v1201
        %v1203 = vrot.slane %v1198, %v1202
        %v1209 = vunpack.c.l.b16 %v1194
        %v1210 = vunpack.c.l.b16 %v1195
        %v1211 = vunpack.c.l.b16 %v1196
        %v1212 = vunpack.c.l.b16 %v1197
        %v1213 = vpack.c.b16 %v1210, %v1209
        %v1214 = vpack.c.b16 %v1212, %v1211
        %v1218 = vsel %vm1164, %v1193, 0
        %1220 = vmatprep.subr.bf16.mxu0 0
        %1221 = vmatpush1.bf16.msra.mxu0 %v1213
        %1222 = vmatprep.subr.bf16.mxu0 0
        %1223 = vmatpush1.bf16.msra.mxu0 %v1214
        %1224 = vmatprep.subr.bf16.mxu0 0
        %1225 = vmatpush1.bf16.msra.mxu0 0
        %1226 = vmatprep.subr.bf16.mxu0 0
        %1227 = vmatpush1.bf16.msra.mxu0 0
        %1228 = vmatprep.subr.bf16.mxu0 0
        %1229 = vmatpush1.bf16.msra.mxu0 0
        %1230 = vmatprep.subr.bf16.mxu0 0
        %1231 = vmatpush1.bf16.msra.mxu0 0
        %1232 = vmatprep.subr.bf16.mxu0 0
        %1233 = vmatpush1.bf16.msra.mxu0 0
        %1234 = vmatprep.subr.bf16.mxu0 0
        %1235 = vmatpush1.bf16.msra.mxu0 0
        %1236 = vmatprep.subr.bf16.mxu0 0
        %1237 = vmatpush1.bf16.msra.mxu0 0
        %1238 = vmatprep.subr.bf16.mxu0 0
        %1239 = vmatpush1.bf16.msra.mxu0 0
        %1240 = vmatprep.subr.bf16.mxu0 0
        %1241 = vmatpush1.bf16.msra.mxu0 0
        %1242 = vmatprep.subr.bf16.mxu0 0
        %1243 = vmatpush1.bf16.msra.mxu0 0
        %1244 = vmatprep.subr.bf16.mxu0 0
        %1245 = vmatpush1.bf16.msra.mxu0 0
        %1246 = vmatprep.subr.bf16.mxu0 0
        %1247 = vmatpush1.bf16.msra.mxu0 0
        %1248 = vmatprep.subr.bf16.mxu0 0
        %1249 = vmatpush1.bf16.msra.mxu0 0
        %1250 = vmatprep.subr.bf16.mxu0 0
        %1251 = vmatpush1.bf16.msra.mxu0 0
        %1252 = vmatprep.mubr.bf16.mxu0 0
        %1253 = vmatmul.mubr.bf16.gmra.mrb[0].mxu0 %v1218
        %v1254 = vpop.f32.mrb[0].mxu0
        %v1255 = vadd.f32 %v1203, %v1254
        %v1256 = vpop.f32.mrb[0].mxu0
        %v1257 = vpop.f32.mrb[0].mxu0
        %v1258 = vpop.f32.mrb[0].mxu0
        %1259 = vdwg.mxu0
        %v1260 = vpack.c.bf16 %v1255, %v1255
        %1262 = vrot.lane.b32.xlu0 %v1260, 96
        %v1263 = vpop.permute.xlu0 %1262
        %vm1264 = vcmask 64512
        %v1266 = vsel %vm1264, %v1260, 0
        %v1269 = vsel %vm1264, %v1263, 0
        %1271 = vmatprep.subr.bf16.mxu0 0
        %1272 = vmatpush1.bf16.xpose.msra.mxu0 %v1269
        %1273 = vmatprep.subr.bf16.mxu0 0
        %1274 = vmatpush1.bf16.xpose.msra.mxu0 0
        %1275 = vmatprep.subr.bf16.mxu0 0
        %1276 = vmatpush1.bf16.xpose.msra.mxu0 0
        %1277 = vmatprep.subr.bf16.mxu0 0
        %1278 = vmatpush1.bf16.xpose.msra.mxu0 0
        %1279 = vmatprep.subr.bf16.mxu0 0
        %1280 = vmatpush1.bf16.xpose.msra.mxu0 0
        %1281 = vmatprep.subr.bf16.mxu0 0
        %1282 = vmatpush1.bf16.xpose.msra.mxu0 0
        %1283 = vmatprep.subr.bf16.mxu0 0
        %1284 = vmatpush1.bf16.xpose.msra.mxu0 0
        %1285 = vmatprep.subr.bf16.mxu0 0
        %1286 = vmatpush1.bf16.xpose.msra.mxu0 0
        %1287 = vmatprep.subr.bf16.mxu0 0
        %1288 = vmatpush1.bf16.xpose.msra.mxu0 0
        %1289 = vmatprep.subr.bf16.mxu0 0
        %1290 = vmatpush1.bf16.xpose.msra.mxu0 0
        %1291 = vmatprep.subr.bf16.mxu0 0
        %1292 = vmatpush1.bf16.xpose.msra.mxu0 0
        %1293 = vmatprep.subr.bf16.mxu0 0
        %1294 = vmatpush1.bf16.xpose.msra.mxu0 0
        %1295 = vmatprep.subr.bf16.mxu0 0
        %1296 = vmatpush1.bf16.xpose.msra.mxu0 0
        %1297 = vmatprep.subr.bf16.mxu0 0
        %1298 = vmatpush1.bf16.xpose.msra.mxu0 0
        %1299 = vmatprep.subr.bf16.mxu0 0
        %1300 = vmatpush1.bf16.xpose.msra.mxu0 0
        %1301 = vmatprep.subr.bf16.mxu0 0
        %1302 = vmatpush1.bf16.xpose.msra.mxu0 0
        %1303 = vmatprep.mubr.bf16.mxu0 0
        %1304 = vmatmul.mubr.bf16.gmra.mrb[0].mxu0 %v1266
        %v1305 = vpop.f32.mrb[0].mxu0
        %v1306 = vadd.f32 0.0, %v1305
        %v1307 = vpop.f32.mrb[0].mxu0
        %v1308 = vpop.f32.mrb[0].mxu0
        %v1309 = vpop.f32.mrb[0].mxu0
        %1310 = vdwg.mxu0
        %v1311 = vmul.f32 %v1306, 0.35355338
        %v1312 = vadd.f32 %v1311, %v1159
        %v1313 = vsel %vm1264, %v1312, -inf
        %1314 = vmax.xlane.f32.xlu0 %v1313
        %v1315 = vpop.xlane.xlu0 %1314
        %v1316 = vsub.f32 %v1312, %v1315
        %v1317 = vmul.f32 %v1316, 1.442695
        %v1318 = vpow.pop %v1317
        %v1319 = vsel %vm1264, %v1318, 0.0
        %1320 = vadd.xlane.f32.xlu0 %v1319
        %v1321 = vpop.xlane.xlu0 %1320
        %v1322 = vrcp.pop %v1321
        %v1323 = vmul.f32 %v1318, %v1322
        %v1324 = vpack.c.bf16 %v1323, %v1323
        %1325 = vrot.lane.b32.xlu0 %v1260, 64
        %v1326 = vpop.permute.xlu0 %1325
        %v1328 = vsel %vm1264, %v1324, 0
        %vm1330 = vcmask 1043456
        %v1332 = vsel %vm1330, %v1326, 0
        %1334 = vmatprep.subr.bf16.mxu0 0
        %1335 = vmatpush1.bf16.msra.mxu0 %v1332
        %1336 = vmatprep.subr.bf16.mxu0 0
        %1337 = vmatpush1.bf16.msra.mxu0 0
        %1338 = vmatprep.subr.bf16.mxu0 0
        %1339 = vmatpush1.bf16.msra.mxu0 0
        %1340 = vmatprep.subr.bf16.mxu0 0
        %1341 = vmatpush1.bf16.msra.mxu0 0
        %1342 = vmatprep.subr.bf16.mxu0 0
        %1343 = vmatpush1.bf16.msra.mxu0 0
        %1344 = vmatprep.subr.bf16.mxu0 0
        %1345 = vmatpush1.bf16.msra.mxu0 0
        %1346 = vmatprep.subr.bf16.mxu0 0
        %1347 = vmatpush1.bf16.msra.mxu0 0
        %1348 = vmatprep.subr.bf16.mxu0 0
        %1349 = vmatpush1.bf16.msra.mxu0 0
        %1350 = vmatprep.subr.bf16.mxu0 0
        %1351 = vmatpush1.bf16.msra.mxu0 0
        %1352 = vmatprep.subr.bf16.mxu0 0
        %1353 = vmatpush1.bf16.msra.mxu0 0
        %1354 = vmatprep.subr.bf16.mxu0 0
        %1355 = vmatpush1.bf16.msra.mxu0 0
        %1356 = vmatprep.subr.bf16.mxu0 0
        %1357 = vmatpush1.bf16.msra.mxu0 0
        %1358 = vmatprep.subr.bf16.mxu0 0
        %1359 = vmatpush1.bf16.msra.mxu0 0
        %1360 = vmatprep.subr.bf16.mxu0 0
        %1361 = vmatpush1.bf16.msra.mxu0 0
        %1362 = vmatprep.subr.bf16.mxu0 0
        %1363 = vmatpush1.bf16.msra.mxu0 0
        %1364 = vmatprep.subr.bf16.mxu0 0
        %1365 = vmatpush1.bf16.msra.mxu0 0
        %1366 = vmatprep.mubr.bf16.mxu0 0
        %1367 = vmatmul.mubr.bf16.gmra.mrb[0].mxu0 %v1328
        %v1368 = vpop.f32.mrb[0].mxu0
        %v1369 = vadd.f32 0.0, %v1368
        %v1370 = vpop.f32.mrb[0].mxu0
        %v1371 = vpop.f32.mrb[0].mxu0
        %v1372 = vpop.f32.mrb[0].mxu0
        %1373 = vdwg.mxu0
        %1374 = vrot.lane.b32.xlu0 %v1260, 120
        %v1375 = vpop.permute.xlu0 %1374
        %1376 = vrot.lane.b32.xlu0 %v1260, 88
        %v1377 = vpop.permute.xlu0 %1376
        %v1379 = vsel %vm1264, %v1375, 0
        %v1382 = vsel %vm1264, %v1377, 0
        %1384 = vmatprep.subr.bf16.mxu0 0
        %1385 = vmatpush1.bf16.xpose.msra.mxu0 %v1382
        %1386 = vmatprep.subr.bf16.mxu0 0
        %1387 = vmatpush1.bf16.xpose.msra.mxu0 0
        %1388 = vmatprep.subr.bf16.mxu0 0
        %1389 = vmatpush1.bf16.xpose.msra.mxu0 0
        %1390 = vmatprep.subr.bf16.mxu0 0
        %1391 = vmatpush1.bf16.xpose.msra.mxu0 0
        %1392 = vmatprep.subr.bf16.mxu0 0
        %1393 = vmatpush1.bf16.xpose.msra.mxu0 0
        %1394 = vmatprep.subr.bf16.mxu0 0
        %1395 = vmatpush1.bf16.xpose.msra.mxu0 0
        %1396 = vmatprep.subr.bf16.mxu0 0
        %1397 = vmatpush1.bf16.xpose.msra.mxu0 0
        %1398 = vmatprep.subr.bf16.mxu0 0
        %1399 = vmatpush1.bf16.xpose.msra.mxu0 0
        %1400 = vmatprep.subr.bf16.mxu0 0
        %1401 = vmatpush1.bf16.xpose.msra.mxu0 0
        %1402 = vmatprep.subr.bf16.mxu0 0
        %1403 = vmatpush1.bf16.xpose.msra.mxu0 0
        %1404 = vmatprep.subr.bf16.mxu0 0
        %1405 = vmatpush1.bf16.xpose.msra.mxu0 0
        %1406 = vmatprep.subr.bf16.mxu0 0
        %1407 = vmatpush1.bf16.xpose.msra.mxu0 0
        %1408 = vmatprep.subr.bf16.mxu0 0
        %1409 = vmatpush1.bf16.xpose.msra.mxu0 0
        %1410 = vmatprep.subr.bf16.mxu0 0
        %1411 = vmatpush1.bf16.xpose.msra.mxu0 0
        %1412 = vmatprep.subr.bf16.mxu0 0
        %1413 = vmatpush1.bf16.xpose.msra.mxu0 0
        %1414 = vmatprep.subr.bf16.mxu0 0
        %1415 = vmatpush1.bf16.xpose.msra.mxu0 0
        %1416 = vmatprep.mubr.bf16.mxu0 0
        %1417 = vmatmul.mubr.bf16.gmra.mrb[0].mxu0 %v1379
        %v1418 = vpop.f32.mrb[0].mxu0
        %v1419 = vadd.f32 0.0, %v1418
        %v1420 = vpop.f32.mrb[0].mxu0
        %v1421 = vpop.f32.mrb[0].mxu0
        %v1422 = vpop.f32.mrb[0].mxu0
        %1423 = vdwg.mxu0
        %v1424 = vmul.f32 %v1419, 0.35355338
        %v1425 = vadd.f32 %v1424, %v1159
        %v1426 = vsel %vm1264, %v1425, -inf
        %1427 = vmax.xlane.f32.xlu0 %v1426
        %v1428 = vpop.xlane.xlu0 %1427
        %v1429 = vsub.f32 %v1425, %v1428
        %v1430 = vmul.f32 %v1429, 1.442695
        %v1431 = vpow.pop %v1430
        %v1432 = vsel %vm1264, %v1431, 0.0
        %1433 = vadd.xlane.f32.xlu0 %v1432
        %v1434 = vpop.xlane.xlu0 %1433
        %v1435 = vrcp.pop %v1434
        %v1436 = vmul.f32 %v1431, %v1435
        %v1437 = vpack.c.bf16 %v1436, %v1436
        %1438 = vrot.lane.b32.xlu0 %v1260, 56
        %v1439 = vpop.permute.xlu0 %1438
        %v1441 = vsel %vm1264, %v1437, 0
        %v1444 = vsel %vm1330, %v1439, 0
        %1446 = vmatprep.subr.bf16.mxu0 0
        %1447 = vmatpush1.bf16.msra.mxu0 %v1444
        %1448 = vmatprep.subr.bf16.mxu0 0
        %1449 = vmatpush1.bf16.msra.mxu0 0
        %1450 = vmatprep.subr.bf16.mxu0 0
        %1451 = vmatpush1.bf16.msra.mxu0 0
        %1452 = vmatprep.subr.bf16.mxu0 0
        %1453 = vmatpush1.bf16.msra.mxu0 0
        %1454 = vmatprep.subr.bf16.mxu0 0
        %1455 = vmatpush1.bf16.msra.mxu0 0
        %1456 = vmatprep.subr.bf16.mxu0 0
        %1457 = vmatpush1.bf16.msra.mxu0 0
        %1458 = vmatprep.subr.bf16.mxu0 0
        %1459 = vmatpush1.bf16.msra.mxu0 0
        %1460 = vmatprep.subr.bf16.mxu0 0
        %1461 = vmatpush1.bf16.msra.mxu0 0
        %1462 = vmatprep.subr.bf16.mxu0 0
        %1463 = vmatpush1.bf16.msra.mxu0 0
        %1464 = vmatprep.subr.bf16.mxu0 0
        %1465 = vmatpush1.bf16.msra.mxu0 0
        %1466 = vmatprep.subr.bf16.mxu0 0
        %1467 = vmatpush1.bf16.msra.mxu0 0
        %1468 = vmatprep.subr.bf16.mxu0 0
        %1469 = vmatpush1.bf16.msra.mxu0 0
        %1470 = vmatprep.subr.bf16.mxu0 0
        %1471 = vmatpush1.bf16.msra.mxu0 0
        %1472 = vmatprep.subr.bf16.mxu0 0
        %1473 = vmatpush1.bf16.msra.mxu0 0
        %1474 = vmatprep.subr.bf16.mxu0 0
        %1475 = vmatpush1.bf16.msra.mxu0 0
        %1476 = vmatprep.subr.bf16.mxu0 0
        %1477 = vmatpush1.bf16.msra.mxu0 0
        %1478 = vmatprep.mubr.bf16.mxu0 0
        %1479 = vmatmul.mubr.bf16.gmra.mrb[0].mxu0 %v1441
        %v1480 = vpop.f32.mrb[0].mxu0
        %v1481 = vadd.f32 0.0, %v1480
        %v1482 = vpop.f32.mrb[0].mxu0
        %v1483 = vpop.f32.mrb[0].mxu0
        %v1484 = vpop.f32.mrb[0].mxu0
        %1485 = vdwg.mxu0
        %1486 = vrot.lane.b32.xlu0 %v1260, 112
        %v1487 = vpop.permute.xlu0 %1486
        %1488 = vrot.lane.b32.xlu0 %v1260, 80
        %v1489 = vpop.permute.xlu0 %1488
        %v1491 = vsel %vm1264, %v1487, 0
        %v1494 = vsel %vm1264, %v1489, 0
        %1496 = vmatprep.subr.bf16.mxu0 0
        %1497 = vmatpush1.bf16.xpose.msra.mxu0 %v1494
        %1498 = vmatprep.subr.bf16.mxu0 0
        %1499 = vmatpush1.bf16.xpose.msra.mxu0 0
        %1500 = vmatprep.subr.bf16.mxu0 0
        %1501 = vmatpush1.bf16.xpose.msra.mxu0 0
        %1502 = vmatprep.subr.bf16.mxu0 0
        %1503 = vmatpush1.bf16.xpose.msra.mxu0 0
        %1504 = vmatprep.subr.bf16.mxu0 0
        %1505 = vmatpush1.bf16.xpose.msra.mxu0 0
        %1506 = vmatprep.subr.bf16.mxu0 0
        %1507 = vmatpush1.bf16.xpose.msra.mxu0 0
        %1508 = vmatprep.subr.bf16.mxu0 0
        %1509 = vmatpush1.bf16.xpose.msra.mxu0 0
        %1510 = vmatprep.subr.bf16.mxu0 0
        %1511 = vmatpush1.bf16.xpose.msra.mxu0 0
        %1512 = vmatprep.subr.bf16.mxu0 0
        %1513 = vmatpush1.bf16.xpose.msra.mxu0 0
        %1514 = vmatprep.subr.bf16.mxu0 0
        %1515 = vmatpush1.bf16.xpose.msra.mxu0 0
        %1516 = vmatprep.subr.bf16.mxu0 0
        %1517 = vmatpush1.bf16.xpose.msra.mxu0 0
        %1518 = vmatprep.subr.bf16.mxu0 0
        %1519 = vmatpush1.bf16.xpose.msra.mxu0 0
        %1520 = vmatprep.subr.bf16.mxu0 0
        %1521 = vmatpush1.bf16.xpose.msra.mxu0 0
        %1522 = vmatprep.subr.bf16.mxu0 0
        %1523 = vmatpush1.bf16.xpose.msra.mxu0 0
        %1524 = vmatprep.subr.bf16.mxu0 0
        %1525 = vmatpush1.bf16.xpose.msra.mxu0 0
        %1526 = vmatprep.subr.bf16.mxu0 0
        %1527 = vmatpush1.bf16.xpose.msra.mxu0 0
        %1528 = vmatprep.mubr.bf16.mxu0 0
        %1529 = vmatmul.mubr.bf16.gmra.mrb[0].mxu0 %v1491
        %v1530 = vpop.f32.mrb[0].mxu0
        %v1531 = vadd.f32 0.0, %v1530
        %v1532 = vpop.f32.mrb[0].mxu0
        %v1533 = vpop.f32.mrb[0].mxu0
        %v1534 = vpop.f32.mrb[0].mxu0
        %1535 = vdwg.mxu0
        %v1536 = vmul.f32 %v1531, 0.35355338
        %v1537 = vadd.f32 %v1536, %v1159
        %v1538 = vsel %vm1264, %v1537, -inf
        %1539 = vmax.xlane.f32.xlu0 %v1538
        %v1540 = vpop.xlane.xlu0 %1539
        %v1541 = vsub.f32 %v1537, %v1540
        %v1542 = vmul.f32 %v1541, 1.442695
        %v1543 = vpow.pop %v1542
        %v1544 = vsel %vm1264, %v1543, 0.0
        %1545 = vadd.xlane.f32.xlu0 %v1544
        %v1546 = vpop.xlane.xlu0 %1545
        %v1547 = vrcp.pop %v1546
        %v1548 = vmul.f32 %v1543, %v1547
        %v1549 = vpack.c.bf16 %v1548, %v1548
        %1550 = vrot.lane.b32.xlu0 %v1260, 48
        %v1551 = vpop.permute.xlu0 %1550
        %v1553 = vsel %vm1264, %v1549, 0
        %v1556 = vsel %vm1330, %v1551, 0
        %1558 = vmatprep.subr.bf16.mxu0 0
        %1559 = vmatpush1.bf16.msra.mxu0 %v1556
        %1560 = vmatprep.subr.bf16.mxu0 0
        %1561 = vmatpush1.bf16.msra.mxu0 0
        %1562 = vmatprep.subr.bf16.mxu0 0
        %1563 = vmatpush1.bf16.msra.mxu0 0
        %1564 = vmatprep.subr.bf16.mxu0 0
        %1565 = vmatpush1.bf16.msra.mxu0 0
        %1566 = vmatprep.subr.bf16.mxu0 0
        %1567 = vmatpush1.bf16.msra.mxu0 0
        %1568 = vmatprep.subr.bf16.mxu0 0
        %1569 = vmatpush1.bf16.msra.mxu0 0
        %1570 = vmatprep.subr.bf16.mxu0 0
        %1571 = vmatpush1.bf16.msra.mxu0 0
        %1572 = vmatprep.subr.bf16.mxu0 0
        %1573 = vmatpush1.bf16.msra.mxu0 0
        %1574 = vmatprep.subr.bf16.mxu0 0
        %1575 = vmatpush1.bf16.msra.mxu0 0
        %1576 = vmatprep.subr.bf16.mxu0 0
        %1577 = vmatpush1.bf16.msra.mxu0 0
        %1578 = vmatprep.subr.bf16.mxu0 0
        %1579 = vmatpush1.bf16.msra.mxu0 0
        %1580 = vmatprep.subr.bf16.mxu0 0
        %1581 = vmatpush1.bf16.msra.mxu0 0
        %1582 = vmatprep.subr.bf16.mxu0 0
        %1583 = vmatpush1.bf16.msra.mxu0 0
        %1584 = vmatprep.subr.bf16.mxu0 0
        %1585 = vmatpush1.bf16.msra.mxu0 0
        %1586 = vmatprep.subr.bf16.mxu0 0
        %1587 = vmatpush1.bf16.msra.mxu0 0
        %1588 = vmatprep.subr.bf16.mxu0 0
        %1589 = vmatpush1.bf16.msra.mxu0 0
        %1590 = vmatprep.mubr.bf16.mxu0 0
        %1591 = vmatmul.mubr.bf16.gmra.mrb[0].mxu0 %v1553
        %v1592 = vpop.f32.mrb[0].mxu0
        %v1593 = vadd.f32 0.0, %v1592
        %v1594 = vpop.f32.mrb[0].mxu0
        %v1595 = vpop.f32.mrb[0].mxu0
        %v1596 = vpop.f32.mrb[0].mxu0
        %1597 = vdwg.mxu0
        %1598 = vrot.lane.b32.xlu0 %v1260, 104
        %v1599 = vpop.permute.xlu0 %1598
        %1600 = vrot.lane.b32.xlu0 %v1260, 72
        %v1601 = vpop.permute.xlu0 %1600
        %v1603 = vsel %vm1264, %v1599, 0
        %v1606 = vsel %vm1264, %v1601, 0
        %1608 = vmatprep.subr.bf16.mxu0 0
        %1609 = vmatpush1.bf16.xpose.msra.mxu0 %v1606
        %1610 = vmatprep.subr.bf16.mxu0 0
        %1611 = vmatpush1.bf16.xpose.msra.mxu0 0
        %1612 = vmatprep.subr.bf16.mxu0 0
        %1613 = vmatpush1.bf16.xpose.msra.mxu0 0
        %1614 = vmatprep.subr.bf16.mxu0 0
        %1615 = vmatpush1.bf16.xpose.msra.mxu0 0
        %1616 = vmatprep.subr.bf16.mxu0 0
        %1617 = vmatpush1.bf16.xpose.msra.mxu0 0
        %1618 = vmatprep.subr.bf16.mxu0 0
        %1619 = vmatpush1.bf16.xpose.msra.mxu0 0
        %1620 = vmatprep.subr.bf16.mxu0 0
        %1621 = vmatpush1.bf16.xpose.msra.mxu0 0
        %1622 = vmatprep.subr.bf16.mxu0 0
        %1623 = vmatpush1.bf16.xpose.msra.mxu0 0
        %1624 = vmatprep.subr.bf16.mxu0 0
        %1625 = vmatpush1.bf16.xpose.msra.mxu0 0
        %1626 = vmatprep.subr.bf16.mxu0 0
        %1627 = vmatpush1.bf16.xpose.msra.mxu0 0
        %1628 = vmatprep.subr.bf16.mxu0 0
        %1629 = vmatpush1.bf16.xpose.msra.mxu0 0
        %1630 = vmatprep.subr.bf16.mxu0 0
        %1631 = vmatpush1.bf16.xpose.msra.mxu0 0
        %1632 = vmatprep.subr.bf16.mxu0 0
        %1633 = vmatpush1.bf16.xpose.msra.mxu0 0
        %1634 = vmatprep.subr.bf16.mxu0 0
        %1635 = vmatpush1.bf16.xpose.msra.mxu0 0
        %1636 = vmatprep.subr.bf16.mxu0 0
        %1637 = vmatpush1.bf16.xpose.msra.mxu0 0
        %1638 = vmatprep.subr.bf16.mxu0 0
        %1639 = vmatpush1.bf16.xpose.msra.mxu0 0
        %1640 = vmatprep.mubr.bf16.mxu0 0
        %1641 = vmatmul.mubr.bf16.gmra.mrb[0].mxu0 %v1603
        %v1642 = vpop.f32.mrb[0].mxu0
        %v1643 = vadd.f32 0.0, %v1642
        %v1644 = vpop.f32.mrb[0].mxu0
        %v1645 = vpop.f32.mrb[0].mxu0
        %v1646 = vpop.f32.mrb[0].mxu0
        %1647 = vdwg.mxu0
        %v1648 = vmul.f32 %v1643, 0.35355338
        %v1649 = vadd.f32 %v1648, %v1159
        %v1650 = vsel %vm1264, %v1649, -inf
        %1651 = vmax.xlane.f32.xlu0 %v1650
        %v1652 = vpop.xlane.xlu0 %1651
        %v1653 = vsub.f32 %v1649, %v1652
        %v1654 = vmul.f32 %v1653, 1.442695
        %v1655 = vpow.pop %v1654
        %v1656 = vsel %vm1264, %v1655, 0.0
        %1657 = vadd.xlane.f32.xlu0 %v1656
        %v1658 = vpop.xlane.xlu0 %1657
        %v1659 = vrcp.pop %v1658
        %v1660 = vmul.f32 %v1655, %v1659
        %v1661 = vpack.c.bf16 %v1660, %v1660
        %1662 = vrot.lane.b32.xlu0 %v1260, 40
        %v1663 = vpop.permute.xlu0 %1662
        %v1665 = vsel %vm1264, %v1661, 0
        %v1668 = vsel %vm1330, %v1663, 0
        %1670 = vmatprep.subr.bf16.mxu0 0
        %1671 = vmatpush1.bf16.msra.mxu0 %v1668
        %1672 = vmatprep.subr.bf16.mxu0 0
        %1673 = vmatpush1.bf16.msra.mxu0 0
        %1674 = vmatprep.subr.bf16.mxu0 0
        %1675 = vmatpush1.bf16.msra.mxu0 0
        %1676 = vmatprep.subr.bf16.mxu0 0
        %1677 = vmatpush1.bf16.msra.mxu0 0
        %1678 = vmatprep.subr.bf16.mxu0 0
        %1679 = vmatpush1.bf16.msra.mxu0 0
        %1680 = vmatprep.subr.bf16.mxu0 0
        %1681 = vmatpush1.bf16.msra.mxu0 0
        %1682 = vmatprep.subr.bf16.mxu0 0
        %1683 = vmatpush1.bf16.msra.mxu0 0
        %1684 = vmatprep.subr.bf16.mxu0 0
        %1685 = vmatpush1.bf16.msra.mxu0 0
        %1686 = vmatprep.subr.bf16.mxu0 0
        %1687 = vmatpush1.bf16.msra.mxu0 0
        %1688 = vmatprep.subr.bf16.mxu0 0
        %1689 = vmatpush1.bf16.msra.mxu0 0
        %1690 = vmatprep.subr.bf16.mxu0 0
        %1691 = vmatpush1.bf16.msra.mxu0 0
        %1692 = vmatprep.subr.bf16.mxu0 0
        %1693 = vmatpush1.bf16.msra.mxu0 0
        %1694 = vmatprep.subr.bf16.mxu0 0
        %1695 = vmatpush1.bf16.msra.mxu0 0
        %1696 = vmatprep.subr.bf16.mxu0 0
        %1697 = vmatpush1.bf16.msra.mxu0 0
        %1698 = vmatprep.subr.bf16.mxu0 0
        %1699 = vmatpush1.bf16.msra.mxu0 0
        %1700 = vmatprep.subr.bf16.mxu0 0
        %1701 = vmatpush1.bf16.msra.mxu0 0
        %1702 = vmatprep.mubr.bf16.mxu0 0
        %1703 = vmatmul.mubr.bf16.gmra.mrb[0].mxu0 %v1665
        %v1704 = vpop.f32.mrb[0].mxu0
        %v1705 = vadd.f32 0.0, %v1704
        %v1706 = vpop.f32.mrb[0].mxu0
        %v1707 = vpop.f32.mrb[0].mxu0
        %v1708 = vpop.f32.mrb[0].mxu0
        %1709 = vdwg.mxu0
        %1711 = vrot.lane.b32.xlu0 %v1481, 8
        %v1712 = vpop.permute.xlu0 %1711
        %1715 = vrot.lane.b32.xlu0 %v1593, 16
        %v1716 = vpop.permute.xlu0 %1715
        %1719 = vrot.lane.b32.xlu0 %v1705, 24
        %v1720 = vpop.permute.xlu0 %1719
        %v1722 = vsel %vm1264, %v1369, %v1712
        %vm1723 = vcmask 130048
        %v1724 = vsel %vm1723, %v1722, %v1716
        %vm1725 = vcmask 195584
        %v1726 = vsel %vm1725, %v1724, %v1720
        %v1727 = vpack.c.bf16 %v1726, %v1726
        %v1728 = vld [vmem:[%s1085] sm:$0xf]
        %v1729 = vld [vmem:[%s1085 + $0x4] sm:$0xf]
        %v1730 = vld [vmem:[%s1085 + $0x8] sm:$0xf]
        %v1731 = vld [vmem:[%s1085 + $0xc] sm:$0xf]
        %v1736 = vunpack.c.l.b16 %v1728
        %v1737 = vunpack.c.l.b16 %v1729
        %v1738 = vunpack.c.l.b16 %v1730
        %v1739 = vunpack.c.l.b16 %v1731
        %v1740 = vpack.c.b16 %v1737, %v1736
        %v1741 = vpack.c.b16 %v1739, %v1738
        %v1745 = vsel %vm1164, %v1727, 0
        %1747 = vmatprep.subr.bf16.mxu0 0
        %1748 = vmatpush1.bf16.msra.mxu0 %v1740
        %1749 = vmatprep.subr.bf16.mxu0 0
        %1750 = vmatpush1.bf16.msra.mxu0 %v1741
        %1751 = vmatprep.subr.bf16.mxu0 0
        %1752 = vmatpush1.bf16.msra.mxu0 0
        %1753 = vmatprep.subr.bf16.mxu0 0
        %1754 = vmatpush1.bf16.msra.mxu0 0
        %1755 = vmatprep.subr.bf16.mxu0 0
        %1756 = vmatpush1.bf16.msra.mxu0 0
        %1757 = vmatprep.subr.bf16.mxu0 0
        %1758 = vmatpush1.bf16.msra.mxu0 0
        %1759 = vmatprep.subr.bf16.mxu0 0
        %1760 = vmatpush1.bf16.msra.mxu0 0
        %1761 = vmatprep.subr.bf16.mxu0 0
        %1762 = vmatpush1.bf16.msra.mxu0 0
        %1763 = vmatprep.subr.bf16.mxu0 0
        %1764 = vmatpush1.bf16.msra.mxu0 0
        %1765 = vmatprep.subr.bf16.mxu0 0
        %1766 = vmatpush1.bf16.msra.mxu0 0
        %1767 = vmatprep.subr.bf16.mxu0 0
        %1768 = vmatpush1.bf16.msra.mxu0 0
        %1769 = vmatprep.subr.bf16.mxu0 0
        %1770 = vmatpush1.bf16.msra.mxu0 0
        %1771 = vmatprep.subr.bf16.mxu0 0
        %1772 = vmatpush1.bf16.msra.mxu0 0
        %1773 = vmatprep.subr.bf16.mxu0 0
        %1774 = vmatpush1.bf16.msra.mxu0 0
        %1775 = vmatprep.subr.bf16.mxu0 0
        %1776 = vmatpush1.bf16.msra.mxu0 0
        %1777 = vmatprep.subr.bf16.mxu0 0
        %1778 = vmatpush1.bf16.msra.mxu0 0
        %1779 = vmatprep.mubr.bf16.mxu0 0
        %1780 = vmatmul.mubr.bf16.gmra.mrb[0].mxu0 %v1745
        %v1781 = vpop.f32.mrb[0].mxu0
        %v1782 = vadd.f32 0.0, %v1781
        %v1783 = vpop.f32.mrb[0].mxu0
        %v1784 = vpop.f32.mrb[0].mxu0
        %v1785 = vpop.f32.mrb[0].mxu0
        %1786 = vdwg.mxu0
        %v1787 = vadd.f32 %v1149, %v1782
        %v1788 = vld [vmem:[%s1088] sm:$0x1]
        %v1790 = vlaneseq
        %v1791 = vshrl.u32 %v1790, 7
        %v1792 = vsub.s32 0, %v1791
        %v1793 = vrot.slane %v1788, %v1792
        %v1795 = vadd.f32 %v1787, %v1793
        %v1796 = vld [vmem:[%s1091] sm:$0x1]
        %v1797 = vld [vmem:[%s1094] sm:$0x1]
        %v1798 = vsel %vm1164, %v1795, 0.0
        %1799 = vadd.xlane.f32.xlu0 %v1798
        %v1800 = vpop.xlane.xlu0 %1799
        %v1801 = vmul.f32 %v1800, %v1168
        %v1802 = vsub.f32 %v1795, %v1801
        %v1803 = vmul.f32 %v1802, %v1802
        %v1804 = vsel %vm1164, %v1803, 0.0
        %1805 = vadd.xlane.f32.xlu0 %v1804
        %v1806 = vpop.xlane.xlu0 %1805
        %v1807 = vmul.f32 %v1806, %v1168
        %v1808 = vadd.f32 %v1807, 1e-05
        %v1809 = vrsqrt.pop %v1808
        %v1810 = vmul.f32 %v1802, %v1809
        %v1812 = vlaneseq
        %v1813 = vshrl.u32 %v1812, 7
        %v1814 = vsub.s32 0, %v1813
        %v1815 = vrot.slane %v1796, %v1814
        %v1817 = vmul.f32 %v1810, %v1815
        %v1819 = vlaneseq
        %v1820 = vshrl.u32 %v1819, 7
        %v1821 = vsub.s32 0, %v1820
        %v1822 = vrot.slane %v1797, %v1821
        %v1824 = vadd.f32 %v1817, %v1822
        %v1825 = vpack.c.bf16 %v1824, %v1824
        %v1826 = vld [vmem:[%s1099] sm:$0xf]
        %v1827 = vld [vmem:[%s1099 + $0x4] sm:$0xf]
        %v1828 = vld [vmem:[%s1099 + $0x8] sm:$0xf]
        %v1829 = vld [vmem:[%s1099 + $0xc] sm:$0xf]
        %v1830 = vld [vmem:[%s1102] sm:$0x1]
        %v1832 = vlaneseq
        %v1833 = vshrl.u32 %v1832, 7
        %v1834 = vsub.s32 0, %v1833
        %v1835 = vrot.slane %v1830, %v1834
        %v1841 = vunpack.c.l.b16 %v1826
        %v1842 = vunpack.c.l.b16 %v1827
        %v1843 = vunpack.c.l.b16 %v1828
        %v1844 = vunpack.c.l.b16 %v1829
        %v1845 = vpack.c.b16 %v1842, %v1841
        %v1846 = vpack.c.b16 %v1844, %v1843
        %v1850 = vsel %vm1164, %v1825, 0
        %1852 = vmatprep.subr.bf16.mxu0 0
        %1853 = vmatpush1.bf16.msra.mxu0 %v1845
        %1854 = vmatprep.subr.bf16.mxu0 0
        %1855 = vmatpush1.bf16.msra.mxu0 %v1846
        %1856 = vmatprep.subr.bf16.mxu0 0
        %1857 = vmatpush1.bf16.msra.mxu0 0
        %1858 = vmatprep.subr.bf16.mxu0 0
        %1859 = vmatpush1.bf16.msra.mxu0 0
        %1860 = vmatprep.subr.bf16.mxu0 0
        %1861 = vmatpush1.bf16.msra.mxu0 0
        %1862 = vmatprep.subr.bf16.mxu0 0
        %1863 = vmatpush1.bf16.msra.mxu0 0
        %1864 = vmatprep.subr.bf16.mxu0 0
        %1865 = vmatpush1.bf16.msra.mxu0 0
        %1866 = vmatprep.subr.bf16.mxu0 0
        %1867 = vmatpush1.bf16.msra.mxu0 0
        %1868 = vmatprep.subr.bf16.mxu0 0
        %1869 = vmatpush1.bf16.msra.mxu0 0
        %1870 = vmatprep.subr.bf16.mxu0 0
        %1871 = vmatpush1.bf16.msra.mxu0 0
        %1872 = vmatprep.subr.bf16.mxu0 0
        %1873 = vmatpush1.bf16.msra.mxu0 0
        %1874 = vmatprep.subr.bf16.mxu0 0
        %1875 = vmatpush1.bf16.msra.mxu0 0
        %1876 = vmatprep.subr.bf16.mxu0 0
        %1877 = vmatpush1.bf16.msra.mxu0 0
        %1878 = vmatprep.subr.bf16.mxu0 0
        %1879 = vmatpush1.bf16.msra.mxu0 0
        %1880 = vmatprep.subr.bf16.mxu0 0
        %1881 = vmatpush1.bf16.msra.mxu0 0
        %1882 = vmatprep.subr.bf16.mxu0 0
        %1883 = vmatpush1.bf16.msra.mxu0 0
        %1884 = vmatprep.mubr.bf16.mxu0 0
        %1885 = vmatmul.mubr.bf16.gmra.mrb[0].mxu0 %v1850
        %v1886 = vpop.f32.mrb[0].mxu0
        %v1887 = vadd.f32 %v1835, %v1886
        %v1888 = vpop.f32.mrb[0].mxu0
        %v1889 = vpop.f32.mrb[0].mxu0
        %v1890 = vpop.f32.mrb[0].mxu0
        %1891 = vdwg.mxu0
        %v1892 = vpack.c.bf16 %v1151, %v1150
        %v1893 = vpack.c.bf16 %v1153, %v1152
        %v1894 = vld [vmem:[%s1107] sm:$0xf]
        %v1895 = vld [vmem:[%s1107 + $0x4] sm:$0xf]
        %v1896 = vld [vmem:[%s1107 + $0x8] sm:$0xf]
        %v1897 = vld [vmem:[%s1107 + $0xc] sm:$0xf]
        %v1898 = vld [vmem:[%s1110] sm:$0x1]
        %v1900 = vlaneseq
        %v1901 = vshrl.u32 %v1900, 7
        %v1902 = vsub.s32 0, %v1901
        %v1903 = vrot.slane %v1898, %v1902
        %v1909 = vunpack.c.l.b16 %v1894
        %v1910 = vunpack.c.l.b16 %v1895
        %v1911 = vunpack.c.l.b16 %v1896
        %v1912 = vunpack.c.l.b16 %v1897
        %v1913 = vpack.c.b16 %v1910, %v1909
        %v1914 = vpack.c.b16 %v1912, %v1911
        %v1918 = vsel %vm1164, %v1892, 0
        %v1921 = vsel %vm1164, %v1893, 0
        %1923 = vmatprep.subr.bf16.mxu0 0
        %1924 = vmatpush1.bf16.msra.mxu0 %v1913
        %1925 = vmatprep.subr.bf16.mxu0 0
        %1926 = vmatpush1.bf16.msra.mxu0 %v1914
        %1927 = vmatprep.subr.bf16.mxu0 0
        %1928 = vmatpush1.bf16.msra.mxu0 0
        %1929 = vmatprep.subr.bf16.mxu0 0
        %1930 = vmatpush1.bf16.msra.mxu0 0
        %1931 = vmatprep.subr.bf16.mxu0 0
        %1932 = vmatpush1.bf16.msra.mxu0 0
        %1933 = vmatprep.subr.bf16.mxu0 0
        %1934 = vmatpush1.bf16.msra.mxu0 0
        %1935 = vmatprep.subr.bf16.mxu0 0
        %1936 = vmatpush1.bf16.msra.mxu0 0
        %1937 = vmatprep.subr.bf16.mxu0 0
        %1938 = vmatpush1.bf16.msra.mxu0 0
        %1939 = vmatprep.subr.bf16.mxu0 0
        %1940 = vmatpush1.bf16.msra.mxu0 0
        %1941 = vmatprep.subr.bf16.mxu0 0
        %1942 = vmatpush1.bf16.msra.mxu0 0
        %1943 = vmatprep.subr.bf16.mxu0 0
        %1944 = vmatpush1.bf16.msra.mxu0 0
        %1945 = vmatprep.subr.bf16.mxu0 0
        %1946 = vmatpush1.bf16.msra.mxu0 0
        %1947 = vmatprep.subr.bf16.mxu0 0
        %1948 = vmatpush1.bf16.msra.mxu0 0
        %1949 = vmatprep.subr.bf16.mxu0 0
        %1950 = vmatpush1.bf16.msra.mxu0 0
        %1951 = vmatprep.subr.bf16.mxu0 0
        %1952 = vmatpush1.bf16.msra.mxu0 0
        %1953 = vmatprep.subr.bf16.mxu0 0
        %1954 = vmatpush1.bf16.msra.mxu0 0
        %1955 = vmatprep.mubr.bf16.mxu0 0
        %1956 = vmatmul.mubr.bf16.gmra.mrb[0].mxu0 %v1918
        %v1957 = vpop.f32.mrb[0].mxu0
        %v1958 = vadd.f32 %v1903, %v1957
        %v1959 = vpop.f32.mrb[0].mxu0
        %v1960 = vpop.f32.mrb[0].mxu0
        %v1961 = vadd.f32 %v1903, %v1960
        %v1962 = vpop.f32.mrb[0].mxu0
        %1963 = vmatprep.mubr.bf16.mxu0 0
        %1964 = vmatmul.mubr.bf16.gmra.mrb[0].mxu0 %v1921
        %v1965 = vpop.f32.mrb[0].mxu0
        %v1966 = vadd.f32 %v1903, %v1965
        %v1967 = vpop.f32.mrb[0].mxu0
        %v1968 = vpop.f32.mrb[0].mxu0
        %v1969 = vadd.f32 %v1903, %v1968
        %v1970 = vpop.f32.mrb[0].mxu0
        %1971 = vdwg.mxu0
        %v1972 = vpack.c.bf16 %v1887, %v1887
        %v1973 = vpack.c.bf16 %v1961, %v1958
        %v1974 = vpack.c.bf16 %v1969, %v1966
        %v1976 = vsel %vm1264, %v1972, 0
        %v1979 = vsel %vm1264, %v1973, 0
        %v1982 = vsel %vm1264, %v1974, 0
        %1984 = vmatprep.subr.bf16.mxu0 0
        %1985 = vmatpush1.bf16.xpose.msra.mxu0 %v1979
        %1986 = vmatprep.subr.bf16.mxu0 0
        %1987 = vmatpush1.bf16.xpose.msra.mxu0 %v1982
        %1988 = vmatprep.subr.bf16.mxu0 0
        %1989 = vmatpush1.bf16.xpose.msra.mxu0 0
        %1990 = vmatprep.subr.bf16.mxu0 0
        %1991 = vmatpush1.bf16.xpose.msra.mxu0 0
        %1992 = vmatprep.subr.bf16.mxu0 0
        %1993 = vmatpush1.bf16.xpose.msra.mxu0 0
        %1994 = vmatprep.subr.bf16.mxu0 0
        %1995 = vmatpush1.bf16.xpose.msra.mxu0 0
        %1996 = vmatprep.subr.bf16.mxu0 0
        %1997 = vmatpush1.bf16.xpose.msra.mxu0 0
        %1998 = vmatprep.subr.bf16.mxu0 0
        %1999 = vmatpush1.bf16.xpose.msra.mxu0 0
        %2000 = vmatprep.subr.bf16.mxu0 0
        %2001 = vmatpush1.bf16.xpose.msra.mxu0 0
        %2002 = vmatprep.subr.bf16.mxu0 0
        %2003 = vmatpush1.bf16.xpose.msra.mxu0 0
        %2004 = vmatprep.subr.bf16.mxu0 0
        %2005 = vmatpush1.bf16.xpose.msra.mxu0 0
        %2006 = vmatprep.subr.bf16.mxu0 0
        %2007 = vmatpush1.bf16.xpose.msra.mxu0 0
        %2008 = vmatprep.subr.bf16.mxu0 0
        %2009 = vmatpush1.bf16.xpose.msra.mxu0 0
        %2010 = vmatprep.subr.bf16.mxu0 0
        %2011 = vmatpush1.bf16.xpose.msra.mxu0 0
        %2012 = vmatprep.subr.bf16.mxu0 0
        %2013 = vmatpush1.bf16.xpose.msra.mxu0 0
        %2014 = vmatprep.subr.bf16.mxu0 0
        %2015 = vmatpush1.bf16.xpose.msra.mxu0 0
        %2016 = vmatprep.mubr.bf16.mxu0 0
        %2017 = vmatmul.mubr.bf16.gmra.mrb[0].mxu0 %v1976
        %v2018 = vpop.f32.mrb[0].mxu0
        %v2019 = vadd.f32 0.0, %v2018
        %v2020 = vpop.f32.mrb[0].mxu0
        %v2021 = vpop.f32.mrb[0].mxu0
        %v2022 = vpop.f32.mrb[0].mxu0
        %2023 = vdwg.mxu0
        %v2024 = vmul.f32 %v2019, 0.35355338
        %v2025 = vadd.f32 %v2024, %v1161
        %v2026 = vsel %vm1164, %v2025, -inf
        %2027 = vmax.xlane.f32.xlu0 %v2026
        %v2028 = vpop.xlane.xlu0 %2027
        %v2029 = vsub.f32 %v2025, %v2028
        %v2030 = vmul.f32 %v2029, 1.442695
        %v2031 = vpow.pop %v2030
        %v2032 = vsel %vm1164, %v2031, 0.0
        %2033 = vadd.xlane.f32.xlu0 %v2032
        %v2034 = vpop.xlane.xlu0 %2033
        %v2035 = vrcp.pop %v2034
        %v2036 = vmul.f32 %v2031, %v2035
        %v2037 = vpack.c.bf16 %v2036, %v2036
        %2040 = vrot.lane.b32.xlu0 %v1973, 96
        %v2041 = vpop.permute.xlu0 %2040
        %2042 = vrot.lane.b32.xlu0 %v1974, 96
        %v2043 = vpop.permute.xlu0 %2042
        %v2047 = vsel %vm1164, %v2037, 0
        %2049 = vmatprep.subr.bf16.mxu0 0
        %2050 = vmatpush1.bf16.msra.mxu0 %v2041
        %2051 = vmatprep.subr.bf16.mxu0 0
        %2052 = vmatpush1.bf16.msra.mxu0 %v2043
        %2053 = vmatprep.subr.bf16.mxu0 0
        %2054 = vmatpush1.bf16.msra.mxu0 0
        %2055 = vmatprep.subr.bf16.mxu0 0
        %2056 = vmatpush1.bf16.msra.mxu0 0
        %2057 = vmatprep.subr.bf16.mxu0 0
        %2058 = vmatpush1.bf16.msra.mxu0 0
        %2059 = vmatprep.subr.bf16.mxu0 0
        %2060 = vmatpush1.bf16.msra.mxu0 0
        %2061 = vmatprep.subr.bf16.mxu0 0
        %2062 = vmatpush1.bf16.msra.mxu0 0
        %2063 = vmatprep.subr.bf16.mxu0 0
        %2064 = vmatpush1.bf16.msra.mxu0 0
        %2065 = vmatprep.subr.bf16.mxu0 0
        %2066 = vmatpush1.bf16.msra.mxu0 0
        %2067 = vmatprep.subr.bf16.mxu0 0
        %2068 = vmatpush1.bf16.msra.mxu0 0
        %2069 = vmatprep.subr.bf16.mxu0 0
        %2070 = vmatpush1.bf16.msra.mxu0 0
        %2071 = vmatprep.subr.bf16.mxu0 0
        %2072 = vmatpush1.bf16.msra.mxu0 0
        %2073 = vmatprep.subr.bf16.mxu0 0
        %2074 = vmatpush1.bf16.msra.mxu0 0
        %2075 = vmatprep.subr.bf16.mxu0 0
        %2076 = vmatpush1.bf16.msra.mxu0 0
        %2077 = vmatprep.subr.bf16.mxu0 0
        %2078 = vmatpush1.bf16.msra.mxu0 0
        %2079 = vmatprep.subr.bf16.mxu0 0
        %2080 = vmatpush1.bf16.msra.mxu0 0
        %2081 = vmatprep.mubr.bf16.mxu0 0
        %2082 = vmatmul.mubr.bf16.gmra.mrb[0].mxu0 %v2047
        %v2083 = vpop.f32.mrb[0].mxu0
        %v2084 = vadd.f32 0.0, %v2083
        %v2085 = vpop.f32.mrb[0].mxu0
        %v2086 = vpop.f32.mrb[0].mxu0
        %v2087 = vpop.f32.mrb[0].mxu0
        %2088 = vdwg.mxu0
        %2090 = vrot.lane.b32.xlu0 %v1972, 120
        %v2091 = vpop.permute.xlu0 %2090
        %2092 = vrot.lane.b32.xlu0 %v1973, 120
        %v2093 = vpop.permute.xlu0 %2092
        %2094 = vrot.lane.b32.xlu0 %v1974, 120
        %v2095 = vpop.permute.xlu0 %2094
        %v2097 = vsel %vm1264, %v2091, 0
        %v2100 = vsel %vm1264, %v2093, 0
        %v2103 = vsel %vm1264, %v2095, 0
        %2105 = vmatprep.subr.bf16.mxu0 0
        %2106 = vmatpush1.bf16.xpose.msra.mxu0 %v2100
        %2107 = vmatprep.subr.bf16.mxu0 0
        %2108 = vmatpush1.bf16.xpose.msra.mxu0 %v2103
        %2109 = vmatprep.subr.bf16.mxu0 0
        %2110 = vmatpush1.bf16.xpose.msra.mxu0 0
        %2111 = vmatprep.subr.bf16.mxu0 0
        %2112 = vmatpush1.bf16.xpose.msra.mxu0 0
        %2113 = vmatprep.subr.bf16.mxu0 0
        %2114 = vmatpush1.bf16.xpose.msra.mxu0 0
        %2115 = vmatprep.subr.bf16.mxu0 0
        %2116 = vmatpush1.bf16.xpose.msra.mxu0 0
        %2117 = vmatprep.subr.bf16.mxu0 0
        %2118 = vmatpush1.bf16.xpose.msra.mxu0 0
        %2119 = vmatprep.subr.bf16.mxu0 0
        %2120 = vmatpush1.bf16.xpose.msra.mxu0 0
        %2121 = vmatprep.subr.bf16.mxu0 0
        %2122 = vmatpush1.bf16.xpose.msra.mxu0 0
        %2123 = vmatprep.subr.bf16.mxu0 0
        %2124 = vmatpush1.bf16.xpose.msra.mxu0 0
        %2125 = vmatprep.subr.bf16.mxu0 0
        %2126 = vmatpush1.bf16.xpose.msra.mxu0 0
        %2127 = vmatprep.subr.bf16.mxu0 0
        %2128 = vmatpush1.bf16.xpose.msra.mxu0 0
        %2129 = vmatprep.subr.bf16.mxu0 0
        %2130 = vmatpush1.bf16.xpose.msra.mxu0 0
        %2131 = vmatprep.subr.bf16.mxu0 0
        %2132 = vmatpush1.bf16.xpose.msra.mxu0 0
        %2133 = vmatprep.subr.bf16.mxu0 0
        %2134 = vmatpush1.bf16.xpose.msra.mxu0 0
        %2135 = vmatprep.subr.bf16.mxu0 0
        %2136 = vmatpush1.bf16.xpose.msra.mxu0 0
        %2137 = vmatprep.mubr.bf16.mxu0 0
        %2138 = vmatmul.mubr.bf16.gmra.mrb[0].mxu0 %v2097
        %v2139 = vpop.f32.mrb[0].mxu0
        %v2140 = vadd.f32 0.0, %v2139
        %v2141 = vpop.f32.mrb[0].mxu0
        %v2142 = vpop.f32.mrb[0].mxu0
        %v2143 = vpop.f32.mrb[0].mxu0
        %2144 = vdwg.mxu0
        %v2145 = vmul.f32 %v2140, 0.35355338
        %v2146 = vadd.f32 %v2145, %v1161
        %v2147 = vsel %vm1164, %v2146, -inf
        %2148 = vmax.xlane.f32.xlu0 %v2147
        %v2149 = vpop.xlane.xlu0 %2148
        %v2150 = vsub.f32 %v2146, %v2149
        %v2151 = vmul.f32 %v2150, 1.442695
        %v2152 = vpow.pop %v2151
        %v2153 = vsel %vm1164, %v2152, 0.0
        %2154 = vadd.xlane.f32.xlu0 %v2153
        %v2155 = vpop.xlane.xlu0 %2154
        %v2156 = vrcp.pop %v2155
        %v2157 = vmul.f32 %v2152, %v2156
        %v2158 = vpack.c.bf16 %v2157, %v2157
        %2159 = vrot.lane.b32.xlu0 %v1973, 88
        %v2160 = vpop.permute.xlu0 %2159
        %2161 = vrot.lane.b32.xlu0 %v1974, 88
        %v2162 = vpop.permute.xlu0 %2161
        %v2166 = vsel %vm1164, %v2158, 0
        %2168 = vmatprep.subr.bf16.mxu0 0
        %2169 = vmatpush1.bf16.msra.mxu0 %v2160
        %2170 = vmatprep.subr.bf16.mxu0 0
        %2171 = vmatpush1.bf16.msra.mxu0 %v2162
        %2172 = vmatprep.subr.bf16.mxu0 0
        %2173 = vmatpush1.bf16.msra.mxu0 0
        %2174 = vmatprep.subr.bf16.mxu0 0
        %2175 = vmatpush1.bf16.msra.mxu0 0
        %2176 = vmatprep.subr.bf16.mxu0 0
        %2177 = vmatpush1.bf16.msra.mxu0 0
        %2178 = vmatprep.subr.bf16.mxu0 0
        %2179 = vmatpush1.bf16.msra.mxu0 0
        %2180 = vmatprep.subr.bf16.mxu0 0
        %2181 = vmatpush1.bf16.msra.mxu0 0
        %2182 = vmatprep.subr.bf16.mxu0 0
        %2183 = vmatpush1.bf16.msra.mxu0 0
        %2184 = vmatprep.subr.bf16.mxu0 0
        %2185 = vmatpush1.bf16.msra.mxu0 0
        %2186 = vmatprep.subr.bf16.mxu0 0
        %2187 = vmatpush1.bf16.msra.mxu0 0
        %2188 = vmatprep.subr.bf16.mxu0 0
        %2189 = vmatpush1.bf16.msra.mxu0 0
        %2190 = vmatprep.subr.bf16.mxu0 0
        %2191 = vmatpush1.bf16.msra.mxu0 0
        %2192 = vmatprep.subr.bf16.mxu0 0
        %2193 = vmatpush1.bf16.msra.mxu0 0
        %2194 = vmatprep.subr.bf16.mxu0 0
        %2195 = vmatpush1.bf16.msra.mxu0 0
        %2196 = vmatprep.subr.bf16.mxu0 0
        %2197 = vmatpush1.bf16.msra.mxu0 0
        %2198 = vmatprep.subr.bf16.mxu0 0
        %2199 = vmatpush1.bf16.msra.mxu0 0
        %2200 = vmatprep.mubr.bf16.mxu0 0
        %2201 = vmatmul.mubr.bf16.gmra.mrb[0].mxu0 %v2166
        %v2202 = vpop.f32.mrb[0].mxu0
        %v2203 = vadd.f32 0.0, %v2202
        %v2204 = vpop.f32.mrb[0].mxu0
        %v2205 = vpop.f32.mrb[0].mxu0
        %v2206 = vpop.f32.mrb[0].mxu0
        %2207 = vdwg.mxu0
        %2208 = vrot.lane.b32.xlu0 %v1972, 112
        %v2209 = vpop.permute.xlu0 %2208
        %2210 = vrot.lane.b32.xlu0 %v1973, 112
        %v2211 = vpop.permute.xlu0 %2210
        %2212 = vrot.lane.b32.xlu0 %v1974, 112
        %v2213 = vpop.permute.xlu0 %2212
        %v2215 = vsel %vm1264, %v2209, 0
        %v2218 = vsel %vm1264, %v2211, 0
        %v2221 = vsel %vm1264, %v2213, 0
        %2223 = vmatprep.subr.bf16.mxu0 0
        %2224 = vmatpush1.bf16.xpose.msra.mxu0 %v2218
        %2225 = vmatprep.subr.bf16.mxu0 0
        %2226 = vmatpush1.bf16.xpose.msra.mxu0 %v2221
        %2227 = vmatprep.subr.bf16.mxu0 0
        %2228 = vmatpush1.bf16.xpose.msra.mxu0 0
        %2229 = vmatprep.subr.bf16.mxu0 0
        %2230 = vmatpush1.bf16.xpose.msra.mxu0 0
        %2231 = vmatprep.subr.bf16.mxu0 0
        %2232 = vmatpush1.bf16.xpose.msra.mxu0 0
        %2233 = vmatprep.subr.bf16.mxu0 0
        %2234 = vmatpush1.bf16.xpose.msra.mxu0 0
        %2235 = vmatprep.subr.bf16.mxu0 0
        %2236 = vmatpush1.bf16.xpose.msra.mxu0 0
        %2237 = vmatprep.subr.bf16.mxu0 0
        %2238 = vmatpush1.bf16.xpose.msra.mxu0 0
        %2239 = vmatprep.subr.bf16.mxu0 0
        %2240 = vmatpush1.bf16.xpose.msra.mxu0 0
        %2241 = vmatprep.subr.bf16.mxu0 0
        %2242 = vmatpush1.bf16.xpose.msra.mxu0 0
        %2243 = vmatprep.subr.bf16.mxu0 0
        %2244 = vmatpush1.bf16.xpose.msra.mxu0 0
        %2245 = vmatprep.subr.bf16.mxu0 0
        %2246 = vmatpush1.bf16.xpose.msra.mxu0 0
        %2247 = vmatprep.subr.bf16.mxu0 0
        %2248 = vmatpush1.bf16.xpose.msra.mxu0 0
        %2249 = vmatprep.subr.bf16.mxu0 0
        %2250 = vmatpush1.bf16.xpose.msra.mxu0 0
        %2251 = vmatprep.subr.bf16.mxu0 0
        %2252 = vmatpush1.bf16.xpose.msra.mxu0 0
        %2253 = vmatprep.subr.bf16.mxu0 0
        %2254 = vmatpush1.bf16.xpose.msra.mxu0 0
        %2255 = vmatprep.mubr.bf16.mxu0 0
        %2256 = vmatmul.mubr.bf16.gmra.mrb[0].mxu0 %v2215
        %v2257 = vpop.f32.mrb[0].mxu0
        %v2258 = vadd.f32 0.0, %v2257
        %v2259 = vpop.f32.mrb[0].mxu0
        %v2260 = vpop.f32.mrb[0].mxu0
        %v2261 = vpop.f32.mrb[0].mxu0
        %2262 = vdwg.mxu0
        %v2263 = vmul.f32 %v2258, 0.35355338
        %v2264 = vadd.f32 %v2263, %v1161
        %v2265 = vsel %vm1164, %v2264, -inf
        %2266 = vmax.xlane.f32.xlu0 %v2265
        %v2267 = vpop.xlane.xlu0 %2266
        %v2268 = vsub.f32 %v2264, %v2267
        %v2269 = vmul.f32 %v2268, 1.442695
        %v2270 = vpow.pop %v2269
        %v2271 = vsel %vm1164, %v2270, 0.0
        %2272 = vadd.xlane.f32.xlu0 %v2271
        %v2273 = vpop.xlane.xlu0 %2272
        %v2274 = vrcp.pop %v2273
        %v2275 = vmul.f32 %v2270, %v2274
        %v2276 = vpack.c.bf16 %v2275, %v2275
        %2277 = vrot.lane.b32.xlu0 %v1973, 80
        %v2278 = vpop.permute.xlu0 %2277
        %2279 = vrot.lane.b32.xlu0 %v1974, 80
        %v2280 = vpop.permute.xlu0 %2279
        %v2284 = vsel %vm1164, %v2276, 0
        %2286 = vmatprep.subr.bf16.mxu0 0
        %2287 = vmatpush1.bf16.msra.mxu0 %v2278
        %2288 = vmatprep.subr.bf16.mxu0 0
        %2289 = vmatpush1.bf16.msra.mxu0 %v2280
        %2290 = vmatprep.subr.bf16.mxu0 0
        %2291 = vmatpush1.bf16.msra.mxu0 0
        %2292 = vmatprep.subr.bf16.mxu0 0
        %2293 = vmatpush1.bf16.msra.mxu0 0
        %2294 = vmatprep.subr.bf16.mxu0 0
        %2295 = vmatpush1.bf16.msra.mxu0 0
        %2296 = vmatprep.subr.bf16.mxu0 0
        %2297 = vmatpush1.bf16.msra.mxu0 0
        %2298 = vmatprep.subr.bf16.mxu0 0
        %2299 = vmatpush1.bf16.msra.mxu0 0
        %2300 = vmatprep.subr.bf16.mxu0 0
        %2301 = vmatpush1.bf16.msra.mxu0 0
        %2302 = vmatprep.subr.bf16.mxu0 0
        %2303 = vmatpush1.bf16.msra.mxu0 0
        %2304 = vmatprep.subr.bf16.mxu0 0
        %2305 = vmatpush1.bf16.msra.mxu0 0
        %2306 = vmatprep.subr.bf16.mxu0 0
        %2307 = vmatpush1.bf16.msra.mxu0 0
        %2308 = vmatprep.subr.bf16.mxu0 0
        %2309 = vmatpush1.bf16.msra.mxu0 0
        %2310 = vmatprep.subr.bf16.mxu0 0
        %2311 = vmatpush1.bf16.msra.mxu0 0
        %2312 = vmatprep.subr.bf16.mxu0 0
        %2313 = vmatpush1.bf16.msra.mxu0 0
        %2314 = vmatprep.subr.bf16.mxu0 0
        %2315 = vmatpush1.bf16.msra.mxu0 0
        %2316 = vmatprep.subr.bf16.mxu0 0
        %2317 = vmatpush1.bf16.msra.mxu0 0
        %2318 = vmatprep.mubr.bf16.mxu0 0
        %2319 = vmatmul.mubr.bf16.gmra.mrb[0].mxu0 %v2284
        %v2320 = vpop.f32.mrb[0].mxu0
        %v2321 = vadd.f32 0.0, %v2320
        %v2322 = vpop.f32.mrb[0].mxu0
        %v2323 = vpop.f32.mrb[0].mxu0
        %v2324 = vpop.f32.mrb[0].mxu0
        %2325 = vdwg.mxu0
        %2326 = vrot.lane.b32.xlu0 %v1972, 104
        %v2327 = vpop.permute.xlu0 %2326
        %2328 = vrot.lane.b32.xlu0 %v1973, 104
        %v2329 = vpop.permute.xlu0 %2328
        %2330 = vrot.lane.b32.xlu0 %v1974, 104
        %v2331 = vpop.permute.xlu0 %2330
        %v2333 = vsel %vm1264, %v2327, 0
        %v2336 = vsel %vm1264, %v2329, 0
        %v2339 = vsel %vm1264, %v2331, 0
        %2341 = vmatprep.subr.bf16.mxu0 0
        %2342 = vmatpush1.bf16.xpose.msra.mxu0 %v2336
        %2343 = vmatprep.subr.bf16.mxu0 0
        %2344 = vmatpush1.bf16.xpose.msra.mxu0 %v2339
        %2345 = vmatprep.subr.bf16.mxu0 0
        %2346 = vmatpush1.bf16.xpose.msra.mxu0 0
        %2347 = vmatprep.subr.bf16.mxu0 0
        %2348 = vmatpush1.bf16.xpose.msra.mxu0 0
        %2349 = vmatprep.subr.bf16.mxu0 0
        %2350 = vmatpush1.bf16.xpose.msra.mxu0 0
        %2351 = vmatprep.subr.bf16.mxu0 0
        %2352 = vmatpush1.bf16.xpose.msra.mxu0 0
        %2353 = vmatprep.subr.bf16.mxu0 0
        %2354 = vmatpush1.bf16.xpose.msra.mxu0 0
        %2355 = vmatprep.subr.bf16.mxu0 0
        %2356 = vmatpush1.bf16.xpose.msra.mxu0 0
        %2357 = vmatprep.subr.bf16.mxu0 0
        %2358 = vmatpush1.bf16.xpose.msra.mxu0 0
        %2359 = vmatprep.subr.bf16.mxu0 0
        %2360 = vmatpush1.bf16.xpose.msra.mxu0 0
        %2361 = vmatprep.subr.bf16.mxu0 0
        %2362 = vmatpush1.bf16.xpose.msra.mxu0 0
        %2363 = vmatprep.subr.bf16.mxu0 0
        %2364 = vmatpush1.bf16.xpose.msra.mxu0 0
        %2365 = vmatprep.subr.bf16.mxu0 0
        %2366 = vmatpush1.bf16.xpose.msra.mxu0 0
        %2367 = vmatprep.subr.bf16.mxu0 0
        %2368 = vmatpush1.bf16.xpose.msra.mxu0 0
        %2369 = vmatprep.subr.bf16.mxu0 0
        %2370 = vmatpush1.bf16.xpose.msra.mxu0 0
        %2371 = vmatprep.subr.bf16.mxu0 0
        %2372 = vmatpush1.bf16.xpose.msra.mxu0 0
        %2373 = vmatprep.mubr.bf16.mxu0 0
        %2374 = vmatmul.mubr.bf16.gmra.mrb[0].mxu0 %v2333
        %v2375 = vpop.f32.mrb[0].mxu0
        %v2376 = vadd.f32 0.0, %v2375
        %v2377 = vpop.f32.mrb[0].mxu0
        %v2378 = vpop.f32.mrb[0].mxu0
        %v2379 = vpop.f32.mrb[0].mxu0
        %2380 = vdwg.mxu0
        %v2381 = vmul.f32 %v2376, 0.35355338
        %v2382 = vadd.f32 %v2381, %v1161
        %v2383 = vsel %vm1164, %v2382, -inf
        %2384 = vmax.xlane.f32.xlu0 %v2383
        %v2385 = vpop.xlane.xlu0 %2384
        %v2386 = vsub.f32 %v2382, %v2385
        %v2387 = vmul.f32 %v2386, 1.442695
        %v2388 = vpow.pop %v2387
        %v2389 = vsel %vm1164, %v2388, 0.0
        %2390 = vadd.xlane.f32.xlu0 %v2389
        %v2391 = vpop.xlane.xlu0 %2390
        %v2392 = vrcp.pop %v2391
        %v2393 = vmul.f32 %v2388, %v2392
        %v2394 = vpack.c.bf16 %v2393, %v2393
        %2395 = vrot.lane.b32.xlu0 %v1973, 72
        %v2396 = vpop.permute.xlu0 %2395
        %2397 = vrot.lane.b32.xlu0 %v1974, 72
        %v2398 = vpop.permute.xlu0 %2397
        %v2402 = vsel %vm1164, %v2394, 0
        %2404 = vmatprep.subr.bf16.mxu0 0
        %2405 = vmatpush1.bf16.msra.mxu0 %v2396
        %2406 = vmatprep.subr.bf16.mxu0 0
        %2407 = vmatpush1.bf16.msra.mxu0 %v2398
        %2408 = vmatprep.subr.bf16.mxu0 0
        %2409 = vmatpush1.bf16.msra.mxu0 0
        %2410 = vmatprep.subr.bf16.mxu0 0
        %2411 = vmatpush1.bf16.msra.mxu0 0
        %2412 = vmatprep.subr.bf16.mxu0 0
        %2413 = vmatpush1.bf16.msra.mxu0 0
        %2414 = vmatprep.subr.bf16.mxu0 0
        %2415 = vmatpush1.bf16.msra.mxu0 0
        %2416 = vmatprep.subr.bf16.mxu0 0
        %2417 = vmatpush1.bf16.msra.mxu0 0
        %2418 = vmatprep.subr.bf16.mxu0 0
        %2419 = vmatpush1.bf16.msra.mxu0 0
        %2420 = vmatprep.subr.bf16.mxu0 0
        %2421 = vmatpush1.bf16.msra.mxu0 0
        %2422 = vmatprep.subr.bf16.mxu0 0
        %2423 = vmatpush1.bf16.msra.mxu0 0
        %2424 = vmatprep.subr.bf16.mxu0 0
        %2425 = vmatpush1.bf16.msra.mxu0 0
        %2426 = vmatprep.subr.bf16.mxu0 0
        %2427 = vmatpush1.bf16.msra.mxu0 0
        %2428 = vmatprep.subr.bf16.mxu0 0
        %2429 = vmatpush1.bf16.msra.mxu0 0
        %2430 = vmatprep.subr.bf16.mxu0 0
        %2431 = vmatpush1.bf16.msra.mxu0 0
        %2432 = vmatprep.subr.bf16.mxu0 0
        %2433 = vmatpush1.bf16.msra.mxu0 0
        %2434 = vmatprep.subr.bf16.mxu0 0
        %2435 = vmatpush1.bf16.msra.mxu0 0
        %2436 = vmatprep.mubr.bf16.mxu0 0
        %2437 = vmatmul.mubr.bf16.gmra.mrb[0].mxu0 %v2402
        %v2438 = vpop.f32.mrb[0].mxu0
        %v2439 = vadd.f32 0.0, %v2438
        %v2440 = vpop.f32.mrb[0].mxu0
        %v2441 = vpop.f32.mrb[0].mxu0
        %v2442 = vpop.f32.mrb[0].mxu0
        %2443 = vdwg.mxu0
        %2445 = vrot.lane.b32.xlu0 %v2203, 8
        %v2446 = vpop.permute.xlu0 %2445
        %2449 = vrot.lane.b32.xlu0 %v2321, 16
        %v2450 = vpop.permute.xlu0 %2449
        %2453 = vrot.lane.b32.xlu0 %v2439, 24
        %v2454 = vpop.permute.xlu0 %2453
        %v2456 = vsel %vm1264, %v2084, %v2446
        %v2457 = vsel %vm1723, %v2456, %v2450
        %v2458 = vsel %vm1725, %v2457, %v2454
        %v2459 = vpack.c.bf16 %v2458, %v2458
        %v2460 = vld [vmem:[%s1115] sm:$0xf]
        %v2461 = vld [vmem:[%s1115 + $0x4] sm:$0xf]
        %v2462 = vld [vmem:[%s1115 + $0x8] sm:$0xf]
        %v2463 = vld [vmem:[%s1115 + $0xc] sm:$0xf]
        %v2468 = vunpack.c.l.b16 %v2460
        %v2469 = vunpack.c.l.b16 %v2461
        %v2470 = vunpack.c.l.b16 %v2462
        %v2471 = vunpack.c.l.b16 %v2463
        %v2472 = vpack.c.b16 %v2469, %v2468
        %v2473 = vpack.c.b16 %v2471, %v2470
        %v2477 = vsel %vm1164, %v2459, 0
        %2479 = vmatprep.subr.bf16.mxu0 0
        %2480 = vmatpush1.bf16.msra.mxu0 %v2472
        %2481 = vmatprep.subr.bf16.mxu0 0
        %2482 = vmatpush1.bf16.msra.mxu0 %v2473
        %2483 = vmatprep.subr.bf16.mxu0 0
        %2484 = vmatpush1.bf16.msra.mxu0 0
        %2485 = vmatprep.subr.bf16.mxu0 0
        %2486 = vmatpush1.bf16.msra.mxu0 0
        %2487 = vmatprep.subr.bf16.mxu0 0
        %2488 = vmatpush1.bf16.msra.mxu0 0
        %2489 = vmatprep.subr.bf16.mxu0 0
        %2490 = vmatpush1.bf16.msra.mxu0 0
        %2491 = vmatprep.subr.bf16.mxu0 0
        %2492 = vmatpush1.bf16.msra.mxu0 0
        %2493 = vmatprep.subr.bf16.mxu0 0
        %2494 = vmatpush1.bf16.msra.mxu0 0
        %2495 = vmatprep.subr.bf16.mxu0 0
        %2496 = vmatpush1.bf16.msra.mxu0 0
        %2497 = vmatprep.subr.bf16.mxu0 0
        %2498 = vmatpush1.bf16.msra.mxu0 0
        %2499 = vmatprep.subr.bf16.mxu0 0
        %2500 = vmatpush1.bf16.msra.mxu0 0
        %2501 = vmatprep.subr.bf16.mxu0 0
        %2502 = vmatpush1.bf16.msra.mxu0 0
        %2503 = vmatprep.subr.bf16.mxu0 0
        %2504 = vmatpush1.bf16.msra.mxu0 0
        %2505 = vmatprep.subr.bf16.mxu0 0
        %2506 = vmatpush1.bf16.msra.mxu0 0
        %2507 = vmatprep.subr.bf16.mxu0 0
        %2508 = vmatpush1.bf16.msra.mxu0 0
        %2509 = vmatprep.subr.bf16.mxu0 0
        %2510 = vmatpush1.bf16.msra.mxu0 0
        %2511 = vmatprep.mubr.bf16.mxu0 0
        %2512 = vmatmul.mubr.bf16.gmra.mrb[0].mxu0 %v2477
        %v2513 = vpop.f32.mrb[0].mxu0
        %v2514 = vadd.f32 0.0, %v2513
        %v2515 = vpop.f32.mrb[0].mxu0
        %v2516 = vpop.f32.mrb[0].mxu0
        %v2517 = vpop.f32.mrb[0].mxu0
        %2518 = vdwg.mxu0
        %v2519 = vadd.f32 %v1795, %v2514
        %v2520 = vld [vmem:[%s1118] sm:$0x1]
        %v2522 = vlaneseq
        %v2523 = vshrl.u32 %v2522, 7
        %v2524 = vsub.s32 0, %v2523
        %v2525 = vrot.slane %v2520, %v2524
        %v2527 = vadd.f32 %v2519, %v2525
        %v2528 = vld [vmem:[%s1121] sm:$0x1]
        %v2529 = vld [vmem:[%s1124] sm:$0x1]
        %v2530 = vsel %vm1164, %v2527, 0.0
        %2531 = vadd.xlane.f32.xlu0 %v2530
        %v2532 = vpop.xlane.xlu0 %2531
        %v2533 = vmul.f32 %v2532, %v1168
        %v2534 = vsub.f32 %v2527, %v2533
        %v2535 = vmul.f32 %v2534, %v2534
        %v2536 = vsel %vm1164, %v2535, 0.0
        %2537 = vadd.xlane.f32.xlu0 %v2536
        %v2538 = vpop.xlane.xlu0 %2537
        %v2539 = vmul.f32 %v2538, %v1168
        %v2540 = vadd.f32 %v2539, 1e-05
        %v2541 = vrsqrt.pop %v2540
        %v2542 = vmul.f32 %v2534, %v2541
        %v2544 = vlaneseq
        %v2545 = vshrl.u32 %v2544, 7
        %v2546 = vsub.s32 0, %v2545
        %v2547 = vrot.slane %v2528, %v2546
        %v2549 = vmul.f32 %v2542, %v2547
        %v2551 = vlaneseq
        %v2552 = vshrl.u32 %v2551, 7
        %v2553 = vsub.s32 0, %v2552
        %v2554 = vrot.slane %v2529, %v2553
        %v2556 = vadd.f32 %v2549, %v2554
        %v2557 = vpack.c.bf16 %v2556, %v2556
        %v2558 = vld [vmem:[%s1129] sm:$0xf]
        %v2559 = vld [vmem:[%s1129 + $0x4] sm:$0xf]
        %v2560 = vld [vmem:[%s1129 + $0x8] sm:$0xf]
        %v2561 = vld [vmem:[%s1129 + $0xc] sm:$0xf]
        %v2562 = vld [vmem:[%s1132] sm:$0x1]
        %v2564 = vlaneseq
        %v2565 = vshrl.u32 %v2564, 7
        %v2566 = vsub.s32 0, %v2565
        %v2567 = vrot.slane %v2562, %v2566
        %v2573 = vunpack.c.l.b16 %v2558
        %v2574 = vunpack.c.l.b16 %v2559
        %v2575 = vunpack.c.l.b16 %v2560
        %v2576 = vunpack.c.l.b16 %v2561
        %v2577 = vpack.c.b16 %v2574, %v2573
        %v2578 = vpack.c.b16 %v2576, %v2575
        %v2582 = vsel %vm1164, %v2557, 0
        %2584 = vmatprep.subr.bf16.mxu0 0
        %2585 = vmatpush1.bf16.msra.mxu0 %v2577
        %2586 = vmatprep.subr.bf16.mxu0 0
        %2587 = vmatpush1.bf16.msra.mxu0 %v2578
        %2588 = vmatprep.subr.bf16.mxu0 0
        %2589 = vmatpush1.bf16.msra.mxu0 0
        %2590 = vmatprep.subr.bf16.mxu0 0
        %2591 = vmatpush1.bf16.msra.mxu0 0
        %2592 = vmatprep.subr.bf16.mxu0 0
        %2593 = vmatpush1.bf16.msra.mxu0 0
        %2594 = vmatprep.subr.bf16.mxu0 0
        %2595 = vmatpush1.bf16.msra.mxu0 0
        %2596 = vmatprep.subr.bf16.mxu0 0
        %2597 = vmatpush1.bf16.msra.mxu0 0
        %2598 = vmatprep.subr.bf16.mxu0 0
        %2599 = vmatpush1.bf16.msra.mxu0 0
        %2600 = vmatprep.subr.bf16.mxu0 0
        %2601 = vmatpush1.bf16.msra.mxu0 0
        %2602 = vmatprep.subr.bf16.mxu0 0
        %2603 = vmatpush1.bf16.msra.mxu0 0
        %2604 = vmatprep.subr.bf16.mxu0 0
        %2605 = vmatpush1.bf16.msra.mxu0 0
        %2606 = vmatprep.subr.bf16.mxu0 0
        %2607 = vmatpush1.bf16.msra.mxu0 0
        %2608 = vmatprep.subr.bf16.mxu0 0
        %2609 = vmatpush1.bf16.msra.mxu0 0
        %2610 = vmatprep.subr.bf16.mxu0 0
        %2611 = vmatpush1.bf16.msra.mxu0 0
        %2612 = vmatprep.subr.bf16.mxu0 0
        %2613 = vmatpush1.bf16.msra.mxu0 0
        %2614 = vmatprep.subr.bf16.mxu0 0
        %2615 = vmatpush1.bf16.msra.mxu0 0
        %2616 = vmatprep.mubr.bf16.mxu0 0
        %2617 = vmatmul.mubr.bf16.gmra.mrb[0].mxu0 %v2582
        %v2618 = vpop.f32.mrb[0].mxu0
        %v2619 = vadd.f32 %v2567, %v2618
        %v2620 = vpop.f32.mrb[0].mxu0
        %v2621 = vpop.f32.mrb[0].mxu0
        %v2622 = vpop.f32.mrb[0].mxu0
        %2623 = vdwg.mxu0
        %v2624 = vmax.f32 %v2619, 0.0
        %v2625 = vpack.c.bf16 %v2624, %v2624
        %v2626 = vld [vmem:[%s1137] sm:$0xf]
        %v2627 = vld [vmem:[%s1137 + $0x4] sm:$0xf]
        %v2628 = vld [vmem:[%s1137 + $0x8] sm:$0xf]
        %v2629 = vld [vmem:[%s1137 + $0xc] sm:$0xf]
        %v2630 = vld [vmem:[%s1137 + $0x10] sm:$0xf]
        %v2631 = vld [vmem:[%s1137 + $0x14] sm:$0xf]
        %v2632 = vld [vmem:[%s1137 + $0x18] sm:$0xf]
        %v2633 = vld [vmem:[%s1137 + $0x1c] sm:$0xf]
        %v2642 = vunpack.c.l.b16 %v2626
        %v2643 = vunpack.c.l.b16 %v2627
        %v2644 = vunpack.c.l.b16 %v2628
        %v2645 = vunpack.c.l.b16 %v2629
        %v2646 = vunpack.c.l.b16 %v2630
        %v2647 = vunpack.c.l.b16 %v2631
        %v2648 = vunpack.c.l.b16 %v2632
        %v2649 = vunpack.c.l.b16 %v2633
        %v2650 = vpack.c.b16 %v2643, %v2642
        %v2651 = vpack.c.b16 %v2645, %v2644
        %v2652 = vpack.c.b16 %v2647, %v2646
        %v2653 = vpack.c.b16 %v2649, %v2648
        %vm2658 = vcmask 523264
        %v2660 = vsel %vm2658, %v2625, 0
        %2662 = vmatprep.subr.bf16.mxu0 0
        %2663 = vmatpush1.bf16.msra.mxu0 %v2650
        %2664 = vmatprep.subr.bf16.mxu0 0
        %2665 = vmatpush1.bf16.msra.mxu0 %v2651
        %2666 = vmatprep.subr.bf16.mxu0 0
        %2667 = vmatpush1.bf16.msra.mxu0 %v2652
        %2668 = vmatprep.subr.bf16.mxu0 0
        %2669 = vmatpush1.bf16.msra.mxu0 %v2653
        %2670 = vmatprep.subr.bf16.mxu0 0
        %2671 = vmatpush1.bf16.msra.mxu0 0
        %2672 = vmatprep.subr.bf16.mxu0 0
        %2673 = vmatpush1.bf16.msra.mxu0 0
        %2674 = vmatprep.subr.bf16.mxu0 0
        %2675 = vmatpush1.bf16.msra.mxu0 0
        %2676 = vmatprep.subr.bf16.mxu0 0
        %2677 = vmatpush1.bf16.msra.mxu0 0
        %2678 = vmatprep.subr.bf16.mxu0 0
        %2679 = vmatpush1.bf16.msra.mxu0 0
        %2680 = vmatprep.subr.bf16.mxu0 0
        %2681 = vmatpush1.bf16.msra.mxu0 0
        %2682 = vmatprep.subr.bf16.mxu0 0
        %2683 = vmatpush1.bf16.msra.mxu0 0
        %2684 = vmatprep.subr.bf16.mxu0 0
        %2685 = vmatpush1.bf16.msra.mxu0 0
        %2686 = vmatprep.subr.bf16.mxu0 0
        %2687 = vmatpush1.bf16.msra.mxu0 0
        %2688 = vmatprep.subr.bf16.mxu0 0
        %2689 = vmatpush1.bf16.msra.mxu0 0
        %2690 = vmatprep.subr.bf16.mxu0 0
        %2691 = vmatpush1.bf16.msra.mxu0 0
        %2692 = vmatprep.subr.bf16.mxu0 0
        %2693 = vmatpush1.bf16.msra.mxu0 0
        %2694 = vmatprep.mubr.bf16.mxu0 0
        %2695 = vmatmul.mubr.bf16.gmra.mrb[0].mxu0 %v2660
        %v2696 = vpop.f32.mrb[0].mxu0
        %v2697 = vadd.f32 0.0, %v2696
        %v2698 = vpop.f32.mrb[0].mxu0
        %v2699 = vpop.f32.mrb[0].mxu0
        %v2700 = vpop.f32.mrb[0].mxu0
        %2701 = vdwg.mxu0
        %v2702 = vadd.f32 %v2527, %v2697
        %v2703 = vld [vmem:[%s1140] sm:$0x1]
        %v2705 = vlaneseq
        %v2706 = vshrl.u32 %v2705, 7
        %v2707 = vsub.s32 0, %v2706
        %v2708 = vrot.slane %v2703, %v2707
        %v2710 = vadd.f32 %v2702, %v2708
        %2711 = vst.msk [vmem:[#allocation2] sm:$0xff] %vm1164, %v2710
        %p2712 = scmp.eq.s32.totalorder %s45, 1
        // Predicated region
        $region129: #{transformer_forward.3} parent=123 // pred_check
          %p2713 = pneg %p2712
        $region130: #{transformer_forward.3} parent=123 // pred_check_branch
          %2715 = sbr.rel (%p2713) target = $region132
        $region131: #{transformer_forward.3} parent=123 // pred_region
          %v2716 = vld [vmem:[%s22] sm:$0x1]
          %v2717 = vld [vmem:[%s23] sm:$0x1]
          %v2718 = vsel %vm1164, %v2710, 0.0
          %2719 = vadd.xlane.f32.xlu0 %v2718
          %v2720 = vpop.xlane.xlu0 %2719
          %v2721 = vmul.f32 %v2720, %v1168
          %v2722 = vsub.f32 %v2710, %v2721
          %v2723 = vmul.f32 %v2722, %v2722
          %v2724 = vsel %vm1164, %v2723, 0.0
          %2725 = vadd.xlane.f32.xlu0 %v2724
          %v2726 = vpop.xlane.xlu0 %2725
          %v2727 = vmul.f32 %v2726, %v1168
          %v2728 = vadd.f32 %v2727, 1e-05
          %v2729 = vrsqrt.pop %v2728
          %v2730 = vmul.f32 %v2722, %v2729
          %v2732 = vlaneseq
          %v2733 = vshrl.u32 %v2732, 7
          %v2734 = vsub.s32 0, %v2733
          %v2735 = vrot.slane %v2716, %v2734
          %v2737 = vmul.f32 %v2730, %v2735
          %v2739 = vlaneseq
          %v2740 = vshrl.u32 %v2739, 7
          %v2741 = vsub.s32 0, %v2740
          %v2742 = vrot.slane %v2717, %v2741
          %v2744 = vadd.f32 %v2737, %v2742
          %v2745 = vpack.c.bf16 %v2744, %v2744
          %v2746 = vld [vmem:[%s24] sm:$0xf]
          %v2747 = vld [vmem:[%s24 + $0x4] sm:$0xf]
          %v2748 = vld [vmem:[%s24 + $0x8] sm:$0xf]
          %v2749 = vld [vmem:[%s24 + $0xc] sm:$0xf]
          %v2750 = vld [vmem:[%s25] sm:$0x1]
          %v2752 = vlaneseq
          %v2753 = vshrl.u32 %v2752, 7
          %v2754 = vsub.s32 0, %v2753
          %v2755 = vrot.slane %v2750, %v2754
          %v2761 = vunpack.c.l.b16 %v2746
          %v2762 = vunpack.c.l.b16 %v2747
          %v2763 = vunpack.c.l.b16 %v2748
          %v2764 = vunpack.c.l.b16 %v2749
          %v2765 = vpack.c.b16 %v2762, %v2761
          %v2766 = vpack.c.b16 %v2764, %v2763
          %v2770 = vsel %vm1164, %v2745, 0
          %2772 = vmatprep.subr.bf16.mxu0 0
          %2773 = vmatpush1.bf16.msra.mxu0 %v2765
          %2774 = vmatprep.subr.bf16.mxu0 0
          %2775 = vmatpush1.bf16.msra.mxu0 %v2766
          %2776 = vmatprep.subr.bf16.mxu0 0
          %2777 = vmatpush1.bf16.msra.mxu0 0
          %2778 = vmatprep.subr.bf16.mxu0 0
          %2779 = vmatpush1.bf16.msra.mxu0 0
          %2780 = vmatprep.subr.bf16.mxu0 0
          %2781 = vmatpush1.bf16.msra.mxu0 0
          %2782 = vmatprep.subr.bf16.mxu0 0
          %2783 = vmatpush1.bf16.msra.mxu0 0
          %2784 = vmatprep.subr.bf16.mxu0 0
          %2785 = vmatpush1.bf16.msra.mxu0 0
          %2786 = vmatprep.subr.bf16.mxu0 0
          %2787 = vmatpush1.bf16.msra.mxu0 0
          %2788 = vmatprep.subr.bf16.mxu0 0
          %2789 = vmatpush1.bf16.msra.mxu0 0
          %2790 = vmatprep.subr.bf16.mxu0 0
          %2791 = vmatpush1.bf16.msra.mxu0 0
          %2792 = vmatprep.subr.bf16.mxu0 0
          %2793 = vmatpush1.bf16.msra.mxu0 0
          %2794 = vmatprep.subr.bf16.mxu0 0
          %2795 = vmatpush1.bf16.msra.mxu0 0
          %2796 = vmatprep.subr.bf16.mxu0 0
          %2797 = vmatpush1.bf16.msra.mxu0 0
          %2798 = vmatprep.subr.bf16.mxu0 0
          %2799 = vmatpush1.bf16.msra.mxu0 0
          %2800 = vmatprep.subr.bf16.mxu0 0
          %2801 = vmatpush1.bf16.msra.mxu0 0
          %2802 = vmatprep.subr.bf16.mxu0 0
          %2803 = vmatpush1.bf16.msra.mxu0 0
          %2804 = vmatprep.mubr.bf16.mxu0 0
          %2805 = vmatmul.mubr.bf16.gmra.mrb[0].mxu0 %v2770
          %v2806 = vpop.f32.mrb[0].mxu0
          %v2807 = vadd.f32 %v2755, %v2806
          %v2808 = vpop.f32.mrb[0].mxu0
          %v2809 = vpop.f32.mrb[0].mxu0
          %v2810 = vpop.f32.mrb[0].mxu0
          %2811 = vdwg.mxu0
          %2812 = vst [vmem:[%s1057] sm:$0xff] %v2807
        $region132: #{transformer_forward.3} parent=123 // pred_fallthru
          _
        %s2813 = sand.u32 %s716, 1
        %s2814 = scalar_lea.sflag [#allocation4], %s2813
        %s2815 = sand.u32 %s716, 1
        %s2816 = smul.addr %s2815, 8
        %s2817 = scalar_lea.vmem [#allocation3], %s2816
        // Predicated region
        $region133: #{transformer_forward.3} parent=123 // pred_check
          %p2818 = pneg %p726
        $region134: #{transformer_forward.3} parent=123 // pred_check_branch
          %2820 = sbr.rel (%p2818) target = $region136
        $region135: #{transformer_forward.3} parent=123 // pred_region
          %s2822 = ssub.s32 128, 128
          %2823 = vsyncadd %s2814, %s2822
          %s2824 = smul.addr %s44, 128
          %s2825 = scalar_lea.hbm %s26, %s2824
          %s2827 = sshll.u32 %s2817, 4
          %s2828 = int_to_ptr.vmem [resolvable:$true] %s2827
          %2830 = dma.vmem_to_hbm [thread:$0]  %s2828, 128, %s2825, %s2814
        $region136: #{transformer_forward.3} parent=123 // pred_fallthru
          _
      $region124: #{transformer_forward.3} parent=5 // pred_fallthru
        _
      %p2831 = scmp.le.s32.totalorder 2, %s35
      // Predicated region
      $region137: #{transformer_forward.3} parent=5 // pred_check
        %p2832 = pneg %p2831
      $region138: #{transformer_forward.3} parent=5 // pred_check_branch
        %2834 = sbr.rel (%p2832) target = $region140
      $region139: #{transformer_forward.3} parent=5 // pred_region
        %s2835 = ssub.s32 %s35, 2
        // Predicated region
        $region141: #{transformer_forward.3} parent=139 // pred_check
          %p2836 = pneg %p732
        $region142: #{transformer_forward.3} parent=139 // pred_check_branch
          %2838 = sbr.rel (%p2836) target = $region144
        $region143: #{transformer_forward.3} parent=139 // pred_region
          %s2839 = sand.u32 %s717, 1
          %s2840 = scalar_lea.sflag [#allocation4], %s2839
          %s2841 = sand.u32 %s717, 1
          %s2842 = smul.addr %s2841, 8
          %s2843 = scalar_lea.vmem [#allocation3], %s2842
          %2844 = dma.done %s2840, 128
        $region144: #{transformer_forward.3} parent=139 // pred_fallthru
          _
      $region140: #{transformer_forward.3} parent=5 // pred_fallthru
        _
    $region6: #{transformer_forward.3} parent=1 // loop_footer
      %s39 = sadd.s32 1, %s35
    $region7: #{transformer_forward.3} parent=1 // loop_footer_branch
      %34 = sbr.rel target = $region3
    $region8: #{transformer_forward.3} parent=1 // loop_exit
      _
    %2845 = vsyncpa [#allocation4], 1
    %s2846 = scalar_lea.sflag [#allocation4], 1
    %2847 = vsyncpa %s2846, 1

</llo_original>
